<compile_context>
chip_gen: v7x
topology: tpu7x:2x2x1
jax: 0.10.0
libtpu: 0.0.40
codegen_flags: <defaults>
</compile_context>

<pallas_src>
import functools

import jax
import jax.numpy as jnp
import numpy as np
from jax.experimental import pallas as pl
from jax.experimental.pallas import tpu as pltpu

INPUT_DIM = 2048  # matches `input_dim = 2048` in the module (resnet50 features)

_MM_VMEM_BUDGET = 14 << 20     # per-kernel working-set budget (double-buffered)
_LSTM_VMEM_BUDGET = 8 << 20    # budget for gx/hs chunk double-buffers in Kernel C
_LSTM_MAX_UNROLL = 32          # cap on fully-unrolled timesteps per chunk


def _round_up(x, m):
    return (x + m - 1) // m * m


# ---------------------------------------------------------------------------
# Kernel A: feature extraction stand-in (GAP over spatial + linear to 2048).
# Row dim padded to a multiple of 128; bm >= 128 (never 8-row / full-M tiles).
# ---------------------------------------------------------------------------
def _feat_kernel(x_ref, w_ref, b_ref, o_ref):
    # x_ref: (bm, C, HW) f32 ; w_ref: (C, D) bf16 ; b_ref: (1, D) f32 ; o: (bm, D)
    pooled = jnp.mean(x_ref[...], axis=-1)                      # (bm, C) f32
    o_ref[...] = (
        jnp.dot(pooled.astype(jnp.bfloat16), w_ref[...],
                preferred_element_type=jnp.float32)
        + b_ref[...]
    )


def feature_extraction(frames, w_proj_bf16, b_proj):
    F_, N, C, Hs, Ws = frames.shape
    M, HW = F_ * N, Hs * Ws
    x = frames.reshape(M, C, HW).astype(jnp.float32)

    Mp = _round_up(M, 128)
    bm = 128
    for cand in (512, 256):
        tile_bytes = 2 * (cand * C * HW * 4) + 2 * (cand * INPUT_DIM * 4)
        if Mp % cand == 0 and tile_bytes <= _MM_VMEM_BUDGET:
            bm = cand
            break
    if Mp != M:
        x = jnp.pad(x, ((0, Mp - M), (0, 0), (0, 0)))
    grid_m = Mp // bm

    out = pl.pallas_call(
        _feat_kernel,
        out_shape=jax.ShapeDtypeStruct((Mp, INPUT_DIM), jnp.float32),
        grid=(grid_m,),
        in_specs=[
            pl.BlockSpec((bm, C, HW), lambda i: (i, 0, 0)),
            pl.BlockSpec((C, INPUT_DIM), lambda i: (0, 0)),
            pl.BlockSpec((1, INPUT_DIM), lambda i: (0, 0)),
        ],
        out_specs=pl.BlockSpec((bm, INPUT_DIM), lambda i: (i, 0)),
        compiler_params=pltpu.CompilerParams(
            dimension_semantics=("parallel",)),
    )(x, w_proj_bf16, b_proj)
    if Mp != M:
        out = out[:M]
    return out.reshape(F_, N, INPUT_DIM)


# ---------------------------------------------------------------------------
# Kernels B & D: generic row-tiled (M, K) @ (K, Nc) + bias, bf16 MXU inputs,
# f32 accumulation, "parallel" grid over row tiles.  bm auto-shrinks to stay
# within the default scoped VMEM limit on every TPU generation.
# ---------------------------------------------------------------------------
def _matmul_bias_kernel(x_ref, w_ref, b_ref, o_ref):
    o_ref[...] = (
        jnp.dot(x_ref[...].astype(jnp.bfloat16), w_ref[...],
                preferred_element_type=jnp.float32)
        + b_ref[...]
    )


def _mm_tile_bytes(bm, K, Nc, x_itemsize):
    return (2 * bm * K * x_itemsize      # double-buffered x tile
            + 2 * K * Nc * 2             # double-buffered bf16 weights
            + 2 * bm * Nc * 4            # double-buffered f32 output tile
            + 2 * Nc * 4)                # bias


def matmul_bias(x, w_bf16, b_f32, *, block_m=512):
    M, K = x.shape
    Kw, Nc = w_bf16.shape
    assert K == Kw
    x_itemsize = jnp.dtype(x.dtype).itemsize

    bm = min(block_m, _round_up(M, 8))
    while bm > 8 and _mm_tile_bytes(bm, K, Nc, x_itemsize) > _MM_VMEM_BUDGET:
        bm = max(8, _round_up(bm // 2, 8))

    grid_m = pl.cdiv(M, bm)
    Mp = grid_m * bm
    xp = x if Mp == M else jnp.pad(x, ((0, Mp - M), (0, 0)))
    out = pl.pallas_call(
        _matmul_bias_kernel,
        out_shape=jax.ShapeDtypeStruct((Mp, Nc), jnp.float32),
        grid=(grid_m,),
        in_specs=[
            pl.BlockSpec((bm, K), lambda i: (i, 0)),
            pl.BlockSpec((K, Nc), lambda i: (0, 0)),
            pl.BlockSpec((1, Nc), lambda i: (0, 0)),
        ],
        out_specs=pl.BlockSpec((bm, Nc), lambda i: (i, 0)),
        compiler_params=pltpu.CompilerParams(
            dimension_semantics=("parallel",)),   # sharded across TCs on v7x
    )(xp, w_bf16, b_f32)
    return out if Mp == M else out[:M]


# ---------------------------------------------------------------------------
# Kernel C: serial LSTM recurrence only, streamed over time chunks.
#   gx_ref : (chunk_t, Npad, 4H) f32  -- precomputed x @ W_ih^T + (b_ih + b_hh)
#   whh_ref: (H, 4H)            bf16  -- pre-concatenated W_hh^T (gate order i,f,g,o)
#   hs_ref : (chunk_t, Npad, H) bf16  -- hidden state per step (output)
# h/c live in f32 VMEM scratch and persist across the (sequential) chunk grid.
# One fused MXU dot + one slab EUP tanh per step; time loop fully unrolled.
# ---------------------------------------------------------------------------
def _lstm_scan_kernel(gx_ref, whh_ref, hs_ref, h_sc, c_sc, *, chunk_t, hidden):
    H = hidden
    n_pad = h_sc.shape[0]

    @pl.when(pl.program_id(0) == 0)
    def _():
        h_sc[...] = jnp.zeros_like(h_sc)
        c_sc[...] = jnp.zeros_like(c_sc)

    whh = whh_ref[...]                               # loop-invariant, loaded once

    # Fused activation constants (hoisted, pre-broadcast to a full slab so no
    # per-step broadcast_in_dim).  Gate order i, f, g, o along the 4H axis:
    #   sigmoid(x) = 0.5*tanh(0.5*x) + 0.5  (i, f, o) ;  tanh(x)  (g)
    #   => act = tanh(pre * s) * s + b   with s = 0.5 (i/f/o) | 1.0 (g),
    #                                         b = 0.5 (i/f/o) | 0.0 (g)
    col = jax.lax.broadcasted_iota(jnp.int32, (n_pad, 4 * H), 1)
    is_g = jnp.logical_and(col >= 2 * H, col < 3 * H)
    scale = jnp.where(is_g, 1.0, 0.5).astype(jnp.float32)
    shift = jnp.where(is_g, 0.0, 0.5).astype(jnp.float32)

    # Fully unrolled (chunk_t is a compile-time constant, capped small): lets the
    # LLO scheduler overlap the gx load / hs store / EUP of step t with the MXU
    # of adjacent steps; the only true cross-step dependency is h/c.
    for t in range(chunk_t):
        h_b = h_sc[...].astype(jnp.bfloat16)                       # (Npad, H)
        pre = gx_ref[t] + jnp.dot(h_b, whh,
                                  preferred_element_type=jnp.float32)  # (Npad, 4H)
        act = jnp.tanh(pre * scale) * scale + shift   # single EUP tanh over slab
        i_t = act[:, 0 * H:1 * H]
        f_t = act[:, 1 * H:2 * H]
        g_t = act[:, 2 * H:3 * H]
        o_t = act[:, 3 * H:4 * H]
        c_new = f_t * c_sc[...] + i_t * g_t                        # all f32
        h_new = o_t * jnp.tanh(c_new)
        c_sc[...] = c_new
        h_sc[...] = h_new
        hs_ref[t] = h_new.astype(jnp.bfloat16)       # bf16: D consumes bf16 anyway


def _pick_time_chunk(tm1, n_pad, hidden):
    # double-buffered gx (f32) + hs (bf16) bytes per resident timestep
    per_t = 2 * (n_pad * 4 * hidden * 4) + 2 * (n_pad * hidden * 2)
    max_chunk = max(1, _LSTM_VMEM_BUDGET // per_t)
    return max(1, min(tm1, max_chunk, _LSTM_MAX_UNROLL))


def lstm_recurrence(gx, whh_t_bf16, *, chunk_t):
    Tp, n_pad, four_h = gx.shape
    H = four_h // 4
    num_chunks = Tp // chunk_t
    kernel = functools.partial(_lstm_scan_kernel, chunk_t=chunk_t, hidden=H)
    return pl.pallas_call(
        kernel,
        out_shape=jax.ShapeDtypeStruct((Tp, n_pad, H), jnp.bfloat16),
        grid=(num_chunks,),
        in_specs=[
            pl.BlockSpec((chunk_t, n_pad, four_h), lambda c: (c, 0, 0)),
            pl.BlockSpec((H, four_h), lambda c: (0, 0)),
        ],
        out_specs=pl.BlockSpec((chunk_t, n_pad, H), lambda c: (c, 0, 0)),
        scratch_shapes=[
            pltpu.VMEM((n_pad, H), jnp.float32),     # h state (persists over grid)
            pltpu.VMEM((n_pad, H), jnp.float32),     # c state
        ],
        compiler_params=pltpu.CompilerParams(
            dimension_semantics=("arbitrary",)),     # sequential: h/c carry
    )(gx, whh_t_bf16)


# ---------------------------------------------------------------------------
# CorrLSTM.forward
# ---------------------------------------------------------------------------
def corr_lstm_forward(frames, prep, lstm_units):
    # NOTE: self.lstm.flatten_parameters() is a cuDNN weight-layout no-op.
    H = lstm_units
    features = feature_extraction(frames, prep["w_proj"], prep["b_proj"])
    F_, N, _ = features.shape
    T = F_ - 1
    features = features[:T]                               # narrow(0, 0, T)
    Tm1 = T - 1

    # Batch padded to 8 sublanes; time padded to a multiple of the chunk so
    # Kernel C streams whole chunks (padded steps/rows are discarded afterwards).
    n_pad = _round_up(max(N, 1), 8)
    chunk_t = _pick_time_chunk(Tm1, n_pad, H)
    num_chunks = pl.cdiv(Tm1, chunk_t)
    Tp = num_chunks * chunk_t

    # LSTM input: slice + pad once, cast to bf16 ONCE (halves Kernel B's
    # memory-bound input stream; numerically identical — the cast happened
    # inside the kernel before).
    x_pad = jnp.pad(features[:Tm1],
                    ((0, Tp - Tm1), (0, n_pad - N), (0, 0))).astype(jnp.bfloat16)

    # Phase 1 (Kernel B): hoisted batched input projection.  gx stays in
    # (Tp, Npad, 4H) layout -> no XLA transpose between B and C.
    gx = matmul_bias(x_pad.reshape(Tp * n_pad, INPUT_DIM),
                     prep["w_ih_t"], prep["b_gates"])      # (Tp*n_pad, 4H) f32
    gx = gx.reshape(Tp, n_pad, 4 * H)

    # Phase 2 (Kernel C): serial recurrence, time-chunk streamed.
    hs = lstm_recurrence(gx, prep["w_hh_t"], chunk_t=chunk_t)   # (Tp, Npad, H) bf16

    # Phase 3 (Kernel D): hoisted batched output FC over the real rows.
    hs_real = hs[:Tm1, :N, :].reshape(Tm1 * N, H)
    out = matmul_bias(hs_real, prep["w_fc_t"], prep["b_fc"])
    out_features = out.reshape(Tm1, N, INPUT_DIM)
    return out_features, features            # ((T-1, N, 2048), (T, N, 2048))


# ---------------------------------------------------------------------------
# Parameters: raw PyTorch-layout init + one-time kernel-ready preparation
# (transposes, bias fusion, bf16 casts done ONCE here).
# ---------------------------------------------------------------------------
def init_params(key, lstm_units, in_channels):
    ks = jax.random.split(key, 8)
    s = 1.0 / np.sqrt(lstm_units)
    return dict(
        w_proj=jax.random.normal(ks[0], (in_channels, INPUT_DIM), jnp.float32) * 0.05,
        b_proj=jax.random.normal(ks[1], (INPUT_DIM,), jnp.float32) * 0.05,
        w_ih=jax.random.uniform(ks[2], (4 * lstm_units, INPUT_DIM), jnp.float32, -s, s),
        w_hh=jax.random.uniform(ks[3], (4 * lstm_units, lstm_units), jnp.float32, -s, s),
        b_ih=jax.random.uniform(ks[4], (4 * lstm_units,), jnp.float32, -s, s),
        b_hh=jax.random.uniform(ks[5], (4 * lstm_units,), jnp.float32, -s, s),
        w_fc=jax.random.uniform(ks[6], (INPUT_DIM, lstm_units), jnp.float32, -s, s),
        b_fc=jax.random.uniform(ks[7], (INPUT_DIM,), jnp.float32, -s, s),
    )


def prepare_params(params, lstm_units):
    H = lstm_units
    bf16 = jnp.bfloat16
    return dict(
        w_proj=params["w_proj"].astype(bf16),                     # (C, D)
        b_proj=params["b_proj"].reshape(1, INPUT_DIM).astype(jnp.float32),
        w_ih_t=params["w_ih"].T.astype(bf16),                     # (D, 4H)
        b_gates=(params["b_ih"] + params["b_hh"]).reshape(1, 4 * H)
                 .astype(jnp.float32),
        w_hh_t=params["w_hh"].T.astype(bf16),                     # (H, 4H), pre-concat
        w_fc_t=params["w_fc"].T.astype(bf16),                     # (H, D)
        b_fc=params["b_fc"].reshape(1, INPUT_DIM).astype(jnp.float32),
    )


# ---------------------------------------------------------------------------
# Pure-JAX reference (mirrors the kernels' bf16-matmul-input / f32-accumulate
# numerics so tolerances stay tight).
# ---------------------------------------------------------------------------
def reference_forward(frames, params, lstm_units):
    bf16 = jnp.bfloat16
    F_, N, C, Hs, Ws = frames.shape
    pooled = frames.reshape(F_, N, C, Hs * Ws).mean(-1)
    features = (jnp.dot(pooled.astype(bf16), params["w_proj"].astype(bf16),
                        preferred_element_type=jnp.float32)
                + params["b_proj"])
    T = F_ - 1
    features = features[:T]
    x_seq = features[:T - 1]
    H = lstm_units
    wih_t = params["w_ih"].T.astype(bf16)
    whh_t = params["w_hh"].T.astype(bf16)
    bias = params["b_ih"] + params["b_hh"]
    gx = (jnp.dot(x_seq.astype(bf16), wih_t, preferred_element_type=jnp.float32)
          + bias)

    def sig(v):
        return 0.5 * (1.0 + jnp.tanh(0.5 * v))

    def step(carry, gx_t):
        h, c = carry
        gates = gx_t + jnp.dot(h.astype(bf16), whh_t,
                               preferred_element_type=jnp.float32)
        i = sig(gates[:, 0 * H:1 * H])
        f = sig(gates[:, 1 * H:2 * H])
        g = jnp.tanh(gates[:, 2 * H:3 * H])
        o = sig(gates[:, 3 * H:4 * H])
        c = f * c + i * g
        h = o * jnp.tanh(c)
        return (h, c), h

    h0 = jnp.zeros((N, H), jnp.float32)
    (_, _), hs = jax.lax.scan(step, (h0, h0), gx)
    hs_b = hs.astype(bf16)                       # kernel stores hs as bf16
    out = (jnp.dot(hs_b.reshape((T - 1) * N, H), params["w_fc"].T.astype(bf16),
                   preferred_element_type=jnp.float32)
           + params["b_fc"])
    return out.reshape(T - 1, N, INPUT_DIM), features


if __name__ == "__main__":
    lstm_units = 32
    F_, N, C, Hs, Ws = 8, 2, 4, 16, 16

    key = jax.random.PRNGKey(0)
    kf, kp = jax.random.split(key)
    frames = jax.random.normal(kf, (F_, N, C, Hs, Ws), jnp.float32)
    params = init_params(kp, lstm_units, C)
    prep = prepare_params(params, lstm_units)      # one-time weight prep

    fwd = jax.jit(corr_lstm_forward, static_argnums=2)
    out_features, features = fwd(frames, prep, lstm_units)
    jax.block_until_ready((out_features, features))

    ref_out, ref_feat = reference_forward(frames, params, lstm_units)
    assert out_features.shape == (F_ - 2, N, INPUT_DIM)
    assert features.shape == (F_ - 1, N, INPUT_DIM)
    np.testing.assert_allclose(np.asarray(features), np.asarray(ref_feat),
                               rtol=2e-3, atol=2e-3)
    np.testing.assert_allclose(np.asarray(out_features), np.asarray(ref_out),
                               rtol=5e-3, atol=5e-3)
    print("KERNEL_OK")
</pallas_src>

<mosaic_0001>
module attributes {stable_mosaic.version = 11 : i64} {
  func.func @_feat_kernel(%arg0: i32, %arg1: memref<128x4x256xf32, #tpu.memory_space<vmem>>, %arg2: memref<4x2048xbf16, #tpu.memory_space<vmem>>, %arg3: memref<1x2048xf32, #tpu.memory_space<vmem>>, %arg4: memref<128x2048xf32, #tpu.memory_space<vmem>>) attributes {dimension_semantics = [#tpu.dimension_semantics<parallel>], iteration_bounds = array<i64: 1>, scalar_prefetch = 0 : i64, scratch_operands = 0 : i64, tpu.core_type = #tpu.core_type<tc>, window_params = [{transform_indices = @transform_0, window_bounds = array<i64: 128, 4, 256>}, {pipeline_mode = #tpu.pipeline_mode<synchronous>, transform_indices = @transform_1, window_bounds = array<i64: 4, 2048>}, {pipeline_mode = #tpu.pipeline_mode<synchronous>, transform_indices = @transform_2, window_bounds = array<i64: 1, 2048>}, {transform_indices = @transform_3, window_bounds = array<i64: 128, 2048>}]} {
    %c0 = arith.constant 0 : index
    %c0_0 = arith.constant 0 : index
    %c0_1 = arith.constant 0 : index
    %0 = vector.load %arg1[%c0, %c0_0, %c0_1] : memref<128x4x256xf32, #tpu.memory_space<vmem>>, vector<128x4x256xf32>
    %cst = arith.constant dense<0.000000e+00> : vector<128x4xf32>
    %1 = vector.multi_reduction <add>, %0, %cst [2] : vector<128x4x256xf32> to vector<128x4xf32>
    %cst_2 = arith.constant 2.560000e+02 : f32
    %2 = vector.broadcast %cst_2 : f32 to vector<128x4xf32>
    %3 = arith.divf %1, %2 : vector<128x4xf32>
    %4 = arith.truncf %3 : vector<128x4xf32> to vector<128x4xbf16>
    %c0_3 = arith.constant 0 : index
    %c0_4 = arith.constant 0 : index
    %5 = vector.load %arg2[%c0_3, %c0_4] : memref<4x2048xbf16, #tpu.memory_space<vmem>>, vector<4x2048xbf16>
    %cst_5 = arith.constant dense<0.000000e+00> : vector<128x2048xf32>
    %6 = tpu.matmul %4, %5, %cst_5 {dimension_numbers = #tpu.dot_dimension_numbers<[1], [0], [0], [1], [0, 0, 1, 1], [], []>} : vector<128x4xbf16>, vector<4x2048xbf16>, vector<128x2048xf32> -> vector<128x2048xf32>
    %c0_6 = arith.constant 0 : index
    %c0_7 = arith.constant 0 : index
    %7 = vector.load %arg3[%c0_6, %c0_7] : memref<1x2048xf32, #tpu.memory_space<vmem>>, vector<1x2048xf32>
    %8 = vector.broadcast %7 : vector<1x2048xf32> to vector<128x2048xf32>
    %9 = arith.addf %6, %8 : vector<128x2048xf32>
    %c0_8 = arith.constant 0 : index
    %c0_9 = arith.constant 0 : index
    %10 = vector.load %arg4[%c0_8, %c0_9] : memref<128x2048xf32, #tpu.memory_space<vmem>>, vector<128x2048xf32>
    tpu.vector_store %arg4[%c0_8, %c0_9], %9 {strides = array<i32>} : memref<128x2048xf32, #tpu.memory_space<vmem>>, vector<128x2048xf32>,
    return
  }
  func.func @transform_0(%arg0: i32) -> (i32, i32, i32) {
    %c0_i32 = arith.constant 0 : i32
    %c0_i32_0 = arith.constant 0 : i32
    %c0_i32_1 = arith.constant 0 : i32
    return %arg0, %c0_i32, %c0_i32_0 : i32, i32, i32
  }
  func.func @transform_1(%arg0: i32) -> (i32, i32) {
    %c0_i32 = arith.constant 0 : i32
    %c0_i32_0 = arith.constant 0 : i32
    %c0_i32_1 = arith.constant 0 : i32
    return %c0_i32, %c0_i32_0 : i32, i32
  }
  func.func @transform_2(%arg0: i32) -> (i32, i32) {
    %c0_i32 = arith.constant 0 : i32
    %c0_i32_0 = arith.constant 0 : i32
    %c0_i32_1 = arith.constant 0 : i32
    return %c0_i32, %c0_i32_0 : i32, i32
  }
  func.func @transform_3(%arg0: i32) -> (i32, i32) {
    %c0_i32 = arith.constant 0 : i32
    %c0_i32_0 = arith.constant 0 : i32
    return %arg0, %c0_i32 : i32, i32
  }
}

module attributes {stable_mosaic.version = 11 : i64} {
  func.func @_matmul_bias_kernel(%arg0: i32, %arg1: memref<48x2048xbf16, #tpu.memory_space<vmem>>, %arg2: memref<2048x128xbf16, #tpu.memory_space<vmem>>, %arg3: memref<1x128xf32, #tpu.memory_space<vmem>>, %arg4: memref<48x128xf32, #tpu.memory_space<vmem>>) attributes {dimension_semantics = [#tpu.dimension_semantics<parallel>], iteration_bounds = array<i64: 1>, scalar_prefetch = 0 : i64, scratch_operands = 0 : i64, tpu.core_type = #tpu.core_type<tc>, window_params = [{transform_indices = @transform_0, window_bounds = array<i64: 48, 2048>}, {pipeline_mode = #tpu.pipeline_mode<synchronous>, transform_indices = @transform_1, window_bounds = array<i64: 2048, 128>}, {pipeline_mode = #tpu.pipeline_mode<synchronous>, transform_indices = @transform_2, window_bounds = array<i64: 1, 128>}, {transform_indices = @transform_3, window_bounds = array<i64: 48, 128>}]} {
    %c0 = arith.constant 0 : index
    %c0_0 = arith.constant 0 : index
    %0 = vector.load %arg1[%c0, %c0_0] : memref<48x2048xbf16, #tpu.memory_space<vmem>>, vector<48x2048xbf16>
    %c0_1 = arith.constant 0 : index
    %c0_2 = arith.constant 0 : index
    %1 = vector.load %arg2[%c0_1, %c0_2] : memref<2048x128xbf16, #tpu.memory_space<vmem>>, vector<2048x128xbf16>
    %cst = arith.constant dense<0.000000e+00> : vector<48x128xf32>
    %2 = tpu.matmul %0, %1, %cst {dimension_numbers = #tpu.dot_dimension_numbers<[1], [0], [0], [1], [0, 0, 1, 1], [], []>} : vector<48x2048xbf16>, vector<2048x128xbf16>, vector<48x128xf32> -> vector<48x128xf32>
    %c0_3 = arith.constant 0 : index
    %c0_4 = arith.constant 0 : index
    %3 = vector.load %arg3[%c0_3, %c0_4] : memref<1x128xf32, #tpu.memory_space<vmem>>, vector<1x128xf32>
    %4 = vector.broadcast %3 : vector<1x128xf32> to vector<48x128xf32>
    %5 = arith.addf %2, %4 : vector<48x128xf32>
    %c0_5 = arith.constant 0 : index
    %c0_6 = arith.constant 0 : index
    %6 = vector.load %arg4[%c0_5, %c0_6] : memref<48x128xf32, #tpu.memory_space<vmem>>, vector<48x128xf32>
    tpu.vector_store %arg4[%c0_5, %c0_6], %5 {strides = array<i32>} : memref<48x128xf32, #tpu.memory_space<vmem>>, vector<48x128xf32>,
    return
  }
  func.func @transform_0(%arg0: i32) -> (i32, i32) {
    %c0_i32 = arith.constant 0 : i32
    %c0_i32_0 = arith.constant 0 : i32
    return %arg0, %c0_i32 : i32, i32
  }
  func.func @transform_1(%arg0: i32) -> (i32, i32) {
    %c0_i32 = arith.constant 0 : i32
    %c0_i32_0 = arith.constant 0 : i32
    %c0_i32_1 = arith.constant 0 : i32
    return %c0_i32, %c0_i32_0 : i32, i32
  }
  func.func @transform_2(%arg0: i32) -> (i32, i32) {
    %c0_i32 = arith.constant 0 : i32
    %c0_i32_0 = arith.constant 0 : i32
    %c0_i32_1 = arith.constant 0 : i32
    return %c0_i32, %c0_i32_0 : i32, i32
  }
  func.func @transform_3(%arg0: i32) -> (i32, i32) {
    %c0_i32 = arith.constant 0 : i32
    %c0_i32_0 = arith.constant 0 : i32
    return %arg0, %c0_i32 : i32, i32
  }
}

module attributes {stable_mosaic.version = 11 : i64} {
  func.func @_lstm_scan_kernel(%arg0: i32, %arg1: memref<6x8x128xf32, #tpu.memory_space<vmem>>, %arg2: memref<32x128xbf16, #tpu.memory_space<vmem>>, %arg3: memref<6x8x32xbf16, #tpu.memory_space<vmem>>, %arg4: memref<8x32xf32, #tpu.memory_space<vmem>>, %arg5: memref<8x32xf32, #tpu.memory_space<vmem>>) attributes {dimension_semantics = [#tpu.dimension_semantics<arbitrary>], iteration_bounds = array<i64: 1>, scalar_prefetch = 0 : i64, scratch_operands = 2 : i64, tpu.core_type = #tpu.core_type<tc>, window_params = [{transform_indices = @transform_0, window_bounds = array<i64: 6, 8, 128>}, {pipeline_mode = #tpu.pipeline_mode<synchronous>, transform_indices = @transform_1, window_bounds = array<i64: 32, 128>}, {transform_indices = @transform_2, window_bounds = array<i64: 6, 8, 32>}]} {
    %c0_i32 = arith.constant 0 : i32
    %0 = arith.cmpi eq, %arg0, %c0_i32 : i32
    %1 = arith.extui %0 : i1 to i32
    %c0_i32_0 = arith.constant 0 : i32
    %2 = arith.cmpi ne, %1, %c0_i32_0 : i32
    scf.if %2 {
      %cst_90 = arith.constant 0.000000e+00 : f32
      %172 = vector.broadcast %cst_90 : f32 to vector<8x32xf32>
      %c0_91 = arith.constant 0 : index
      %c0_92 = arith.constant 0 : index
      %173 = vector.load %arg4[%c0_91, %c0_92] : memref<8x32xf32, #tpu.memory_space<vmem>>, vector<8x32xf32>
      tpu.vector_store %arg4[%c0_91, %c0_92], %172 {strides = array<i32>} : memref<8x32xf32, #tpu.memory_space<vmem>>, vector<8x32xf32>,
      %cst_93 = arith.constant 0.000000e+00 : f32
      %174 = vector.broadcast %cst_93 : f32 to vector<8x32xf32>
      %c0_94 = arith.constant 0 : index
      %c0_95 = arith.constant 0 : index
      %175 = vector.load %arg5[%c0_94, %c0_95] : memref<8x32xf32, #tpu.memory_space<vmem>>, vector<8x32xf32>
      tpu.vector_store %arg5[%c0_94, %c0_95], %174 {strides = array<i32>} : memref<8x32xf32, #tpu.memory_space<vmem>>, vector<8x32xf32>,
    } else {
    }
    %c0 = arith.constant 0 : index
    %c0_1 = arith.constant 0 : index
    %3 = vector.load %arg2[%c0, %c0_1] : memref<32x128xbf16, #tpu.memory_space<vmem>>, vector<32x128xbf16>
    %4 = tpu.iota {dimensions = array<i32: 1>} : vector<8x128xi32>
    %c64_i32 = arith.constant 64 : i32
    %5 = vector.broadcast %c64_i32 : i32 to vector<8x128xi32>
    %6 = arith.cmpi sge, %4, %5 : vector<8x128xi32>
    %c96_i32 = arith.constant 96 : i32
    %7 = vector.broadcast %c96_i32 : i32 to vector<8x128xi32>
    %8 = arith.cmpi slt, %4, %7 : vector<8x128xi32>
    %9 = arith.andi %6, %8 : vector<8x128xi1>
    %cst = arith.constant 1.000000e+00 : f32
    %cst_2 = arith.constant 5.000000e-01 : f32
    %10 = vector.broadcast %cst : f32 to vector<8x128xf32>
    %11 = vector.broadcast %cst_2 : f32 to vector<8x128xf32>
    %12 = arith.select %9, %10, %11 : vector<8x128xi1>, vector<8x128xf32>
    %cst_3 = arith.constant 0.000000e+00 : f32
    %cst_4 = arith.constant 5.000000e-01 : f32
    %13 = vector.broadcast %cst_3 : f32 to vector<8x128xf32>
    %14 = vector.broadcast %cst_4 : f32 to vector<8x128xf32>
    %15 = arith.select %9, %13, %14 : vector<8x128xi1>, vector<8x128xf32>
    %c0_5 = arith.constant 0 : index
    %c0_6 = arith.constant 0 : index
    %16 = vector.load %arg4[%c0_5, %c0_6] : memref<8x32xf32, #tpu.memory_space<vmem>>, vector<8x32xf32>
    %17 = arith.truncf %16 : vector<8x32xf32> to vector<8x32xbf16>
    %c0_7 = arith.constant 0 : index
    %c0_8 = arith.constant 0 : index
    %c0_9 = arith.constant 0 : index
    %18 = vector.load %arg1[%c0_7, %c0_8, %c0_9] : memref<6x8x128xf32, #tpu.memory_space<vmem>>, vector<1x8x128xf32>
    %19 = vector.shape_cast %18 : vector<1x8x128xf32> to vector<8x128xf32>
    %cst_10 = arith.constant dense<0.000000e+00> : vector<8x128xf32>
    %20 = tpu.matmul %17, %3, %cst_10 {dimension_numbers = #tpu.dot_dimension_numbers<[1], [0], [0], [1], [0, 0, 1, 1], [], []>} : vector<8x32xbf16>, vector<32x128xbf16>, vector<8x128xf32> -> vector<8x128xf32>
    %21 = arith.addf %19, %20 : vector<8x128xf32>
    %22 = arith.mulf %21, %12 : vector<8x128xf32>
    %23 = math.tanh %22 : vector<8x128xf32>
    %24 = arith.mulf %23, %12 : vector<8x128xf32>
    %25 = arith.addf %24, %15 : vector<8x128xf32>
    %26 = vector.extract_strided_slice %25 {offsets = [0, 0], sizes = [8, 32], strides = [1, 1]} : vector<8x128xf32> to vector<8x32xf32>
    %27 = vector.extract_strided_slice %25 {offsets = [0, 32], sizes = [8, 32], strides = [1, 1]} : vector<8x128xf32> to vector<8x32xf32>
    %28 = vector.extract_strided_slice %25 {offsets = [0, 64], sizes = [8, 32], strides = [1, 1]} : vector<8x128xf32> to vector<8x32xf32>
    %29 = vector.extract_strided_slice %25 {offsets = [0, 96], sizes = [8, 32], strides = [1, 1]} : vector<8x128xf32> to vector<8x32xf32>
    %c0_11 = arith.constant 0 : index
    %c0_12 = arith.constant 0 : index
    %30 = vector.load %arg5[%c0_11, %c0_12] : memref<8x32xf32, #tpu.memory_space<vmem>>, vector<8x32xf32>
    %31 = arith.mulf %27, %30 : vector<8x32xf32>
    %32 = arith.mulf %26, %28 : vector<8x32xf32>
    %33 = arith.addf %31, %32 : vector<8x32xf32>
    %34 = math.tanh %33 : vector<8x32xf32>
    %35 = arith.mulf %29, %34 : vector<8x32xf32>
    %c0_13 = arith.constant 0 : index
    %c0_14 = arith.constant 0 : index
    %36 = vector.load %arg5[%c0_13, %c0_14] : memref<8x32xf32, #tpu.memory_space<vmem>>, vector<8x32xf32>
    tpu.vector_store %arg5[%c0_13, %c0_14], %33 {strides = array<i32>} : memref<8x32xf32, #tpu.memory_space<vmem>>, vector<8x32xf32>,
    %c0_15 = arith.constant 0 : index
    %c0_16 = arith.constant 0 : index
    %37 = vector.load %arg4[%c0_15, %c0_16] : memref<8x32xf32, #tpu.memory_space<vmem>>, vector<8x32xf32>
    tpu.vector_store %arg4[%c0_15, %c0_16], %35 {strides = array<i32>} : memref<8x32xf32, #tpu.memory_space<vmem>>, vector<8x32xf32>,
    %38 = arith.truncf %35 : vector<8x32xf32> to vector<8x32xbf16>
    %c0_17 = arith.constant 0 : index
    %c0_18 = arith.constant 0 : index
    %c0_19 = arith.constant 0 : index
    %39 = vector.load %arg3[%c0_17, %c0_18, %c0_19] : memref<6x8x32xbf16, #tpu.memory_space<vmem>>, vector<1x8x32xbf16>
    %40 = vector.shape_cast %39 : vector<1x8x32xbf16> to vector<8x32xbf16>
    %41 = vector.shape_cast %38 : vector<8x32xbf16> to vector<1x8x32xbf16>
    tpu.vector_store %arg3[%c0_17, %c0_18, %c0_19], %41 {strides = array<i32>} : memref<6x8x32xbf16, #tpu.memory_space<vmem>>, vector<1x8x32xbf16>,
    %c0_20 = arith.constant 0 : index
    %c0_21 = arith.constant 0 : index
    %42 = vector.load %arg4[%c0_20, %c0_21] : memref<8x32xf32, #tpu.memory_space<vmem>>, vector<8x32xf32>
    %43 = arith.truncf %42 : vector<8x32xf32> to vector<8x32xbf16>
    %c1 = arith.constant 1 : index
    %c0_22 = arith.constant 0 : index
    %c0_23 = arith.constant 0 : index
    %44 = vector.load %arg1[%c1, %c0_22, %c0_23] : memref<6x8x128xf32, #tpu.memory_space<vmem>>, vector<1x8x128xf32>
    %45 = vector.shape_cast %44 : vector<1x8x128xf32> to vector<8x128xf32>
    %cst_24 = arith.constant dense<0.000000e+00> : vector<8x128xf32>
    %46 = tpu.matmul %43, %3, %cst_24 {dimension_numbers = #tpu.dot_dimension_numbers<[1], [0], [0], [1], [0, 0, 1, 1], [], []>} : vector<8x32xbf16>, vector<32x128xbf16>, vector<8x128xf32> -> vector<8x128xf32>
    %47 = arith.addf %45, %46 : vector<8x128xf32>
    %48 = arith.mulf %47, %12 : vector<8x128xf32>
    %49 = math.tanh %48 : vector<8x128xf32>
    %50 = arith.mulf %49, %12 : vector<8x128xf32>
    %51 = arith.addf %50, %15 : vector<8x128xf32>
    %52 = vector.extract_strided_slice %51 {offsets = [0, 0], sizes = [8, 32], strides = [1, 1]} : vector<8x128xf32> to vector<8x32xf32>
    %53 = vector.extract_strided_slice %51 {offsets = [0, 32], sizes = [8, 32], strides = [1, 1]} : vector<8x128xf32> to vector<8x32xf32>
    %54 = vector.extract_strided_slice %51 {offsets = [0, 64], sizes = [8, 32], strides = [1, 1]} : vector<8x128xf32> to vector<8x32xf32>
    %55 = vector.extract_strided_slice %51 {offsets = [0, 96], sizes = [8, 32], strides = [1, 1]} : vector<8x128xf32> to vector<8x32xf32>
    %c0_25 = arith.constant 0 : index
    %c0_26 = arith.constant 0 : index
    %56 = vector.load %arg5[%c0_25, %c0_26] : memref<8x32xf32, #tpu.memory_space<vmem>>, vector<8x32xf32>
    %57 = arith.mulf %53, %56 : vector<8x32xf32>
    %58 = arith.mulf %52, %54 : vector<8x32xf32>
    %59 = arith.addf %57, %58 : vector<8x32xf32>
    %60 = math.tanh %59 : vector<8x32xf32>
    %61 = arith.mulf %55, %60 : vector<8x32xf32>
    %c0_27 = arith.constant 0 : index
    %c0_28 = arith.constant 0 : index
    %62 = vector.load %arg5[%c0_27, %c0_28] : memref<8x32xf32, #tpu.memory_space<vmem>>, vector<8x32xf32>
    tpu.vector_store %arg5[%c0_27, %c0_28], %59 {strides = array<i32>} : memref<8x32xf32, #tpu.memory_space<vmem>>, vector<8x32xf32>,
    %c0_29 = arith.constant 0 : index
    %c0_30 = arith.constant 0 : index
    %63 = vector.load %arg4[%c0_29, %c0_30] : memref<8x32xf32, #tpu.memory_space<vmem>>, vector<8x32xf32>
    tpu.vector_store %arg4[%c0_29, %c0_30], %61 {strides = array<i32>} : memref<8x32xf32, #tpu.memory_space<vmem>>, vector<8x32xf32>,
    %64 = arith.truncf %61 : vector<8x32xf32> to vector<8x32xbf16>
    %c1_31 = arith.constant 1 : index
    %c0_32 = arith.constant 0 : index
    %c0_33 = arith.constant 0 : index
    %65 = vector.load %arg3[%c1_31, %c0_32, %c0_33] : memref<6x8x32xbf16, #tpu.memory_space<vmem>>, vector<1x8x32xbf16>
    %66 = vector.shape_cast %65 : vector<1x8x32xbf16> to vector<8x32xbf16>
    %67 = vector.shape_cast %64 : vector<8x32xbf16> to vector<1x8x32xbf16>
    tpu.vector_store %arg3[%c1_31, %c0_32, %c0_33], %67 {strides = array<i32>} : memref<6x8x32xbf16, #tpu.memory_space<vmem>>, vector<1x8x32xbf16>,
    %c0_34 = arith.constant 0 : index
    %c0_35 = arith.constant 0 : index
    %68 = vector.load %arg4[%c0_34, %c0_35] : memref<8x32xf32, #tpu.memory_space<vmem>>, vector<8x32xf32>
    %69 = arith.truncf %68 : vector<8x32xf32> to vector<8x32xbf16>
    %c2 = arith.constant 2 : index
    %c0_36 = arith.constant 0 : index
    %c0_37 = arith.constant 0 : index
    %70 = vector.load %arg1[%c2, %c0_36, %c0_37] : memref<6x8x128xf32, #tpu.memory_space<vmem>>, vector<1x8x128xf32>
    %71 = vector.shape_cast %70 : vector<1x8x128xf32> to vector<8x128xf32>
    %cst_38 = arith.constant dense<0.000000e+00> : vector<8x128xf32>
    %72 = tpu.matmul %69, %3, %cst_38 {dimension_numbers = #tpu.dot_dimension_numbers<[1], [0], [0], [1], [0, 0, 1, 1], [], []>} : vector<8x32xbf16>, vector<32x128xbf16>, vector<8x128xf32> -> vector<8x128xf32>
    %73 = arith.addf %71, %72 : vector<8x128xf32>
    %74 = arith.mulf %73, %12 : vector<8x128xf32>
    %75 = math.tanh %74 : vector<8x128xf32>
    %76 = arith.mulf %75, %12 : vector<8x128xf32>
    %77 = arith.addf %76, %15 : vector<8x128xf32>
    %78 = vector.extract_strided_slice %77 {offsets = [0, 0], sizes = [8, 32], strides = [1, 1]} : vector<8x128xf32> to vector<8x32xf32>
    %79 = vector.extract_strided_slice %77 {offsets = [0, 32], sizes = [8, 32], strides = [1, 1]} : vector<8x128xf32> to vector<8x32xf32>
    %80 = vector.extract_strided_slice %77 {offsets = [0, 64], sizes = [8, 32], strides = [1, 1]} : vector<8x128xf32> to vector<8x32xf32>
    %81 = vector.extract_strided_slice %77 {offsets = [0, 96], sizes = [8, 32], strides = [1, 1]} : vector<8x128xf32> to vector<8x32xf32>
    %c0_39 = arith.constant 0 : index
    %c0_40 = arith.constant 0 : index
    %82 = vector.load %arg5[%c0_39, %c0_40] : memref<8x32xf32, #tpu.memory_space<vmem>>, vector<8x32xf32>
    %83 = arith.mulf %79, %82 : vector<8x32xf32>
    %84 = arith.mulf %78, %80 : vector<8x32xf32>
    %85 = arith.addf %83, %84 : vector<8x32xf32>
    %86 = math.tanh %85 : vector<8x32xf32>
    %87 = arith.mulf %81, %86 : vector<8x32xf32>
    %c0_41 = arith.constant 0 : index
    %c0_42 = arith.constant 0 : index
    %88 = vector.load %arg5[%c0_41, %c0_42] : memref<8x32xf32, #tpu.memory_space<vmem>>, vector<8x32xf32>
    tpu.vector_store %arg5[%c0_41, %c0_42], %85 {strides = array<i32>} : memref<8x32xf32, #tpu.memory_space<vmem>>, vector<8x32xf32>,
    %c0_43 = arith.constant 0 : index
    %c0_44 = arith.constant 0 : index
    %89 = vector.load %arg4[%c0_43, %c0_44] : memref<8x32xf32, #tpu.memory_space<vmem>>, vector<8x32xf32>
    tpu.vector_store %arg4[%c0_43, %c0_44], %87 {strides = array<i32>} : memref<8x32xf32, #tpu.memory_space<vmem>>, vector<8x32xf32>,
    %90 = arith.truncf %87 : vector<8x32xf32> to vector<8x32xbf16>
    %c2_45 = arith.constant 2 : index
    %c0_46 = arith.constant 0 : index
    %c0_47 = arith.constant 0 : index
    %91 = vector.load %arg3[%c2_45, %c0_46, %c0_47] : memref<6x8x32xbf16, #tpu.memory_space<vmem>>, vector<1x8x32xbf16>
    %92 = vector.shape_cast %91 : vector<1x8x32xbf16> to vector<8x32xbf16>
    %93 = vector.shape_cast %90 : vector<8x32xbf16> to vector<1x8x32xbf16>
    tpu.vector_store %arg3[%c2_45, %c0_46, %c0_47], %93 {strides = array<i32>} : memref<6x8x32xbf16, #tpu.memory_space<vmem>>, vector<1x8x32xbf16>,
    %c0_48 = arith.constant 0 : index
    %c0_49 = arith.constant 0 : index
    %94 = vector.load %arg4[%c0_48, %c0_49] : memref<8x32xf32, #tpu.memory_space<vmem>>, vector<8x32xf32>
    %95 = arith.truncf %94 : vector<8x32xf32> to vector<8x32xbf16>
    %c3 = arith.constant 3 : index
    %c0_50 = arith.constant 0 : index
    %c0_51 = arith.constant 0 : index
    %96 = vector.load %arg1[%c3, %c0_50, %c0_51] : memref<6x8x128xf32, #tpu.memory_space<vmem>>, vector<1x8x128xf32>
    %97 = vector.shape_cast %96 : vector<1x8x128xf32> to vector<8x128xf32>
    %cst_52 = arith.constant dense<0.000000e+00> : vector<8x128xf32>
    %98 = tpu.matmul %95, %3, %cst_52 {dimension_numbers = #tpu.dot_dimension_numbers<[1], [0], [0], [1], [0, 0, 1, 1], [], []>} : vector<8x32xbf16>, vector<32x128xbf16>, vector<8x128xf32> -> vector<8x128xf32>
    %99 = arith.addf %97, %98 : vector<8x128xf32>
    %100 = arith.mulf %99, %12 : vector<8x128xf32>
    %101 = math.tanh %100 : vector<8x128xf32>
    %102 = arith.mulf %101, %12 : vector<8x128xf32>
    %103 = arith.addf %102, %15 : vector<8x128xf32>
    %104 = vector.extract_strided_slice %103 {offsets = [0, 0], sizes = [8, 32], strides = [1, 1]} : vector<8x128xf32> to vector<8x32xf32>
    %105 = vector.extract_strided_slice %103 {offsets = [0, 32], sizes = [8, 32], strides = [1, 1]} : vector<8x128xf32> to vector<8x32xf32>
    %106 = vector.extract_strided_slice %103 {offsets = [0, 64], sizes = [8, 32], strides = [1, 1]} : vector<8x128xf32> to vector<8x32xf32>
    %107 = vector.extract_strided_slice %103 {offsets = [0, 96], sizes = [8, 32], strides = [1, 1]} : vector<8x128xf32> to vector<8x32xf32>
    %c0_53 = arith.constant 0 : index
    %c0_54 = arith.constant 0 : index
    %108 = vector.load %arg5[%c0_53, %c0_54] : memref<8x32xf32, #tpu.memory_space<vmem>>, vector<8x32xf32>
    %109 = arith.mulf %105, %108 : vector<8x32xf32>
    %110 = arith.mulf %104, %106 : vector<8x32xf32>
    %111 = arith.addf %109, %110 : vector<8x32xf32>
    %112 = math.tanh %111 : vector<8x32xf32>
    %113 = arith.mulf %107, %112 : vector<8x32xf32>
    %c0_55 = arith.constant 0 : index
    %c0_56 = arith.constant 0 : index
    %114 = vector.load %arg5[%c0_55, %c0_56] : memref<8x32xf32, #tpu.memory_space<vmem>>, vector<8x32xf32>
    tpu.vector_store %arg5[%c0_55, %c0_56], %111 {strides = array<i32>} : memref<8x32xf32, #tpu.memory_space<vmem>>, vector<8x32xf32>,
    %c0_57 = arith.constant 0 : index
    %c0_58 = arith.constant 0 : index
    %115 = vector.load %arg4[%c0_57, %c0_58] : memref<8x32xf32, #tpu.memory_space<vmem>>, vector<8x32xf32>
    tpu.vector_store %arg4[%c0_57, %c0_58], %113 {strides = array<i32>} : memref<8x32xf32, #tpu.memory_space<vmem>>, vector<8x32xf32>,
    %116 = arith.truncf %113 : vector<8x32xf32> to vector<8x32xbf16>
    %c3_59 = arith.constant 3 : index
    %c0_60 = arith.constant 0 : index
    %c0_61 = arith.constant 0 : index
    %117 = vector.load %arg3[%c3_59, %c0_60, %c0_61] : memref<6x8x32xbf16, #tpu.memory_space<vmem>>, vector<1x8x32xbf16>
    %118 = vector.shape_cast %117 : vector<1x8x32xbf16> to vector<8x32xbf16>
    %119 = vector.shape_cast %116 : vector<8x32xbf16> to vector<1x8x32xbf16>
    tpu.vector_store %arg3[%c3_59, %c0_60, %c0_61], %119 {strides = array<i32>} : memref<6x8x32xbf16, #tpu.memory_space<vmem>>, vector<1x8x32xbf16>,
    %c0_62 = arith.constant 0 : index
    %c0_63 = arith.constant 0 : index
    %120 = vector.load %arg4[%c0_62, %c0_63] : memref<8x32xf32, #tpu.memory_space<vmem>>, vector<8x32xf32>
    %121 = arith.truncf %120 : vector<8x32xf32> to vector<8x32xbf16>
    %c4 = arith.constant 4 : index
    %c0_64 = arith.constant 0 : index
    %c0_65 = arith.constant 0 : index
    %122 = vector.load %arg1[%c4, %c0_64, %c0_65] : memref<6x8x128xf32, #tpu.memory_space<vmem>>, vector<1x8x128xf32>
    %123 = vector.shape_cast %122 : vector<1x8x128xf32> to vector<8x128xf32>
    %cst_66 = arith.constant dense<0.000000e+00> : vector<8x128xf32>
    %124 = tpu.matmul %121, %3, %cst_66 {dimension_numbers = #tpu.dot_dimension_numbers<[1], [0], [0], [1], [0, 0, 1, 1], [], []>} : vector<8x32xbf16>, vector<32x128xbf16>, vector<8x128xf32> -> vector<8x128xf32>
    %125 = arith.addf %123, %124 : vector<8x128xf32>
    %126 = arith.mulf %125, %12 : vector<8x128xf32>
    %127 = math.tanh %126 : vector<8x128xf32>
    %128 = arith.mulf %127, %12 : vector<8x128xf32>
    %129 = arith.addf %128, %15 : vector<8x128xf32>
    %130 = vector.extract_strided_slice %129 {offsets = [0, 0], sizes = [8, 32], strides = [1, 1]} : vector<8x128xf32> to vector<8x32xf32>
    %131 = vector.extract_strided_slice %129 {offsets = [0, 32], sizes = [8, 32], strides = [1, 1]} : vector<8x128xf32> to vector<8x32xf32>
    %132 = vector.extract_strided_slice %129 {offsets = [0, 64], sizes = [8, 32], strides = [1, 1]} : vector<8x128xf32> to vector<8x32xf32>
    %133 = vector.extract_strided_slice %129 {offsets = [0, 96], sizes = [8, 32], strides = [1, 1]} : vector<8x128xf32> to vector<8x32xf32>
    %c0_67 = arith.constant 0 : index
    %c0_68 = arith.constant 0 : index
    %134 = vector.load %arg5[%c0_67, %c0_68] : memref<8x32xf32, #tpu.memory_space<vmem>>, vector<8x32xf32>
    %135 = arith.mulf %131, %134 : vector<8x32xf32>
    %136 = arith.mulf %130, %132 : vector<8x32xf32>
    %137 = arith.addf %135, %136 : vector<8x32xf32>
    %138 = math.tanh %137 : vector<8x32xf32>
    %139 = arith.mulf %133, %138 : vector<8x32xf32>
    %c0_69 = arith.constant 0 : index
    %c0_70 = arith.constant 0 : index
    %140 = vector.load %arg5[%c0_69, %c0_70] : memref<8x32xf32, #tpu.memory_space<vmem>>, vector<8x32xf32>
    tpu.vector_store %arg5[%c0_69, %c0_70], %137 {strides = array<i32>} : memref<8x32xf32, #tpu.memory_space<vmem>>, vector<8x32xf32>,
    %c0_71 = arith.constant 0 : index
    %c0_72 = arith.constant 0 : index
    %141 = vector.load %arg4[%c0_71, %c0_72] : memref<8x32xf32, #tpu.memory_space<vmem>>, vector<8x32xf32>
    tpu.vector_store %arg4[%c0_71, %c0_72], %139 {strides = array<i32>} : memref<8x32xf32, #tpu.memory_space<vmem>>, vector<8x32xf32>,
    %142 = arith.truncf %139 : vector<8x32xf32> to vector<8x32xbf16>
    %c4_73 = arith.constant 4 : index
    %c0_74 = arith.constant 0 : index
    %c0_75 = arith.constant 0 : index
    %143 = vector.load %arg3[%c4_73, %c0_74, %c0_75] : memref<6x8x32xbf16, #tpu.memory_space<vmem>>, vector<1x8x32xbf16>
    %144 = vector.shape_cast %143 : vector<1x8x32xbf16> to vector<8x32xbf16>
    %145 = vector.shape_cast %142 : vector<8x32xbf16> to vector<1x8x32xbf16>
    tpu.vector_store %arg3[%c4_73, %c0_74, %c0_75], %145 {strides = array<i32>} : memref<6x8x32xbf16, #tpu.memory_space<vmem>>, vector<1x8x32xbf16>,
    %c0_76 = arith.constant 0 : index
    %c0_77 = arith.constant 0 : index
    %146 = vector.load %arg4[%c0_76, %c0_77] : memref<8x32xf32, #tpu.memory_space<vmem>>, vector<8x32xf32>
    %147 = arith.truncf %146 : vector<8x32xf32> to vector<8x32xbf16>
    %c5 = arith.constant 5 : index
    %c0_78 = arith.constant 0 : index
    %c0_79 = arith.constant 0 : index
    %148 = vector.load %arg1[%c5, %c0_78, %c0_79] : memref<6x8x128xf32, #tpu.memory_space<vmem>>, vector<1x8x128xf32>
    %149 = vector.shape_cast %148 : vector<1x8x128xf32> to vector<8x128xf32>
    %cst_80 = arith.constant dense<0.000000e+00> : vector<8x128xf32>
    %150 = tpu.matmul %147, %3, %cst_80 {dimension_numbers = #tpu.dot_dimension_numbers<[1], [0], [0], [1], [0, 0, 1, 1], [], []>} : vector<8x32xbf16>, vector<32x128xbf16>, vector<8x128xf32> -> vector<8x128xf32>
    %151 = arith.addf %149, %150 : vector<8x128xf32>
    %152 = arith.mulf %151, %12 : vector<8x128xf32>
    %153 = math.tanh %152 : vector<8x128xf32>
    %154 = arith.mulf %153, %12 : vector<8x128xf32>
    %155 = arith.addf %154, %15 : vector<8x128xf32>
    %156 = vector.extract_strided_slice %155 {offsets = [0, 0], sizes = [8, 32], strides = [1, 1]} : vector<8x128xf32> to vector<8x32xf32>
    %157 = vector.extract_strided_slice %155 {offsets = [0, 32], sizes = [8, 32], strides = [1, 1]} : vector<8x128xf32> to vector<8x32xf32>
    %158 = vector.extract_strided_slice %155 {offsets = [0, 64], sizes = [8, 32], strides = [1, 1]} : vector<8x128xf32> to vector<8x32xf32>
    %159 = vector.extract_strided_slice %155 {offsets = [0, 96], sizes = [8, 32], strides = [1, 1]} : vector<8x128xf32> to vector<8x32xf32>
    %c0_81 = arith.constant 0 : index
    %c0_82 = arith.constant 0 : index
    %160 = vector.load %arg5[%c0_81, %c0_82] : memref<8x32xf32, #tpu.memory_space<vmem>>, vector<8x32xf32>
    %161 = arith.mulf %157, %160 : vector<8x32xf32>
    %162 = arith.mulf %156, %158 : vector<8x32xf32>
    %163 = arith.addf %161, %162 : vector<8x32xf32>
    %164 = math.tanh %163 : vector<8x32xf32>
    %165 = arith.mulf %159, %164 : vector<8x32xf32>
    %c0_83 = arith.constant 0 : index
    %c0_84 = arith.constant 0 : index
    %166 = vector.load %arg5[%c0_83, %c0_84] : memref<8x32xf32, #tpu.memory_space<vmem>>, vector<8x32xf32>
    tpu.vector_store %arg5[%c0_83, %c0_84], %163 {strides = array<i32>} : memref<8x32xf32, #tpu.memory_space<vmem>>, vector<8x32xf32>,
    %c0_85 = arith.constant 0 : index
    %c0_86 = arith.constant 0 : index
    %167 = vector.load %arg4[%c0_85, %c0_86] : memref<8x32xf32, #tpu.memory_space<vmem>>, vector<8x32xf32>
    tpu.vector_store %arg4[%c0_85, %c0_86], %165 {strides = array<i32>} : memref<8x32xf32, #tpu.memory_space<vmem>>, vector<8x32xf32>,
    %168 = arith.truncf %165 : vector<8x32xf32> to vector<8x32xbf16>
    %c5_87 = arith.constant 5 : index
    %c0_88 = arith.constant 0 : index
    %c0_89 = arith.constant 0 : index
    %169 = vector.load %arg3[%c5_87, %c0_88, %c0_89] : memref<6x8x32xbf16, #tpu.memory_space<vmem>>, vector<1x8x32xbf16>
    %170 = vector.shape_cast %169 : vector<1x8x32xbf16> to vector<8x32xbf16>
    %171 = vector.shape_cast %168 : vector<8x32xbf16> to vector<1x8x32xbf16>
    tpu.vector_store %arg3[%c5_87, %c0_88, %c0_89], %171 {strides = array<i32>} : memref<6x8x32xbf16, #tpu.memory_space<vmem>>, vector<1x8x32xbf16>,
    return
  }
  func.func @transform_0(%arg0: i32) -> (i32, i32, i32) {
    %c0_i32 = arith.constant 0 : i32
    %c0_i32_0 = arith.constant 0 : i32
    %c0_i32_1 = arith.constant 0 : i32
    return %arg0, %c0_i32, %c0_i32_0 : i32, i32, i32
  }
  func.func @transform_1(%arg0: i32) -> (i32, i32) {
    %c0_i32 = arith.constant 0 : i32
    %c0_i32_0 = arith.constant 0 : i32
    %c0_i32_1 = arith.constant 0 : i32
    return %c0_i32, %c0_i32_0 : i32, i32
  }
  func.func @transform_2(%arg0: i32) -> (i32, i32, i32) {
    %c0_i32 = arith.constant 0 : i32
    %c0_i32_0 = arith.constant 0 : i32
    %c0_i32_1 = arith.constant 0 : i32
    return %arg0, %c0_i32, %c0_i32_0 : i32, i32, i32
  }
}

module attributes {stable_mosaic.version = 11 : i64} {
  func.func @_matmul_bias_kernel(%arg0: i32, %arg1: memref<16x32xbf16, #tpu.memory_space<vmem>>, %arg2: memref<32x2048xbf16, #tpu.memory_space<vmem>>, %arg3: memref<1x2048xf32, #tpu.memory_space<vmem>>, %arg4: memref<16x2048xf32, #tpu.memory_space<vmem>>) attributes {dimension_semantics = [#tpu.dimension_semantics<parallel>], iteration_bounds = array<i64: 1>, scalar_prefetch = 0 : i64, scratch_operands = 0 : i64, tpu.core_type = #tpu.core_type<tc>, window_params = [{transform_indices = @transform_0, window_bounds = array<i64: 16, 32>}, {pipeline_mode = #tpu.pipeline_mode<synchronous>, transform_indices = @transform_1, window_bounds = array<i64: 32, 2048>}, {pipeline_mode = #tpu.pipeline_mode<synchronous>, transform_indices = @transform_2, window_bounds = array<i64: 1, 2048>}, {transform_indices = @transform_3, window_bounds = array<i64: 16, 2048>}]} {
    %c0 = arith.constant 0 : index
    %c0_0 = arith.constant 0 : index
    %0 = vector.load %arg1[%c0, %c0_0] : memref<16x32xbf16, #tpu.memory_space<vmem>>, vector<16x32xbf16>
    %c0_1 = arith.constant 0 : index
    %c0_2 = arith.constant 0 : index
    %1 = vector.load %arg2[%c0_1, %c0_2] : memref<32x2048xbf16, #tpu.memory_space<vmem>>, vector<32x2048xbf16>
    %cst = arith.constant dense<0.000000e+00> : vector<16x2048xf32>
    %2 = tpu.matmul %0, %1, %cst {dimension_numbers = #tpu.dot_dimension_numbers<[1], [0], [0], [1], [0, 0, 1, 1], [], []>} : vector<16x32xbf16>, vector<32x2048xbf16>, vector<16x2048xf32> -> vector<16x2048xf32>
    %c0_3 = arith.constant 0 : index
    %c0_4 = arith.constant 0 : index
    %3 = vector.load %arg3[%c0_3, %c0_4] : memref<1x2048xf32, #tpu.memory_space<vmem>>, vector<1x2048xf32>
    %4 = vector.broadcast %3 : vector<1x2048xf32> to vector<16x2048xf32>
    %5 = arith.addf %2, %4 : vector<16x2048xf32>
    %c0_5 = arith.constant 0 : index
    %c0_6 = arith.constant 0 : index
    %6 = vector.load %arg4[%c0_5, %c0_6] : memref<16x2048xf32, #tpu.memory_space<vmem>>, vector<16x2048xf32>
    tpu.vector_store %arg4[%c0_5, %c0_6], %5 {strides = array<i32>} : memref<16x2048xf32, #tpu.memory_space<vmem>>, vector<16x2048xf32>,
    return
  }
  func.func @transform_0(%arg0: i32) -> (i32, i32) {
    %c0_i32 = arith.constant 0 : i32
    %c0_i32_0 = arith.constant 0 : i32
    return %arg0, %c0_i32 : i32, i32
  }
  func.func @transform_1(%arg0: i32) -> (i32, i32) {
    %c0_i32 = arith.constant 0 : i32
    %c0_i32_0 = arith.constant 0 : i32
    %c0_i32_1 = arith.constant 0 : i32
    return %c0_i32, %c0_i32_0 : i32, i32
  }
  func.func @transform_2(%arg0: i32) -> (i32, i32) {
    %c0_i32 = arith.constant 0 : i32
    %c0_i32_0 = arith.constant 0 : i32
    %c0_i32_1 = arith.constant 0 : i32
    return %c0_i32, %c0_i32_0 : i32, i32
  }
  func.func @transform_3(%arg0: i32) -> (i32, i32) {
    %c0_i32 = arith.constant 0 : i32
    %c0_i32_0 = arith.constant 0 : i32
    return %arg0, %c0_i32 : i32, i32
  }
}

</mosaic_0001>

<llo_original>
// kernel: corr_lstm_forward.7
$region0: #{corr_lstm_forward.7}
  #allocation0 [shape = 'u32[]', space=smem, size = 0x4, offset = 0x4, fixed_abs, tag = 'smem constant byte address 0x4 - core index']
  #allocation1 [shape = 'u32[144,128]{1,0:T(1,128)}', space=vmem, size = 0x12000, scoped, tag = 'internal scratch']
  %s0 = inlined_call_operand.vmem [shape: bf16[16,32], index: 0, kind: input, shape index: {}]
  %s1 = inlined_call_operand.vmem [shape: bf16[32,2048], index: 1, kind: input, shape index: {}]
  %s2 = inlined_call_operand.vmem [shape: f32[1,2048], index: 2, kind: input, shape index: {}]
  %s3 = inlined_call_operand.vmem [shape: f32[16,2048], index: 3, kind: output, shape index: {}]
  %s4 = sld [smem:[#allocation0]]
  $region22: #{corr_lstm_forward.7} parent=0
    _
  %s6 = ssub.s32 1, %s4
  %s7 = scalar_select 0, %s6, %s4
  // Predicated region
  $region2: #{corr_lstm_forward.7} parent=0 // pred_check
    _
  $region3: #{corr_lstm_forward.7} parent=0 // pred_check_branch
    %9 = sbr.rel (0) target = $region5
  $region4: #{corr_lstm_forward.7} parent=0 // pred_region
    _
  $region5: #{corr_lstm_forward.7} parent=0 // pred_fallthru
    _
  // Predicated region
  $region6: #{corr_lstm_forward.7} parent=0 // pred_check
    _
  $region7: #{corr_lstm_forward.7} parent=0 // pred_check_branch
    %11 = sbr.rel (0) target = $region9
  $region8: #{corr_lstm_forward.7} parent=0 // pred_region
    _
  $region9: #{corr_lstm_forward.7} parent=0 // pred_fallthru
    _
  // Predicated region
  $region10: #{corr_lstm_forward.7} parent=0 // pred_check
    _
  $region11: #{corr_lstm_forward.7} parent=0 // pred_check_branch
    %13 = sbr.rel (0) target = $region13
  $region12: #{corr_lstm_forward.7} parent=0 // pred_region
    _
  $region13: #{corr_lstm_forward.7} parent=0 // pred_fallthru
    _
  %v15 = vld [vmem:[%s0] sm:$0xf]
  %v16 = vld [vmem:[%s0 + $0x4] sm:$0xf]
  %v17 = vld [vmem:[%s1] sm:$0xff]
  %v18 = vld [vmem:[%s1 + $0x8] sm:$0xff]
  %v19 = vld [vmem:[%s1 + $0x10] sm:$0xff]
  %v20 = vld [vmem:[%s1 + $0x18] sm:$0xff]
  %v21 = vld [vmem:[%s1 + $0x20] sm:$0xff]
  %v22 = vld [vmem:[%s1 + $0x28] sm:$0xff]
  %v23 = vld [vmem:[%s1 + $0x30] sm:$0xff]
  %v24 = vld [vmem:[%s1 + $0x38] sm:$0xff]
  %v25 = vld [vmem:[%s1 + $0x40] sm:$0xff]
  %v26 = vld [vmem:[%s1 + $0x48] sm:$0xff]
  %v27 = vld [vmem:[%s1 + $0x50] sm:$0xff]
  %v28 = vld [vmem:[%s1 + $0x58] sm:$0xff]
  %v29 = vld [vmem:[%s1 + $0x60] sm:$0xff]
  %v30 = vld [vmem:[%s1 + $0x68] sm:$0xff]
  %v31 = vld [vmem:[%s1 + $0x70] sm:$0xff]
  %v32 = vld [vmem:[%s1 + $0x78] sm:$0xff]
  %v33 = vld [vmem:[%s1 + $0x80] sm:$0xff]
  %v34 = vld [vmem:[%s1 + $0x88] sm:$0xff]
  %v35 = vld [vmem:[%s1 + $0x90] sm:$0xff]
  %v36 = vld [vmem:[%s1 + $0x98] sm:$0xff]
  %v37 = vld [vmem:[%s1 + $0xa0] sm:$0xff]
  %v38 = vld [vmem:[%s1 + $0xa8] sm:$0xff]
  %v39 = vld [vmem:[%s1 + $0xb0] sm:$0xff]
  %v40 = vld [vmem:[%s1 + $0xb8] sm:$0xff]
  %v41 = vld [vmem:[%s1 + $0xc0] sm:$0xff]
  %v42 = vld [vmem:[%s1 + $0xc8] sm:$0xff]
  %v43 = vld [vmem:[%s1 + $0xd0] sm:$0xff]
  %v44 = vld [vmem:[%s1 + $0xd8] sm:$0xff]
  %v45 = vld [vmem:[%s1 + $0xe0] sm:$0xff]
  %v46 = vld [vmem:[%s1 + $0xe8] sm:$0xff]
  %v47 = vld [vmem:[%s1 + $0xf0] sm:$0xff]
  %v48 = vld [vmem:[%s1 + $0xf8] sm:$0xff]
  %v49 = vld [vmem:[%s2] sm:$0xff]
  %v50 = vld [vmem:[%s2 + $0x8] sm:$0xff]
  %v53 = vlaneseq
  %v54 = vshrl.u32 %v53, 7
  %v55 = vsub.s32 0, %v54
  %v56 = vrot.slane %v49, %v55
  %v57 = vlaneseq
  %v58 = vshrl.u32 %v57, 7
  %v59 = vsub.s32 1, %v58
  %v60 = vrot.slane %v49, %v59
  %v61 = vlaneseq
  %v62 = vshrl.u32 %v61, 7
  %v63 = vsub.s32 2, %v62
  %v64 = vrot.slane %v49, %v63
  %v65 = vlaneseq
  %v66 = vshrl.u32 %v65, 7
  %v67 = vsub.s32 3, %v66
  %v68 = vrot.slane %v49, %v67
  %v69 = vlaneseq
  %v70 = vshrl.u32 %v69, 7
  %v71 = vsub.s32 4, %v70
  %v72 = vrot.slane %v49, %v71
  %v73 = vlaneseq
  %v74 = vshrl.u32 %v73, 7
  %v75 = vsub.s32 5, %v74
  %v76 = vrot.slane %v49, %v75
  %v77 = vlaneseq
  %v78 = vshrl.u32 %v77, 7
  %v79 = vsub.s32 6, %v78
  %v80 = vrot.slane %v49, %v79
  %v81 = vlaneseq
  %v82 = vshrl.u32 %v81, 7
  %v83 = vsub.s32 7, %v82
  %v84 = vrot.slane %v49, %v83
  %v85 = vlaneseq
  %v86 = vshrl.u32 %v85, 7
  %v87 = vsub.s32 0, %v86
  %v88 = vrot.slane %v50, %v87
  %v89 = vlaneseq
  %v90 = vshrl.u32 %v89, 7
  %v91 = vsub.s32 1, %v90
  %v92 = vrot.slane %v50, %v91
  %v93 = vlaneseq
  %v94 = vshrl.u32 %v93, 7
  %v95 = vsub.s32 2, %v94
  %v96 = vrot.slane %v50, %v95
  %v97 = vlaneseq
  %v98 = vshrl.u32 %v97, 7
  %v99 = vsub.s32 3, %v98
  %v100 = vrot.slane %v50, %v99
  %v101 = vlaneseq
  %v102 = vshrl.u32 %v101, 7
  %v103 = vsub.s32 4, %v102
  %v104 = vrot.slane %v50, %v103
  %v105 = vlaneseq
  %v106 = vshrl.u32 %v105, 7
  %v107 = vsub.s32 5, %v106
  %v108 = vrot.slane %v50, %v107
  %v109 = vlaneseq
  %v110 = vshrl.u32 %v109, 7
  %v111 = vsub.s32 6, %v110
  %v112 = vrot.slane %v50, %v111
  %v113 = vlaneseq
  %v114 = vshrl.u32 %v113, 7
  %v115 = vsub.s32 7, %v114
  %v116 = vrot.slane %v50, %v115
  %v135 = vunpack.c.l.b16 %v15
  %v136 = vunpack.c.l.b16 %v16
  %v137 = vpack.c.b16 %v136, %v135
  %v170 = vunpack.c.l.b16 %v17
  %v171 = vunpack.c.h.b16 %v17
  %v172 = vunpack.c.l.b16 %v18
  %v173 = vunpack.c.h.b16 %v18
  %v174 = vunpack.c.l.b16 %v19
  %v175 = vunpack.c.h.b16 %v19
  %v176 = vunpack.c.l.b16 %v20
  %v177 = vunpack.c.h.b16 %v20
  %v178 = vunpack.c.l.b16 %v21
  %v179 = vunpack.c.h.b16 %v21
  %v180 = vunpack.c.l.b16 %v22
  %v181 = vunpack.c.h.b16 %v22
  %v182 = vunpack.c.l.b16 %v23
  %v183 = vunpack.c.h.b16 %v23
  %v184 = vunpack.c.l.b16 %v24
  %v185 = vunpack.c.h.b16 %v24
  %v186 = vunpack.c.l.b16 %v25
  %v187 = vunpack.c.h.b16 %v25
  %v188 = vunpack.c.l.b16 %v26
  %v189 = vunpack.c.h.b16 %v26
  %v190 = vunpack.c.l.b16 %v27
  %v191 = vunpack.c.h.b16 %v27
  %v192 = vunpack.c.l.b16 %v28
  %v193 = vunpack.c.h.b16 %v28
  %v194 = vunpack.c.l.b16 %v29
  %v195 = vunpack.c.h.b16 %v29
  %v196 = vunpack.c.l.b16 %v30
  %v197 = vunpack.c.h.b16 %v30
  %v198 = vunpack.c.l.b16 %v31
  %v199 = vunpack.c.h.b16 %v31
  %v200 = vunpack.c.l.b16 %v32
  %v201 = vunpack.c.h.b16 %v32
  %v202 = vunpack.c.l.b16 %v33
  %v203 = vunpack.c.h.b16 %v33
  %v204 = vunpack.c.l.b16 %v34
  %v205 = vunpack.c.h.b16 %v34
  %v206 = vunpack.c.l.b16 %v35
  %v207 = vunpack.c.h.b16 %v35
  %v208 = vunpack.c.l.b16 %v36
  %v209 = vunpack.c.h.b16 %v36
  %v210 = vunpack.c.l.b16 %v37
  %v211 = vunpack.c.h.b16 %v37
  %v212 = vunpack.c.l.b16 %v38
  %v213 = vunpack.c.h.b16 %v38
  %v214 = vunpack.c.l.b16 %v39
  %v215 = vunpack.c.h.b16 %v39
  %v216 = vunpack.c.l.b16 %v40
  %v217 = vunpack.c.h.b16 %v40
  %v218 = vunpack.c.l.b16 %v41
  %v219 = vunpack.c.h.b16 %v41
  %v220 = vunpack.c.l.b16 %v42
  %v221 = vunpack.c.h.b16 %v42
  %v222 = vunpack.c.l.b16 %v43
  %v223 = vunpack.c.h.b16 %v43
  %v224 = vunpack.c.l.b16 %v44
  %v225 = vunpack.c.h.b16 %v44
  %v226 = vunpack.c.l.b16 %v45
  %v227 = vunpack.c.h.b16 %v45
  %v228 = vunpack.c.l.b16 %v46
  %v229 = vunpack.c.h.b16 %v46
  %v230 = vunpack.c.l.b16 %v47
  %v231 = vunpack.c.h.b16 %v47
  %v232 = vunpack.c.l.b16 %v48
  %v233 = vunpack.c.h.b16 %v48
  %v234 = vpack.c.b16 %v186, %v170
  %v235 = vpack.c.b16 %v187, %v171
  %v236 = vpack.c.b16 %v188, %v172
  %v237 = vpack.c.b16 %v189, %v173
  %v238 = vpack.c.b16 %v190, %v174
  %v239 = vpack.c.b16 %v191, %v175
  %v240 = vpack.c.b16 %v192, %v176
  %v241 = vpack.c.b16 %v193, %v177
  %v242 = vpack.c.b16 %v194, %v178
  %v243 = vpack.c.b16 %v195, %v179
  %v244 = vpack.c.b16 %v196, %v180
  %v245 = vpack.c.b16 %v197, %v181
  %v246 = vpack.c.b16 %v198, %v182
  %v247 = vpack.c.b16 %v199, %v183
  %v248 = vpack.c.b16 %v200, %v184
  %v249 = vpack.c.b16 %v201, %v185
  %v250 = vpack.c.b16 %v218, %v202
  %v251 = vpack.c.b16 %v219, %v203
  %v252 = vpack.c.b16 %v220, %v204
  %v253 = vpack.c.b16 %v221, %v205
  %v254 = vpack.c.b16 %v222, %v206
  %v255 = vpack.c.b16 %v223, %v207
  %v256 = vpack.c.b16 %v224, %v208
  %v257 = vpack.c.b16 %v225, %v209
  %v258 = vpack.c.b16 %v226, %v210
  %v259 = vpack.c.b16 %v227, %v211
  %v260 = vpack.c.b16 %v228, %v212
  %v261 = vpack.c.b16 %v229, %v213
  %v262 = vpack.c.b16 %v230, %v214
  %v263 = vpack.c.b16 %v231, %v215
  %v264 = vpack.c.b16 %v232, %v216
  %v265 = vpack.c.b16 %v233, %v217
  %vm298 = vcmask 261120
  %v300 = vsel %vm298, %v137, 0
  %302 = vmatprep.subr.bf16.mxu0 %v235
  %303 = vmatpush1.bf16.msra.mxu0 %v234
  %304 = vmatprep.subr.bf16.mxu0 %v251
  %305 = vmatpush1.bf16.msra.mxu0 %v250
  %306 = vmatprep.subr.bf16.mxu0 0
  %307 = vmatpush1.bf16.msra.mxu0 0
  %308 = vmatprep.subr.bf16.mxu0 0
  %309 = vmatpush1.bf16.msra.mxu0 0
  %310 = vmatprep.subr.bf16.mxu0 0
  %311 = vmatpush1.bf16.msra.mxu0 0
  %312 = vmatprep.subr.bf16.mxu0 0
  %313 = vmatpush1.bf16.msra.mxu0 0
  %314 = vmatprep.subr.bf16.mxu0 0
  %315 = vmatpush1.bf16.msra.mxu0 0
  %316 = vmatprep.subr.bf16.mxu0 0
  %317 = vmatpush1.bf16.msra.mxu0 0
  %318 = vmatprep.subr.bf16.mxu0 0
  %319 = vmatpush1.bf16.msra.mxu0 0
  %320 = vmatprep.subr.bf16.mxu0 0
  %321 = vmatpush1.bf16.msra.mxu0 0
  %322 = vmatprep.subr.bf16.mxu0 0
  %323 = vmatpush1.bf16.msra.mxu0 0
  %324 = vmatprep.subr.bf16.mxu0 0
  %325 = vmatpush1.bf16.msra.mxu0 0
  %326 = vmatprep.subr.bf16.mxu0 0
  %327 = vmatpush1.bf16.msra.mxu0 0
  %328 = vmatprep.subr.bf16.mxu0 0
  %329 = vmatpush1.bf16.msra.mxu0 0
  %330 = vmatprep.subr.bf16.mxu0 0
  %331 = vmatpush1.bf16.msra.mxu0 0
  %332 = vmatprep.subr.bf16.mxu0 0
  %333 = vmatpush1.bf16.msra.mxu0 0
  %334 = vmatprep.mubr.bf16.mxu0 0
  %335 = vmatmul.mubr.bf16.gmra.mrb[0].mxu0 %v300
  %v336 = vpop.f32.mrb[0].mxu0
  %v337 = vadd.f32 %v56, %v336
  %v338 = vpop.f32.mrb[0].mxu0
  %v339 = vadd.f32 %v60, %v338
  %v340 = vpop.f32.mrb[0].mxu0
  %v341 = vadd.f32 %v56, %v340
  %v342 = vpop.f32.mrb[0].mxu0
  %v343 = vadd.f32 %v60, %v342
  %344 = vdwg.mxu0
  %345 = vmatprep.subr.bf16.mxu0 %v237
  %346 = vmatpush1.bf16.msra.mxu0 %v236
  %347 = vmatprep.subr.bf16.mxu0 %v253
  %348 = vmatpush1.bf16.msra.mxu0 %v252
  %349 = vmatprep.subr.bf16.mxu0 0
  %350 = vmatpush1.bf16.msra.mxu0 0
  %351 = vmatprep.subr.bf16.mxu0 0
  %352 = vmatpush1.bf16.msra.mxu0 0
  %353 = vmatprep.subr.bf16.mxu0 0
  %354 = vmatpush1.bf16.msra.mxu0 0
  %355 = vmatprep.subr.bf16.mxu0 0
  %356 = vmatpush1.bf16.msra.mxu0 0
  %357 = vmatprep.subr.bf16.mxu0 0
  %358 = vmatpush1.bf16.msra.mxu0 0
  %359 = vmatprep.subr.bf16.mxu0 0
  %360 = vmatpush1.bf16.msra.mxu0 0
  %361 = vmatprep.subr.bf16.mxu0 0
  %362 = vmatpush1.bf16.msra.mxu0 0
  %363 = vmatprep.subr.bf16.mxu0 0
  %364 = vmatpush1.bf16.msra.mxu0 0
  %365 = vmatprep.subr.bf16.mxu0 0
  %366 = vmatpush1.bf16.msra.mxu0 0
  %367 = vmatprep.subr.bf16.mxu0 0
  %368 = vmatpush1.bf16.msra.mxu0 0
  %369 = vmatprep.subr.bf16.mxu0 0
  %370 = vmatpush1.bf16.msra.mxu0 0
  %371 = vmatprep.subr.bf16.mxu0 0
  %372 = vmatpush1.bf16.msra.mxu0 0
  %373 = vmatprep.subr.bf16.mxu0 0
  %374 = vmatpush1.bf16.msra.mxu0 0
  %375 = vmatprep.subr.bf16.mxu0 0
  %376 = vmatpush1.bf16.msra.mxu0 0
  %377 = vmatprep.mubr.bf16.mxu0 0
  %378 = vmatmul.mubr.bf16.gmra.mrb[0].mxu0 %v300
  %v379 = vpop.f32.mrb[0].mxu0
  %v380 = vadd.f32 %v64, %v379
  %v381 = vpop.f32.mrb[0].mxu0
  %v382 = vadd.f32 %v68, %v381
  %v383 = vpop.f32.mrb[0].mxu0
  %v384 = vadd.f32 %v64, %v383
  %v385 = vpop.f32.mrb[0].mxu0
  %v386 = vadd.f32 %v68, %v385
  %387 = vdwg.mxu0
  %388 = vmatprep.subr.bf16.mxu0 %v239
  %389 = vmatpush1.bf16.msra.mxu0 %v238
  %390 = vmatprep.subr.bf16.mxu0 %v255
  %391 = vmatpush1.bf16.msra.mxu0 %v254
  %392 = vmatprep.subr.bf16.mxu0 0
  %393 = vmatpush1.bf16.msra.mxu0 0
  %394 = vmatprep.subr.bf16.mxu0 0
  %395 = vmatpush1.bf16.msra.mxu0 0
  %396 = vmatprep.subr.bf16.mxu0 0
  %397 = vmatpush1.bf16.msra.mxu0 0
  %398 = vmatprep.subr.bf16.mxu0 0
  %399 = vmatpush1.bf16.msra.mxu0 0
  %400 = vmatprep.subr.bf16.mxu0 0
  %401 = vmatpush1.bf16.msra.mxu0 0
  %402 = vmatprep.subr.bf16.mxu0 0
  %403 = vmatpush1.bf16.msra.mxu0 0
  %404 = vmatprep.subr.bf16.mxu0 0
  %405 = vmatpush1.bf16.msra.mxu0 0
  %406 = vmatprep.subr.bf16.mxu0 0
  %407 = vmatpush1.bf16.msra.mxu0 0
  %408 = vmatprep.subr.bf16.mxu0 0
  %409 = vmatpush1.bf16.msra.mxu0 0
  %410 = vmatprep.subr.bf16.mxu0 0
  %411 = vmatpush1.bf16.msra.mxu0 0
  %412 = vmatprep.subr.bf16.mxu0 0
  %413 = vmatpush1.bf16.msra.mxu0 0
  %414 = vmatprep.subr.bf16.mxu0 0
  %415 = vmatpush1.bf16.msra.mxu0 0
  %416 = vmatprep.subr.bf16.mxu0 0
  %417 = vmatpush1.bf16.msra.mxu0 0
  %418 = vmatprep.subr.bf16.mxu0 0
  %419 = vmatpush1.bf16.msra.mxu0 0
  %420 = vmatprep.mubr.bf16.mxu0 0
  %421 = vmatmul.mubr.bf16.gmra.mrb[0].mxu0 %v300
  %v422 = vpop.f32.mrb[0].mxu0
  %v423 = vadd.f32 %v72, %v422
  %v424 = vpop.f32.mrb[0].mxu0
  %v425 = vadd.f32 %v76, %v424
  %v426 = vpop.f32.mrb[0].mxu0
  %v427 = vadd.f32 %v72, %v426
  %v428 = vpop.f32.mrb[0].mxu0
  %v429 = vadd.f32 %v76, %v428
  %430 = vdwg.mxu0
  %431 = vmatprep.subr.bf16.mxu0 %v241
  %432 = vmatpush1.bf16.msra.mxu0 %v240
  %433 = vmatprep.subr.bf16.mxu0 %v257
  %434 = vmatpush1.bf16.msra.mxu0 %v256
  %435 = vmatprep.subr.bf16.mxu0 0
  %436 = vmatpush1.bf16.msra.mxu0 0
  %437 = vmatprep.subr.bf16.mxu0 0
  %438 = vmatpush1.bf16.msra.mxu0 0
  %439 = vmatprep.subr.bf16.mxu0 0
  %440 = vmatpush1.bf16.msra.mxu0 0
  %441 = vmatprep.subr.bf16.mxu0 0
  %442 = vmatpush1.bf16.msra.mxu0 0
  %443 = vmatprep.subr.bf16.mxu0 0
  %444 = vmatpush1.bf16.msra.mxu0 0
  %445 = vmatprep.subr.bf16.mxu0 0
  %446 = vmatpush1.bf16.msra.mxu0 0
  %447 = vmatprep.subr.bf16.mxu0 0
  %448 = vmatpush1.bf16.msra.mxu0 0
  %449 = vmatprep.subr.bf16.mxu0 0
  %450 = vmatpush1.bf16.msra.mxu0 0
  %451 = vmatprep.subr.bf16.mxu0 0
  %452 = vmatpush1.bf16.msra.mxu0 0
  %453 = vmatprep.subr.bf16.mxu0 0
  %454 = vmatpush1.bf16.msra.mxu0 0
  %455 = vmatprep.subr.bf16.mxu0 0
  %456 = vmatpush1.bf16.msra.mxu0 0
  %457 = vmatprep.subr.bf16.mxu0 0
  %458 = vmatpush1.bf16.msra.mxu0 0
  %459 = vmatprep.subr.bf16.mxu0 0
  %460 = vmatpush1.bf16.msra.mxu0 0
  %461 = vmatprep.subr.bf16.mxu0 0
  %462 = vmatpush1.bf16.msra.mxu0 0
  %463 = vmatprep.mubr.bf16.mxu0 0
  %464 = vmatmul.mubr.bf16.gmra.mrb[0].mxu0 %v300
  %v465 = vpop.f32.mrb[0].mxu0
  %v466 = vadd.f32 %v80, %v465
  %v467 = vpop.f32.mrb[0].mxu0
  %v468 = vadd.f32 %v84, %v467
  %v469 = vpop.f32.mrb[0].mxu0
  %v470 = vadd.f32 %v80, %v469
  %v471 = vpop.f32.mrb[0].mxu0
  %v472 = vadd.f32 %v84, %v471
  %473 = vdwg.mxu0
  %474 = vmatprep.subr.bf16.mxu0 %v243
  %475 = vmatpush1.bf16.msra.mxu0 %v242
  %476 = vmatprep.subr.bf16.mxu0 %v259
  %477 = vmatpush1.bf16.msra.mxu0 %v258
  %478 = vmatprep.subr.bf16.mxu0 0
  %479 = vmatpush1.bf16.msra.mxu0 0
  %480 = vmatprep.subr.bf16.mxu0 0
  %481 = vmatpush1.bf16.msra.mxu0 0
  %482 = vmatprep.subr.bf16.mxu0 0
  %483 = vmatpush1.bf16.msra.mxu0 0
  %484 = vmatprep.subr.bf16.mxu0 0
  %485 = vmatpush1.bf16.msra.mxu0 0
  %486 = vmatprep.subr.bf16.mxu0 0
  %487 = vmatpush1.bf16.msra.mxu0 0
  %488 = vmatprep.subr.bf16.mxu0 0
  %489 = vmatpush1.bf16.msra.mxu0 0
  %490 = vmatprep.subr.bf16.mxu0 0
  %491 = vmatpush1.bf16.msra.mxu0 0
  %492 = vmatprep.subr.bf16.mxu0 0
  %493 = vmatpush1.bf16.msra.mxu0 0
  %494 = vmatprep.subr.bf16.mxu0 0
  %495 = vmatpush1.bf16.msra.mxu0 0
  %496 = vmatprep.subr.bf16.mxu0 0
  %497 = vmatpush1.bf16.msra.mxu0 0
  %498 = vmatprep.subr.bf16.mxu0 0
  %499 = vmatpush1.bf16.msra.mxu0 0
  %500 = vmatprep.subr.bf16.mxu0 0
  %501 = vmatpush1.bf16.msra.mxu0 0
  %502 = vmatprep.subr.bf16.mxu0 0
  %503 = vmatpush1.bf16.msra.mxu0 0
  %504 = vmatprep.subr.bf16.mxu0 0
  %505 = vmatpush1.bf16.msra.mxu0 0
  %506 = vmatprep.mubr.bf16.mxu0 0
  %507 = vmatmul.mubr.bf16.gmra.mrb[0].mxu0 %v300
  %v508 = vpop.f32.mrb[0].mxu0
  %v509 = vadd.f32 %v88, %v508
  %v510 = vpop.f32.mrb[0].mxu0
  %v511 = vadd.f32 %v92, %v510
  %v512 = vpop.f32.mrb[0].mxu0
  %v513 = vadd.f32 %v88, %v512
  %v514 = vpop.f32.mrb[0].mxu0
  %v515 = vadd.f32 %v92, %v514
  %516 = vdwg.mxu0
  %517 = vmatprep.subr.bf16.mxu0 %v245
  %518 = vmatpush1.bf16.msra.mxu0 %v244
  %519 = vmatprep.subr.bf16.mxu0 %v261
  %520 = vmatpush1.bf16.msra.mxu0 %v260
  %521 = vmatprep.subr.bf16.mxu0 0
  %522 = vmatpush1.bf16.msra.mxu0 0
  %523 = vmatprep.subr.bf16.mxu0 0
  %524 = vmatpush1.bf16.msra.mxu0 0
  %525 = vmatprep.subr.bf16.mxu0 0
  %526 = vmatpush1.bf16.msra.mxu0 0
  %527 = vmatprep.subr.bf16.mxu0 0
  %528 = vmatpush1.bf16.msra.mxu0 0
  %529 = vmatprep.subr.bf16.mxu0 0
  %530 = vmatpush1.bf16.msra.mxu0 0
  %531 = vmatprep.subr.bf16.mxu0 0
  %532 = vmatpush1.bf16.msra.mxu0 0
  %533 = vmatprep.subr.bf16.mxu0 0
  %534 = vmatpush1.bf16.msra.mxu0 0
  %535 = vmatprep.subr.bf16.mxu0 0
  %536 = vmatpush1.bf16.msra.mxu0 0
  %537 = vmatprep.subr.bf16.mxu0 0
  %538 = vmatpush1.bf16.msra.mxu0 0
  %539 = vmatprep.subr.bf16.mxu0 0
  %540 = vmatpush1.bf16.msra.mxu0 0
  %541 = vmatprep.subr.bf16.mxu0 0
  %542 = vmatpush1.bf16.msra.mxu0 0
  %543 = vmatprep.subr.bf16.mxu0 0
  %544 = vmatpush1.bf16.msra.mxu0 0
  %545 = vmatprep.subr.bf16.mxu0 0
  %546 = vmatpush1.bf16.msra.mxu0 0
  %547 = vmatprep.subr.bf16.mxu0 0
  %548 = vmatpush1.bf16.msra.mxu0 0
  %549 = vmatprep.mubr.bf16.mxu0 0
  %550 = vmatmul.mubr.bf16.gmra.mrb[0].mxu0 %v300
  %v551 = vpop.f32.mrb[0].mxu0
  %v552 = vadd.f32 %v96, %v551
  %v553 = vpop.f32.mrb[0].mxu0
  %v554 = vadd.f32 %v100, %v553
  %v555 = vpop.f32.mrb[0].mxu0
  %v556 = vadd.f32 %v96, %v555
  %v557 = vpop.f32.mrb[0].mxu0
  %v558 = vadd.f32 %v100, %v557
  %559 = vdwg.mxu0
  %560 = vmatprep.subr.bf16.mxu0 %v247
  %561 = vmatpush1.bf16.msra.mxu0 %v246
  %562 = vmatprep.subr.bf16.mxu0 %v263
  %563 = vmatpush1.bf16.msra.mxu0 %v262
  %564 = vmatprep.subr.bf16.mxu0 0
  %565 = vmatpush1.bf16.msra.mxu0 0
  %566 = vmatprep.subr.bf16.mxu0 0
  %567 = vmatpush1.bf16.msra.mxu0 0
  %568 = vmatprep.subr.bf16.mxu0 0
  %569 = vmatpush1.bf16.msra.mxu0 0
  %570 = vmatprep.subr.bf16.mxu0 0
  %571 = vmatpush1.bf16.msra.mxu0 0
  %572 = vmatprep.subr.bf16.mxu0 0
  %573 = vmatpush1.bf16.msra.mxu0 0
  %574 = vmatprep.subr.bf16.mxu0 0
  %575 = vmatpush1.bf16.msra.mxu0 0
  %576 = vmatprep.subr.bf16.mxu0 0
  %577 = vmatpush1.bf16.msra.mxu0 0
  %578 = vmatprep.subr.bf16.mxu0 0
  %579 = vmatpush1.bf16.msra.mxu0 0
  %580 = vmatprep.subr.bf16.mxu0 0
  %581 = vmatpush1.bf16.msra.mxu0 0
  %582 = vmatprep.subr.bf16.mxu0 0
  %583 = vmatpush1.bf16.msra.mxu0 0
  %584 = vmatprep.subr.bf16.mxu0 0
  %585 = vmatpush1.bf16.msra.mxu0 0
  %586 = vmatprep.subr.bf16.mxu0 0
  %587 = vmatpush1.bf16.msra.mxu0 0
  %588 = vmatprep.subr.bf16.mxu0 0
  %589 = vmatpush1.bf16.msra.mxu0 0
  %590 = vmatprep.subr.bf16.mxu0 0
  %591 = vmatpush1.bf16.msra.mxu0 0
  %592 = vmatprep.mubr.bf16.mxu0 0
  %593 = vmatmul.mubr.bf16.gmra.mrb[0].mxu0 %v300
  %v594 = vpop.f32.mrb[0].mxu0
  %v595 = vadd.f32 %v104, %v594
  %v596 = vpop.f32.mrb[0].mxu0
  %v597 = vadd.f32 %v108, %v596
  %v598 = vpop.f32.mrb[0].mxu0
  %v599 = vadd.f32 %v104, %v598
  %v600 = vpop.f32.mrb[0].mxu0
  %v601 = vadd.f32 %v108, %v600
  %602 = vdwg.mxu0
  %603 = vmatprep.subr.bf16.mxu0 %v249
  %604 = vmatpush1.bf16.msra.mxu0 %v248
  %605 = vmatprep.subr.bf16.mxu0 %v265
  %606 = vmatpush1.bf16.msra.mxu0 %v264
  %607 = vmatprep.subr.bf16.mxu0 0
  %608 = vmatpush1.bf16.msra.mxu0 0
  %609 = vmatprep.subr.bf16.mxu0 0
  %610 = vmatpush1.bf16.msra.mxu0 0
  %611 = vmatprep.subr.bf16.mxu0 0
  %612 = vmatpush1.bf16.msra.mxu0 0
  %613 = vmatprep.subr.bf16.mxu0 0
  %614 = vmatpush1.bf16.msra.mxu0 0
  %615 = vmatprep.subr.bf16.mxu0 0
  %616 = vmatpush1.bf16.msra.mxu0 0
  %617 = vmatprep.subr.bf16.mxu0 0
  %618 = vmatpush1.bf16.msra.mxu0 0
  %619 = vmatprep.subr.bf16.mxu0 0
  %620 = vmatpush1.bf16.msra.mxu0 0
  %621 = vmatprep.subr.bf16.mxu0 0
  %622 = vmatpush1.bf16.msra.mxu0 0
  %623 = vmatprep.subr.bf16.mxu0 0
  %624 = vmatpush1.bf16.msra.mxu0 0
  %625 = vmatprep.subr.bf16.mxu0 0
  %626 = vmatpush1.bf16.msra.mxu0 0
  %627 = vmatprep.subr.bf16.mxu0 0
  %628 = vmatpush1.bf16.msra.mxu0 0
  %629 = vmatprep.subr.bf16.mxu0 0
  %630 = vmatpush1.bf16.msra.mxu0 0
  %631 = vmatprep.subr.bf16.mxu0 0
  %632 = vmatpush1.bf16.msra.mxu0 0
  %633 = vmatprep.subr.bf16.mxu0 0
  %634 = vmatpush1.bf16.msra.mxu0 0
  %635 = vmatprep.mubr.bf16.mxu0 0
  %636 = vmatmul.mubr.bf16.gmra.mrb[0].mxu0 %v300
  %v637 = vpop.f32.mrb[0].mxu0
  %v638 = vadd.f32 %v112, %v637
  %v639 = vpop.f32.mrb[0].mxu0
  %v640 = vadd.f32 %v116, %v639
  %v641 = vpop.f32.mrb[0].mxu0
  %v642 = vadd.f32 %v112, %v641
  %v643 = vpop.f32.mrb[0].mxu0
  %v644 = vadd.f32 %v116, %v643
  %645 = vdwg.mxu0
  %646 = vst [vmem:[%s3] sm:$0xff] %v337
  %647 = vst [vmem:[%s3 + $0x8] sm:$0xff] %v339
  %648 = vst [vmem:[%s3 + $0x10] sm:$0xff] %v380
  %649 = vst [vmem:[%s3 + $0x18] sm:$0xff] %v382
  %650 = vst [vmem:[%s3 + $0x20] sm:$0xff] %v423
  %651 = vst [vmem:[%s3 + $0x28] sm:$0xff] %v425
  %652 = vst [vmem:[%s3 + $0x30] sm:$0xff] %v466
  %653 = vst [vmem:[%s3 + $0x38] sm:$0xff] %v468
  %654 = vst [vmem:[%s3 + $0x40] sm:$0xff] %v509
  %655 = vst [vmem:[%s3 + $0x48] sm:$0xff] %v511
  %656 = vst [vmem:[%s3 + $0x50] sm:$0xff] %v552
  %657 = vst [vmem:[%s3 + $0x58] sm:$0xff] %v554
  %658 = vst [vmem:[%s3 + $0x60] sm:$0xff] %v595
  %659 = vst [vmem:[%s3 + $0x68] sm:$0xff] %v597
  %660 = vst [vmem:[%s3 + $0x70] sm:$0xff] %v638
  %661 = vst [vmem:[%s3 + $0x78] sm:$0xff] %v640
  %662 = vst [vmem:[%s3 + $0x80] sm:$0xff] %v341
  %663 = vst [vmem:[%s3 + $0x88] sm:$0xff] %v343
  %664 = vst [vmem:[%s3 + $0x90] sm:$0xff] %v384
  %665 = vst [vmem:[%s3 + $0x98] sm:$0xff] %v386
  %666 = vst [vmem:[%s3 + $0xa0] sm:$0xff] %v427
  %667 = vst [vmem:[%s3 + $0xa8] sm:$0xff] %v429
  %668 = vst [vmem:[%s3 + $0xb0] sm:$0xff] %v470
  %669 = vst [vmem:[%s3 + $0xb8] sm:$0xff] %v472
  %670 = vst [vmem:[%s3 + $0xc0] sm:$0xff] %v513
  %671 = vst [vmem:[%s3 + $0xc8] sm:$0xff] %v515
  %672 = vst [vmem:[%s3 + $0xd0] sm:$0xff] %v556
  %673 = vst [vmem:[%s3 + $0xd8] sm:$0xff] %v558
  %674 = vst [vmem:[%s3 + $0xe0] sm:$0xff] %v599
  %675 = vst [vmem:[%s3 + $0xe8] sm:$0xff] %v601
  %676 = vst [vmem:[%s3 + $0xf0] sm:$0xff] %v642
  %677 = vst [vmem:[%s3 + $0xf8] sm:$0xff] %v644
  // Predicated region
  $region14: #{corr_lstm_forward.7} parent=0 // pred_check
    _
  $region15: #{corr_lstm_forward.7} parent=0 // pred_check_branch
    %679 = sbr.rel (0) target = $region17
  $region16: #{corr_lstm_forward.7} parent=0 // pred_region
    _
  $region17: #{corr_lstm_forward.7} parent=0 // pred_fallthru
    _
  // Predicated region
  $region18: #{corr_lstm_forward.7} parent=0 // pred_check
    _
  $region19: #{corr_lstm_forward.7} parent=0 // pred_check_branch
    %681 = sbr.rel (0) target = $region21
  $region20: #{corr_lstm_forward.7} parent=0 // pred_region
    _
  $region21: #{corr_lstm_forward.7} parent=0 // pred_fallthru
    _

// kernel: corr_lstm_forward.6
$region0: #{corr_lstm_forward.6}
  #allocation0 [shape = 'u32[]', space=smem, size = 0x4, offset = 0x4, fixed_abs, tag = 'smem constant byte address 0x4 - core index']
  #allocation1 [shape = 'u32[144,128]{1,0:T(1,128)}', space=vmem, size = 0x12000, scoped, tag = 'internal scratch']
  #allocation2 [shape = 'f32[8,32]{1,0:T(8,128)}', space=vmem, size = 0x1000, scoped, tag = 'scratch operand']
  #allocation3 [shape = 'f32[8,32]{1,0:T(8,128)}', space=vmem, size = 0x1000, scoped, tag = 'scratch operand']
  %s0 = inlined_call_operand.vmem [shape: f32[6,8,128], index: 0, kind: input, shape index: {}]
  %s1 = inlined_call_operand.vmem [shape: bf16[32,128], index: 1, kind: input, shape index: {}]
  %s2 = inlined_call_operand.vmem [shape: bf16[6,8,32], index: 2, kind: output, shape index: {}]
  %s3 = sld [smem:[#allocation0]]
  $region22: #{corr_lstm_forward.6} parent=0
    _
  %s5 = ssub.s32 1, %s3
  %s6 = scalar_select 0, %s5, %s3
  // Predicated region
  $region2: #{corr_lstm_forward.6} parent=0 // pred_check
    _
  $region3: #{corr_lstm_forward.6} parent=0 // pred_check_branch
    %8 = sbr.rel (0) target = $region5
  $region4: #{corr_lstm_forward.6} parent=0 // pred_region
    _
  $region5: #{corr_lstm_forward.6} parent=0 // pred_fallthru
    _
  // Predicated region
  $region6: #{corr_lstm_forward.6} parent=0 // pred_check
    _
  $region7: #{corr_lstm_forward.6} parent=0 // pred_check_branch
    %10 = sbr.rel (0) target = $region9
  $region8: #{corr_lstm_forward.6} parent=0 // pred_region
    _
  $region9: #{corr_lstm_forward.6} parent=0 // pred_fallthru
    _
  %p12 = scmp.eq.s32.totalorder 0, 0
  // Predicated region
  $region10: #{corr_lstm_forward.6} parent=0 // pred_check
    %p13 = pneg %p12
  $region11: #{corr_lstm_forward.6} parent=0 // pred_check_branch
    %15 = sbr.rel (%p13) target = $region13
  $region12: #{corr_lstm_forward.6} parent=0 // pred_region
    %vm16 = vcmask 261120
    %17 = vst.msk [vmem:[#allocation2] sm:$0xff] %vm16, 0.0
    %18 = vst.msk [vmem:[#allocation3] sm:$0xff] %vm16, 0.0
  $region13: #{corr_lstm_forward.6} parent=0 // pred_fallthru
    _
  %v19 = vld [vmem:[%s1] sm:$0xf]
  %v20 = vld [vmem:[%s1 + $0x4] sm:$0xf]
  %v21 = vld [vmem:[%s1 + $0x8] sm:$0xf]
  %v22 = vld [vmem:[%s1 + $0xc] sm:$0xf]
  %v23 = vlaneseq
  %v24 = vand.u32 %v23, 127
  %vm25 = vcmp.ge.s32.totalorder %v24, 64
  %vm26 = vcmp.lt.s32.totalorder %v24, 96
  %vm27 = vmand %vm25, %vm26
  %v28 = vsel %vm27, 1.0, 0.5
  %v29 = vsel %vm27, 0.0, 0.5
  %v30 = vld [vmem:[#allocation2] sm:$0xff]
  %v31 = vpack.c.bf16 %v30, %v30
  %v32 = vld [vmem:[%s0] sm:$0xff]
  %v37 = vunpack.c.l.b16 %v19
  %v38 = vunpack.c.l.b16 %v20
  %v39 = vunpack.c.l.b16 %v21
  %v40 = vunpack.c.l.b16 %v22
  %v41 = vpack.c.b16 %v38, %v37
  %v42 = vpack.c.b16 %v40, %v39
  %vm45 = vcmask 261120
  %v47 = vsel %vm45, %v31, 0
  %49 = vmatprep.subr.bf16.mxu0 0
  %50 = vmatpush1.bf16.msra.mxu0 %v41
  %51 = vmatprep.subr.bf16.mxu0 0
  %52 = vmatpush1.bf16.msra.mxu0 %v42
  %53 = vmatprep.subr.bf16.mxu0 0
  %54 = vmatpush1.bf16.msra.mxu0 0
  %55 = vmatprep.subr.bf16.mxu0 0
  %56 = vmatpush1.bf16.msra.mxu0 0
  %57 = vmatprep.subr.bf16.mxu0 0
  %58 = vmatpush1.bf16.msra.mxu0 0
  %59 = vmatprep.subr.bf16.mxu0 0
  %60 = vmatpush1.bf16.msra.mxu0 0
  %61 = vmatprep.subr.bf16.mxu0 0
  %62 = vmatpush1.bf16.msra.mxu0 0
  %63 = vmatprep.subr.bf16.mxu0 0
  %64 = vmatpush1.bf16.msra.mxu0 0
  %65 = vmatprep.subr.bf16.mxu0 0
  %66 = vmatpush1.bf16.msra.mxu0 0
  %67 = vmatprep.subr.bf16.mxu0 0
  %68 = vmatpush1.bf16.msra.mxu0 0
  %69 = vmatprep.subr.bf16.mxu0 0
  %70 = vmatpush1.bf16.msra.mxu0 0
  %71 = vmatprep.subr.bf16.mxu0 0
  %72 = vmatpush1.bf16.msra.mxu0 0
  %73 = vmatprep.subr.bf16.mxu0 0
  %74 = vmatpush1.bf16.msra.mxu0 0
  %75 = vmatprep.subr.bf16.mxu0 0
  %76 = vmatpush1.bf16.msra.mxu0 0
  %77 = vmatprep.subr.bf16.mxu0 0
  %78 = vmatpush1.bf16.msra.mxu0 0
  %79 = vmatprep.subr.bf16.mxu0 0
  %80 = vmatpush1.bf16.msra.mxu0 0
  %81 = vmatprep.mubr.bf16.mxu0 0
  %82 = vmatmul.mubr.bf16.gmra.mrb[0].mxu0 %v47
  %v83 = vpop.f32.mrb[0].mxu0
  %v84 = vadd.f32 0.0, %v83
  %v85 = vpop.f32.mrb[0].mxu0
  %v86 = vpop.f32.mrb[0].mxu0
  %v87 = vpop.f32.mrb[0].mxu0
  %88 = vdwg.mxu0
  %v89 = vadd.f32 %v32, %v84
  %v90 = vmul.f32 %v89, %v28
  %v91 = vtanh.pop %v90
  %v92 = vmul.f32 %v91, %v28
  %v93 = vadd.f32 %v92, %v29
  %v94 = vld [vmem:[#allocation3] sm:$0xff]
  %96 = vrot.lane.b32.xlu0 %v94, 32
  %v97 = vpop.permute.xlu0 %96
  %v99 = vmul.f32 %v93, %v97
  %101 = vrot.lane.b32.xlu0 %v93, 64
  %v102 = vpop.permute.xlu0 %101
  %v104 = vmul.f32 %v93, %v102
  %106 = vrot.lane.b32.xlu0 %v104, 32
  %v107 = vpop.permute.xlu0 %106
  %v109 = vadd.f32 %v99, %v107
  %v110 = vtanh.pop %v109
  %112 = vrot.lane.b32.xlu0 %v110, 64
  %v113 = vpop.permute.xlu0 %112
  %v115 = vmul.f32 %v93, %v113
  %117 = vrot.lane.b32.xlu0 %v109, 96
  %v118 = vpop.permute.xlu0 %117
  %120 = vst.msk [vmem:[#allocation3] sm:$0xff] %vm45, %v118
  %122 = vrot.lane.b32.xlu0 %v115, 32
  %v123 = vpop.permute.xlu0 %122
  %125 = vst.msk [vmem:[#allocation2] sm:$0xff] %vm45, %v123
  %v126 = vpack.c.bf16 %v115, %v115
  %v128 = vunpack.c.l.b16 %v126
  %v129 = vpack.c.b16 %v128, %v128
  %130 = vrot.lane.b32.xlu0 %v129, 32
  %v131 = vpop.permute.xlu0 %130
  %vm133 = vcmask 257024
  %134 = vst.msk [vmem:[%s2] sm:$0xf] %vm133, %v131
  %v135 = vld [vmem:[#allocation2] sm:$0xff]
  %v136 = vpack.c.bf16 %v135, %v135
  %s137 = scalar_lea.vmem %s0, 8
  %v138 = vld [vmem:[%s137] sm:$0xff]
  %v140 = vsel %vm45, %v136, 0
  %142 = vmatprep.subr.bf16.mxu0 0
  %143 = vmatpush1.bf16.msra.mxu0 %v41
  %144 = vmatprep.subr.bf16.mxu0 0
  %145 = vmatpush1.bf16.msra.mxu0 %v42
  %146 = vmatprep.subr.bf16.mxu0 0
  %147 = vmatpush1.bf16.msra.mxu0 0
  %148 = vmatprep.subr.bf16.mxu0 0
  %149 = vmatpush1.bf16.msra.mxu0 0
  %150 = vmatprep.subr.bf16.mxu0 0
  %151 = vmatpush1.bf16.msra.mxu0 0
  %152 = vmatprep.subr.bf16.mxu0 0
  %153 = vmatpush1.bf16.msra.mxu0 0
  %154 = vmatprep.subr.bf16.mxu0 0
  %155 = vmatpush1.bf16.msra.mxu0 0
  %156 = vmatprep.subr.bf16.mxu0 0
  %157 = vmatpush1.bf16.msra.mxu0 0
  %158 = vmatprep.subr.bf16.mxu0 0
  %159 = vmatpush1.bf16.msra.mxu0 0
  %160 = vmatprep.subr.bf16.mxu0 0
  %161 = vmatpush1.bf16.msra.mxu0 0
  %162 = vmatprep.subr.bf16.mxu0 0
  %163 = vmatpush1.bf16.msra.mxu0 0
  %164 = vmatprep.subr.bf16.mxu0 0
  %165 = vmatpush1.bf16.msra.mxu0 0
  %166 = vmatprep.subr.bf16.mxu0 0
  %167 = vmatpush1.bf16.msra.mxu0 0
  %168 = vmatprep.subr.bf16.mxu0 0
  %169 = vmatpush1.bf16.msra.mxu0 0
  %170 = vmatprep.subr.bf16.mxu0 0
  %171 = vmatpush1.bf16.msra.mxu0 0
  %172 = vmatprep.subr.bf16.mxu0 0
  %173 = vmatpush1.bf16.msra.mxu0 0
  %174 = vmatprep.mubr.bf16.mxu0 0
  %175 = vmatmul.mubr.bf16.gmra.mrb[0].mxu0 %v140
  %v176 = vpop.f32.mrb[0].mxu0
  %v177 = vadd.f32 0.0, %v176
  %v178 = vpop.f32.mrb[0].mxu0
  %v179 = vpop.f32.mrb[0].mxu0
  %v180 = vpop.f32.mrb[0].mxu0
  %181 = vdwg.mxu0
  %v182 = vadd.f32 %v138, %v177
  %v183 = vmul.f32 %v182, %v28
  %v184 = vtanh.pop %v183
  %v185 = vmul.f32 %v184, %v28
  %v186 = vadd.f32 %v185, %v29
  %v187 = vld [vmem:[#allocation3] sm:$0xff]
  %189 = vrot.lane.b32.xlu0 %v187, 32
  %v190 = vpop.permute.xlu0 %189
  %v192 = vmul.f32 %v186, %v190
  %194 = vrot.lane.b32.xlu0 %v186, 64
  %v195 = vpop.permute.xlu0 %194
  %v197 = vmul.f32 %v186, %v195
  %199 = vrot.lane.b32.xlu0 %v197, 32
  %v200 = vpop.permute.xlu0 %199
  %v202 = vadd.f32 %v192, %v200
  %v203 = vtanh.pop %v202
  %205 = vrot.lane.b32.xlu0 %v203, 64
  %v206 = vpop.permute.xlu0 %205
  %v208 = vmul.f32 %v186, %v206
  %210 = vrot.lane.b32.xlu0 %v202, 96
  %v211 = vpop.permute.xlu0 %210
  %213 = vst.msk [vmem:[#allocation3] sm:$0xff] %vm45, %v211
  %215 = vrot.lane.b32.xlu0 %v208, 32
  %v216 = vpop.permute.xlu0 %215
  %218 = vst.msk [vmem:[#allocation2] sm:$0xff] %vm45, %v216
  %v219 = vpack.c.bf16 %v208, %v208
  %v221 = vunpack.c.l.b16 %v219
  %v222 = vpack.c.b16 %v221, %v221
  %223 = vrot.lane.b32.xlu0 %v222, 32
  %v224 = vpop.permute.xlu0 %223
  %s226 = scalar_lea.vmem %s2, 4
  %227 = vst.msk [vmem:[%s226] sm:$0xf] %vm133, %v224
  %v228 = vld [vmem:[#allocation2] sm:$0xff]
  %v229 = vpack.c.bf16 %v228, %v228
  %s230 = scalar_lea.vmem %s0, 16
  %v231 = vld [vmem:[%s230] sm:$0xff]
  %v233 = vsel %vm45, %v229, 0
  %235 = vmatprep.subr.bf16.mxu0 0
  %236 = vmatpush1.bf16.msra.mxu0 %v41
  %237 = vmatprep.subr.bf16.mxu0 0
  %238 = vmatpush1.bf16.msra.mxu0 %v42
  %239 = vmatprep.subr.bf16.mxu0 0
  %240 = vmatpush1.bf16.msra.mxu0 0
  %241 = vmatprep.subr.bf16.mxu0 0
  %242 = vmatpush1.bf16.msra.mxu0 0
  %243 = vmatprep.subr.bf16.mxu0 0
  %244 = vmatpush1.bf16.msra.mxu0 0
  %245 = vmatprep.subr.bf16.mxu0 0
  %246 = vmatpush1.bf16.msra.mxu0 0
  %247 = vmatprep.subr.bf16.mxu0 0
  %248 = vmatpush1.bf16.msra.mxu0 0
  %249 = vmatprep.subr.bf16.mxu0 0
  %250 = vmatpush1.bf16.msra.mxu0 0
  %251 = vmatprep.subr.bf16.mxu0 0
  %252 = vmatpush1.bf16.msra.mxu0 0
  %253 = vmatprep.subr.bf16.mxu0 0
  %254 = vmatpush1.bf16.msra.mxu0 0
  %255 = vmatprep.subr.bf16.mxu0 0
  %256 = vmatpush1.bf16.msra.mxu0 0
  %257 = vmatprep.subr.bf16.mxu0 0
  %258 = vmatpush1.bf16.msra.mxu0 0
  %259 = vmatprep.subr.bf16.mxu0 0
  %260 = vmatpush1.bf16.msra.mxu0 0
  %261 = vmatprep.subr.bf16.mxu0 0
  %262 = vmatpush1.bf16.msra.mxu0 0
  %263 = vmatprep.subr.bf16.mxu0 0
  %264 = vmatpush1.bf16.msra.mxu0 0
  %265 = vmatprep.subr.bf16.mxu0 0
  %266 = vmatpush1.bf16.msra.mxu0 0
  %267 = vmatprep.mubr.bf16.mxu0 0
  %268 = vmatmul.mubr.bf16.gmra.mrb[0].mxu0 %v233
  %v269 = vpop.f32.mrb[0].mxu0
  %v270 = vadd.f32 0.0, %v269
  %v271 = vpop.f32.mrb[0].mxu0
  %v272 = vpop.f32.mrb[0].mxu0
  %v273 = vpop.f32.mrb[0].mxu0
  %274 = vdwg.mxu0
  %v275 = vadd.f32 %v231, %v270
  %v276 = vmul.f32 %v275, %v28
  %v277 = vtanh.pop %v276
  %v278 = vmul.f32 %v277, %v28
  %v279 = vadd.f32 %v278, %v29
  %v280 = vld [vmem:[#allocation3] sm:$0xff]
  %282 = vrot.lane.b32.xlu0 %v280, 32
  %v283 = vpop.permute.xlu0 %282
  %v285 = vmul.f32 %v279, %v283
  %287 = vrot.lane.b32.xlu0 %v279, 64
  %v288 = vpop.permute.xlu0 %287
  %v290 = vmul.f32 %v279, %v288
  %292 = vrot.lane.b32.xlu0 %v290, 32
  %v293 = vpop.permute.xlu0 %292
  %v295 = vadd.f32 %v285, %v293
  %v296 = vtanh.pop %v295
  %298 = vrot.lane.b32.xlu0 %v296, 64
  %v299 = vpop.permute.xlu0 %298
  %v301 = vmul.f32 %v279, %v299
  %303 = vrot.lane.b32.xlu0 %v295, 96
  %v304 = vpop.permute.xlu0 %303
  %306 = vst.msk [vmem:[#allocation3] sm:$0xff] %vm45, %v304
  %308 = vrot.lane.b32.xlu0 %v301, 32
  %v309 = vpop.permute.xlu0 %308
  %311 = vst.msk [vmem:[#allocation2] sm:$0xff] %vm45, %v309
  %v312 = vpack.c.bf16 %v301, %v301
  %v314 = vunpack.c.l.b16 %v312
  %v315 = vpack.c.b16 %v314, %v314
  %316 = vrot.lane.b32.xlu0 %v315, 32
  %v317 = vpop.permute.xlu0 %316
  %s319 = scalar_lea.vmem %s2, 8
  %320 = vst.msk [vmem:[%s319] sm:$0xf] %vm133, %v317
  %v321 = vld [vmem:[#allocation2] sm:$0xff]
  %v322 = vpack.c.bf16 %v321, %v321
  %s323 = scalar_lea.vmem %s0, 24
  %v324 = vld [vmem:[%s323] sm:$0xff]
  %v326 = vsel %vm45, %v322, 0
  %328 = vmatprep.subr.bf16.mxu0 0
  %329 = vmatpush1.bf16.msra.mxu0 %v41
  %330 = vmatprep.subr.bf16.mxu0 0
  %331 = vmatpush1.bf16.msra.mxu0 %v42
  %332 = vmatprep.subr.bf16.mxu0 0
  %333 = vmatpush1.bf16.msra.mxu0 0
  %334 = vmatprep.subr.bf16.mxu0 0
  %335 = vmatpush1.bf16.msra.mxu0 0
  %336 = vmatprep.subr.bf16.mxu0 0
  %337 = vmatpush1.bf16.msra.mxu0 0
  %338 = vmatprep.subr.bf16.mxu0 0
  %339 = vmatpush1.bf16.msra.mxu0 0
  %340 = vmatprep.subr.bf16.mxu0 0
  %341 = vmatpush1.bf16.msra.mxu0 0
  %342 = vmatprep.subr.bf16.mxu0 0
  %343 = vmatpush1.bf16.msra.mxu0 0
  %344 = vmatprep.subr.bf16.mxu0 0
  %345 = vmatpush1.bf16.msra.mxu0 0
  %346 = vmatprep.subr.bf16.mxu0 0
  %347 = vmatpush1.bf16.msra.mxu0 0
  %348 = vmatprep.subr.bf16.mxu0 0
  %349 = vmatpush1.bf16.msra.mxu0 0
  %350 = vmatprep.subr.bf16.mxu0 0
  %351 = vmatpush1.bf16.msra.mxu0 0
  %352 = vmatprep.subr.bf16.mxu0 0
  %353 = vmatpush1.bf16.msra.mxu0 0
  %354 = vmatprep.subr.bf16.mxu0 0
  %355 = vmatpush1.bf16.msra.mxu0 0
  %356 = vmatprep.subr.bf16.mxu0 0
  %357 = vmatpush1.bf16.msra.mxu0 0
  %358 = vmatprep.subr.bf16.mxu0 0
  %359 = vmatpush1.bf16.msra.mxu0 0
  %360 = vmatprep.mubr.bf16.mxu0 0
  %361 = vmatmul.mubr.bf16.gmra.mrb[0].mxu0 %v326
  %v362 = vpop.f32.mrb[0].mxu0
  %v363 = vadd.f32 0.0, %v362
  %v364 = vpop.f32.mrb[0].mxu0
  %v365 = vpop.f32.mrb[0].mxu0
  %v366 = vpop.f32.mrb[0].mxu0
  %367 = vdwg.mxu0
  %v368 = vadd.f32 %v324, %v363
  %v369 = vmul.f32 %v368, %v28
  %v370 = vtanh.pop %v369
  %v371 = vmul.f32 %v370, %v28
  %v372 = vadd.f32 %v371, %v29
  %v373 = vld [vmem:[#allocation3] sm:$0xff]
  %375 = vrot.lane.b32.xlu0 %v373, 32
  %v376 = vpop.permute.xlu0 %375
  %v378 = vmul.f32 %v372, %v376
  %380 = vrot.lane.b32.xlu0 %v372, 64
  %v381 = vpop.permute.xlu0 %380
  %v383 = vmul.f32 %v372, %v381
  %385 = vrot.lane.b32.xlu0 %v383, 32
  %v386 = vpop.permute.xlu0 %385
  %v388 = vadd.f32 %v378, %v386
  %v389 = vtanh.pop %v388
  %391 = vrot.lane.b32.xlu0 %v389, 64
  %v392 = vpop.permute.xlu0 %391
  %v394 = vmul.f32 %v372, %v392
  %396 = vrot.lane.b32.xlu0 %v388, 96
  %v397 = vpop.permute.xlu0 %396
  %399 = vst.msk [vmem:[#allocation3] sm:$0xff] %vm45, %v397
  %401 = vrot.lane.b32.xlu0 %v394, 32
  %v402 = vpop.permute.xlu0 %401
  %404 = vst.msk [vmem:[#allocation2] sm:$0xff] %vm45, %v402
  %v405 = vpack.c.bf16 %v394, %v394
  %v407 = vunpack.c.l.b16 %v405
  %v408 = vpack.c.b16 %v407, %v407
  %409 = vrot.lane.b32.xlu0 %v408, 32
  %v410 = vpop.permute.xlu0 %409
  %s412 = scalar_lea.vmem %s2, 12
  %413 = vst.msk [vmem:[%s412] sm:$0xf] %vm133, %v410
  %v414 = vld [vmem:[#allocation2] sm:$0xff]
  %v415 = vpack.c.bf16 %v414, %v414
  %s416 = scalar_lea.vmem %s0, 32
  %v417 = vld [vmem:[%s416] sm:$0xff]
  %v419 = vsel %vm45, %v415, 0
  %421 = vmatprep.subr.bf16.mxu0 0
  %422 = vmatpush1.bf16.msra.mxu0 %v41
  %423 = vmatprep.subr.bf16.mxu0 0
  %424 = vmatpush1.bf16.msra.mxu0 %v42
  %425 = vmatprep.subr.bf16.mxu0 0
  %426 = vmatpush1.bf16.msra.mxu0 0
  %427 = vmatprep.subr.bf16.mxu0 0
  %428 = vmatpush1.bf16.msra.mxu0 0
  %429 = vmatprep.subr.bf16.mxu0 0
  %430 = vmatpush1.bf16.msra.mxu0 0
  %431 = vmatprep.subr.bf16.mxu0 0
  %432 = vmatpush1.bf16.msra.mxu0 0
  %433 = vmatprep.subr.bf16.mxu0 0
  %434 = vmatpush1.bf16.msra.mxu0 0
  %435 = vmatprep.subr.bf16.mxu0 0
  %436 = vmatpush1.bf16.msra.mxu0 0
  %437 = vmatprep.subr.bf16.mxu0 0
  %438 = vmatpush1.bf16.msra.mxu0 0
  %439 = vmatprep.subr.bf16.mxu0 0
  %440 = vmatpush1.bf16.msra.mxu0 0
  %441 = vmatprep.subr.bf16.mxu0 0
  %442 = vmatpush1.bf16.msra.mxu0 0
  %443 = vmatprep.subr.bf16.mxu0 0
  %444 = vmatpush1.bf16.msra.mxu0 0
  %445 = vmatprep.subr.bf16.mxu0 0
  %446 = vmatpush1.bf16.msra.mxu0 0
  %447 = vmatprep.subr.bf16.mxu0 0
  %448 = vmatpush1.bf16.msra.mxu0 0
  %449 = vmatprep.subr.bf16.mxu0 0
  %450 = vmatpush1.bf16.msra.mxu0 0
  %451 = vmatprep.subr.bf16.mxu0 0
  %452 = vmatpush1.bf16.msra.mxu0 0
  %453 = vmatprep.mubr.bf16.mxu0 0
  %454 = vmatmul.mubr.bf16.gmra.mrb[0].mxu0 %v419
  %v455 = vpop.f32.mrb[0].mxu0
  %v456 = vadd.f32 0.0, %v455
  %v457 = vpop.f32.mrb[0].mxu0
  %v458 = vpop.f32.mrb[0].mxu0
  %v459 = vpop.f32.mrb[0].mxu0
  %460 = vdwg.mxu0
  %v461 = vadd.f32 %v417, %v456
  %v462 = vmul.f32 %v461, %v28
  %v463 = vtanh.pop %v462
  %v464 = vmul.f32 %v463, %v28
  %v465 = vadd.f32 %v464, %v29
  %v466 = vld [vmem:[#allocation3] sm:$0xff]
  %468 = vrot.lane.b32.xlu0 %v466, 32
  %v469 = vpop.permute.xlu0 %468
  %v471 = vmul.f32 %v465, %v469
  %473 = vrot.lane.b32.xlu0 %v465, 64
  %v474 = vpop.permute.xlu0 %473
  %v476 = vmul.f32 %v465, %v474
  %478 = vrot.lane.b32.xlu0 %v476, 32
  %v479 = vpop.permute.xlu0 %478
  %v481 = vadd.f32 %v471, %v479
  %v482 = vtanh.pop %v481
  %484 = vrot.lane.b32.xlu0 %v482, 64
  %v485 = vpop.permute.xlu0 %484
  %v487 = vmul.f32 %v465, %v485
  %489 = vrot.lane.b32.xlu0 %v481, 96
  %v490 = vpop.permute.xlu0 %489
  %492 = vst.msk [vmem:[#allocation3] sm:$0xff] %vm45, %v490
  %494 = vrot.lane.b32.xlu0 %v487, 32
  %v495 = vpop.permute.xlu0 %494
  %497 = vst.msk [vmem:[#allocation2] sm:$0xff] %vm45, %v495
  %v498 = vpack.c.bf16 %v487, %v487
  %v500 = vunpack.c.l.b16 %v498
  %v501 = vpack.c.b16 %v500, %v500
  %502 = vrot.lane.b32.xlu0 %v501, 32
  %v503 = vpop.permute.xlu0 %502
  %s505 = scalar_lea.vmem %s2, 16
  %506 = vst.msk [vmem:[%s505] sm:$0xf] %vm133, %v503
  %v507 = vld [vmem:[#allocation2] sm:$0xff]
  %v508 = vpack.c.bf16 %v507, %v507
  %s509 = scalar_lea.vmem %s0, 40
  %v510 = vld [vmem:[%s509] sm:$0xff]
  %v512 = vsel %vm45, %v508, 0
  %514 = vmatprep.subr.bf16.mxu0 0
  %515 = vmatpush1.bf16.msra.mxu0 %v41
  %516 = vmatprep.subr.bf16.mxu0 0
  %517 = vmatpush1.bf16.msra.mxu0 %v42
  %518 = vmatprep.subr.bf16.mxu0 0
  %519 = vmatpush1.bf16.msra.mxu0 0
  %520 = vmatprep.subr.bf16.mxu0 0
  %521 = vmatpush1.bf16.msra.mxu0 0
  %522 = vmatprep.subr.bf16.mxu0 0
  %523 = vmatpush1.bf16.msra.mxu0 0
  %524 = vmatprep.subr.bf16.mxu0 0
  %525 = vmatpush1.bf16.msra.mxu0 0
  %526 = vmatprep.subr.bf16.mxu0 0
  %527 = vmatpush1.bf16.msra.mxu0 0
  %528 = vmatprep.subr.bf16.mxu0 0
  %529 = vmatpush1.bf16.msra.mxu0 0
  %530 = vmatprep.subr.bf16.mxu0 0
  %531 = vmatpush1.bf16.msra.mxu0 0
  %532 = vmatprep.subr.bf16.mxu0 0
  %533 = vmatpush1.bf16.msra.mxu0 0
  %534 = vmatprep.subr.bf16.mxu0 0
  %535 = vmatpush1.bf16.msra.mxu0 0
  %536 = vmatprep.subr.bf16.mxu0 0
  %537 = vmatpush1.bf16.msra.mxu0 0
  %538 = vmatprep.subr.bf16.mxu0 0
  %539 = vmatpush1.bf16.msra.mxu0 0
  %540 = vmatprep.subr.bf16.mxu0 0
  %541 = vmatpush1.bf16.msra.mxu0 0
  %542 = vmatprep.subr.bf16.mxu0 0
  %543 = vmatpush1.bf16.msra.mxu0 0
  %544 = vmatprep.subr.bf16.mxu0 0
  %545 = vmatpush1.bf16.msra.mxu0 0
  %546 = vmatprep.mubr.bf16.mxu0 0
  %547 = vmatmul.mubr.bf16.gmra.mrb[0].mxu0 %v512
  %v548 = vpop.f32.mrb[0].mxu0
  %v549 = vadd.f32 0.0, %v548
  %v550 = vpop.f32.mrb[0].mxu0
  %v551 = vpop.f32.mrb[0].mxu0
  %v552 = vpop.f32.mrb[0].mxu0
  %553 = vdwg.mxu0
  %v554 = vadd.f32 %v510, %v549
  %v555 = vmul.f32 %v554, %v28
  %v556 = vtanh.pop %v555
  %v557 = vmul.f32 %v556, %v28
  %v558 = vadd.f32 %v557, %v29
  %v559 = vld [vmem:[#allocation3] sm:$0xff]
  %561 = vrot.lane.b32.xlu0 %v559, 32
  %v562 = vpop.permute.xlu0 %561
  %v564 = vmul.f32 %v558, %v562
  %566 = vrot.lane.b32.xlu0 %v558, 64
  %v567 = vpop.permute.xlu0 %566
  %v569 = vmul.f32 %v558, %v567
  %571 = vrot.lane.b32.xlu0 %v569, 32
  %v572 = vpop.permute.xlu0 %571
  %v574 = vadd.f32 %v564, %v572
  %v575 = vtanh.pop %v574
  %577 = vrot.lane.b32.xlu0 %v575, 64
  %v578 = vpop.permute.xlu0 %577
  %v580 = vmul.f32 %v558, %v578
  %582 = vrot.lane.b32.xlu0 %v574, 96
  %v583 = vpop.permute.xlu0 %582
  %585 = vst.msk [vmem:[#allocation3] sm:$0xff] %vm45, %v583
  %587 = vrot.lane.b32.xlu0 %v580, 32
  %v588 = vpop.permute.xlu0 %587
  %590 = vst.msk [vmem:[#allocation2] sm:$0xff] %vm45, %v588
  %v591 = vpack.c.bf16 %v580, %v580
  %v593 = vunpack.c.l.b16 %v591
  %v594 = vpack.c.b16 %v593, %v593
  %595 = vrot.lane.b32.xlu0 %v594, 32
  %v596 = vpop.permute.xlu0 %595
  %s598 = scalar_lea.vmem %s2, 20
  %599 = vst.msk [vmem:[%s598] sm:$0xf] %vm133, %v596
  // Predicated region
  $region14: #{corr_lstm_forward.6} parent=0 // pred_check
    _
  $region15: #{corr_lstm_forward.6} parent=0 // pred_check_branch
    %601 = sbr.rel (0) target = $region17
  $region16: #{corr_lstm_forward.6} parent=0 // pred_region
    _
  $region17: #{corr_lstm_forward.6} parent=0 // pred_fallthru
    _
  // Predicated region
  $region18: #{corr_lstm_forward.6} parent=0 // pred_check
    _
  $region19: #{corr_lstm_forward.6} parent=0 // pred_check_branch
    %603 = sbr.rel (0) target = $region21
  $region20: #{corr_lstm_forward.6} parent=0 // pred_region
    _
  $region21: #{corr_lstm_forward.6} parent=0 // pred_fallthru
    _

// kernel: corr_lstm_forward.5
$region0: #{corr_lstm_forward.5}
  #allocation0 [shape = 'u32[]', space=smem, size = 0x4, offset = 0x4, fixed_abs, tag = 'smem constant byte address 0x4 - core index']
  #allocation1 [shape = 'u32[144,128]{1,0:T(1,128)}', space=vmem, size = 0x12000, scoped, tag = 'internal scratch']
  %s0 = inlined_call_operand.vmem [shape: bf16[48,2048], index: 0, kind: input, shape index: {}]
  %s1 = inlined_call_operand.vmem [shape: bf16[2048,128], index: 1, kind: input, shape index: {}]
  %s2 = inlined_call_operand.vmem [shape: f32[1,128], index: 2, kind: input, shape index: {}]
  %s3 = inlined_call_operand.vmem [shape: f32[48,128], index: 3, kind: output, shape index: {}]
  %s4 = sld [smem:[#allocation0]]
  $region22: #{corr_lstm_forward.5} parent=0
    _
  %s6 = ssub.s32 1, %s4
  %s7 = scalar_select 0, %s6, %s4
  // Predicated region
  $region2: #{corr_lstm_forward.5} parent=0 // pred_check
    _
  $region3: #{corr_lstm_forward.5} parent=0 // pred_check_branch
    %9 = sbr.rel (0) target = $region5
  $region4: #{corr_lstm_forward.5} parent=0 // pred_region
    _
  $region5: #{corr_lstm_forward.5} parent=0 // pred_fallthru
    _
  // Predicated region
  $region6: #{corr_lstm_forward.5} parent=0 // pred_check
    _
  $region7: #{corr_lstm_forward.5} parent=0 // pred_check_branch
    %11 = sbr.rel (0) target = $region9
  $region8: #{corr_lstm_forward.5} parent=0 // pred_region
    _
  $region9: #{corr_lstm_forward.5} parent=0 // pred_fallthru
    _
  // Predicated region
  $region10: #{corr_lstm_forward.5} parent=0 // pred_check
    _
  $region11: #{corr_lstm_forward.5} parent=0 // pred_check_branch
    %13 = sbr.rel (0) target = $region13
  $region12: #{corr_lstm_forward.5} parent=0 // pred_region
    _
  $region13: #{corr_lstm_forward.5} parent=0 // pred_fallthru
    _
  %v15 = vld [vmem:[%s0] sm:$0xff]
  %v16 = vld [vmem:[%s0 + $0x8] sm:$0xff]
  %v17 = vld [vmem:[%s0 + $0x10] sm:$0xff]
  %v18 = vld [vmem:[%s0 + $0x18] sm:$0xff]
  %v19 = vld [vmem:[%s0 + $0x20] sm:$0xff]
  %v20 = vld [vmem:[%s0 + $0x28] sm:$0xff]
  %v21 = vld [vmem:[%s0 + $0x30] sm:$0xff]
  %v22 = vld [vmem:[%s0 + $0x38] sm:$0xff]
  %v23 = vld [vmem:[%s0 + $0x40] sm:$0xff]
  %v24 = vld [vmem:[%s0 + $0x48] sm:$0xff]
  %v25 = vld [vmem:[%s0 + $0x50] sm:$0xff]
  %v26 = vld [vmem:[%s0 + $0x58] sm:$0xff]
  %v27 = vld [vmem:[%s0 + $0x60] sm:$0xff]
  %v28 = vld [vmem:[%s0 + $0x68] sm:$0xff]
  %v29 = vld [vmem:[%s0 + $0x70] sm:$0xff]
  %v30 = vld [vmem:[%s0 + $0x78] sm:$0xff]
  %v31 = vld [vmem:[%s0 + $0x80] sm:$0xff]
  %v32 = vld [vmem:[%s0 + $0x88] sm:$0xff]
  %v33 = vld [vmem:[%s0 + $0x90] sm:$0xff]
  %v34 = vld [vmem:[%s0 + $0x98] sm:$0xff]
  %v35 = vld [vmem:[%s0 + $0xa0] sm:$0xff]
  %v36 = vld [vmem:[%s0 + $0xa8] sm:$0xff]
  %v37 = vld [vmem:[%s0 + $0xb0] sm:$0xff]
  %v38 = vld [vmem:[%s0 + $0xb8] sm:$0xff]
  %v39 = vld [vmem:[%s0 + $0xc0] sm:$0xff]
  %v40 = vld [vmem:[%s0 + $0xc8] sm:$0xff]
  %v41 = vld [vmem:[%s0 + $0xd0] sm:$0xff]
  %v42 = vld [vmem:[%s0 + $0xd8] sm:$0xff]
  %v43 = vld [vmem:[%s0 + $0xe0] sm:$0xff]
  %v44 = vld [vmem:[%s0 + $0xe8] sm:$0xff]
  %v45 = vld [vmem:[%s0 + $0xf0] sm:$0xff]
  %v46 = vld [vmem:[%s0 + $0xf8] sm:$0xff]
  %v47 = vld [vmem:[%s0 + $0x100] sm:$0xff]
  %v48 = vld [vmem:[%s0 + $0x108] sm:$0xff]
  %v49 = vld [vmem:[%s0 + $0x110] sm:$0xff]
  %v50 = vld [vmem:[%s0 + $0x118] sm:$0xff]
  %v51 = vld [vmem:[%s0 + $0x120] sm:$0xff]
  %v52 = vld [vmem:[%s0 + $0x128] sm:$0xff]
  %v53 = vld [vmem:[%s0 + $0x130] sm:$0xff]
  %v54 = vld [vmem:[%s0 + $0x138] sm:$0xff]
  %v55 = vld [vmem:[%s0 + $0x140] sm:$0xff]
  %v56 = vld [vmem:[%s0 + $0x148] sm:$0xff]
  %v57 = vld [vmem:[%s0 + $0x150] sm:$0xff]
  %v58 = vld [vmem:[%s0 + $0x158] sm:$0xff]
  %v59 = vld [vmem:[%s0 + $0x160] sm:$0xff]
  %v60 = vld [vmem:[%s0 + $0x168] sm:$0xff]
  %v61 = vld [vmem:[%s0 + $0x170] sm:$0xff]
  %v62 = vld [vmem:[%s0 + $0x178] sm:$0xff]
  %v63 = vld [vmem:[%s1] sm:$0xf]
  %v64 = vld [vmem:[%s1 + $0x4] sm:$0xf]
  %v65 = vld [vmem:[%s1 + $0x8] sm:$0xf]
  %v66 = vld [vmem:[%s1 + $0xc] sm:$0xf]
  %v67 = vld [vmem:[%s1 + $0x10] sm:$0xf]
  %v68 = vld [vmem:[%s1 + $0x14] sm:$0xf]
  %v69 = vld [vmem:[%s1 + $0x18] sm:$0xf]
  %v70 = vld [vmem:[%s1 + $0x1c] sm:$0xf]
  %v71 = vld [vmem:[%s1 + $0x20] sm:$0xf]
  %v72 = vld [vmem:[%s1 + $0x24] sm:$0xf]
  %v73 = vld [vmem:[%s1 + $0x28] sm:$0xf]
  %v74 = vld [vmem:[%s1 + $0x2c] sm:$0xf]
  %v75 = vld [vmem:[%s1 + $0x30] sm:$0xf]
  %v76 = vld [vmem:[%s1 + $0x34] sm:$0xf]
  %v77 = vld [vmem:[%s1 + $0x38] sm:$0xf]
  %v78 = vld [vmem:[%s1 + $0x3c] sm:$0xf]
  %v79 = vld [vmem:[%s1 + $0x40] sm:$0xf]
  %v80 = vld [vmem:[%s1 + $0x44] sm:$0xf]
  %v81 = vld [vmem:[%s1 + $0x48] sm:$0xf]
  %v82 = vld [vmem:[%s1 + $0x4c] sm:$0xf]
  %v83 = vld [vmem:[%s1 + $0x50] sm:$0xf]
  %v84 = vld [vmem:[%s1 + $0x54] sm:$0xf]
  %v85 = vld [vmem:[%s1 + $0x58] sm:$0xf]
  %v86 = vld [vmem:[%s1 + $0x5c] sm:$0xf]
  %v87 = vld [vmem:[%s1 + $0x60] sm:$0xf]
  %v88 = vld [vmem:[%s1 + $0x64] sm:$0xf]
  %v89 = vld [vmem:[%s1 + $0x68] sm:$0xf]
  %v90 = vld [vmem:[%s1 + $0x6c] sm:$0xf]
  %v91 = vld [vmem:[%s1 + $0x70] sm:$0xf]
  %v92 = vld [vmem:[%s1 + $0x74] sm:$0xf]
  %v93 = vld [vmem:[%s1 + $0x78] sm:$0xf]
  %v94 = vld [vmem:[%s1 + $0x7c] sm:$0xf]
  %v95 = vld [vmem:[%s1 + $0x80] sm:$0xf]
  %v96 = vld [vmem:[%s1 + $0x84] sm:$0xf]
  %v97 = vld [vmem:[%s1 + $0x88] sm:$0xf]
  %v98 = vld [vmem:[%s1 + $0x8c] sm:$0xf]
  %v99 = vld [vmem:[%s1 + $0x90] sm:$0xf]
  %v100 = vld [vmem:[%s1 + $0x94] sm:$0xf]
  %v101 = vld [vmem:[%s1 + $0x98] sm:$0xf]
  %v102 = vld [vmem:[%s1 + $0x9c] sm:$0xf]
  %v103 = vld [vmem:[%s1 + $0xa0] sm:$0xf]
  %v104 = vld [vmem:[%s1 + $0xa4] sm:$0xf]
  %v105 = vld [vmem:[%s1 + $0xa8] sm:$0xf]
  %v106 = vld [vmem:[%s1 + $0xac] sm:$0xf]
  %v107 = vld [vmem:[%s1 + $0xb0] sm:$0xf]
  %v108 = vld [vmem:[%s1 + $0xb4] sm:$0xf]
  %v109 = vld [vmem:[%s1 + $0xb8] sm:$0xf]
  %v110 = vld [vmem:[%s1 + $0xbc] sm:$0xf]
  %v111 = vld [vmem:[%s1 + $0xc0] sm:$0xf]
  %v112 = vld [vmem:[%s1 + $0xc4] sm:$0xf]
  %v113 = vld [vmem:[%s1 + $0xc8] sm:$0xf]
  %v114 = vld [vmem:[%s1 + $0xcc] sm:$0xf]
  %v115 = vld [vmem:[%s1 + $0xd0] sm:$0xf]
  %v116 = vld [vmem:[%s1 + $0xd4] sm:$0xf]
  %v117 = vld [vmem:[%s1 + $0xd8] sm:$0xf]
  %v118 = vld [vmem:[%s1 + $0xdc] sm:$0xf]
  %v119 = vld [vmem:[%s1 + $0xe0] sm:$0xf]
  %v120 = vld [vmem:[%s1 + $0xe4] sm:$0xf]
  %v121 = vld [vmem:[%s1 + $0xe8] sm:$0xf]
  %v122 = vld [vmem:[%s1 + $0xec] sm:$0xf]
  %v123 = vld [vmem:[%s1 + $0xf0] sm:$0xf]
  %v124 = vld [vmem:[%s1 + $0xf4] sm:$0xf]
  %v125 = vld [vmem:[%s1 + $0xf8] sm:$0xf]
  %v126 = vld [vmem:[%s1 + $0xfc] sm:$0xf]
  %v127 = vld [vmem:[%s1 + $0x100] sm:$0xf]
  %v128 = vld [vmem:[%s1 + $0x104] sm:$0xf]
  %v129 = vld [vmem:[%s1 + $0x108] sm:$0xf]
  %v130 = vld [vmem:[%s1 + $0x10c] sm:$0xf]
  %v131 = vld [vmem:[%s1 + $0x110] sm:$0xf]
  %v132 = vld [vmem:[%s1 + $0x114] sm:$0xf]
  %v133 = vld [vmem:[%s1 + $0x118] sm:$0xf]
  %v134 = vld [vmem:[%s1 + $0x11c] sm:$0xf]
  %v135 = vld [vmem:[%s1 + $0x120] sm:$0xf]
  %v136 = vld [vmem:[%s1 + $0x124] sm:$0xf]
  %v137 = vld [vmem:[%s1 + $0x128] sm:$0xf]
  %v138 = vld [vmem:[%s1 + $0x12c] sm:$0xf]
  %v139 = vld [vmem:[%s1 + $0x130] sm:$0xf]
  %v140 = vld [vmem:[%s1 + $0x134] sm:$0xf]
  %v141 = vld [vmem:[%s1 + $0x138] sm:$0xf]
  %v142 = vld [vmem:[%s1 + $0x13c] sm:$0xf]
  %v143 = vld [vmem:[%s1 + $0x140] sm:$0xf]
  %v144 = vld [vmem:[%s1 + $0x144] sm:$0xf]
  %v145 = vld [vmem:[%s1 + $0x148] sm:$0xf]
  %v146 = vld [vmem:[%s1 + $0x14c] sm:$0xf]
  %v147 = vld [vmem:[%s1 + $0x150] sm:$0xf]
  %v148 = vld [vmem:[%s1 + $0x154] sm:$0xf]
  %v149 = vld [vmem:[%s1 + $0x158] sm:$0xf]
  %v150 = vld [vmem:[%s1 + $0x15c] sm:$0xf]
  %v151 = vld [vmem:[%s1 + $0x160] sm:$0xf]
  %v152 = vld [vmem:[%s1 + $0x164] sm:$0xf]
  %v153 = vld [vmem:[%s1 + $0x168] sm:$0xf]
  %v154 = vld [vmem:[%s1 + $0x16c] sm:$0xf]
  %v155 = vld [vmem:[%s1 + $0x170] sm:$0xf]
  %v156 = vld [vmem:[%s1 + $0x174] sm:$0xf]
  %v157 = vld [vmem:[%s1 + $0x178] sm:$0xf]
  %v158 = vld [vmem:[%s1 + $0x17c] sm:$0xf]
  %v159 = vld [vmem:[%s1 + $0x180] sm:$0xf]
  %v160 = vld [vmem:[%s1 + $0x184] sm:$0xf]
  %v161 = vld [vmem:[%s1 + $0x188] sm:$0xf]
  %v162 = vld [vmem:[%s1 + $0x18c] sm:$0xf]
  %v163 = vld [vmem:[%s1 + $0x190] sm:$0xf]
  %v164 = vld [vmem:[%s1 + $0x194] sm:$0xf]
  %v165 = vld [vmem:[%s1 + $0x198] sm:$0xf]
  %v166 = vld [vmem:[%s1 + $0x19c] sm:$0xf]
  %v167 = vld [vmem:[%s1 + $0x1a0] sm:$0xf]
  %v168 = vld [vmem:[%s1 + $0x1a4] sm:$0xf]
  %v169 = vld [vmem:[%s1 + $0x1a8] sm:$0xf]
  %v170 = vld [vmem:[%s1 + $0x1ac] sm:$0xf]
  %v171 = vld [vmem:[%s1 + $0x1b0] sm:$0xf]
  %v172 = vld [vmem:[%s1 + $0x1b4] sm:$0xf]
  %v173 = vld [vmem:[%s1 + $0x1b8] sm:$0xf]
  %v174 = vld [vmem:[%s1 + $0x1bc] sm:$0xf]
  %v175 = vld [vmem:[%s1 + $0x1c0] sm:$0xf]
  %v176 = vld [vmem:[%s1 + $0x1c4] sm:$0xf]
  %v177 = vld [vmem:[%s1 + $0x1c8] sm:$0xf]
  %v178 = vld [vmem:[%s1 + $0x1cc] sm:$0xf]
  %v179 = vld [vmem:[%s1 + $0x1d0] sm:$0xf]
  %v180 = vld [vmem:[%s1 + $0x1d4] sm:$0xf]
  %v181 = vld [vmem:[%s1 + $0x1d8] sm:$0xf]
  %v182 = vld [vmem:[%s1 + $0x1dc] sm:$0xf]
  %v183 = vld [vmem:[%s1 + $0x1e0] sm:$0xf]
  %v184 = vld [vmem:[%s1 + $0x1e4] sm:$0xf]
  %v185 = vld [vmem:[%s1 + $0x1e8] sm:$0xf]
  %v186 = vld [vmem:[%s1 + $0x1ec] sm:$0xf]
  %v187 = vld [vmem:[%s1 + $0x1f0] sm:$0xf]
  %v188 = vld [vmem:[%s1 + $0x1f4] sm:$0xf]
  %v189 = vld [vmem:[%s1 + $0x1f8] sm:$0xf]
  %v190 = vld [vmem:[%s1 + $0x1fc] sm:$0xf]
  %v191 = vld [vmem:[%s1 + $0x200] sm:$0xf]
  %v192 = vld [vmem:[%s1 + $0x204] sm:$0xf]
  %v193 = vld [vmem:[%s1 + $0x208] sm:$0xf]
  %v194 = vld [vmem:[%s1 + $0x20c] sm:$0xf]
  %v195 = vld [vmem:[%s1 + $0x210] sm:$0xf]
  %v196 = vld [vmem:[%s1 + $0x214] sm:$0xf]
  %v197 = vld [vmem:[%s1 + $0x218] sm:$0xf]
  %v198 = vld [vmem:[%s1 + $0x21c] sm:$0xf]
  %v199 = vld [vmem:[%s1 + $0x220] sm:$0xf]
  %v200 = vld [vmem:[%s1 + $0x224] sm:$0xf]
  %v201 = vld [vmem:[%s1 + $0x228] sm:$0xf]
  %v202 = vld [vmem:[%s1 + $0x22c] sm:$0xf]
  %v203 = vld [vmem:[%s1 + $0x230] sm:$0xf]
  %v204 = vld [vmem:[%s1 + $0x234] sm:$0xf]
  %v205 = vld [vmem:[%s1 + $0x238] sm:$0xf]
  %v206 = vld [vmem:[%s1 + $0x23c] sm:$0xf]
  %v207 = vld [vmem:[%s1 + $0x240] sm:$0xf]
  %v208 = vld [vmem:[%s1 + $0x244] sm:$0xf]
  %v209 = vld [vmem:[%s1 + $0x248] sm:$0xf]
  %v210 = vld [vmem:[%s1 + $0x24c] sm:$0xf]
  %v211 = vld [vmem:[%s1 + $0x250] sm:$0xf]
  %v212 = vld [vmem:[%s1 + $0x254] sm:$0xf]
  %v213 = vld [vmem:[%s1 + $0x258] sm:$0xf]
  %v214 = vld [vmem:[%s1 + $0x25c] sm:$0xf]
  %v215 = vld [vmem:[%s1 + $0x260] sm:$0xf]
  %v216 = vld [vmem:[%s1 + $0x264] sm:$0xf]
  %v217 = vld [vmem:[%s1 + $0x268] sm:$0xf]
  %v218 = vld [vmem:[%s1 + $0x26c] sm:$0xf]
  %v219 = vld [vmem:[%s1 + $0x270] sm:$0xf]
  %v220 = vld [vmem:[%s1 + $0x274] sm:$0xf]
  %v221 = vld [vmem:[%s1 + $0x278] sm:$0xf]
  %v222 = vld [vmem:[%s1 + $0x27c] sm:$0xf]
  %v223 = vld [vmem:[%s1 + $0x280] sm:$0xf]
  %v224 = vld [vmem:[%s1 + $0x284] sm:$0xf]
  %v225 = vld [vmem:[%s1 + $0x288] sm:$0xf]
  %v226 = vld [vmem:[%s1 + $0x28c] sm:$0xf]
  %v227 = vld [vmem:[%s1 + $0x290] sm:$0xf]
  %v228 = vld [vmem:[%s1 + $0x294] sm:$0xf]
  %v229 = vld [vmem:[%s1 + $0x298] sm:$0xf]
  %v230 = vld [vmem:[%s1 + $0x29c] sm:$0xf]
  %v231 = vld [vmem:[%s1 + $0x2a0] sm:$0xf]
  %v232 = vld [vmem:[%s1 + $0x2a4] sm:$0xf]
  %v233 = vld [vmem:[%s1 + $0x2a8] sm:$0xf]
  %v234 = vld [vmem:[%s1 + $0x2ac] sm:$0xf]
  %v235 = vld [vmem:[%s1 + $0x2b0] sm:$0xf]
  %v236 = vld [vmem:[%s1 + $0x2b4] sm:$0xf]
  %v237 = vld [vmem:[%s1 + $0x2b8] sm:$0xf]
  %v238 = vld [vmem:[%s1 + $0x2bc] sm:$0xf]
  %v239 = vld [vmem:[%s1 + $0x2c0] sm:$0xf]
  %v240 = vld [vmem:[%s1 + $0x2c4] sm:$0xf]
  %v241 = vld [vmem:[%s1 + $0x2c8] sm:$0xf]
  %v242 = vld [vmem:[%s1 + $0x2cc] sm:$0xf]
  %v243 = vld [vmem:[%s1 + $0x2d0] sm:$0xf]
  %v244 = vld [vmem:[%s1 + $0x2d4] sm:$0xf]
  %v245 = vld [vmem:[%s1 + $0x2d8] sm:$0xf]
  %v246 = vld [vmem:[%s1 + $0x2dc] sm:$0xf]
  %v247 = vld [vmem:[%s1 + $0x2e0] sm:$0xf]
  %v248 = vld [vmem:[%s1 + $0x2e4] sm:$0xf]
  %v249 = vld [vmem:[%s1 + $0x2e8] sm:$0xf]
  %v250 = vld [vmem:[%s1 + $0x2ec] sm:$0xf]
  %v251 = vld [vmem:[%s1 + $0x2f0] sm:$0xf]
  %v252 = vld [vmem:[%s1 + $0x2f4] sm:$0xf]
  %v253 = vld [vmem:[%s1 + $0x2f8] sm:$0xf]
  %v254 = vld [vmem:[%s1 + $0x2fc] sm:$0xf]
  %v255 = vld [vmem:[%s1 + $0x300] sm:$0xf]
  %v256 = vld [vmem:[%s1 + $0x304] sm:$0xf]
  %v257 = vld [vmem:[%s1 + $0x308] sm:$0xf]
  %v258 = vld [vmem:[%s1 + $0x30c] sm:$0xf]
  %v259 = vld [vmem:[%s1 + $0x310] sm:$0xf]
  %v260 = vld [vmem:[%s1 + $0x314] sm:$0xf]
  %v261 = vld [vmem:[%s1 + $0x318] sm:$0xf]
  %v262 = vld [vmem:[%s1 + $0x31c] sm:$0xf]
  %v263 = vld [vmem:[%s1 + $0x320] sm:$0xf]
  %v264 = vld [vmem:[%s1 + $0x324] sm:$0xf]
  %v265 = vld [vmem:[%s1 + $0x328] sm:$0xf]
  %v266 = vld [vmem:[%s1 + $0x32c] sm:$0xf]
  %v267 = vld [vmem:[%s1 + $0x330] sm:$0xf]
  %v268 = vld [vmem:[%s1 + $0x334] sm:$0xf]
  %v269 = vld [vmem:[%s1 + $0x338] sm:$0xf]
  %v270 = vld [vmem:[%s1 + $0x33c] sm:$0xf]
  %v271 = vld [vmem:[%s1 + $0x340] sm:$0xf]
  %v272 = vld [vmem:[%s1 + $0x344] sm:$0xf]
  %v273 = vld [vmem:[%s1 + $0x348] sm:$0xf]
  %v274 = vld [vmem:[%s1 + $0x34c] sm:$0xf]
  %v275 = vld [vmem:[%s1 + $0x350] sm:$0xf]
  %v276 = vld [vmem:[%s1 + $0x354] sm:$0xf]
  %v277 = vld [vmem:[%s1 + $0x358] sm:$0xf]
  %v278 = vld [vmem:[%s1 + $0x35c] sm:$0xf]
  %v279 = vld [vmem:[%s1 + $0x360] sm:$0xf]
  %v280 = vld [vmem:[%s1 + $0x364] sm:$0xf]
  %v281 = vld [vmem:[%s1 + $0x368] sm:$0xf]
  %v282 = vld [vmem:[%s1 + $0x36c] sm:$0xf]
  %v283 = vld [vmem:[%s1 + $0x370] sm:$0xf]
  %v284 = vld [vmem:[%s1 + $0x374] sm:$0xf]
  %v285 = vld [vmem:[%s1 + $0x378] sm:$0xf]
  %v286 = vld [vmem:[%s1 + $0x37c] sm:$0xf]
  %v287 = vld [vmem:[%s1 + $0x380] sm:$0xf]
  %v288 = vld [vmem:[%s1 + $0x384] sm:$0xf]
  %v289 = vld [vmem:[%s1 + $0x388] sm:$0xf]
  %v290 = vld [vmem:[%s1 + $0x38c] sm:$0xf]
  %v291 = vld [vmem:[%s1 + $0x390] sm:$0xf]
  %v292 = vld [vmem:[%s1 + $0x394] sm:$0xf]
  %v293 = vld [vmem:[%s1 + $0x398] sm:$0xf]
  %v294 = vld [vmem:[%s1 + $0x39c] sm:$0xf]
  %v295 = vld [vmem:[%s1 + $0x3a0] sm:$0xf]
  %v296 = vld [vmem:[%s1 + $0x3a4] sm:$0xf]
  %v297 = vld [vmem:[%s1 + $0x3a8] sm:$0xf]
  %v298 = vld [vmem:[%s1 + $0x3ac] sm:$0xf]
  %v299 = vld [vmem:[%s1 + $0x3b0] sm:$0xf]
  %v300 = vld [vmem:[%s1 + $0x3b4] sm:$0xf]
  %v301 = vld [vmem:[%s1 + $0x3b8] sm:$0xf]
  %v302 = vld [vmem:[%s1 + $0x3bc] sm:$0xf]
  %v303 = vld [vmem:[%s1 + $0x3c0] sm:$0xf]
  %v304 = vld [vmem:[%s1 + $0x3c4] sm:$0xf]
  %v305 = vld [vmem:[%s1 + $0x3c8] sm:$0xf]
  %v306 = vld [vmem:[%s1 + $0x3cc] sm:$0xf]
  %v307 = vld [vmem:[%s1 + $0x3d0] sm:$0xf]
  %v308 = vld [vmem:[%s1 + $0x3d4] sm:$0xf]
  %v309 = vld [vmem:[%s1 + $0x3d8] sm:$0xf]
  %v310 = vld [vmem:[%s1 + $0x3dc] sm:$0xf]
  %v311 = vld [vmem:[%s1 + $0x3e0] sm:$0xf]
  %v312 = vld [vmem:[%s1 + $0x3e4] sm:$0xf]
  %v313 = vld [vmem:[%s1 + $0x3e8] sm:$0xf]
  %v314 = vld [vmem:[%s1 + $0x3ec] sm:$0xf]
  %v315 = vld [vmem:[%s1 + $0x3f0] sm:$0xf]
  %v316 = vld [vmem:[%s1 + $0x3f4] sm:$0xf]
  %v317 = vld [vmem:[%s1 + $0x3f8] sm:$0xf]
  %v318 = vld [vmem:[%s1 + $0x3fc] sm:$0xf]
  %v319 = vld [vmem:[%s2] sm:$0x1]
  %v321 = vlaneseq
  %v322 = vshrl.u32 %v321, 7
  %v323 = vsub.s32 0, %v322
  %v324 = vrot.slane %v319, %v323
  %v374 = vunpack.c.l.b16 %v15
  %v375 = vunpack.c.h.b16 %v15
  %v376 = vunpack.c.l.b16 %v16
  %v377 = vunpack.c.h.b16 %v16
  %v378 = vunpack.c.l.b16 %v17
  %v379 = vunpack.c.h.b16 %v17
  %v380 = vunpack.c.l.b16 %v18
  %v381 = vunpack.c.h.b16 %v18
  %v382 = vunpack.c.l.b16 %v19
  %v383 = vunpack.c.h.b16 %v19
  %v384 = vunpack.c.l.b16 %v20
  %v385 = vunpack.c.h.b16 %v20
  %v386 = vunpack.c.l.b16 %v21
  %v387 = vunpack.c.h.b16 %v21
  %v388 = vunpack.c.l.b16 %v22
  %v389 = vunpack.c.h.b16 %v22
  %v390 = vunpack.c.l.b16 %v23
  %v391 = vunpack.c.h.b16 %v23
  %v392 = vunpack.c.l.b16 %v24
  %v393 = vunpack.c.h.b16 %v24
  %v394 = vunpack.c.l.b16 %v25
  %v395 = vunpack.c.h.b16 %v25
  %v396 = vunpack.c.l.b16 %v26
  %v397 = vunpack.c.h.b16 %v26
  %v398 = vunpack.c.l.b16 %v27
  %v399 = vunpack.c.h.b16 %v27
  %v400 = vunpack.c.l.b16 %v28
  %v401 = vunpack.c.h.b16 %v28
  %v402 = vunpack.c.l.b16 %v29
  %v403 = vunpack.c.h.b16 %v29
  %v404 = vunpack.c.l.b16 %v30
  %v405 = vunpack.c.h.b16 %v30
  %v406 = vunpack.c.l.b16 %v31
  %v407 = vunpack.c.h.b16 %v31
  %v408 = vunpack.c.l.b16 %v32
  %v409 = vunpack.c.h.b16 %v32
  %v410 = vunpack.c.l.b16 %v33
  %v411 = vunpack.c.h.b16 %v33
  %v412 = vunpack.c.l.b16 %v34
  %v413 = vunpack.c.h.b16 %v34
  %v414 = vunpack.c.l.b16 %v35
  %v415 = vunpack.c.h.b16 %v35
  %v416 = vunpack.c.l.b16 %v36
  %v417 = vunpack.c.h.b16 %v36
  %v418 = vunpack.c.l.b16 %v37
  %v419 = vunpack.c.h.b16 %v37
  %v420 = vunpack.c.l.b16 %v38
  %v421 = vunpack.c.h.b16 %v38
  %v422 = vunpack.c.l.b16 %v39
  %v423 = vunpack.c.h.b16 %v39
  %v424 = vunpack.c.l.b16 %v40
  %v425 = vunpack.c.h.b16 %v40
  %v426 = vunpack.c.l.b16 %v41
  %v427 = vunpack.c.h.b16 %v41
  %v428 = vunpack.c.l.b16 %v42
  %v429 = vunpack.c.h.b16 %v42
  %v430 = vunpack.c.l.b16 %v43
  %v431 = vunpack.c.h.b16 %v43
  %v432 = vunpack.c.l.b16 %v44
  %v433 = vunpack.c.h.b16 %v44
  %v434 = vunpack.c.l.b16 %v45
  %v435 = vunpack.c.h.b16 %v45
  %v436 = vunpack.c.l.b16 %v46
  %v437 = vunpack.c.h.b16 %v46
  %v438 = vunpack.c.l.b16 %v47
  %v439 = vunpack.c.h.b16 %v47
  %v440 = vunpack.c.l.b16 %v48
  %v441 = vunpack.c.h.b16 %v48
  %v442 = vunpack.c.l.b16 %v49
  %v443 = vunpack.c.h.b16 %v49
  %v444 = vunpack.c.l.b16 %v50
  %v445 = vunpack.c.h.b16 %v50
  %v446 = vunpack.c.l.b16 %v51
  %v447 = vunpack.c.h.b16 %v51
  %v448 = vunpack.c.l.b16 %v52
  %v449 = vunpack.c.h.b16 %v52
  %v450 = vunpack.c.l.b16 %v53
  %v451 = vunpack.c.h.b16 %v53
  %v452 = vunpack.c.l.b16 %v54
  %v453 = vunpack.c.h.b16 %v54
  %v454 = vunpack.c.l.b16 %v55
  %v455 = vunpack.c.h.b16 %v55
  %v456 = vunpack.c.l.b16 %v56
  %v457 = vunpack.c.h.b16 %v56
  %v458 = vunpack.c.l.b16 %v57
  %v459 = vunpack.c.h.b16 %v57
  %v460 = vunpack.c.l.b16 %v58
  %v461 = vunpack.c.h.b16 %v58
  %v462 = vunpack.c.l.b16 %v59
  %v463 = vunpack.c.h.b16 %v59
  %v464 = vunpack.c.l.b16 %v60
  %v465 = vunpack.c.h.b16 %v60
  %v466 = vunpack.c.l.b16 %v61
  %v467 = vunpack.c.h.b16 %v61
  %v468 = vunpack.c.l.b16 %v62
  %v469 = vunpack.c.h.b16 %v62
  %v470 = vpack.c.b16 %v390, %v374
  %v471 = vpack.c.b16 %v391, %v375
  %v472 = vpack.c.b16 %v392, %v376
  %v473 = vpack.c.b16 %v393, %v377
  %v474 = vpack.c.b16 %v394, %v378
  %v475 = vpack.c.b16 %v395, %v379
  %v476 = vpack.c.b16 %v396, %v380
  %v477 = vpack.c.b16 %v397, %v381
  %v478 = vpack.c.b16 %v398, %v382
  %v479 = vpack.c.b16 %v399, %v383
  %v480 = vpack.c.b16 %v400, %v384
  %v481 = vpack.c.b16 %v401, %v385
  %v482 = vpack.c.b16 %v402, %v386
  %v483 = vpack.c.b16 %v403, %v387
  %v484 = vpack.c.b16 %v404, %v388
  %v485 = vpack.c.b16 %v405, %v389
  %v486 = vpack.c.b16 %v422, %v406
  %v487 = vpack.c.b16 %v423, %v407
  %v488 = vpack.c.b16 %v424, %v408
  %v489 = vpack.c.b16 %v425, %v409
  %v490 = vpack.c.b16 %v426, %v410
  %v491 = vpack.c.b16 %v427, %v411
  %v492 = vpack.c.b16 %v428, %v412
  %v493 = vpack.c.b16 %v429, %v413
  %v494 = vpack.c.b16 %v430, %v414
  %v495 = vpack.c.b16 %v431, %v415
  %v496 = vpack.c.b16 %v432, %v416
  %v497 = vpack.c.b16 %v433, %v417
  %v498 = vpack.c.b16 %v434, %v418
  %v499 = vpack.c.b16 %v435, %v419
  %v500 = vpack.c.b16 %v436, %v420
  %v501 = vpack.c.b16 %v437, %v421
  %v502 = vpack.c.b16 %v454, %v438
  %v503 = vpack.c.b16 %v455, %v439
  %v504 = vpack.c.b16 %v456, %v440
  %v505 = vpack.c.b16 %v457, %v441
  %v506 = vpack.c.b16 %v458, %v442
  %v507 = vpack.c.b16 %v459, %v443
  %v508 = vpack.c.b16 %v460, %v444
  %v509 = vpack.c.b16 %v461, %v445
  %v510 = vpack.c.b16 %v462, %v446
  %v511 = vpack.c.b16 %v463, %v447
  %v512 = vpack.c.b16 %v464, %v448
  %v513 = vpack.c.b16 %v465, %v449
  %v514 = vpack.c.b16 %v466, %v450
  %v515 = vpack.c.b16 %v467, %v451
  %v516 = vpack.c.b16 %v468, %v452
  %v517 = vpack.c.b16 %v469, %v453
  %v822 = vunpack.c.l.b16 %v63
  %v823 = vunpack.c.l.b16 %v64
  %v824 = vunpack.c.l.b16 %v65
  %v825 = vunpack.c.l.b16 %v66
  %v826 = vunpack.c.l.b16 %v67
  %v827 = vunpack.c.l.b16 %v68
  %v828 = vunpack.c.l.b16 %v69
  %v829 = vunpack.c.l.b16 %v70
  %v830 = vunpack.c.l.b16 %v71
  %v831 = vunpack.c.l.b16 %v72
  %v832 = vunpack.c.l.b16 %v73
  %v833 = vunpack.c.l.b16 %v74
  %v834 = vunpack.c.l.b16 %v75
  %v835 = vunpack.c.l.b16 %v76
  %v836 = vunpack.c.l.b16 %v77
  %v837 = vunpack.c.l.b16 %v78
  %v838 = vunpack.c.l.b16 %v79
  %v839 = vunpack.c.l.b16 %v80
  %v840 = vunpack.c.l.b16 %v81
  %v841 = vunpack.c.l.b16 %v82
  %v842 = vunpack.c.l.b16 %v83
  %v843 = vunpack.c.l.b16 %v84
  %v844 = vunpack.c.l.b16 %v85
  %v845 = vunpack.c.l.b16 %v86
  %v846 = vunpack.c.l.b16 %v87
  %v847 = vunpack.c.l.b16 %v88
  %v848 = vunpack.c.l.b16 %v89
  %v849 = vunpack.c.l.b16 %v90
  %v850 = vunpack.c.l.b16 %v91
  %v851 = vunpack.c.l.b16 %v92
  %v852 = vunpack.c.l.b16 %v93
  %v853 = vunpack.c.l.b16 %v94
  %v854 = vunpack.c.l.b16 %v95
  %v855 = vunpack.c.l.b16 %v96
  %v856 = vunpack.c.l.b16 %v97
  %v857 = vunpack.c.l.b16 %v98
  %v858 = vunpack.c.l.b16 %v99
  %v859 = vunpack.c.l.b16 %v100
  %v860 = vunpack.c.l.b16 %v101
  %v861 = vunpack.c.l.b16 %v102
  %v862 = vunpack.c.l.b16 %v103
  %v863 = vunpack.c.l.b16 %v104
  %v864 = vunpack.c.l.b16 %v105
  %v865 = vunpack.c.l.b16 %v106
  %v866 = vunpack.c.l.b16 %v107
  %v867 = vunpack.c.l.b16 %v108
  %v868 = vunpack.c.l.b16 %v109
  %v869 = vunpack.c.l.b16 %v110
  %v870 = vunpack.c.l.b16 %v111
  %v871 = vunpack.c.l.b16 %v112
  %v872 = vunpack.c.l.b16 %v113
  %v873 = vunpack.c.l.b16 %v114
  %v874 = vunpack.c.l.b16 %v115
  %v875 = vunpack.c.l.b16 %v116
  %v876 = vunpack.c.l.b16 %v117
  %v877 = vunpack.c.l.b16 %v118
  %v878 = vunpack.c.l.b16 %v119
  %v879 = vunpack.c.l.b16 %v120
  %v880 = vunpack.c.l.b16 %v121
  %v881 = vunpack.c.l.b16 %v122
  %v882 = vunpack.c.l.b16 %v123
  %v883 = vunpack.c.l.b16 %v124
  %v884 = vunpack.c.l.b16 %v125
  %v885 = vunpack.c.l.b16 %v126
  %v886 = vunpack.c.l.b16 %v127
  %v887 = vunpack.c.l.b16 %v128
  %v888 = vunpack.c.l.b16 %v129
  %v889 = vunpack.c.l.b16 %v130
  %v890 = vunpack.c.l.b16 %v131
  %v891 = vunpack.c.l.b16 %v132
  %v892 = vunpack.c.l.b16 %v133
  %v893 = vunpack.c.l.b16 %v134
  %v894 = vunpack.c.l.b16 %v135
  %v895 = vunpack.c.l.b16 %v136
  %v896 = vunpack.c.l.b16 %v137
  %v897 = vunpack.c.l.b16 %v138
  %v898 = vunpack.c.l.b16 %v139
  %v899 = vunpack.c.l.b16 %v140
  %v900 = vunpack.c.l.b16 %v141
  %v901 = vunpack.c.l.b16 %v142
  %v902 = vunpack.c.l.b16 %v143
  %v903 = vunpack.c.l.b16 %v144
  %v904 = vunpack.c.l.b16 %v145
  %v905 = vunpack.c.l.b16 %v146
  %v906 = vunpack.c.l.b16 %v147
  %v907 = vunpack.c.l.b16 %v148
  %v908 = vunpack.c.l.b16 %v149
  %v909 = vunpack.c.l.b16 %v150
  %v910 = vunpack.c.l.b16 %v151
  %v911 = vunpack.c.l.b16 %v152
  %v912 = vunpack.c.l.b16 %v153
  %v913 = vunpack.c.l.b16 %v154
  %v914 = vunpack.c.l.b16 %v155
  %v915 = vunpack.c.l.b16 %v156
  %v916 = vunpack.c.l.b16 %v157
  %v917 = vunpack.c.l.b16 %v158
  %v918 = vunpack.c.l.b16 %v159
  %v919 = vunpack.c.l.b16 %v160
  %v920 = vunpack.c.l.b16 %v161
  %v921 = vunpack.c.l.b16 %v162
  %v922 = vunpack.c.l.b16 %v163
  %v923 = vunpack.c.l.b16 %v164
  %v924 = vunpack.c.l.b16 %v165
  %v925 = vunpack.c.l.b16 %v166
  %v926 = vunpack.c.l.b16 %v167
  %v927 = vunpack.c.l.b16 %v168
  %v928 = vunpack.c.l.b16 %v169
  %v929 = vunpack.c.l.b16 %v170
  %v930 = vunpack.c.l.b16 %v171
  %v931 = vunpack.c.l.b16 %v172
  %v932 = vunpack.c.l.b16 %v173
  %v933 = vunpack.c.l.b16 %v174
  %v934 = vunpack.c.l.b16 %v175
  %v935 = vunpack.c.l.b16 %v176
  %v936 = vunpack.c.l.b16 %v177
  %v937 = vunpack.c.l.b16 %v178
  %v938 = vunpack.c.l.b16 %v179
  %v939 = vunpack.c.l.b16 %v180
  %v940 = vunpack.c.l.b16 %v181
  %v941 = vunpack.c.l.b16 %v182
  %v942 = vunpack.c.l.b16 %v183
  %v943 = vunpack.c.l.b16 %v184
  %v944 = vunpack.c.l.b16 %v185
  %v945 = vunpack.c.l.b16 %v186
  %v946 = vunpack.c.l.b16 %v187
  %v947 = vunpack.c.l.b16 %v188
  %v948 = vunpack.c.l.b16 %v189
  %v949 = vunpack.c.l.b16 %v190
  %v950 = vunpack.c.l.b16 %v191
  %v951 = vunpack.c.l.b16 %v192
  %v952 = vunpack.c.l.b16 %v193
  %v953 = vunpack.c.l.b16 %v194
  %v954 = vunpack.c.l.b16 %v195
  %v955 = vunpack.c.l.b16 %v196
  %v956 = vunpack.c.l.b16 %v197
  %v957 = vunpack.c.l.b16 %v198
  %v958 = vunpack.c.l.b16 %v199
  %v959 = vunpack.c.l.b16 %v200
  %v960 = vunpack.c.l.b16 %v201
  %v961 = vunpack.c.l.b16 %v202
  %v962 = vunpack.c.l.b16 %v203
  %v963 = vunpack.c.l.b16 %v204
  %v964 = vunpack.c.l.b16 %v205
  %v965 = vunpack.c.l.b16 %v206
  %v966 = vunpack.c.l.b16 %v207
  %v967 = vunpack.c.l.b16 %v208
  %v968 = vunpack.c.l.b16 %v209
  %v969 = vunpack.c.l.b16 %v210
  %v970 = vunpack.c.l.b16 %v211
  %v971 = vunpack.c.l.b16 %v212
  %v972 = vunpack.c.l.b16 %v213
  %v973 = vunpack.c.l.b16 %v214
  %v974 = vunpack.c.l.b16 %v215
  %v975 = vunpack.c.l.b16 %v216
  %v976 = vunpack.c.l.b16 %v217
  %v977 = vunpack.c.l.b16 %v218
  %v978 = vunpack.c.l.b16 %v219
  %v979 = vunpack.c.l.b16 %v220
  %v980 = vunpack.c.l.b16 %v221
  %v981 = vunpack.c.l.b16 %v222
  %v982 = vunpack.c.l.b16 %v223
  %v983 = vunpack.c.l.b16 %v224
  %v984 = vunpack.c.l.b16 %v225
  %v985 = vunpack.c.l.b16 %v226
  %v986 = vunpack.c.l.b16 %v227
  %v987 = vunpack.c.l.b16 %v228
  %v988 = vunpack.c.l.b16 %v229
  %v989 = vunpack.c.l.b16 %v230
  %v990 = vunpack.c.l.b16 %v231
  %v991 = vunpack.c.l.b16 %v232
  %v992 = vunpack.c.l.b16 %v233
  %v993 = vunpack.c.l.b16 %v234
  %v994 = vunpack.c.l.b16 %v235
  %v995 = vunpack.c.l.b16 %v236
  %v996 = vunpack.c.l.b16 %v237
  %v997 = vunpack.c.l.b16 %v238
  %v998 = vunpack.c.l.b16 %v239
  %v999 = vunpack.c.l.b16 %v240
  %v1000 = vunpack.c.l.b16 %v241
  %v1001 = vunpack.c.l.b16 %v242
  %v1002 = vunpack.c.l.b16 %v243
  %v1003 = vunpack.c.l.b16 %v244
  %v1004 = vunpack.c.l.b16 %v245
  %v1005 = vunpack.c.l.b16 %v246
  %v1006 = vunpack.c.l.b16 %v247
  %v1007 = vunpack.c.l.b16 %v248
  %v1008 = vunpack.c.l.b16 %v249
  %v1009 = vunpack.c.l.b16 %v250
  %v1010 = vunpack.c.l.b16 %v251
  %v1011 = vunpack.c.l.b16 %v252
  %v1012 = vunpack.c.l.b16 %v253
  %v1013 = vunpack.c.l.b16 %v254
  %v1014 = vunpack.c.l.b16 %v255
  %v1015 = vunpack.c.l.b16 %v256
  %v1016 = vunpack.c.l.b16 %v257
  %v1017 = vunpack.c.l.b16 %v258
  %v1018 = vunpack.c.l.b16 %v259
  %v1019 = vunpack.c.l.b16 %v260
  %v1020 = vunpack.c.l.b16 %v261
  %v1021 = vunpack.c.l.b16 %v262
  %v1022 = vunpack.c.l.b16 %v263
  %v1023 = vunpack.c.l.b16 %v264
  %v1024 = vunpack.c.l.b16 %v265
  %v1025 = vunpack.c.l.b16 %v266
  %v1026 = vunpack.c.l.b16 %v267
  %v1027 = vunpack.c.l.b16 %v268
  %v1028 = vunpack.c.l.b16 %v269
  %v1029 = vunpack.c.l.b16 %v270
  %v1030 = vunpack.c.l.b16 %v271
  %v1031 = vunpack.c.l.b16 %v272
  %v1032 = vunpack.c.l.b16 %v273
  %v1033 = vunpack.c.l.b16 %v274
  %v1034 = vunpack.c.l.b16 %v275
  %v1035 = vunpack.c.l.b16 %v276
  %v1036 = vunpack.c.l.b16 %v277
  %v1037 = vunpack.c.l.b16 %v278
  %v1038 = vunpack.c.l.b16 %v279
  %v1039 = vunpack.c.l.b16 %v280
  %v1040 = vunpack.c.l.b16 %v281
  %v1041 = vunpack.c.l.b16 %v282
  %v1042 = vunpack.c.l.b16 %v283
  %v1043 = vunpack.c.l.b16 %v284
  %v1044 = vunpack.c.l.b16 %v285
  %v1045 = vunpack.c.l.b16 %v286
  %v1046 = vunpack.c.l.b16 %v287
  %v1047 = vunpack.c.l.b16 %v288
  %v1048 = vunpack.c.l.b16 %v289
  %v1049 = vunpack.c.l.b16 %v290
  %v1050 = vunpack.c.l.b16 %v291
  %v1051 = vunpack.c.l.b16 %v292
  %v1052 = vunpack.c.l.b16 %v293
  %v1053 = vunpack.c.l.b16 %v294
  %v1054 = vunpack.c.l.b16 %v295
  %v1055 = vunpack.c.l.b16 %v296
  %v1056 = vunpack.c.l.b16 %v297
  %v1057 = vunpack.c.l.b16 %v298
  %v1058 = vunpack.c.l.b16 %v299
  %v1059 = vunpack.c.l.b16 %v300
  %v1060 = vunpack.c.l.b16 %v301
  %v1061 = vunpack.c.l.b16 %v302
  %v1062 = vunpack.c.l.b16 %v303
  %v1063 = vunpack.c.l.b16 %v304
  %v1064 = vunpack.c.l.b16 %v305
  %v1065 = vunpack.c.l.b16 %v306
  %v1066 = vunpack.c.l.b16 %v307
  %v1067 = vunpack.c.l.b16 %v308
  %v1068 = vunpack.c.l.b16 %v309
  %v1069 = vunpack.c.l.b16 %v310
  %v1070 = vunpack.c.l.b16 %v311
  %v1071 = vunpack.c.l.b16 %v312
  %v1072 = vunpack.c.l.b16 %v313
  %v1073 = vunpack.c.l.b16 %v314
  %v1074 = vunpack.c.l.b16 %v315
  %v1075 = vunpack.c.l.b16 %v316
  %v1076 = vunpack.c.l.b16 %v317
  %v1077 = vunpack.c.l.b16 %v318
  %v1078 = vpack.c.b16 %v823, %v822
  %v1079 = vpack.c.b16 %v825, %v824
  %v1080 = vpack.c.b16 %v827, %v826
  %v1081 = vpack.c.b16 %v829, %v828
  %v1082 = vpack.c.b16 %v831, %v830
  %v1083 = vpack.c.b16 %v833, %v832
  %v1084 = vpack.c.b16 %v835, %v834
  %v1085 = vpack.c.b16 %v837, %v836
  %v1086 = vpack.c.b16 %v839, %v838
  %v1087 = vpack.c.b16 %v841, %v840
  %v1088 = vpack.c.b16 %v843, %v842
  %v1089 = vpack.c.b16 %v845, %v844
  %v1090 = vpack.c.b16 %v847, %v846
  %v1091 = vpack.c.b16 %v849, %v848
  %v1092 = vpack.c.b16 %v851, %v850
  %v1093 = vpack.c.b16 %v853, %v852
  %v1094 = vpack.c.b16 %v855, %v854
  %v1095 = vpack.c.b16 %v857, %v856
  %v1096 = vpack.c.b16 %v859, %v858
  %v1097 = vpack.c.b16 %v861, %v860
  %v1098 = vpack.c.b16 %v863, %v862
  %v1099 = vpack.c.b16 %v865, %v864
  %v1100 = vpack.c.b16 %v867, %v866
  %v1101 = vpack.c.b16 %v869, %v868
  %v1102 = vpack.c.b16 %v871, %v870
  %v1103 = vpack.c.b16 %v873, %v872
  %v1104 = vpack.c.b16 %v875, %v874
  %v1105 = vpack.c.b16 %v877, %v876
  %v1106 = vpack.c.b16 %v879, %v878
  %v1107 = vpack.c.b16 %v881, %v880
  %v1108 = vpack.c.b16 %v883, %v882
  %v1109 = vpack.c.b16 %v885, %v884
  %v1110 = vpack.c.b16 %v887, %v886
  %v1111 = vpack.c.b16 %v889, %v888
  %v1112 = vpack.c.b16 %v891, %v890
  %v1113 = vpack.c.b16 %v893, %v892
  %v1114 = vpack.c.b16 %v895, %v894
  %v1115 = vpack.c.b16 %v897, %v896
  %v1116 = vpack.c.b16 %v899, %v898
  %v1117 = vpack.c.b16 %v901, %v900
  %v1118 = vpack.c.b16 %v903, %v902
  %v1119 = vpack.c.b16 %v905, %v904
  %v1120 = vpack.c.b16 %v907, %v906
  %v1121 = vpack.c.b16 %v909, %v908
  %v1122 = vpack.c.b16 %v911, %v910
  %v1123 = vpack.c.b16 %v913, %v912
  %v1124 = vpack.c.b16 %v915, %v914
  %v1125 = vpack.c.b16 %v917, %v916
  %v1126 = vpack.c.b16 %v919, %v918
  %v1127 = vpack.c.b16 %v921, %v920
  %v1128 = vpack.c.b16 %v923, %v922
  %v1129 = vpack.c.b16 %v925, %v924
  %v1130 = vpack.c.b16 %v927, %v926
  %v1131 = vpack.c.b16 %v929, %v928
  %v1132 = vpack.c.b16 %v931, %v930
  %v1133 = vpack.c.b16 %v933, %v932
  %v1134 = vpack.c.b16 %v935, %v934
  %v1135 = vpack.c.b16 %v937, %v936
  %v1136 = vpack.c.b16 %v939, %v938
  %v1137 = vpack.c.b16 %v941, %v940
  %v1138 = vpack.c.b16 %v943, %v942
  %v1139 = vpack.c.b16 %v945, %v944
  %v1140 = vpack.c.b16 %v947, %v946
  %v1141 = vpack.c.b16 %v949, %v948
  %v1142 = vpack.c.b16 %v951, %v950
  %v1143 = vpack.c.b16 %v953, %v952
  %v1144 = vpack.c.b16 %v955, %v954
  %v1145 = vpack.c.b16 %v957, %v956
  %v1146 = vpack.c.b16 %v959, %v958
  %v1147 = vpack.c.b16 %v961, %v960
  %v1148 = vpack.c.b16 %v963, %v962
  %v1149 = vpack.c.b16 %v965, %v964
  %v1150 = vpack.c.b16 %v967, %v966
  %v1151 = vpack.c.b16 %v969, %v968
  %v1152 = vpack.c.b16 %v971, %v970
  %v1153 = vpack.c.b16 %v973, %v972
  %v1154 = vpack.c.b16 %v975, %v974
  %v1155 = vpack.c.b16 %v977, %v976
  %v1156 = vpack.c.b16 %v979, %v978
  %v1157 = vpack.c.b16 %v981, %v980
  %v1158 = vpack.c.b16 %v983, %v982
  %v1159 = vpack.c.b16 %v985, %v984
  %v1160 = vpack.c.b16 %v987, %v986
  %v1161 = vpack.c.b16 %v989, %v988
  %v1162 = vpack.c.b16 %v991, %v990
  %v1163 = vpack.c.b16 %v993, %v992
  %v1164 = vpack.c.b16 %v995, %v994
  %v1165 = vpack.c.b16 %v997, %v996
  %v1166 = vpack.c.b16 %v999, %v998
  %v1167 = vpack.c.b16 %v1001, %v1000
  %v1168 = vpack.c.b16 %v1003, %v1002
  %v1169 = vpack.c.b16 %v1005, %v1004
  %v1170 = vpack.c.b16 %v1007, %v1006
  %v1171 = vpack.c.b16 %v1009, %v1008
  %v1172 = vpack.c.b16 %v1011, %v1010
  %v1173 = vpack.c.b16 %v1013, %v1012
  %v1174 = vpack.c.b16 %v1015, %v1014
  %v1175 = vpack.c.b16 %v1017, %v1016
  %v1176 = vpack.c.b16 %v1019, %v1018
  %v1177 = vpack.c.b16 %v1021, %v1020
  %v1178 = vpack.c.b16 %v1023, %v1022
  %v1179 = vpack.c.b16 %v1025, %v1024
  %v1180 = vpack.c.b16 %v1027, %v1026
  %v1181 = vpack.c.b16 %v1029, %v1028
  %v1182 = vpack.c.b16 %v1031, %v1030
  %v1183 = vpack.c.b16 %v1033, %v1032
  %v1184 = vpack.c.b16 %v1035, %v1034
  %v1185 = vpack.c.b16 %v1037, %v1036
  %v1186 = vpack.c.b16 %v1039, %v1038
  %v1187 = vpack.c.b16 %v1041, %v1040
  %v1188 = vpack.c.b16 %v1043, %v1042
  %v1189 = vpack.c.b16 %v1045, %v1044
  %v1190 = vpack.c.b16 %v1047, %v1046
  %v1191 = vpack.c.b16 %v1049, %v1048
  %v1192 = vpack.c.b16 %v1051, %v1050
  %v1193 = vpack.c.b16 %v1053, %v1052
  %v1194 = vpack.c.b16 %v1055, %v1054
  %v1195 = vpack.c.b16 %v1057, %v1056
  %v1196 = vpack.c.b16 %v1059, %v1058
  %v1197 = vpack.c.b16 %v1061, %v1060
  %v1198 = vpack.c.b16 %v1063, %v1062
  %v1199 = vpack.c.b16 %v1065, %v1064
  %v1200 = vpack.c.b16 %v1067, %v1066
  %v1201 = vpack.c.b16 %v1069, %v1068
  %v1202 = vpack.c.b16 %v1071, %v1070
  %v1203 = vpack.c.b16 %v1073, %v1072
  %v1204 = vpack.c.b16 %v1075, %v1074
  %v1205 = vpack.c.b16 %v1077, %v1076
  %1334 = vmatprep.subr.bf16.mxu0 0
  %1335 = vmatpush1.bf16.msra.mxu0 %v1078
  %1336 = vmatprep.subr.bf16.mxu0 0
  %1337 = vmatpush1.bf16.msra.mxu0 %v1079
  %1338 = vmatprep.subr.bf16.mxu0 0
  %1339 = vmatpush1.bf16.msra.mxu0 %v1080
  %1340 = vmatprep.subr.bf16.mxu0 0
  %1341 = vmatpush1.bf16.msra.mxu0 %v1081
  %1342 = vmatprep.subr.bf16.mxu0 0
  %1343 = vmatpush1.bf16.msra.mxu0 %v1082
  %1344 = vmatprep.subr.bf16.mxu0 0
  %1345 = vmatpush1.bf16.msra.mxu0 %v1083
  %1346 = vmatprep.subr.bf16.mxu0 0
  %1347 = vmatpush1.bf16.msra.mxu0 %v1084
  %1348 = vmatprep.subr.bf16.mxu0 0
  %1349 = vmatpush1.bf16.msra.mxu0 %v1085
  %1350 = vmatprep.subr.bf16.mxu0 0
  %1351 = vmatpush1.bf16.msra.mxu0 %v1086
  %1352 = vmatprep.subr.bf16.mxu0 0
  %1353 = vmatpush1.bf16.msra.mxu0 %v1087
  %1354 = vmatprep.subr.bf16.mxu0 0
  %1355 = vmatpush1.bf16.msra.mxu0 %v1088
  %1356 = vmatprep.subr.bf16.mxu0 0
  %1357 = vmatpush1.bf16.msra.mxu0 %v1089
  %1358 = vmatprep.subr.bf16.mxu0 0
  %1359 = vmatpush1.bf16.msra.mxu0 %v1090
  %1360 = vmatprep.subr.bf16.mxu0 0
  %1361 = vmatpush1.bf16.msra.mxu0 %v1091
  %1362 = vmatprep.subr.bf16.mxu0 0
  %1363 = vmatpush1.bf16.msra.mxu0 %v1092
  %1364 = vmatprep.subr.bf16.mxu0 0
  %1365 = vmatpush1.bf16.msra.mxu0 %v1093
  %1366 = vmatprep.mubr.bf16.mxu0 %v471
  %1367 = vmatmul.mubr.bf16.gmra.mrb[0].mxu0 %v470
  %v1368 = vpop.f32.mrb[0].mxu0
  %v1369 = vadd.f32 %v324, %v1368
  %v1370 = vpop.f32.mrb[0].mxu0
  %v1371 = vpop.f32.mrb[0].mxu0
  %v1372 = vadd.f32 %v324, %v1371
  %v1373 = vpop.f32.mrb[0].mxu0
  %1374 = vmatprep.mubr.bf16.mxu0 %v487
  %1375 = vmatmul.mubr.bf16.gmra.mrb[0].mxu0 %v486
  %v1376 = vpop.f32.mrb[0].mxu0
  %v1377 = vadd.f32 %v324, %v1376
  %v1378 = vpop.f32.mrb[0].mxu0
  %v1379 = vpop.f32.mrb[0].mxu0
  %v1380 = vadd.f32 %v324, %v1379
  %v1381 = vpop.f32.mrb[0].mxu0
  %1382 = vmatprep.mubr.bf16.mxu0 %v503
  %1383 = vmatmul.mubr.bf16.gmra.mrb[0].mxu0 %v502
  %v1384 = vpop.f32.mrb[0].mxu0
  %v1385 = vadd.f32 %v324, %v1384
  %v1386 = vpop.f32.mrb[0].mxu0
  %v1387 = vpop.f32.mrb[0].mxu0
  %v1388 = vadd.f32 %v324, %v1387
  %v1389 = vpop.f32.mrb[0].mxu0
  %1390 = vdwg.mxu0
  %1391 = vmatprep.subr.bf16.mxu0 0
  %1392 = vmatpush1.bf16.msra.mxu0 %v1094
  %1393 = vmatprep.subr.bf16.mxu0 0
  %1394 = vmatpush1.bf16.msra.mxu0 %v1095
  %1395 = vmatprep.subr.bf16.mxu0 0
  %1396 = vmatpush1.bf16.msra.mxu0 %v1096
  %1397 = vmatprep.subr.bf16.mxu0 0
  %1398 = vmatpush1.bf16.msra.mxu0 %v1097
  %1399 = vmatprep.subr.bf16.mxu0 0
  %1400 = vmatpush1.bf16.msra.mxu0 %v1098
  %1401 = vmatprep.subr.bf16.mxu0 0
  %1402 = vmatpush1.bf16.msra.mxu0 %v1099
  %1403 = vmatprep.subr.bf16.mxu0 0
  %1404 = vmatpush1.bf16.msra.mxu0 %v1100
  %1405 = vmatprep.subr.bf16.mxu0 0
  %1406 = vmatpush1.bf16.msra.mxu0 %v1101
  %1407 = vmatprep.subr.bf16.mxu0 0
  %1408 = vmatpush1.bf16.msra.mxu0 %v1102
  %1409 = vmatprep.subr.bf16.mxu0 0
  %1410 = vmatpush1.bf16.msra.mxu0 %v1103
  %1411 = vmatprep.subr.bf16.mxu0 0
  %1412 = vmatpush1.bf16.msra.mxu0 %v1104
  %1413 = vmatprep.subr.bf16.mxu0 0
  %1414 = vmatpush1.bf16.msra.mxu0 %v1105
  %1415 = vmatprep.subr.bf16.mxu0 0
  %1416 = vmatpush1.bf16.msra.mxu0 %v1106
  %1417 = vmatprep.subr.bf16.mxu0 0
  %1418 = vmatpush1.bf16.msra.mxu0 %v1107
  %1419 = vmatprep.subr.bf16.mxu0 0
  %1420 = vmatpush1.bf16.msra.mxu0 %v1108
  %1421 = vmatprep.subr.bf16.mxu0 0
  %1422 = vmatpush1.bf16.msra.mxu0 %v1109
  %1423 = vmatprep.mubr.bf16.mxu0 %v473
  %1424 = vmatmul.mubr.bf16.gmra.mrb[0].mxu0 %v472
  %v1425 = vpop.f32.mrb[0].mxu0
  %v1426 = vadd.f32 %v1369, %v1425
  %v1427 = vpop.f32.mrb[0].mxu0
  %v1428 = vpop.f32.mrb[0].mxu0
  %v1429 = vadd.f32 %v1372, %v1428
  %v1430 = vpop.f32.mrb[0].mxu0
  %1431 = vmatprep.mubr.bf16.mxu0 %v489
  %1432 = vmatmul.mubr.bf16.gmra.mrb[0].mxu0 %v488
  %v1433 = vpop.f32.mrb[0].mxu0
  %v1434 = vadd.f32 %v1377, %v1433
  %v1435 = vpop.f32.mrb[0].mxu0
  %v1436 = vpop.f32.mrb[0].mxu0
  %v1437 = vadd.f32 %v1380, %v1436
  %v1438 = vpop.f32.mrb[0].mxu0
  %1439 = vmatprep.mubr.bf16.mxu0 %v505
  %1440 = vmatmul.mubr.bf16.gmra.mrb[0].mxu0 %v504
  %v1441 = vpop.f32.mrb[0].mxu0
  %v1442 = vadd.f32 %v1385, %v1441
  %v1443 = vpop.f32.mrb[0].mxu0
  %v1444 = vpop.f32.mrb[0].mxu0
  %v1445 = vadd.f32 %v1388, %v1444
  %v1446 = vpop.f32.mrb[0].mxu0
  %1447 = vdwg.mxu0
  %1448 = vmatprep.subr.bf16.mxu0 0
  %1449 = vmatpush1.bf16.msra.mxu0 %v1110
  %1450 = vmatprep.subr.bf16.mxu0 0
  %1451 = vmatpush1.bf16.msra.mxu0 %v1111
  %1452 = vmatprep.subr.bf16.mxu0 0
  %1453 = vmatpush1.bf16.msra.mxu0 %v1112
  %1454 = vmatprep.subr.bf16.mxu0 0
  %1455 = vmatpush1.bf16.msra.mxu0 %v1113
  %1456 = vmatprep.subr.bf16.mxu0 0
  %1457 = vmatpush1.bf16.msra.mxu0 %v1114
  %1458 = vmatprep.subr.bf16.mxu0 0
  %1459 = vmatpush1.bf16.msra.mxu0 %v1115
  %1460 = vmatprep.subr.bf16.mxu0 0
  %1461 = vmatpush1.bf16.msra.mxu0 %v1116
  %1462 = vmatprep.subr.bf16.mxu0 0
  %1463 = vmatpush1.bf16.msra.mxu0 %v1117
  %1464 = vmatprep.subr.bf16.mxu0 0
  %1465 = vmatpush1.bf16.msra.mxu0 %v1118
  %1466 = vmatprep.subr.bf16.mxu0 0
  %1467 = vmatpush1.bf16.msra.mxu0 %v1119
  %1468 = vmatprep.subr.bf16.mxu0 0
  %1469 = vmatpush1.bf16.msra.mxu0 %v1120
  %1470 = vmatprep.subr.bf16.mxu0 0
  %1471 = vmatpush1.bf16.msra.mxu0 %v1121
  %1472 = vmatprep.subr.bf16.mxu0 0
  %1473 = vmatpush1.bf16.msra.mxu0 %v1122
  %1474 = vmatprep.subr.bf16.mxu0 0
  %1475 = vmatpush1.bf16.msra.mxu0 %v1123
  %1476 = vmatprep.subr.bf16.mxu0 0
  %1477 = vmatpush1.bf16.msra.mxu0 %v1124
  %1478 = vmatprep.subr.bf16.mxu0 0
  %1479 = vmatpush1.bf16.msra.mxu0 %v1125
  %1480 = vmatprep.mubr.bf16.mxu0 %v475
  %1481 = vmatmul.mubr.bf16.gmra.mrb[0].mxu0 %v474
  %v1482 = vpop.f32.mrb[0].mxu0
  %v1483 = vadd.f32 %v1426, %v1482
  %v1484 = vpop.f32.mrb[0].mxu0
  %v1485 = vpop.f32.mrb[0].mxu0
  %v1486 = vadd.f32 %v1429, %v1485
  %v1487 = vpop.f32.mrb[0].mxu0
  %1488 = vmatprep.mubr.bf16.mxu0 %v491
  %1489 = vmatmul.mubr.bf16.gmra.mrb[0].mxu0 %v490
  %v1490 = vpop.f32.mrb[0].mxu0
  %v1491 = vadd.f32 %v1434, %v1490
  %v1492 = vpop.f32.mrb[0].mxu0
  %v1493 = vpop.f32.mrb[0].mxu0
  %v1494 = vadd.f32 %v1437, %v1493
  %v1495 = vpop.f32.mrb[0].mxu0
  %1496 = vmatprep.mubr.bf16.mxu0 %v507
  %1497 = vmatmul.mubr.bf16.gmra.mrb[0].mxu0 %v506
  %v1498 = vpop.f32.mrb[0].mxu0
  %v1499 = vadd.f32 %v1442, %v1498
  %v1500 = vpop.f32.mrb[0].mxu0
  %v1501 = vpop.f32.mrb[0].mxu0
  %v1502 = vadd.f32 %v1445, %v1501
  %v1503 = vpop.f32.mrb[0].mxu0
  %1504 = vdwg.mxu0
  %1505 = vmatprep.subr.bf16.mxu0 0
  %1506 = vmatpush1.bf16.msra.mxu0 %v1126
  %1507 = vmatprep.subr.bf16.mxu0 0
  %1508 = vmatpush1.bf16.msra.mxu0 %v1127
  %1509 = vmatprep.subr.bf16.mxu0 0
  %1510 = vmatpush1.bf16.msra.mxu0 %v1128
  %1511 = vmatprep.subr.bf16.mxu0 0
  %1512 = vmatpush1.bf16.msra.mxu0 %v1129
  %1513 = vmatprep.subr.bf16.mxu0 0
  %1514 = vmatpush1.bf16.msra.mxu0 %v1130
  %1515 = vmatprep.subr.bf16.mxu0 0
  %1516 = vmatpush1.bf16.msra.mxu0 %v1131
  %1517 = vmatprep.subr.bf16.mxu0 0
  %1518 = vmatpush1.bf16.msra.mxu0 %v1132
  %1519 = vmatprep.subr.bf16.mxu0 0
  %1520 = vmatpush1.bf16.msra.mxu0 %v1133
  %1521 = vmatprep.subr.bf16.mxu0 0
  %1522 = vmatpush1.bf16.msra.mxu0 %v1134
  %1523 = vmatprep.subr.bf16.mxu0 0
  %1524 = vmatpush1.bf16.msra.mxu0 %v1135
  %1525 = vmatprep.subr.bf16.mxu0 0
  %1526 = vmatpush1.bf16.msra.mxu0 %v1136
  %1527 = vmatprep.subr.bf16.mxu0 0
  %1528 = vmatpush1.bf16.msra.mxu0 %v1137
  %1529 = vmatprep.subr.bf16.mxu0 0
  %1530 = vmatpush1.bf16.msra.mxu0 %v1138
  %1531 = vmatprep.subr.bf16.mxu0 0
  %1532 = vmatpush1.bf16.msra.mxu0 %v1139
  %1533 = vmatprep.subr.bf16.mxu0 0
  %1534 = vmatpush1.bf16.msra.mxu0 %v1140
  %1535 = vmatprep.subr.bf16.mxu0 0
  %1536 = vmatpush1.bf16.msra.mxu0 %v1141
  %1537 = vmatprep.mubr.bf16.mxu0 %v477
  %1538 = vmatmul.mubr.bf16.gmra.mrb[0].mxu0 %v476
  %v1539 = vpop.f32.mrb[0].mxu0
  %v1540 = vadd.f32 %v1483, %v1539
  %v1541 = vpop.f32.mrb[0].mxu0
  %v1542 = vpop.f32.mrb[0].mxu0
  %v1543 = vadd.f32 %v1486, %v1542
  %v1544 = vpop.f32.mrb[0].mxu0
  %1545 = vmatprep.mubr.bf16.mxu0 %v493
  %1546 = vmatmul.mubr.bf16.gmra.mrb[0].mxu0 %v492
  %v1547 = vpop.f32.mrb[0].mxu0
  %v1548 = vadd.f32 %v1491, %v1547
  %v1549 = vpop.f32.mrb[0].mxu0
  %v1550 = vpop.f32.mrb[0].mxu0
  %v1551 = vadd.f32 %v1494, %v1550
  %v1552 = vpop.f32.mrb[0].mxu0
  %1553 = vmatprep.mubr.bf16.mxu0 %v509
  %1554 = vmatmul.mubr.bf16.gmra.mrb[0].mxu0 %v508
  %v1555 = vpop.f32.mrb[0].mxu0
  %v1556 = vadd.f32 %v1499, %v1555
  %v1557 = vpop.f32.mrb[0].mxu0
  %v1558 = vpop.f32.mrb[0].mxu0
  %v1559 = vadd.f32 %v1502, %v1558
  %v1560 = vpop.f32.mrb[0].mxu0
  %1561 = vdwg.mxu0
  %1562 = vmatprep.subr.bf16.mxu0 0
  %1563 = vmatpush1.bf16.msra.mxu0 %v1142
  %1564 = vmatprep.subr.bf16.mxu0 0
  %1565 = vmatpush1.bf16.msra.mxu0 %v1143
  %1566 = vmatprep.subr.bf16.mxu0 0
  %1567 = vmatpush1.bf16.msra.mxu0 %v1144
  %1568 = vmatprep.subr.bf16.mxu0 0
  %1569 = vmatpush1.bf16.msra.mxu0 %v1145
  %1570 = vmatprep.subr.bf16.mxu0 0
  %1571 = vmatpush1.bf16.msra.mxu0 %v1146
  %1572 = vmatprep.subr.bf16.mxu0 0
  %1573 = vmatpush1.bf16.msra.mxu0 %v1147
  %1574 = vmatprep.subr.bf16.mxu0 0
  %1575 = vmatpush1.bf16.msra.mxu0 %v1148
  %1576 = vmatprep.subr.bf16.mxu0 0
  %1577 = vmatpush1.bf16.msra.mxu0 %v1149
  %1578 = vmatprep.subr.bf16.mxu0 0
  %1579 = vmatpush1.bf16.msra.mxu0 %v1150
  %1580 = vmatprep.subr.bf16.mxu0 0
  %1581 = vmatpush1.bf16.msra.mxu0 %v1151
  %1582 = vmatprep.subr.bf16.mxu0 0
  %1583 = vmatpush1.bf16.msra.mxu0 %v1152
  %1584 = vmatprep.subr.bf16.mxu0 0
  %1585 = vmatpush1.bf16.msra.mxu0 %v1153
  %1586 = vmatprep.subr.bf16.mxu0 0
  %1587 = vmatpush1.bf16.msra.mxu0 %v1154
  %1588 = vmatprep.subr.bf16.mxu0 0
  %1589 = vmatpush1.bf16.msra.mxu0 %v1155
  %1590 = vmatprep.subr.bf16.mxu0 0
  %1591 = vmatpush1.bf16.msra.mxu0 %v1156
  %1592 = vmatprep.subr.bf16.mxu0 0
  %1593 = vmatpush1.bf16.msra.mxu0 %v1157
  %1594 = vmatprep.mubr.bf16.mxu0 %v479
  %1595 = vmatmul.mubr.bf16.gmra.mrb[0].mxu0 %v478
  %v1596 = vpop.f32.mrb[0].mxu0
  %v1597 = vadd.f32 %v1540, %v1596
  %v1598 = vpop.f32.mrb[0].mxu0
  %v1599 = vpop.f32.mrb[0].mxu0
  %v1600 = vadd.f32 %v1543, %v1599
  %v1601 = vpop.f32.mrb[0].mxu0
  %1602 = vmatprep.mubr.bf16.mxu0 %v495
  %1603 = vmatmul.mubr.bf16.gmra.mrb[0].mxu0 %v494
  %v1604 = vpop.f32.mrb[0].mxu0
  %v1605 = vadd.f32 %v1548, %v1604
  %v1606 = vpop.f32.mrb[0].mxu0
  %v1607 = vpop.f32.mrb[0].mxu0
  %v1608 = vadd.f32 %v1551, %v1607
  %v1609 = vpop.f32.mrb[0].mxu0
  %1610 = vmatprep.mubr.bf16.mxu0 %v511
  %1611 = vmatmul.mubr.bf16.gmra.mrb[0].mxu0 %v510
  %v1612 = vpop.f32.mrb[0].mxu0
  %v1613 = vadd.f32 %v1556, %v1612
  %v1614 = vpop.f32.mrb[0].mxu0
  %v1615 = vpop.f32.mrb[0].mxu0
  %v1616 = vadd.f32 %v1559, %v1615
  %v1617 = vpop.f32.mrb[0].mxu0
  %1618 = vdwg.mxu0
  %1619 = vmatprep.subr.bf16.mxu0 0
  %1620 = vmatpush1.bf16.msra.mxu0 %v1158
  %1621 = vmatprep.subr.bf16.mxu0 0
  %1622 = vmatpush1.bf16.msra.mxu0 %v1159
  %1623 = vmatprep.subr.bf16.mxu0 0
  %1624 = vmatpush1.bf16.msra.mxu0 %v1160
  %1625 = vmatprep.subr.bf16.mxu0 0
  %1626 = vmatpush1.bf16.msra.mxu0 %v1161
  %1627 = vmatprep.subr.bf16.mxu0 0
  %1628 = vmatpush1.bf16.msra.mxu0 %v1162
  %1629 = vmatprep.subr.bf16.mxu0 0
  %1630 = vmatpush1.bf16.msra.mxu0 %v1163
  %1631 = vmatprep.subr.bf16.mxu0 0
  %1632 = vmatpush1.bf16.msra.mxu0 %v1164
  %1633 = vmatprep.subr.bf16.mxu0 0
  %1634 = vmatpush1.bf16.msra.mxu0 %v1165
  %1635 = vmatprep.subr.bf16.mxu0 0
  %1636 = vmatpush1.bf16.msra.mxu0 %v1166
  %1637 = vmatprep.subr.bf16.mxu0 0
  %1638 = vmatpush1.bf16.msra.mxu0 %v1167
  %1639 = vmatprep.subr.bf16.mxu0 0
  %1640 = vmatpush1.bf16.msra.mxu0 %v1168
  %1641 = vmatprep.subr.bf16.mxu0 0
  %1642 = vmatpush1.bf16.msra.mxu0 %v1169
  %1643 = vmatprep.subr.bf16.mxu0 0
  %1644 = vmatpush1.bf16.msra.mxu0 %v1170
  %1645 = vmatprep.subr.bf16.mxu0 0
  %1646 = vmatpush1.bf16.msra.mxu0 %v1171
  %1647 = vmatprep.subr.bf16.mxu0 0
  %1648 = vmatpush1.bf16.msra.mxu0 %v1172
  %1649 = vmatprep.subr.bf16.mxu0 0
  %1650 = vmatpush1.bf16.msra.mxu0 %v1173
  %1651 = vmatprep.mubr.bf16.mxu0 %v481
  %1652 = vmatmul.mubr.bf16.gmra.mrb[0].mxu0 %v480
  %v1653 = vpop.f32.mrb[0].mxu0
  %v1654 = vadd.f32 %v1597, %v1653
  %v1655 = vpop.f32.mrb[0].mxu0
  %v1656 = vpop.f32.mrb[0].mxu0
  %v1657 = vadd.f32 %v1600, %v1656
  %v1658 = vpop.f32.mrb[0].mxu0
  %1659 = vmatprep.mubr.bf16.mxu0 %v497
  %1660 = vmatmul.mubr.bf16.gmra.mrb[0].mxu0 %v496
  %v1661 = vpop.f32.mrb[0].mxu0
  %v1662 = vadd.f32 %v1605, %v1661
  %v1663 = vpop.f32.mrb[0].mxu0
  %v1664 = vpop.f32.mrb[0].mxu0
  %v1665 = vadd.f32 %v1608, %v1664
  %v1666 = vpop.f32.mrb[0].mxu0
  %1667 = vmatprep.mubr.bf16.mxu0 %v513
  %1668 = vmatmul.mubr.bf16.gmra.mrb[0].mxu0 %v512
  %v1669 = vpop.f32.mrb[0].mxu0
  %v1670 = vadd.f32 %v1613, %v1669
  %v1671 = vpop.f32.mrb[0].mxu0
  %v1672 = vpop.f32.mrb[0].mxu0
  %v1673 = vadd.f32 %v1616, %v1672
  %v1674 = vpop.f32.mrb[0].mxu0
  %1675 = vdwg.mxu0
  %1676 = vmatprep.subr.bf16.mxu0 0
  %1677 = vmatpush1.bf16.msra.mxu0 %v1174
  %1678 = vmatprep.subr.bf16.mxu0 0
  %1679 = vmatpush1.bf16.msra.mxu0 %v1175
  %1680 = vmatprep.subr.bf16.mxu0 0
  %1681 = vmatpush1.bf16.msra.mxu0 %v1176
  %1682 = vmatprep.subr.bf16.mxu0 0
  %1683 = vmatpush1.bf16.msra.mxu0 %v1177
  %1684 = vmatprep.subr.bf16.mxu0 0
  %1685 = vmatpush1.bf16.msra.mxu0 %v1178
  %1686 = vmatprep.subr.bf16.mxu0 0
  %1687 = vmatpush1.bf16.msra.mxu0 %v1179
  %1688 = vmatprep.subr.bf16.mxu0 0
  %1689 = vmatpush1.bf16.msra.mxu0 %v1180
  %1690 = vmatprep.subr.bf16.mxu0 0
  %1691 = vmatpush1.bf16.msra.mxu0 %v1181
  %1692 = vmatprep.subr.bf16.mxu0 0
  %1693 = vmatpush1.bf16.msra.mxu0 %v1182
  %1694 = vmatprep.subr.bf16.mxu0 0
  %1695 = vmatpush1.bf16.msra.mxu0 %v1183
  %1696 = vmatprep.subr.bf16.mxu0 0
  %1697 = vmatpush1.bf16.msra.mxu0 %v1184
  %1698 = vmatprep.subr.bf16.mxu0 0
  %1699 = vmatpush1.bf16.msra.mxu0 %v1185
  %1700 = vmatprep.subr.bf16.mxu0 0
  %1701 = vmatpush1.bf16.msra.mxu0 %v1186
  %1702 = vmatprep.subr.bf16.mxu0 0
  %1703 = vmatpush1.bf16.msra.mxu0 %v1187
  %1704 = vmatprep.subr.bf16.mxu0 0
  %1705 = vmatpush1.bf16.msra.mxu0 %v1188
  %1706 = vmatprep.subr.bf16.mxu0 0
  %1707 = vmatpush1.bf16.msra.mxu0 %v1189
  %1708 = vmatprep.mubr.bf16.mxu0 %v483
  %1709 = vmatmul.mubr.bf16.gmra.mrb[0].mxu0 %v482
  %v1710 = vpop.f32.mrb[0].mxu0
  %v1711 = vadd.f32 %v1654, %v1710
  %v1712 = vpop.f32.mrb[0].mxu0
  %v1713 = vpop.f32.mrb[0].mxu0
  %v1714 = vadd.f32 %v1657, %v1713
  %v1715 = vpop.f32.mrb[0].mxu0
  %1716 = vmatprep.mubr.bf16.mxu0 %v499
  %1717 = vmatmul.mubr.bf16.gmra.mrb[0].mxu0 %v498
  %v1718 = vpop.f32.mrb[0].mxu0
  %v1719 = vadd.f32 %v1662, %v1718
  %v1720 = vpop.f32.mrb[0].mxu0
  %v1721 = vpop.f32.mrb[0].mxu0
  %v1722 = vadd.f32 %v1665, %v1721
  %v1723 = vpop.f32.mrb[0].mxu0
  %1724 = vmatprep.mubr.bf16.mxu0 %v515
  %1725 = vmatmul.mubr.bf16.gmra.mrb[0].mxu0 %v514
  %v1726 = vpop.f32.mrb[0].mxu0
  %v1727 = vadd.f32 %v1670, %v1726
  %v1728 = vpop.f32.mrb[0].mxu0
  %v1729 = vpop.f32.mrb[0].mxu0
  %v1730 = vadd.f32 %v1673, %v1729
  %v1731 = vpop.f32.mrb[0].mxu0
  %1732 = vdwg.mxu0
  %1733 = vmatprep.subr.bf16.mxu0 0
  %1734 = vmatpush1.bf16.msra.mxu0 %v1190
  %1735 = vmatprep.subr.bf16.mxu0 0
  %1736 = vmatpush1.bf16.msra.mxu0 %v1191
  %1737 = vmatprep.subr.bf16.mxu0 0
  %1738 = vmatpush1.bf16.msra.mxu0 %v1192
  %1739 = vmatprep.subr.bf16.mxu0 0
  %1740 = vmatpush1.bf16.msra.mxu0 %v1193
  %1741 = vmatprep.subr.bf16.mxu0 0
  %1742 = vmatpush1.bf16.msra.mxu0 %v1194
  %1743 = vmatprep.subr.bf16.mxu0 0
  %1744 = vmatpush1.bf16.msra.mxu0 %v1195
  %1745 = vmatprep.subr.bf16.mxu0 0
  %1746 = vmatpush1.bf16.msra.mxu0 %v1196
  %1747 = vmatprep.subr.bf16.mxu0 0
  %1748 = vmatpush1.bf16.msra.mxu0 %v1197
  %1749 = vmatprep.subr.bf16.mxu0 0
  %1750 = vmatpush1.bf16.msra.mxu0 %v1198
  %1751 = vmatprep.subr.bf16.mxu0 0
  %1752 = vmatpush1.bf16.msra.mxu0 %v1199
  %1753 = vmatprep.subr.bf16.mxu0 0
  %1754 = vmatpush1.bf16.msra.mxu0 %v1200
  %1755 = vmatprep.subr.bf16.mxu0 0
  %1756 = vmatpush1.bf16.msra.mxu0 %v1201
  %1757 = vmatprep.subr.bf16.mxu0 0
  %1758 = vmatpush1.bf16.msra.mxu0 %v1202
  %1759 = vmatprep.subr.bf16.mxu0 0
  %1760 = vmatpush1.bf16.msra.mxu0 %v1203
  %1761 = vmatprep.subr.bf16.mxu0 0
  %1762 = vmatpush1.bf16.msra.mxu0 %v1204
  %1763 = vmatprep.subr.bf16.mxu0 0
  %1764 = vmatpush1.bf16.msra.mxu0 %v1205
  %1765 = vmatprep.mubr.bf16.mxu0 %v485
  %1766 = vmatmul.mubr.bf16.gmra.mrb[0].mxu0 %v484
  %v1767 = vpop.f32.mrb[0].mxu0
  %v1768 = vadd.f32 %v1711, %v1767
  %v1769 = vpop.f32.mrb[0].mxu0
  %v1770 = vpop.f32.mrb[0].mxu0
  %v1771 = vadd.f32 %v1714, %v1770
  %v1772 = vpop.f32.mrb[0].mxu0
  %1773 = vmatprep.mubr.bf16.mxu0 %v501
  %1774 = vmatmul.mubr.bf16.gmra.mrb[0].mxu0 %v500
  %v1775 = vpop.f32.mrb[0].mxu0
  %v1776 = vadd.f32 %v1719, %v1775
  %v1777 = vpop.f32.mrb[0].mxu0
  %v1778 = vpop.f32.mrb[0].mxu0
  %v1779 = vadd.f32 %v1722, %v1778
  %v1780 = vpop.f32.mrb[0].mxu0
  %1781 = vmatprep.mubr.bf16.mxu0 %v517
  %1782 = vmatmul.mubr.bf16.gmra.mrb[0].mxu0 %v516
  %v1783 = vpop.f32.mrb[0].mxu0
  %v1784 = vadd.f32 %v1727, %v1783
  %v1785 = vpop.f32.mrb[0].mxu0
  %v1786 = vpop.f32.mrb[0].mxu0
  %v1787 = vadd.f32 %v1730, %v1786
  %v1788 = vpop.f32.mrb[0].mxu0
  %1789 = vdwg.mxu0
  %1790 = vst [vmem:[%s3] sm:$0xff] %v1768
  %1791 = vst [vmem:[%s3 + $0x8] sm:$0xff] %v1771
  %1792 = vst [vmem:[%s3 + $0x10] sm:$0xff] %v1776
  %1793 = vst [vmem:[%s3 + $0x18] sm:$0xff] %v1779
  %1794 = vst [vmem:[%s3 + $0x20] sm:$0xff] %v1784
  %1795 = vst [vmem:[%s3 + $0x28] sm:$0xff] %v1787
  // Predicated region
  $region14: #{corr_lstm_forward.5} parent=0 // pred_check
    _
  $region15: #{corr_lstm_forward.5} parent=0 // pred_check_branch
    %1797 = sbr.rel (0) target = $region17
  $region16: #{corr_lstm_forward.5} parent=0 // pred_region
    _
  $region17: #{corr_lstm_forward.5} parent=0 // pred_fallthru
    _
  // Predicated region
  $region18: #{corr_lstm_forward.5} parent=0 // pred_check
    _
  $region19: #{corr_lstm_forward.5} parent=0 // pred_check_branch
    %1799 = sbr.rel (0) target = $region21
  $region20: #{corr_lstm_forward.5} parent=0 // pred_region
    _
  $region21: #{corr_lstm_forward.5} parent=0 // pred_fallthru
    _

// kernel: corr_lstm_forward.4
$region0: #{corr_lstm_forward.4}
  #allocation0 [shape = 'u32[]', space=smem, size = 0x4, offset = 0x4, fixed_abs, tag = 'smem constant byte address 0x4 - core index']
  #allocation1 [shape = 'u32[144,128]{1,0:T(1,128)}', space=vmem, size = 0x12000, scoped, tag = 'internal scratch']
  %s0 = inlined_call_operand.vmem [shape: f32[128,4,256], index: 0, kind: input, shape index: {}]
  %s1 = inlined_call_operand.vmem [shape: bf16[4,2048], index: 1, kind: input, shape index: {}]
  %s2 = inlined_call_operand.vmem [shape: f32[1,2048], index: 2, kind: input, shape index: {}]
  %s3 = inlined_call_operand.vmem [shape: f32[128,2048], index: 3, kind: output, shape index: {}]
  %s4 = sld [smem:[#allocation0]]
  $region22: #{corr_lstm_forward.4} parent=0
    _
  %s6 = ssub.s32 1, %s4
  %s7 = scalar_select 0, %s6, %s4
  // Predicated region
  $region2: #{corr_lstm_forward.4} parent=0 // pred_check
    _
  $region3: #{corr_lstm_forward.4} parent=0 // pred_check_branch
    %9 = sbr.rel (0) target = $region5
  $region4: #{corr_lstm_forward.4} parent=0 // pred_region
    _
  $region5: #{corr_lstm_forward.4} parent=0 // pred_fallthru
    _
  // Predicated region
  $region6: #{corr_lstm_forward.4} parent=0 // pred_check
    _
  $region7: #{corr_lstm_forward.4} parent=0 // pred_check_branch
    %11 = sbr.rel (0) target = $region9
  $region8: #{corr_lstm_forward.4} parent=0 // pred_region
    _
  $region9: #{corr_lstm_forward.4} parent=0 // pred_fallthru
    _
  // Predicated region
  $region10: #{corr_lstm_forward.4} parent=0 // pred_check
    _
  $region11: #{corr_lstm_forward.4} parent=0 // pred_check_branch
    %13 = sbr.rel (0) target = $region13
  $region12: #{corr_lstm_forward.4} parent=0 // pred_region
    _
  $region13: #{corr_lstm_forward.4} parent=0 // pred_fallthru
    _
  %v15 = vld [vmem:[%s0] sm:$0xff]
  %v16 = vld [vmem:[%s0 + $0x8] sm:$0xff]
  %v17 = vld [vmem:[%s0 + $0x10] sm:$0xff]
  %v18 = vld [vmem:[%s0 + $0x18] sm:$0xff]
  %v19 = vld [vmem:[%s0 + $0x20] sm:$0xff]
  %v20 = vld [vmem:[%s0 + $0x28] sm:$0xff]
  %v21 = vld [vmem:[%s0 + $0x30] sm:$0xff]
  %v22 = vld [vmem:[%s0 + $0x38] sm:$0xff]
  %v23 = vld [vmem:[%s0 + $0x40] sm:$0xff]
  %v24 = vld [vmem:[%s0 + $0x48] sm:$0xff]
  %v25 = vld [vmem:[%s0 + $0x50] sm:$0xff]
  %v26 = vld [vmem:[%s0 + $0x58] sm:$0xff]
  %v27 = vld [vmem:[%s0 + $0x60] sm:$0xff]
  %v28 = vld [vmem:[%s0 + $0x68] sm:$0xff]
  %v29 = vld [vmem:[%s0 + $0x70] sm:$0xff]
  %v30 = vld [vmem:[%s0 + $0x78] sm:$0xff]
  %v31 = vld [vmem:[%s0 + $0x80] sm:$0xff]
  %v32 = vld [vmem:[%s0 + $0x88] sm:$0xff]
  %v33 = vld [vmem:[%s0 + $0x90] sm:$0xff]
  %v34 = vld [vmem:[%s0 + $0x98] sm:$0xff]
  %v35 = vld [vmem:[%s0 + $0xa0] sm:$0xff]
  %v36 = vld [vmem:[%s0 + $0xa8] sm:$0xff]
  %v37 = vld [vmem:[%s0 + $0xb0] sm:$0xff]
  %v38 = vld [vmem:[%s0 + $0xb8] sm:$0xff]
  %v39 = vld [vmem:[%s0 + $0xc0] sm:$0xff]
  %v40 = vld [vmem:[%s0 + $0xc8] sm:$0xff]
  %v41 = vld [vmem:[%s0 + $0xd0] sm:$0xff]
  %v42 = vld [vmem:[%s0 + $0xd8] sm:$0xff]
  %v43 = vld [vmem:[%s0 + $0xe0] sm:$0xff]
  %v44 = vld [vmem:[%s0 + $0xe8] sm:$0xff]
  %v45 = vld [vmem:[%s0 + $0xf0] sm:$0xff]
  %v46 = vld [vmem:[%s0 + $0xf8] sm:$0xff]
  %v47 = vld [vmem:[%s0 + $0x100] sm:$0xff]
  %v48 = vld [vmem:[%s0 + $0x108] sm:$0xff]
  %v49 = vld [vmem:[%s0 + $0x110] sm:$0xff]
  %v50 = vld [vmem:[%s0 + $0x118] sm:$0xff]
  %v51 = vld [vmem:[%s0 + $0x120] sm:$0xff]
  %v52 = vld [vmem:[%s0 + $0x128] sm:$0xff]
  %v53 = vld [vmem:[%s0 + $0x130] sm:$0xff]
  %v54 = vld [vmem:[%s0 + $0x138] sm:$0xff]
  %v55 = vld [vmem:[%s0 + $0x140] sm:$0xff]
  %v56 = vld [vmem:[%s0 + $0x148] sm:$0xff]
  %v57 = vld [vmem:[%s0 + $0x150] sm:$0xff]
  %v58 = vld [vmem:[%s0 + $0x158] sm:$0xff]
  %v59 = vld [vmem:[%s0 + $0x160] sm:$0xff]
  %v60 = vld [vmem:[%s0 + $0x168] sm:$0xff]
  %v61 = vld [vmem:[%s0 + $0x170] sm:$0xff]
  %v62 = vld [vmem:[%s0 + $0x178] sm:$0xff]
  %v63 = vld [vmem:[%s0 + $0x180] sm:$0xff]
  %v64 = vld [vmem:[%s0 + $0x188] sm:$0xff]
  %v65 = vld [vmem:[%s0 + $0x190] sm:$0xff]
  %v66 = vld [vmem:[%s0 + $0x198] sm:$0xff]
  %v67 = vld [vmem:[%s0 + $0x1a0] sm:$0xff]
  %v68 = vld [vmem:[%s0 + $0x1a8] sm:$0xff]
  %v69 = vld [vmem:[%s0 + $0x1b0] sm:$0xff]
  %v70 = vld [vmem:[%s0 + $0x1b8] sm:$0xff]
  %v71 = vld [vmem:[%s0 + $0x1c0] sm:$0xff]
  %v72 = vld [vmem:[%s0 + $0x1c8] sm:$0xff]
  %v73 = vld [vmem:[%s0 + $0x1d0] sm:$0xff]
  %v74 = vld [vmem:[%s0 + $0x1d8] sm:$0xff]
  %v75 = vld [vmem:[%s0 + $0x1e0] sm:$0xff]
  %v76 = vld [vmem:[%s0 + $0x1e8] sm:$0xff]
  %v77 = vld [vmem:[%s0 + $0x1f0] sm:$0xff]
  %v78 = vld [vmem:[%s0 + $0x1f8] sm:$0xff]
  %v79 = vld [vmem:[%s0 + $0x200] sm:$0xff]
  %v80 = vld [vmem:[%s0 + $0x208] sm:$0xff]
  %v81 = vld [vmem:[%s0 + $0x210] sm:$0xff]
  %v82 = vld [vmem:[%s0 + $0x218] sm:$0xff]
  %v83 = vld [vmem:[%s0 + $0x220] sm:$0xff]
  %v84 = vld [vmem:[%s0 + $0x228] sm:$0xff]
  %v85 = vld [vmem:[%s0 + $0x230] sm:$0xff]
  %v86 = vld [vmem:[%s0 + $0x238] sm:$0xff]
  %v87 = vld [vmem:[%s0 + $0x240] sm:$0xff]
  %v88 = vld [vmem:[%s0 + $0x248] sm:$0xff]
  %v89 = vld [vmem:[%s0 + $0x250] sm:$0xff]
  %v90 = vld [vmem:[%s0 + $0x258] sm:$0xff]
  %v91 = vld [vmem:[%s0 + $0x260] sm:$0xff]
  %v92 = vld [vmem:[%s0 + $0x268] sm:$0xff]
  %v93 = vld [vmem:[%s0 + $0x270] sm:$0xff]
  %v94 = vld [vmem:[%s0 + $0x278] sm:$0xff]
  %v95 = vld [vmem:[%s0 + $0x280] sm:$0xff]
  %v96 = vld [vmem:[%s0 + $0x288] sm:$0xff]
  %v97 = vld [vmem:[%s0 + $0x290] sm:$0xff]
  %v98 = vld [vmem:[%s0 + $0x298] sm:$0xff]
  %v99 = vld [vmem:[%s0 + $0x2a0] sm:$0xff]
  %v100 = vld [vmem:[%s0 + $0x2a8] sm:$0xff]
  %v101 = vld [vmem:[%s0 + $0x2b0] sm:$0xff]
  %v102 = vld [vmem:[%s0 + $0x2b8] sm:$0xff]
  %v103 = vld [vmem:[%s0 + $0x2c0] sm:$0xff]
  %v104 = vld [vmem:[%s0 + $0x2c8] sm:$0xff]
  %v105 = vld [vmem:[%s0 + $0x2d0] sm:$0xff]
  %v106 = vld [vmem:[%s0 + $0x2d8] sm:$0xff]
  %v107 = vld [vmem:[%s0 + $0x2e0] sm:$0xff]
  %v108 = vld [vmem:[%s0 + $0x2e8] sm:$0xff]
  %v109 = vld [vmem:[%s0 + $0x2f0] sm:$0xff]
  %v110 = vld [vmem:[%s0 + $0x2f8] sm:$0xff]
  %v111 = vld [vmem:[%s0 + $0x300] sm:$0xff]
  %v112 = vld [vmem:[%s0 + $0x308] sm:$0xff]
  %v113 = vld [vmem:[%s0 + $0x310] sm:$0xff]
  %v114 = vld [vmem:[%s0 + $0x318] sm:$0xff]
  %v115 = vld [vmem:[%s0 + $0x320] sm:$0xff]
  %v116 = vld [vmem:[%s0 + $0x328] sm:$0xff]
  %v117 = vld [vmem:[%s0 + $0x330] sm:$0xff]
  %v118 = vld [vmem:[%s0 + $0x338] sm:$0xff]
  %v119 = vld [vmem:[%s0 + $0x340] sm:$0xff]
  %v120 = vld [vmem:[%s0 + $0x348] sm:$0xff]
  %v121 = vld [vmem:[%s0 + $0x350] sm:$0xff]
  %v122 = vld [vmem:[%s0 + $0x358] sm:$0xff]
  %v123 = vld [vmem:[%s0 + $0x360] sm:$0xff]
  %v124 = vld [vmem:[%s0 + $0x368] sm:$0xff]
  %v125 = vld [vmem:[%s0 + $0x370] sm:$0xff]
  %v126 = vld [vmem:[%s0 + $0x378] sm:$0xff]
  %v127 = vld [vmem:[%s0 + $0x380] sm:$0xff]
  %v128 = vld [vmem:[%s0 + $0x388] sm:$0xff]
  %v129 = vld [vmem:[%s0 + $0x390] sm:$0xff]
  %v130 = vld [vmem:[%s0 + $0x398] sm:$0xff]
  %v131 = vld [vmem:[%s0 + $0x3a0] sm:$0xff]
  %v132 = vld [vmem:[%s0 + $0x3a8] sm:$0xff]
  %v133 = vld [vmem:[%s0 + $0x3b0] sm:$0xff]
  %v134 = vld [vmem:[%s0 + $0x3b8] sm:$0xff]
  %v135 = vld [vmem:[%s0 + $0x3c0] sm:$0xff]
  %v136 = vld [vmem:[%s0 + $0x3c8] sm:$0xff]
  %v137 = vld [vmem:[%s0 + $0x3d0] sm:$0xff]
  %v138 = vld [vmem:[%s0 + $0x3d8] sm:$0xff]
  %v139 = vld [vmem:[%s0 + $0x3e0] sm:$0xff]
  %v140 = vld [vmem:[%s0 + $0x3e8] sm:$0xff]
  %v141 = vld [vmem:[%s0 + $0x3f0] sm:$0xff]
  %v142 = vld [vmem:[%s0 + $0x3f8] sm:$0xff]
  %v271 = vcombine.high %v15, %v15
  %v272 = vcombine.high %v16, %v16
  %v273 = vcombine.high %v17, %v17
  %v274 = vcombine.high %v18, %v18
  %v275 = vcombine.high %v19, %v19
  %v276 = vcombine.high %v20, %v20
  %v277 = vcombine.high %v21, %v21
  %v278 = vcombine.high %v22, %v22
  %v279 = vcombine.high %v23, %v23
  %v280 = vcombine.high %v24, %v24
  %v281 = vcombine.high %v25, %v25
  %v282 = vcombine.high %v26, %v26
  %v283 = vcombine.high %v27, %v27
  %v284 = vcombine.high %v28, %v28
  %v285 = vcombine.high %v29, %v29
  %v286 = vcombine.high %v30, %v30
  %v287 = vcombine.high %v31, %v31
  %v288 = vcombine.high %v32, %v32
  %v289 = vcombine.high %v33, %v33
  %v290 = vcombine.high %v34, %v34
  %v291 = vcombine.high %v35, %v35
  %v292 = vcombine.high %v36, %v36
  %v293 = vcombine.high %v37, %v37
  %v294 = vcombine.high %v38, %v38
  %v295 = vcombine.high %v39, %v39
  %v296 = vcombine.high %v40, %v40
  %v297 = vcombine.high %v41, %v41
  %v298 = vcombine.high %v42, %v42
  %v299 = vcombine.high %v43, %v43
  %v300 = vcombine.high %v44, %v44
  %v301 = vcombine.high %v45, %v45
  %v302 = vcombine.high %v46, %v46
  %v303 = vcombine.high %v47, %v47
  %v304 = vcombine.high %v48, %v48
  %v305 = vcombine.high %v49, %v49
  %v306 = vcombine.high %v50, %v50
  %v307 = vcombine.high %v51, %v51
  %v308 = vcombine.high %v52, %v52
  %v309 = vcombine.high %v53, %v53
  %v310 = vcombine.high %v54, %v54
  %v311 = vcombine.high %v55, %v55
  %v312 = vcombine.high %v56, %v56
  %v313 = vcombine.high %v57, %v57
  %v314 = vcombine.high %v58, %v58
  %v315 = vcombine.high %v59, %v59
  %v316 = vcombine.high %v60, %v60
  %v317 = vcombine.high %v61, %v61
  %v318 = vcombine.high %v62, %v62
  %v319 = vcombine.high %v63, %v63
  %v320 = vcombine.high %v64, %v64
  %v321 = vcombine.high %v65, %v65
  %v322 = vcombine.high %v66, %v66
  %v323 = vcombine.high %v67, %v67
  %v324 = vcombine.high %v68, %v68
  %v325 = vcombine.high %v69, %v69
  %v326 = vcombine.high %v70, %v70
  %v327 = vcombine.high %v71, %v71
  %v328 = vcombine.high %v72, %v72
  %v329 = vcombine.high %v73, %v73
  %v330 = vcombine.high %v74, %v74
  %v331 = vcombine.high %v75, %v75
  %v332 = vcombine.high %v76, %v76
  %v333 = vcombine.high %v77, %v77
  %v334 = vcombine.high %v78, %v78
  %v335 = vcombine.high %v79, %v79
  %v336 = vcombine.high %v80, %v80
  %v337 = vcombine.high %v81, %v81
  %v338 = vcombine.high %v82, %v82
  %v339 = vcombine.high %v83, %v83
  %v340 = vcombine.high %v84, %v84
  %v341 = vcombine.high %v85, %v85
  %v342 = vcombine.high %v86, %v86
  %v343 = vcombine.high %v87, %v87
  %v344 = vcombine.high %v88, %v88
  %v345 = vcombine.high %v89, %v89
  %v346 = vcombine.high %v90, %v90
  %v347 = vcombine.high %v91, %v91
  %v348 = vcombine.high %v92, %v92
  %v349 = vcombine.high %v93, %v93
  %v350 = vcombine.high %v94, %v94
  %v351 = vcombine.high %v95, %v95
  %v352 = vcombine.high %v96, %v96
  %v353 = vcombine.high %v97, %v97
  %v354 = vcombine.high %v98, %v98
  %v355 = vcombine.high %v99, %v99
  %v356 = vcombine.high %v100, %v100
  %v357 = vcombine.high %v101, %v101
  %v358 = vcombine.high %v102, %v102
  %v359 = vcombine.high %v103, %v103
  %v360 = vcombine.high %v104, %v104
  %v361 = vcombine.high %v105, %v105
  %v362 = vcombine.high %v106, %v106
  %v363 = vcombine.high %v107, %v107
  %v364 = vcombine.high %v108, %v108
  %v365 = vcombine.high %v109, %v109
  %v366 = vcombine.high %v110, %v110
  %v367 = vcombine.high %v111, %v111
  %v368 = vcombine.high %v112, %v112
  %v369 = vcombine.high %v113, %v113
  %v370 = vcombine.high %v114, %v114
  %v371 = vcombine.high %v115, %v115
  %v372 = vcombine.high %v116, %v116
  %v373 = vcombine.high %v117, %v117
  %v374 = vcombine.high %v118, %v118
  %v375 = vcombine.high %v119, %v119
  %v376 = vcombine.high %v120, %v120
  %v377 = vcombine.high %v121, %v121
  %v378 = vcombine.high %v122, %v122
  %v379 = vcombine.high %v123, %v123
  %v380 = vcombine.high %v124, %v124
  %v381 = vcombine.high %v125, %v125
  %v382 = vcombine.high %v126, %v126
  %v383 = vcombine.high %v127, %v127
  %v384 = vcombine.high %v128, %v128
  %v385 = vcombine.high %v129, %v129
  %v386 = vcombine.high %v130, %v130
  %v387 = vcombine.high %v131, %v131
  %v388 = vcombine.high %v132, %v132
  %v389 = vcombine.high %v133, %v133
  %v390 = vcombine.high %v134, %v134
  %v391 = vcombine.high %v135, %v135
  %v392 = vcombine.high %v136, %v136
  %v393 = vcombine.high %v137, %v137
  %v394 = vcombine.high %v138, %v138
  %v395 = vcombine.high %v139, %v139
  %v396 = vcombine.high %v140, %v140
  %v397 = vcombine.high %v141, %v141
  %v398 = vcombine.high %v142, %v142
  %vm527 = vcmask 1043456
  %v528 = vsel %vm527, %v15, 0.0
  %v529 = vsel %vm527, %v271, 0.0
  %v530 = vadd.f32 %v528, %v529
  %531 = vadd.xlane.f32.xlu0 %v530
  %v532 = vpop.xlane.xlu0 %531
  %v533 = vsel %vm527, %v16, 0.0
  %v534 = vsel %vm527, %v272, 0.0
  %v535 = vadd.f32 %v533, %v534
  %536 = vadd.xlane.f32.xlu0 %v535
  %v537 = vpop.xlane.xlu0 %536
  %v538 = vsel %vm527, %v17, 0.0
  %v539 = vsel %vm527, %v273, 0.0
  %v540 = vadd.f32 %v538, %v539
  %541 = vadd.xlane.f32.xlu0 %v540
  %v542 = vpop.xlane.xlu0 %541
  %v543 = vsel %vm527, %v18, 0.0
  %v544 = vsel %vm527, %v274, 0.0
  %v545 = vadd.f32 %v543, %v544
  %546 = vadd.xlane.f32.xlu0 %v545
  %v547 = vpop.xlane.xlu0 %546
  %v548 = vsel %vm527, %v19, 0.0
  %v549 = vsel %vm527, %v275, 0.0
  %v550 = vadd.f32 %v548, %v549
  %551 = vadd.xlane.f32.xlu0 %v550
  %v552 = vpop.xlane.xlu0 %551
  %v553 = vsel %vm527, %v20, 0.0
  %v554 = vsel %vm527, %v276, 0.0
  %v555 = vadd.f32 %v553, %v554
  %556 = vadd.xlane.f32.xlu0 %v555
  %v557 = vpop.xlane.xlu0 %556
  %v558 = vsel %vm527, %v21, 0.0
  %v559 = vsel %vm527, %v277, 0.0
  %v560 = vadd.f32 %v558, %v559
  %561 = vadd.xlane.f32.xlu0 %v560
  %v562 = vpop.xlane.xlu0 %561
  %v563 = vsel %vm527, %v22, 0.0
  %v564 = vsel %vm527, %v278, 0.0
  %v565 = vadd.f32 %v563, %v564
  %566 = vadd.xlane.f32.xlu0 %v565
  %v567 = vpop.xlane.xlu0 %566
  %v568 = vsel %vm527, %v23, 0.0
  %v569 = vsel %vm527, %v279, 0.0
  %v570 = vadd.f32 %v568, %v569
  %571 = vadd.xlane.f32.xlu0 %v570
  %v572 = vpop.xlane.xlu0 %571
  %v573 = vsel %vm527, %v24, 0.0
  %v574 = vsel %vm527, %v280, 0.0
  %v575 = vadd.f32 %v573, %v574
  %576 = vadd.xlane.f32.xlu0 %v575
  %v577 = vpop.xlane.xlu0 %576
  %v578 = vsel %vm527, %v25, 0.0
  %v579 = vsel %vm527, %v281, 0.0
  %v580 = vadd.f32 %v578, %v579
  %581 = vadd.xlane.f32.xlu0 %v580
  %v582 = vpop.xlane.xlu0 %581
  %v583 = vsel %vm527, %v26, 0.0
  %v584 = vsel %vm527, %v282, 0.0
  %v585 = vadd.f32 %v583, %v584
  %586 = vadd.xlane.f32.xlu0 %v585
  %v587 = vpop.xlane.xlu0 %586
  %v588 = vsel %vm527, %v27, 0.0
  %v589 = vsel %vm527, %v283, 0.0
  %v590 = vadd.f32 %v588, %v589
  %591 = vadd.xlane.f32.xlu0 %v590
  %v592 = vpop.xlane.xlu0 %591
  %v593 = vsel %vm527, %v28, 0.0
  %v594 = vsel %vm527, %v284, 0.0
  %v595 = vadd.f32 %v593, %v594
  %596 = vadd.xlane.f32.xlu0 %v595
  %v597 = vpop.xlane.xlu0 %596
  %v598 = vsel %vm527, %v29, 0.0
  %v599 = vsel %vm527, %v285, 0.0
  %v600 = vadd.f32 %v598, %v599
  %601 = vadd.xlane.f32.xlu0 %v600
  %v602 = vpop.xlane.xlu0 %601
  %v603 = vsel %vm527, %v30, 0.0
  %v604 = vsel %vm527, %v286, 0.0
  %v605 = vadd.f32 %v603, %v604
  %606 = vadd.xlane.f32.xlu0 %v605
  %v607 = vpop.xlane.xlu0 %606
  %v608 = vsel %vm527, %v31, 0.0
  %v609 = vsel %vm527, %v287, 0.0
  %v610 = vadd.f32 %v608, %v609
  %611 = vadd.xlane.f32.xlu0 %v610
  %v612 = vpop.xlane.xlu0 %611
  %v613 = vsel %vm527, %v32, 0.0
  %v614 = vsel %vm527, %v288, 0.0
  %v615 = vadd.f32 %v613, %v614
  %616 = vadd.xlane.f32.xlu0 %v615
  %v617 = vpop.xlane.xlu0 %616
  %v618 = vsel %vm527, %v33, 0.0
  %v619 = vsel %vm527, %v289, 0.0
  %v620 = vadd.f32 %v618, %v619
  %621 = vadd.xlane.f32.xlu0 %v620
  %v622 = vpop.xlane.xlu0 %621
  %v623 = vsel %vm527, %v34, 0.0
  %v624 = vsel %vm527, %v290, 0.0
  %v625 = vadd.f32 %v623, %v624
  %626 = vadd.xlane.f32.xlu0 %v625
  %v627 = vpop.xlane.xlu0 %626
  %v628 = vsel %vm527, %v35, 0.0
  %v629 = vsel %vm527, %v291, 0.0
  %v630 = vadd.f32 %v628, %v629
  %631 = vadd.xlane.f32.xlu0 %v630
  %v632 = vpop.xlane.xlu0 %631
  %v633 = vsel %vm527, %v36, 0.0
  %v634 = vsel %vm527, %v292, 0.0
  %v635 = vadd.f32 %v633, %v634
  %636 = vadd.xlane.f32.xlu0 %v635
  %v637 = vpop.xlane.xlu0 %636
  %v638 = vsel %vm527, %v37, 0.0
  %v639 = vsel %vm527, %v293, 0.0
  %v640 = vadd.f32 %v638, %v639
  %641 = vadd.xlane.f32.xlu0 %v640
  %v642 = vpop.xlane.xlu0 %641
  %v643 = vsel %vm527, %v38, 0.0
  %v644 = vsel %vm527, %v294, 0.0
  %v645 = vadd.f32 %v643, %v644
  %646 = vadd.xlane.f32.xlu0 %v645
  %v647 = vpop.xlane.xlu0 %646
  %v648 = vsel %vm527, %v39, 0.0
  %v649 = vsel %vm527, %v295, 0.0
  %v650 = vadd.f32 %v648, %v649
  %651 = vadd.xlane.f32.xlu0 %v650
  %v652 = vpop.xlane.xlu0 %651
  %v653 = vsel %vm527, %v40, 0.0
  %v654 = vsel %vm527, %v296, 0.0
  %v655 = vadd.f32 %v653, %v654
  %656 = vadd.xlane.f32.xlu0 %v655
  %v657 = vpop.xlane.xlu0 %656
  %v658 = vsel %vm527, %v41, 0.0
  %v659 = vsel %vm527, %v297, 0.0
  %v660 = vadd.f32 %v658, %v659
  %661 = vadd.xlane.f32.xlu0 %v660
  %v662 = vpop.xlane.xlu0 %661
  %v663 = vsel %vm527, %v42, 0.0
  %v664 = vsel %vm527, %v298, 0.0
  %v665 = vadd.f32 %v663, %v664
  %666 = vadd.xlane.f32.xlu0 %v665
  %v667 = vpop.xlane.xlu0 %666
  %v668 = vsel %vm527, %v43, 0.0
  %v669 = vsel %vm527, %v299, 0.0
  %v670 = vadd.f32 %v668, %v669
  %671 = vadd.xlane.f32.xlu0 %v670
  %v672 = vpop.xlane.xlu0 %671
  %v673 = vsel %vm527, %v44, 0.0
  %v674 = vsel %vm527, %v300, 0.0
  %v675 = vadd.f32 %v673, %v674
  %676 = vadd.xlane.f32.xlu0 %v675
  %v677 = vpop.xlane.xlu0 %676
  %v678 = vsel %vm527, %v45, 0.0
  %v679 = vsel %vm527, %v301, 0.0
  %v680 = vadd.f32 %v678, %v679
  %681 = vadd.xlane.f32.xlu0 %v680
  %v682 = vpop.xlane.xlu0 %681
  %v683 = vsel %vm527, %v46, 0.0
  %v684 = vsel %vm527, %v302, 0.0
  %v685 = vadd.f32 %v683, %v684
  %686 = vadd.xlane.f32.xlu0 %v685
  %v687 = vpop.xlane.xlu0 %686
  %v688 = vsel %vm527, %v47, 0.0
  %v689 = vsel %vm527, %v303, 0.0
  %v690 = vadd.f32 %v688, %v689
  %691 = vadd.xlane.f32.xlu0 %v690
  %v692 = vpop.xlane.xlu0 %691
  %v693 = vsel %vm527, %v48, 0.0
  %v694 = vsel %vm527, %v304, 0.0
  %v695 = vadd.f32 %v693, %v694
  %696 = vadd.xlane.f32.xlu0 %v695
  %v697 = vpop.xlane.xlu0 %696
  %v698 = vsel %vm527, %v49, 0.0
  %v699 = vsel %vm527, %v305, 0.0
  %v700 = vadd.f32 %v698, %v699
  %701 = vadd.xlane.f32.xlu0 %v700
  %v702 = vpop.xlane.xlu0 %701
  %v703 = vsel %vm527, %v50, 0.0
  %v704 = vsel %vm527, %v306, 0.0
  %v705 = vadd.f32 %v703, %v704
  %706 = vadd.xlane.f32.xlu0 %v705
  %v707 = vpop.xlane.xlu0 %706
  %v708 = vsel %vm527, %v51, 0.0
  %v709 = vsel %vm527, %v307, 0.0
  %v710 = vadd.f32 %v708, %v709
  %711 = vadd.xlane.f32.xlu0 %v710
  %v712 = vpop.xlane.xlu0 %711
  %v713 = vsel %vm527, %v52, 0.0
  %v714 = vsel %vm527, %v308, 0.0
  %v715 = vadd.f32 %v713, %v714
  %716 = vadd.xlane.f32.xlu0 %v715
  %v717 = vpop.xlane.xlu0 %716
  %v718 = vsel %vm527, %v53, 0.0
  %v719 = vsel %vm527, %v309, 0.0
  %v720 = vadd.f32 %v718, %v719
  %721 = vadd.xlane.f32.xlu0 %v720
  %v722 = vpop.xlane.xlu0 %721
  %v723 = vsel %vm527, %v54, 0.0
  %v724 = vsel %vm527, %v310, 0.0
  %v725 = vadd.f32 %v723, %v724
  %726 = vadd.xlane.f32.xlu0 %v725
  %v727 = vpop.xlane.xlu0 %726
  %v728 = vsel %vm527, %v55, 0.0
  %v729 = vsel %vm527, %v311, 0.0
  %v730 = vadd.f32 %v728, %v729
  %731 = vadd.xlane.f32.xlu0 %v730
  %v732 = vpop.xlane.xlu0 %731
  %v733 = vsel %vm527, %v56, 0.0
  %v734 = vsel %vm527, %v312, 0.0
  %v735 = vadd.f32 %v733, %v734
  %736 = vadd.xlane.f32.xlu0 %v735
  %v737 = vpop.xlane.xlu0 %736
  %v738 = vsel %vm527, %v57, 0.0
  %v739 = vsel %vm527, %v313, 0.0
  %v740 = vadd.f32 %v738, %v739
  %741 = vadd.xlane.f32.xlu0 %v740
  %v742 = vpop.xlane.xlu0 %741
  %v743 = vsel %vm527, %v58, 0.0
  %v744 = vsel %vm527, %v314, 0.0
  %v745 = vadd.f32 %v743, %v744
  %746 = vadd.xlane.f32.xlu0 %v745
  %v747 = vpop.xlane.xlu0 %746
  %v748 = vsel %vm527, %v59, 0.0
  %v749 = vsel %vm527, %v315, 0.0
  %v750 = vadd.f32 %v748, %v749
  %751 = vadd.xlane.f32.xlu0 %v750
  %v752 = vpop.xlane.xlu0 %751
  %v753 = vsel %vm527, %v60, 0.0
  %v754 = vsel %vm527, %v316, 0.0
  %v755 = vadd.f32 %v753, %v754
  %756 = vadd.xlane.f32.xlu0 %v755
  %v757 = vpop.xlane.xlu0 %756
  %v758 = vsel %vm527, %v61, 0.0
  %v759 = vsel %vm527, %v317, 0.0
  %v760 = vadd.f32 %v758, %v759
  %761 = vadd.xlane.f32.xlu0 %v760
  %v762 = vpop.xlane.xlu0 %761
  %v763 = vsel %vm527, %v62, 0.0
  %v764 = vsel %vm527, %v318, 0.0
  %v765 = vadd.f32 %v763, %v764
  %766 = vadd.xlane.f32.xlu0 %v765
  %v767 = vpop.xlane.xlu0 %766
  %v768 = vsel %vm527, %v63, 0.0
  %v769 = vsel %vm527, %v319, 0.0
  %v770 = vadd.f32 %v768, %v769
  %771 = vadd.xlane.f32.xlu0 %v770
  %v772 = vpop.xlane.xlu0 %771
  %v773 = vsel %vm527, %v64, 0.0
  %v774 = vsel %vm527, %v320, 0.0
  %v775 = vadd.f32 %v773, %v774
  %776 = vadd.xlane.f32.xlu0 %v775
  %v777 = vpop.xlane.xlu0 %776
  %v778 = vsel %vm527, %v65, 0.0
  %v779 = vsel %vm527, %v321, 0.0
  %v780 = vadd.f32 %v778, %v779
  %781 = vadd.xlane.f32.xlu0 %v780
  %v782 = vpop.xlane.xlu0 %781
  %v783 = vsel %vm527, %v66, 0.0
  %v784 = vsel %vm527, %v322, 0.0
  %v785 = vadd.f32 %v783, %v784
  %786 = vadd.xlane.f32.xlu0 %v785
  %v787 = vpop.xlane.xlu0 %786
  %v788 = vsel %vm527, %v67, 0.0
  %v789 = vsel %vm527, %v323, 0.0
  %v790 = vadd.f32 %v788, %v789
  %791 = vadd.xlane.f32.xlu0 %v790
  %v792 = vpop.xlane.xlu0 %791
  %v793 = vsel %vm527, %v68, 0.0
  %v794 = vsel %vm527, %v324, 0.0
  %v795 = vadd.f32 %v793, %v794
  %796 = vadd.xlane.f32.xlu0 %v795
  %v797 = vpop.xlane.xlu0 %796
  %v798 = vsel %vm527, %v69, 0.0
  %v799 = vsel %vm527, %v325, 0.0
  %v800 = vadd.f32 %v798, %v799
  %801 = vadd.xlane.f32.xlu0 %v800
  %v802 = vpop.xlane.xlu0 %801
  %v803 = vsel %vm527, %v70, 0.0
  %v804 = vsel %vm527, %v326, 0.0
  %v805 = vadd.f32 %v803, %v804
  %806 = vadd.xlane.f32.xlu0 %v805
  %v807 = vpop.xlane.xlu0 %806
  %v808 = vsel %vm527, %v71, 0.0
  %v809 = vsel %vm527, %v327, 0.0
  %v810 = vadd.f32 %v808, %v809
  %811 = vadd.xlane.f32.xlu0 %v810
  %v812 = vpop.xlane.xlu0 %811
  %v813 = vsel %vm527, %v72, 0.0
  %v814 = vsel %vm527, %v328, 0.0
  %v815 = vadd.f32 %v813, %v814
  %816 = vadd.xlane.f32.xlu0 %v815
  %v817 = vpop.xlane.xlu0 %816
  %v818 = vsel %vm527, %v73, 0.0
  %v819 = vsel %vm527, %v329, 0.0
  %v820 = vadd.f32 %v818, %v819
  %821 = vadd.xlane.f32.xlu0 %v820
  %v822 = vpop.xlane.xlu0 %821
  %v823 = vsel %vm527, %v74, 0.0
  %v824 = vsel %vm527, %v330, 0.0
  %v825 = vadd.f32 %v823, %v824
  %826 = vadd.xlane.f32.xlu0 %v825
  %v827 = vpop.xlane.xlu0 %826
  %v828 = vsel %vm527, %v75, 0.0
  %v829 = vsel %vm527, %v331, 0.0
  %v830 = vadd.f32 %v828, %v829
  %831 = vadd.xlane.f32.xlu0 %v830
  %v832 = vpop.xlane.xlu0 %831
  %v833 = vsel %vm527, %v76, 0.0
  %v834 = vsel %vm527, %v332, 0.0
  %v835 = vadd.f32 %v833, %v834
  %836 = vadd.xlane.f32.xlu0 %v835
  %v837 = vpop.xlane.xlu0 %836
  %v838 = vsel %vm527, %v77, 0.0
  %v839 = vsel %vm527, %v333, 0.0
  %v840 = vadd.f32 %v838, %v839
  %841 = vadd.xlane.f32.xlu0 %v840
  %v842 = vpop.xlane.xlu0 %841
  %v843 = vsel %vm527, %v78, 0.0
  %v844 = vsel %vm527, %v334, 0.0
  %v845 = vadd.f32 %v843, %v844
  %846 = vadd.xlane.f32.xlu0 %v845
  %v847 = vpop.xlane.xlu0 %846
  %v848 = vsel %vm527, %v79, 0.0
  %v849 = vsel %vm527, %v335, 0.0
  %v850 = vadd.f32 %v848, %v849
  %851 = vadd.xlane.f32.xlu0 %v850
  %v852 = vpop.xlane.xlu0 %851
  %v853 = vsel %vm527, %v80, 0.0
  %v854 = vsel %vm527, %v336, 0.0
  %v855 = vadd.f32 %v853, %v854
  %856 = vadd.xlane.f32.xlu0 %v855
  %v857 = vpop.xlane.xlu0 %856
  %v858 = vsel %vm527, %v81, 0.0
  %v859 = vsel %vm527, %v337, 0.0
  %v860 = vadd.f32 %v858, %v859
  %861 = vadd.xlane.f32.xlu0 %v860
  %v862 = vpop.xlane.xlu0 %861
  %v863 = vsel %vm527, %v82, 0.0
  %v864 = vsel %vm527, %v338, 0.0
  %v865 = vadd.f32 %v863, %v864
  %866 = vadd.xlane.f32.xlu0 %v865
  %v867 = vpop.xlane.xlu0 %866
  %v868 = vsel %vm527, %v83, 0.0
  %v869 = vsel %vm527, %v339, 0.0
  %v870 = vadd.f32 %v868, %v869
  %871 = vadd.xlane.f32.xlu0 %v870
  %v872 = vpop.xlane.xlu0 %871
  %v873 = vsel %vm527, %v84, 0.0
  %v874 = vsel %vm527, %v340, 0.0
  %v875 = vadd.f32 %v873, %v874
  %876 = vadd.xlane.f32.xlu0 %v875
  %v877 = vpop.xlane.xlu0 %876
  %v878 = vsel %vm527, %v85, 0.0
  %v879 = vsel %vm527, %v341, 0.0
  %v880 = vadd.f32 %v878, %v879
  %881 = vadd.xlane.f32.xlu0 %v880
  %v882 = vpop.xlane.xlu0 %881
  %v883 = vsel %vm527, %v86, 0.0
  %v884 = vsel %vm527, %v342, 0.0
  %v885 = vadd.f32 %v883, %v884
  %886 = vadd.xlane.f32.xlu0 %v885
  %v887 = vpop.xlane.xlu0 %886
  %v888 = vsel %vm527, %v87, 0.0
  %v889 = vsel %vm527, %v343, 0.0
  %v890 = vadd.f32 %v888, %v889
  %891 = vadd.xlane.f32.xlu0 %v890
  %v892 = vpop.xlane.xlu0 %891
  %v893 = vsel %vm527, %v88, 0.0
  %v894 = vsel %vm527, %v344, 0.0
  %v895 = vadd.f32 %v893, %v894
  %896 = vadd.xlane.f32.xlu0 %v895
  %v897 = vpop.xlane.xlu0 %896
  %v898 = vsel %vm527, %v89, 0.0
  %v899 = vsel %vm527, %v345, 0.0
  %v900 = vadd.f32 %v898, %v899
  %901 = vadd.xlane.f32.xlu0 %v900
  %v902 = vpop.xlane.xlu0 %901
  %v903 = vsel %vm527, %v90, 0.0
  %v904 = vsel %vm527, %v346, 0.0
  %v905 = vadd.f32 %v903, %v904
  %906 = vadd.xlane.f32.xlu0 %v905
  %v907 = vpop.xlane.xlu0 %906
  %v908 = vsel %vm527, %v91, 0.0
  %v909 = vsel %vm527, %v347, 0.0
  %v910 = vadd.f32 %v908, %v909
  %911 = vadd.xlane.f32.xlu0 %v910
  %v912 = vpop.xlane.xlu0 %911
  %v913 = vsel %vm527, %v92, 0.0
  %v914 = vsel %vm527, %v348, 0.0
  %v915 = vadd.f32 %v913, %v914
  %916 = vadd.xlane.f32.xlu0 %v915
  %v917 = vpop.xlane.xlu0 %916
  %v918 = vsel %vm527, %v93, 0.0
  %v919 = vsel %vm527, %v349, 0.0
  %v920 = vadd.f32 %v918, %v919
  %921 = vadd.xlane.f32.xlu0 %v920
  %v922 = vpop.xlane.xlu0 %921
  %v923 = vsel %vm527, %v94, 0.0
  %v924 = vsel %vm527, %v350, 0.0
  %v925 = vadd.f32 %v923, %v924
  %926 = vadd.xlane.f32.xlu0 %v925
  %v927 = vpop.xlane.xlu0 %926
  %v928 = vsel %vm527, %v95, 0.0
  %v929 = vsel %vm527, %v351, 0.0
  %v930 = vadd.f32 %v928, %v929
  %931 = vadd.xlane.f32.xlu0 %v930
  %v932 = vpop.xlane.xlu0 %931
  %v933 = vsel %vm527, %v96, 0.0
  %v934 = vsel %vm527, %v352, 0.0
  %v935 = vadd.f32 %v933, %v934
  %936 = vadd.xlane.f32.xlu0 %v935
  %v937 = vpop.xlane.xlu0 %936
  %v938 = vsel %vm527, %v97, 0.0
  %v939 = vsel %vm527, %v353, 0.0
  %v940 = vadd.f32 %v938, %v939
  %941 = vadd.xlane.f32.xlu0 %v940
  %v942 = vpop.xlane.xlu0 %941
  %v943 = vsel %vm527, %v98, 0.0
  %v944 = vsel %vm527, %v354, 0.0
  %v945 = vadd.f32 %v943, %v944
  %946 = vadd.xlane.f32.xlu0 %v945
  %v947 = vpop.xlane.xlu0 %946
  %v948 = vsel %vm527, %v99, 0.0
  %v949 = vsel %vm527, %v355, 0.0
  %v950 = vadd.f32 %v948, %v949
  %951 = vadd.xlane.f32.xlu0 %v950
  %v952 = vpop.xlane.xlu0 %951
  %v953 = vsel %vm527, %v100, 0.0
  %v954 = vsel %vm527, %v356, 0.0
  %v955 = vadd.f32 %v953, %v954
  %956 = vadd.xlane.f32.xlu0 %v955
  %v957 = vpop.xlane.xlu0 %956
  %v958 = vsel %vm527, %v101, 0.0
  %v959 = vsel %vm527, %v357, 0.0
  %v960 = vadd.f32 %v958, %v959
  %961 = vadd.xlane.f32.xlu0 %v960
  %v962 = vpop.xlane.xlu0 %961
  %v963 = vsel %vm527, %v102, 0.0
  %v964 = vsel %vm527, %v358, 0.0
  %v965 = vadd.f32 %v963, %v964
  %966 = vadd.xlane.f32.xlu0 %v965
  %v967 = vpop.xlane.xlu0 %966
  %v968 = vsel %vm527, %v103, 0.0
  %v969 = vsel %vm527, %v359, 0.0
  %v970 = vadd.f32 %v968, %v969
  %971 = vadd.xlane.f32.xlu0 %v970
  %v972 = vpop.xlane.xlu0 %971
  %v973 = vsel %vm527, %v104, 0.0
  %v974 = vsel %vm527, %v360, 0.0
  %v975 = vadd.f32 %v973, %v974
  %976 = vadd.xlane.f32.xlu0 %v975
  %v977 = vpop.xlane.xlu0 %976
  %v978 = vsel %vm527, %v105, 0.0
  %v979 = vsel %vm527, %v361, 0.0
  %v980 = vadd.f32 %v978, %v979
  %981 = vadd.xlane.f32.xlu0 %v980
  %v982 = vpop.xlane.xlu0 %981
  %v983 = vsel %vm527, %v106, 0.0
  %v984 = vsel %vm527, %v362, 0.0
  %v985 = vadd.f32 %v983, %v984
  %986 = vadd.xlane.f32.xlu0 %v985
  %v987 = vpop.xlane.xlu0 %986
  %v988 = vsel %vm527, %v107, 0.0
  %v989 = vsel %vm527, %v363, 0.0
  %v990 = vadd.f32 %v988, %v989
  %991 = vadd.xlane.f32.xlu0 %v990
  %v992 = vpop.xlane.xlu0 %991
  %v993 = vsel %vm527, %v108, 0.0
  %v994 = vsel %vm527, %v364, 0.0
  %v995 = vadd.f32 %v993, %v994
  %996 = vadd.xlane.f32.xlu0 %v995
  %v997 = vpop.xlane.xlu0 %996
  %v998 = vsel %vm527, %v109, 0.0
  %v999 = vsel %vm527, %v365, 0.0
  %v1000 = vadd.f32 %v998, %v999
  %1001 = vadd.xlane.f32.xlu0 %v1000
  %v1002 = vpop.xlane.xlu0 %1001
  %v1003 = vsel %vm527, %v110, 0.0
  %v1004 = vsel %vm527, %v366, 0.0
  %v1005 = vadd.f32 %v1003, %v1004
  %1006 = vadd.xlane.f32.xlu0 %v1005
  %v1007 = vpop.xlane.xlu0 %1006
  %v1008 = vsel %vm527, %v111, 0.0
  %v1009 = vsel %vm527, %v367, 0.0
  %v1010 = vadd.f32 %v1008, %v1009
  %1011 = vadd.xlane.f32.xlu0 %v1010
  %v1012 = vpop.xlane.xlu0 %1011
  %v1013 = vsel %vm527, %v112, 0.0
  %v1014 = vsel %vm527, %v368, 0.0
  %v1015 = vadd.f32 %v1013, %v1014
  %1016 = vadd.xlane.f32.xlu0 %v1015
  %v1017 = vpop.xlane.xlu0 %1016
  %v1018 = vsel %vm527, %v113, 0.0
  %v1019 = vsel %vm527, %v369, 0.0
  %v1020 = vadd.f32 %v1018, %v1019
  %1021 = vadd.xlane.f32.xlu0 %v1020
  %v1022 = vpop.xlane.xlu0 %1021
  %v1023 = vsel %vm527, %v114, 0.0
  %v1024 = vsel %vm527, %v370, 0.0
  %v1025 = vadd.f32 %v1023, %v1024
  %1026 = vadd.xlane.f32.xlu0 %v1025
  %v1027 = vpop.xlane.xlu0 %1026
  %v1028 = vsel %vm527, %v115, 0.0
  %v1029 = vsel %vm527, %v371, 0.0
  %v1030 = vadd.f32 %v1028, %v1029
  %1031 = vadd.xlane.f32.xlu0 %v1030
  %v1032 = vpop.xlane.xlu0 %1031
  %v1033 = vsel %vm527, %v116, 0.0
  %v1034 = vsel %vm527, %v372, 0.0
  %v1035 = vadd.f32 %v1033, %v1034
  %1036 = vadd.xlane.f32.xlu0 %v1035
  %v1037 = vpop.xlane.xlu0 %1036
  %v1038 = vsel %vm527, %v117, 0.0
  %v1039 = vsel %vm527, %v373, 0.0
  %v1040 = vadd.f32 %v1038, %v1039
  %1041 = vadd.xlane.f32.xlu0 %v1040
  %v1042 = vpop.xlane.xlu0 %1041
  %v1043 = vsel %vm527, %v118, 0.0
  %v1044 = vsel %vm527, %v374, 0.0
  %v1045 = vadd.f32 %v1043, %v1044
  %1046 = vadd.xlane.f32.xlu0 %v1045
  %v1047 = vpop.xlane.xlu0 %1046
  %v1048 = vsel %vm527, %v119, 0.0
  %v1049 = vsel %vm527, %v375, 0.0
  %v1050 = vadd.f32 %v1048, %v1049
  %1051 = vadd.xlane.f32.xlu0 %v1050
  %v1052 = vpop.xlane.xlu0 %1051
  %v1053 = vsel %vm527, %v120, 0.0
  %v1054 = vsel %vm527, %v376, 0.0
  %v1055 = vadd.f32 %v1053, %v1054
  %1056 = vadd.xlane.f32.xlu0 %v1055
  %v1057 = vpop.xlane.xlu0 %1056
  %v1058 = vsel %vm527, %v121, 0.0
  %v1059 = vsel %vm527, %v377, 0.0
  %v1060 = vadd.f32 %v1058, %v1059
  %1061 = vadd.xlane.f32.xlu0 %v1060
  %v1062 = vpop.xlane.xlu0 %1061
  %v1063 = vsel %vm527, %v122, 0.0
  %v1064 = vsel %vm527, %v378, 0.0
  %v1065 = vadd.f32 %v1063, %v1064
  %1066 = vadd.xlane.f32.xlu0 %v1065
  %v1067 = vpop.xlane.xlu0 %1066
  %v1068 = vsel %vm527, %v123, 0.0
  %v1069 = vsel %vm527, %v379, 0.0
  %v1070 = vadd.f32 %v1068, %v1069
  %1071 = vadd.xlane.f32.xlu0 %v1070
  %v1072 = vpop.xlane.xlu0 %1071
  %v1073 = vsel %vm527, %v124, 0.0
  %v1074 = vsel %vm527, %v380, 0.0
  %v1075 = vadd.f32 %v1073, %v1074
  %1076 = vadd.xlane.f32.xlu0 %v1075
  %v1077 = vpop.xlane.xlu0 %1076
  %v1078 = vsel %vm527, %v125, 0.0
  %v1079 = vsel %vm527, %v381, 0.0
  %v1080 = vadd.f32 %v1078, %v1079
  %1081 = vadd.xlane.f32.xlu0 %v1080
  %v1082 = vpop.xlane.xlu0 %1081
  %v1083 = vsel %vm527, %v126, 0.0
  %v1084 = vsel %vm527, %v382, 0.0
  %v1085 = vadd.f32 %v1083, %v1084
  %1086 = vadd.xlane.f32.xlu0 %v1085
  %v1087 = vpop.xlane.xlu0 %1086
  %v1088 = vsel %vm527, %v127, 0.0
  %v1089 = vsel %vm527, %v383, 0.0
  %v1090 = vadd.f32 %v1088, %v1089
  %1091 = vadd.xlane.f32.xlu0 %v1090
  %v1092 = vpop.xlane.xlu0 %1091
  %v1093 = vsel %vm527, %v128, 0.0
  %v1094 = vsel %vm527, %v384, 0.0
  %v1095 = vadd.f32 %v1093, %v1094
  %1096 = vadd.xlane.f32.xlu0 %v1095
  %v1097 = vpop.xlane.xlu0 %1096
  %v1098 = vsel %vm527, %v129, 0.0
  %v1099 = vsel %vm527, %v385, 0.0
  %v1100 = vadd.f32 %v1098, %v1099
  %1101 = vadd.xlane.f32.xlu0 %v1100
  %v1102 = vpop.xlane.xlu0 %1101
  %v1103 = vsel %vm527, %v130, 0.0
  %v1104 = vsel %vm527, %v386, 0.0
  %v1105 = vadd.f32 %v1103, %v1104
  %1106 = vadd.xlane.f32.xlu0 %v1105
  %v1107 = vpop.xlane.xlu0 %1106
  %v1108 = vsel %vm527, %v131, 0.0
  %v1109 = vsel %vm527, %v387, 0.0
  %v1110 = vadd.f32 %v1108, %v1109
  %1111 = vadd.xlane.f32.xlu0 %v1110
  %v1112 = vpop.xlane.xlu0 %1111
  %v1113 = vsel %vm527, %v132, 0.0
  %v1114 = vsel %vm527, %v388, 0.0
  %v1115 = vadd.f32 %v1113, %v1114
  %1116 = vadd.xlane.f32.xlu0 %v1115
  %v1117 = vpop.xlane.xlu0 %1116
  %v1118 = vsel %vm527, %v133, 0.0
  %v1119 = vsel %vm527, %v389, 0.0
  %v1120 = vadd.f32 %v1118, %v1119
  %1121 = vadd.xlane.f32.xlu0 %v1120
  %v1122 = vpop.xlane.xlu0 %1121
  %v1123 = vsel %vm527, %v134, 0.0
  %v1124 = vsel %vm527, %v390, 0.0
  %v1125 = vadd.f32 %v1123, %v1124
  %1126 = vadd.xlane.f32.xlu0 %v1125
  %v1127 = vpop.xlane.xlu0 %1126
  %v1128 = vsel %vm527, %v135, 0.0
  %v1129 = vsel %vm527, %v391, 0.0
  %v1130 = vadd.f32 %v1128, %v1129
  %1131 = vadd.xlane.f32.xlu0 %v1130
  %v1132 = vpop.xlane.xlu0 %1131
  %v1133 = vsel %vm527, %v136, 0.0
  %v1134 = vsel %vm527, %v392, 0.0
  %v1135 = vadd.f32 %v1133, %v1134
  %1136 = vadd.xlane.f32.xlu0 %v1135
  %v1137 = vpop.xlane.xlu0 %1136
  %v1138 = vsel %vm527, %v137, 0.0
  %v1139 = vsel %vm527, %v393, 0.0
  %v1140 = vadd.f32 %v1138, %v1139
  %1141 = vadd.xlane.f32.xlu0 %v1140
  %v1142 = vpop.xlane.xlu0 %1141
  %v1143 = vsel %vm527, %v138, 0.0
  %v1144 = vsel %vm527, %v394, 0.0
  %v1145 = vadd.f32 %v1143, %v1144
  %1146 = vadd.xlane.f32.xlu0 %v1145
  %v1147 = vpop.xlane.xlu0 %1146
  %v1148 = vsel %vm527, %v139, 0.0
  %v1149 = vsel %vm527, %v395, 0.0
  %v1150 = vadd.f32 %v1148, %v1149
  %1151 = vadd.xlane.f32.xlu0 %v1150
  %v1152 = vpop.xlane.xlu0 %1151
  %v1153 = vsel %vm527, %v140, 0.0
  %v1154 = vsel %vm527, %v396, 0.0
  %v1155 = vadd.f32 %v1153, %v1154
  %1156 = vadd.xlane.f32.xlu0 %v1155
  %v1157 = vpop.xlane.xlu0 %1156
  %v1158 = vsel %vm527, %v141, 0.0
  %v1159 = vsel %vm527, %v397, 0.0
  %v1160 = vadd.f32 %v1158, %v1159
  %1161 = vadd.xlane.f32.xlu0 %v1160
  %v1162 = vpop.xlane.xlu0 %1161
  %v1163 = vsel %vm527, %v142, 0.0
  %v1164 = vsel %vm527, %v398, 0.0
  %v1165 = vadd.f32 %v1163, %v1164
  %1166 = vadd.xlane.f32.xlu0 %v1165
  %v1167 = vpop.xlane.xlu0 %1166
  %v1168 = vrcp.pop 256.0
  %v1169 = vmul.f32 %v532, %v1168
  %v1170 = vmul.f32 %v537, %v1168
  %v1171 = vmul.f32 %v542, %v1168
  %v1172 = vmul.f32 %v547, %v1168
  %v1173 = vmul.f32 %v552, %v1168
  %v1174 = vmul.f32 %v557, %v1168
  %v1175 = vmul.f32 %v562, %v1168
  %v1176 = vmul.f32 %v567, %v1168
  %v1177 = vmul.f32 %v572, %v1168
  %v1178 = vmul.f32 %v577, %v1168
  %v1179 = vmul.f32 %v582, %v1168
  %v1180 = vmul.f32 %v587, %v1168
  %v1181 = vmul.f32 %v592, %v1168
  %v1182 = vmul.f32 %v597, %v1168
  %v1183 = vmul.f32 %v602, %v1168
  %v1184 = vmul.f32 %v607, %v1168
  %v1185 = vmul.f32 %v612, %v1168
  %v1186 = vmul.f32 %v617, %v1168
  %v1187 = vmul.f32 %v622, %v1168
  %v1188 = vmul.f32 %v627, %v1168
  %v1189 = vmul.f32 %v632, %v1168
  %v1190 = vmul.f32 %v637, %v1168
  %v1191 = vmul.f32 %v642, %v1168
  %v1192 = vmul.f32 %v647, %v1168
  %v1193 = vmul.f32 %v652, %v1168
  %v1194 = vmul.f32 %v657, %v1168
  %v1195 = vmul.f32 %v662, %v1168
  %v1196 = vmul.f32 %v667, %v1168
  %v1197 = vmul.f32 %v672, %v1168
  %v1198 = vmul.f32 %v677, %v1168
  %v1199 = vmul.f32 %v682, %v1168
  %v1200 = vmul.f32 %v687, %v1168
  %v1201 = vmul.f32 %v692, %v1168
  %v1202 = vmul.f32 %v697, %v1168
  %v1203 = vmul.f32 %v702, %v1168
  %v1204 = vmul.f32 %v707, %v1168
  %v1205 = vmul.f32 %v712, %v1168
  %v1206 = vmul.f32 %v717, %v1168
  %v1207 = vmul.f32 %v722, %v1168
  %v1208 = vmul.f32 %v727, %v1168
  %v1209 = vmul.f32 %v732, %v1168
  %v1210 = vmul.f32 %v737, %v1168
  %v1211 = vmul.f32 %v742, %v1168
  %v1212 = vmul.f32 %v747, %v1168
  %v1213 = vmul.f32 %v752, %v1168
  %v1214 = vmul.f32 %v757, %v1168
  %v1215 = vmul.f32 %v762, %v1168
  %v1216 = vmul.f32 %v767, %v1168
  %v1217 = vmul.f32 %v772, %v1168
  %v1218 = vmul.f32 %v777, %v1168
  %v1219 = vmul.f32 %v782, %v1168
  %v1220 = vmul.f32 %v787, %v1168
  %v1221 = vmul.f32 %v792, %v1168
  %v1222 = vmul.f32 %v797, %v1168
  %v1223 = vmul.f32 %v802, %v1168
  %v1224 = vmul.f32 %v807, %v1168
  %v1225 = vmul.f32 %v812, %v1168
  %v1226 = vmul.f32 %v817, %v1168
  %v1227 = vmul.f32 %v822, %v1168
  %v1228 = vmul.f32 %v827, %v1168
  %v1229 = vmul.f32 %v832, %v1168
  %v1230 = vmul.f32 %v837, %v1168
  %v1231 = vmul.f32 %v842, %v1168
  %v1232 = vmul.f32 %v847, %v1168
  %v1233 = vmul.f32 %v852, %v1168
  %v1234 = vmul.f32 %v857, %v1168
  %v1235 = vmul.f32 %v862, %v1168
  %v1236 = vmul.f32 %v867, %v1168
  %v1237 = vmul.f32 %v872, %v1168
  %v1238 = vmul.f32 %v877, %v1168
  %v1239 = vmul.f32 %v882, %v1168
  %v1240 = vmul.f32 %v887, %v1168
  %v1241 = vmul.f32 %v892, %v1168
  %v1242 = vmul.f32 %v897, %v1168
  %v1243 = vmul.f32 %v902, %v1168
  %v1244 = vmul.f32 %v907, %v1168
  %v1245 = vmul.f32 %v912, %v1168
  %v1246 = vmul.f32 %v917, %v1168
  %v1247 = vmul.f32 %v922, %v1168
  %v1248 = vmul.f32 %v927, %v1168
  %v1249 = vmul.f32 %v932, %v1168
  %v1250 = vmul.f32 %v937, %v1168
  %v1251 = vmul.f32 %v942, %v1168
  %v1252 = vmul.f32 %v947, %v1168
  %v1253 = vmul.f32 %v952, %v1168
  %v1254 = vmul.f32 %v957, %v1168
  %v1255 = vmul.f32 %v962, %v1168
  %v1256 = vmul.f32 %v967, %v1168
  %v1257 = vmul.f32 %v972, %v1168
  %v1258 = vmul.f32 %v977, %v1168
  %v1259 = vmul.f32 %v982, %v1168
  %v1260 = vmul.f32 %v987, %v1168
  %v1261 = vmul.f32 %v992, %v1168
  %v1262 = vmul.f32 %v997, %v1168
  %v1263 = vmul.f32 %v1002, %v1168
  %v1264 = vmul.f32 %v1007, %v1168
  %v1265 = vmul.f32 %v1012, %v1168
  %v1266 = vmul.f32 %v1017, %v1168
  %v1267 = vmul.f32 %v1022, %v1168
  %v1268 = vmul.f32 %v1027, %v1168
  %v1269 = vmul.f32 %v1032, %v1168
  %v1270 = vmul.f32 %v1037, %v1168
  %v1271 = vmul.f32 %v1042, %v1168
  %v1272 = vmul.f32 %v1047, %v1168
  %v1273 = vmul.f32 %v1052, %v1168
  %v1274 = vmul.f32 %v1057, %v1168
  %v1275 = vmul.f32 %v1062, %v1168
  %v1276 = vmul.f32 %v1067, %v1168
  %v1277 = vmul.f32 %v1072, %v1168
  %v1278 = vmul.f32 %v1077, %v1168
  %v1279 = vmul.f32 %v1082, %v1168
  %v1280 = vmul.f32 %v1087, %v1168
  %v1281 = vmul.f32 %v1092, %v1168
  %v1282 = vmul.f32 %v1097, %v1168
  %v1283 = vmul.f32 %v1102, %v1168
  %v1284 = vmul.f32 %v1107, %v1168
  %v1285 = vmul.f32 %v1112, %v1168
  %v1286 = vmul.f32 %v1117, %v1168
  %v1287 = vmul.f32 %v1122, %v1168
  %v1288 = vmul.f32 %v1127, %v1168
  %v1289 = vmul.f32 %v1132, %v1168
  %v1290 = vmul.f32 %v1137, %v1168
  %v1291 = vmul.f32 %v1142, %v1168
  %v1292 = vmul.f32 %v1147, %v1168
  %v1293 = vmul.f32 %v1152, %v1168
  %v1294 = vmul.f32 %v1157, %v1168
  %v1295 = vmul.f32 %v1162, %v1168
  %v1296 = vmul.f32 %v1167, %v1168
  %v1297 = vpack.c.bf16 %v1169, %v1169
  %v1298 = vpack.c.bf16 %v1170, %v1170
  %v1299 = vpack.c.bf16 %v1171, %v1171
  %v1300 = vpack.c.bf16 %v1172, %v1172
  %v1301 = vpack.c.bf16 %v1173, %v1173
  %v1302 = vpack.c.bf16 %v1174, %v1174
  %v1303 = vpack.c.bf16 %v1175, %v1175
  %v1304 = vpack.c.bf16 %v1176, %v1176
  %v1305 = vpack.c.bf16 %v1177, %v1177
  %v1306 = vpack.c.bf16 %v1178, %v1178
  %v1307 = vpack.c.bf16 %v1179, %v1179
  %v1308 = vpack.c.bf16 %v1180, %v1180
  %v1309 = vpack.c.bf16 %v1181, %v1181
  %v1310 = vpack.c.bf16 %v1182, %v1182
  %v1311 = vpack.c.bf16 %v1183, %v1183
  %v1312 = vpack.c.bf16 %v1184, %v1184
  %v1313 = vpack.c.bf16 %v1185, %v1185
  %v1314 = vpack.c.bf16 %v1186, %v1186
  %v1315 = vpack.c.bf16 %v1187, %v1187
  %v1316 = vpack.c.bf16 %v1188, %v1188
  %v1317 = vpack.c.bf16 %v1189, %v1189
  %v1318 = vpack.c.bf16 %v1190, %v1190
  %v1319 = vpack.c.bf16 %v1191, %v1191
  %v1320 = vpack.c.bf16 %v1192, %v1192
  %v1321 = vpack.c.bf16 %v1193, %v1193
  %v1322 = vpack.c.bf16 %v1194, %v1194
  %v1323 = vpack.c.bf16 %v1195, %v1195
  %v1324 = vpack.c.bf16 %v1196, %v1196
  %v1325 = vpack.c.bf16 %v1197, %v1197
  %v1326 = vpack.c.bf16 %v1198, %v1198
  %v1327 = vpack.c.bf16 %v1199, %v1199
  %v1328 = vpack.c.bf16 %v1200, %v1200
  %v1329 = vpack.c.bf16 %v1201, %v1201
  %v1330 = vpack.c.bf16 %v1202, %v1202
  %v1331 = vpack.c.bf16 %v1203, %v1203
  %v1332 = vpack.c.bf16 %v1204, %v1204
  %v1333 = vpack.c.bf16 %v1205, %v1205
  %v1334 = vpack.c.bf16 %v1206, %v1206
  %v1335 = vpack.c.bf16 %v1207, %v1207
  %v1336 = vpack.c.bf16 %v1208, %v1208
  %v1337 = vpack.c.bf16 %v1209, %v1209
  %v1338 = vpack.c.bf16 %v1210, %v1210
  %v1339 = vpack.c.bf16 %v1211, %v1211
  %v1340 = vpack.c.bf16 %v1212, %v1212
  %v1341 = vpack.c.bf16 %v1213, %v1213
  %v1342 = vpack.c.bf16 %v1214, %v1214
  %v1343 = vpack.c.bf16 %v1215, %v1215
  %v1344 = vpack.c.bf16 %v1216, %v1216
  %v1345 = vpack.c.bf16 %v1217, %v1217
  %v1346 = vpack.c.bf16 %v1218, %v1218
  %v1347 = vpack.c.bf16 %v1219, %v1219
  %v1348 = vpack.c.bf16 %v1220, %v1220
  %v1349 = vpack.c.bf16 %v1221, %v1221
  %v1350 = vpack.c.bf16 %v1222, %v1222
  %v1351 = vpack.c.bf16 %v1223, %v1223
  %v1352 = vpack.c.bf16 %v1224, %v1224
  %v1353 = vpack.c.bf16 %v1225, %v1225
  %v1354 = vpack.c.bf16 %v1226, %v1226
  %v1355 = vpack.c.bf16 %v1227, %v1227
  %v1356 = vpack.c.bf16 %v1228, %v1228
  %v1357 = vpack.c.bf16 %v1229, %v1229
  %v1358 = vpack.c.bf16 %v1230, %v1230
  %v1359 = vpack.c.bf16 %v1231, %v1231
  %v1360 = vpack.c.bf16 %v1232, %v1232
  %v1361 = vpack.c.bf16 %v1233, %v1233
  %v1362 = vpack.c.bf16 %v1234, %v1234
  %v1363 = vpack.c.bf16 %v1235, %v1235
  %v1364 = vpack.c.bf16 %v1236, %v1236
  %v1365 = vpack.c.bf16 %v1237, %v1237
  %v1366 = vpack.c.bf16 %v1238, %v1238
  %v1367 = vpack.c.bf16 %v1239, %v1239
  %v1368 = vpack.c.bf16 %v1240, %v1240
  %v1369 = vpack.c.bf16 %v1241, %v1241
  %v1370 = vpack.c.bf16 %v1242, %v1242
  %v1371 = vpack.c.bf16 %v1243, %v1243
  %v1372 = vpack.c.bf16 %v1244, %v1244
  %v1373 = vpack.c.bf16 %v1245, %v1245
  %v1374 = vpack.c.bf16 %v1246, %v1246
  %v1375 = vpack.c.bf16 %v1247, %v1247
  %v1376 = vpack.c.bf16 %v1248, %v1248
  %v1377 = vpack.c.bf16 %v1249, %v1249
  %v1378 = vpack.c.bf16 %v1250, %v1250
  %v1379 = vpack.c.bf16 %v1251, %v1251
  %v1380 = vpack.c.bf16 %v1252, %v1252
  %v1381 = vpack.c.bf16 %v1253, %v1253
  %v1382 = vpack.c.bf16 %v1254, %v1254
  %v1383 = vpack.c.bf16 %v1255, %v1255
  %v1384 = vpack.c.bf16 %v1256, %v1256
  %v1385 = vpack.c.bf16 %v1257, %v1257
  %v1386 = vpack.c.bf16 %v1258, %v1258
  %v1387 = vpack.c.bf16 %v1259, %v1259
  %v1388 = vpack.c.bf16 %v1260, %v1260
  %v1389 = vpack.c.bf16 %v1261, %v1261
  %v1390 = vpack.c.bf16 %v1262, %v1262
  %v1391 = vpack.c.bf16 %v1263, %v1263
  %v1392 = vpack.c.bf16 %v1264, %v1264
  %v1393 = vpack.c.bf16 %v1265, %v1265
  %v1394 = vpack.c.bf16 %v1266, %v1266
  %v1395 = vpack.c.bf16 %v1267, %v1267
  %v1396 = vpack.c.bf16 %v1268, %v1268
  %v1397 = vpack.c.bf16 %v1269, %v1269
  %v1398 = vpack.c.bf16 %v1270, %v1270
  %v1399 = vpack.c.bf16 %v1271, %v1271
  %v1400 = vpack.c.bf16 %v1272, %v1272
  %v1401 = vpack.c.bf16 %v1273, %v1273
  %v1402 = vpack.c.bf16 %v1274, %v1274
  %v1403 = vpack.c.bf16 %v1275, %v1275
  %v1404 = vpack.c.bf16 %v1276, %v1276
  %v1405 = vpack.c.bf16 %v1277, %v1277
  %v1406 = vpack.c.bf16 %v1278, %v1278
  %v1407 = vpack.c.bf16 %v1279, %v1279
  %v1408 = vpack.c.bf16 %v1280, %v1280
  %v1409 = vpack.c.bf16 %v1281, %v1281
  %v1410 = vpack.c.bf16 %v1282, %v1282
  %v1411 = vpack.c.bf16 %v1283, %v1283
  %v1412 = vpack.c.bf16 %v1284, %v1284
  %v1413 = vpack.c.bf16 %v1285, %v1285
  %v1414 = vpack.c.bf16 %v1286, %v1286
  %v1415 = vpack.c.bf16 %v1287, %v1287
  %v1416 = vpack.c.bf16 %v1288, %v1288
  %v1417 = vpack.c.bf16 %v1289, %v1289
  %v1418 = vpack.c.bf16 %v1290, %v1290
  %v1419 = vpack.c.bf16 %v1291, %v1291
  %v1420 = vpack.c.bf16 %v1292, %v1292
  %v1421 = vpack.c.bf16 %v1293, %v1293
  %v1422 = vpack.c.bf16 %v1294, %v1294
  %v1423 = vpack.c.bf16 %v1295, %v1295
  %v1424 = vpack.c.bf16 %v1296, %v1296
  %v1425 = vld [vmem:[%s1] sm:$0xff]
  %v1426 = vld [vmem:[%s1 + $0x8] sm:$0xff]
  %v1427 = vld [vmem:[%s1 + $0x10] sm:$0xff]
  %v1428 = vld [vmem:[%s1 + $0x18] sm:$0xff]
  %v1429 = vld [vmem:[%s2] sm:$0xff]
  %v1430 = vld [vmem:[%s2 + $0x8] sm:$0xff]
  %v1433 = vlaneseq
  %v1434 = vshrl.u32 %v1433, 7
  %v1435 = vsub.s32 0, %v1434
  %v1436 = vrot.slane %v1429, %v1435
  %v1437 = vlaneseq
  %v1438 = vshrl.u32 %v1437, 7
  %v1439 = vsub.s32 1, %v1438
  %v1440 = vrot.slane %v1429, %v1439
  %v1441 = vlaneseq
  %v1442 = vshrl.u32 %v1441, 7
  %v1443 = vsub.s32 2, %v1442
  %v1444 = vrot.slane %v1429, %v1443
  %v1445 = vlaneseq
  %v1446 = vshrl.u32 %v1445, 7
  %v1447 = vsub.s32 3, %v1446
  %v1448 = vrot.slane %v1429, %v1447
  %v1449 = vlaneseq
  %v1450 = vshrl.u32 %v1449, 7
  %v1451 = vsub.s32 4, %v1450
  %v1452 = vrot.slane %v1429, %v1451
  %v1453 = vlaneseq
  %v1454 = vshrl.u32 %v1453, 7
  %v1455 = vsub.s32 5, %v1454
  %v1456 = vrot.slane %v1429, %v1455
  %v1457 = vlaneseq
  %v1458 = vshrl.u32 %v1457, 7
  %v1459 = vsub.s32 6, %v1458
  %v1460 = vrot.slane %v1429, %v1459
  %v1461 = vlaneseq
  %v1462 = vshrl.u32 %v1461, 7
  %v1463 = vsub.s32 7, %v1462
  %v1464 = vrot.slane %v1429, %v1463
  %v1465 = vlaneseq
  %v1466 = vshrl.u32 %v1465, 7
  %v1467 = vsub.s32 0, %v1466
  %v1468 = vrot.slane %v1430, %v1467
  %v1469 = vlaneseq
  %v1470 = vshrl.u32 %v1469, 7
  %v1471 = vsub.s32 1, %v1470
  %v1472 = vrot.slane %v1430, %v1471
  %v1473 = vlaneseq
  %v1474 = vshrl.u32 %v1473, 7
  %v1475 = vsub.s32 2, %v1474
  %v1476 = vrot.slane %v1430, %v1475
  %v1477 = vlaneseq
  %v1478 = vshrl.u32 %v1477, 7
  %v1479 = vsub.s32 3, %v1478
  %v1480 = vrot.slane %v1430, %v1479
  %v1481 = vlaneseq
  %v1482 = vshrl.u32 %v1481, 7
  %v1483 = vsub.s32 4, %v1482
  %v1484 = vrot.slane %v1430, %v1483
  %v1485 = vlaneseq
  %v1486 = vshrl.u32 %v1485, 7
  %v1487 = vsub.s32 5, %v1486
  %v1488 = vrot.slane %v1430, %v1487
  %v1489 = vlaneseq
  %v1490 = vshrl.u32 %v1489, 7
  %v1491 = vsub.s32 6, %v1490
  %v1492 = vrot.slane %v1430, %v1491
  %v1493 = vlaneseq
  %v1494 = vshrl.u32 %v1493, 7
  %v1495 = vsub.s32 7, %v1494
  %v1496 = vrot.slane %v1430, %v1495
  %v1641 = vunpack.c.l.b16 %v1297
  %v1642 = vunpack.c.l.b16 %v1298
  %v1643 = vunpack.c.l.b16 %v1299
  %v1644 = vunpack.c.l.b16 %v1300
  %v1645 = vunpack.c.l.b16 %v1301
  %v1646 = vunpack.c.l.b16 %v1302
  %v1647 = vunpack.c.l.b16 %v1303
  %v1648 = vunpack.c.l.b16 %v1304
  %v1649 = vunpack.c.l.b16 %v1305
  %v1650 = vunpack.c.l.b16 %v1306
  %v1651 = vunpack.c.l.b16 %v1307
  %v1652 = vunpack.c.l.b16 %v1308
  %v1653 = vunpack.c.l.b16 %v1309
  %v1654 = vunpack.c.l.b16 %v1310
  %v1655 = vunpack.c.l.b16 %v1311
  %v1656 = vunpack.c.l.b16 %v1312
  %v1657 = vunpack.c.l.b16 %v1313
  %v1658 = vunpack.c.l.b16 %v1314
  %v1659 = vunpack.c.l.b16 %v1315
  %v1660 = vunpack.c.l.b16 %v1316
  %v1661 = vunpack.c.l.b16 %v1317
  %v1662 = vunpack.c.l.b16 %v1318
  %v1663 = vunpack.c.l.b16 %v1319
  %v1664 = vunpack.c.l.b16 %v1320
  %v1665 = vunpack.c.l.b16 %v1321
  %v1666 = vunpack.c.l.b16 %v1322
  %v1667 = vunpack.c.l.b16 %v1323
  %v1668 = vunpack.c.l.b16 %v1324
  %v1669 = vunpack.c.l.b16 %v1325
  %v1670 = vunpack.c.l.b16 %v1326
  %v1671 = vunpack.c.l.b16 %v1327
  %v1672 = vunpack.c.l.b16 %v1328
  %v1673 = vunpack.c.l.b16 %v1329
  %v1674 = vunpack.c.l.b16 %v1330
  %v1675 = vunpack.c.l.b16 %v1331
  %v1676 = vunpack.c.l.b16 %v1332
  %v1677 = vunpack.c.l.b16 %v1333
  %v1678 = vunpack.c.l.b16 %v1334
  %v1679 = vunpack.c.l.b16 %v1335
  %v1680 = vunpack.c.l.b16 %v1336
  %v1681 = vunpack.c.l.b16 %v1337
  %v1682 = vunpack.c.l.b16 %v1338
  %v1683 = vunpack.c.l.b16 %v1339
  %v1684 = vunpack.c.l.b16 %v1340
  %v1685 = vunpack.c.l.b16 %v1341
  %v1686 = vunpack.c.l.b16 %v1342
  %v1687 = vunpack.c.l.b16 %v1343
  %v1688 = vunpack.c.l.b16 %v1344
  %v1689 = vunpack.c.l.b16 %v1345
  %v1690 = vunpack.c.l.b16 %v1346
  %v1691 = vunpack.c.l.b16 %v1347
  %v1692 = vunpack.c.l.b16 %v1348
  %v1693 = vunpack.c.l.b16 %v1349
  %v1694 = vunpack.c.l.b16 %v1350
  %v1695 = vunpack.c.l.b16 %v1351
  %v1696 = vunpack.c.l.b16 %v1352
  %v1697 = vunpack.c.l.b16 %v1353
  %v1698 = vunpack.c.l.b16 %v1354
  %v1699 = vunpack.c.l.b16 %v1355
  %v1700 = vunpack.c.l.b16 %v1356
  %v1701 = vunpack.c.l.b16 %v1357
  %v1702 = vunpack.c.l.b16 %v1358
  %v1703 = vunpack.c.l.b16 %v1359
  %v1704 = vunpack.c.l.b16 %v1360
  %v1705 = vunpack.c.l.b16 %v1361
  %v1706 = vunpack.c.l.b16 %v1362
  %v1707 = vunpack.c.l.b16 %v1363
  %v1708 = vunpack.c.l.b16 %v1364
  %v1709 = vunpack.c.l.b16 %v1365
  %v1710 = vunpack.c.l.b16 %v1366
  %v1711 = vunpack.c.l.b16 %v1367
  %v1712 = vunpack.c.l.b16 %v1368
  %v1713 = vunpack.c.l.b16 %v1369
  %v1714 = vunpack.c.l.b16 %v1370
  %v1715 = vunpack.c.l.b16 %v1371
  %v1716 = vunpack.c.l.b16 %v1372
  %v1717 = vunpack.c.l.b16 %v1373
  %v1718 = vunpack.c.l.b16 %v1374
  %v1719 = vunpack.c.l.b16 %v1375
  %v1720 = vunpack.c.l.b16 %v1376
  %v1721 = vunpack.c.l.b16 %v1377
  %v1722 = vunpack.c.l.b16 %v1378
  %v1723 = vunpack.c.l.b16 %v1379
  %v1724 = vunpack.c.l.b16 %v1380
  %v1725 = vunpack.c.l.b16 %v1381
  %v1726 = vunpack.c.l.b16 %v1382
  %v1727 = vunpack.c.l.b16 %v1383
  %v1728 = vunpack.c.l.b16 %v1384
  %v1729 = vunpack.c.l.b16 %v1385
  %v1730 = vunpack.c.l.b16 %v1386
  %v1731 = vunpack.c.l.b16 %v1387
  %v1732 = vunpack.c.l.b16 %v1388
  %v1733 = vunpack.c.l.b16 %v1389
  %v1734 = vunpack.c.l.b16 %v1390
  %v1735 = vunpack.c.l.b16 %v1391
  %v1736 = vunpack.c.l.b16 %v1392
  %v1737 = vunpack.c.l.b16 %v1393
  %v1738 = vunpack.c.l.b16 %v1394
  %v1739 = vunpack.c.l.b16 %v1395
  %v1740 = vunpack.c.l.b16 %v1396
  %v1741 = vunpack.c.l.b16 %v1397
  %v1742 = vunpack.c.l.b16 %v1398
  %v1743 = vunpack.c.l.b16 %v1399
  %v1744 = vunpack.c.l.b16 %v1400
  %v1745 = vunpack.c.l.b16 %v1401
  %v1746 = vunpack.c.l.b16 %v1402
  %v1747 = vunpack.c.l.b16 %v1403
  %v1748 = vunpack.c.l.b16 %v1404
  %v1749 = vunpack.c.l.b16 %v1405
  %v1750 = vunpack.c.l.b16 %v1406
  %v1751 = vunpack.c.l.b16 %v1407
  %v1752 = vunpack.c.l.b16 %v1408
  %v1753 = vunpack.c.l.b16 %v1409
  %v1754 = vunpack.c.l.b16 %v1410
  %v1755 = vunpack.c.l.b16 %v1411
  %v1756 = vunpack.c.l.b16 %v1412
  %v1757 = vunpack.c.l.b16 %v1413
  %v1758 = vunpack.c.l.b16 %v1414
  %v1759 = vunpack.c.l.b16 %v1415
  %v1760 = vunpack.c.l.b16 %v1416
  %v1761 = vunpack.c.l.b16 %v1417
  %v1762 = vunpack.c.l.b16 %v1418
  %v1763 = vunpack.c.l.b16 %v1419
  %v1764 = vunpack.c.l.b16 %v1420
  %v1765 = vunpack.c.l.b16 %v1421
  %v1766 = vunpack.c.l.b16 %v1422
  %v1767 = vunpack.c.l.b16 %v1423
  %v1768 = vunpack.c.l.b16 %v1424
  %v1769 = vlaneseq
  %v1770 = vand.u32 %v1769, 127
  %v1771 = vlaneseq
  %v1772 = vshrl.u32 %v1771, 7
  %v1773 = vsub.s32 %v1770, %v1772
  %v1774 = vrot.slane %v1641, %v1773
  %v1775 = vlaneseq
  %v1776 = vshrl.u32 %v1775, 7
  %v1777 = vsub.s32 %v1770, %v1776
  %v1778 = vrot.slane %v1642, %v1777
  %v1779 = vlaneseq
  %v1780 = vshrl.u32 %v1779, 7
  %v1781 = vsub.s32 %v1770, %v1780
  %v1782 = vrot.slane %v1643, %v1781
  %v1783 = vlaneseq
  %v1784 = vshrl.u32 %v1783, 7
  %v1785 = vsub.s32 %v1770, %v1784
  %v1786 = vrot.slane %v1644, %v1785
  %v1787 = vlaneseq
  %v1788 = vshrl.u32 %v1787, 7
  %v1789 = vsub.s32 %v1770, %v1788
  %v1790 = vrot.slane %v1645, %v1789
  %v1791 = vlaneseq
  %v1792 = vshrl.u32 %v1791, 7
  %v1793 = vsub.s32 %v1770, %v1792
  %v1794 = vrot.slane %v1646, %v1793
  %v1795 = vlaneseq
  %v1796 = vshrl.u32 %v1795, 7
  %v1797 = vsub.s32 %v1770, %v1796
  %v1798 = vrot.slane %v1647, %v1797
  %v1799 = vlaneseq
  %v1800 = vshrl.u32 %v1799, 7
  %v1801 = vsub.s32 %v1770, %v1800
  %v1802 = vrot.slane %v1648, %v1801
  %v1803 = vlaneseq
  %v1804 = vshrl.u32 %v1803, 7
  %v1805 = vsub.s32 %v1770, %v1804
  %v1806 = vrot.slane %v1649, %v1805
  %v1807 = vlaneseq
  %v1808 = vshrl.u32 %v1807, 7
  %v1809 = vsub.s32 %v1770, %v1808
  %v1810 = vrot.slane %v1650, %v1809
  %v1811 = vlaneseq
  %v1812 = vshrl.u32 %v1811, 7
  %v1813 = vsub.s32 %v1770, %v1812
  %v1814 = vrot.slane %v1651, %v1813
  %v1815 = vlaneseq
  %v1816 = vshrl.u32 %v1815, 7
  %v1817 = vsub.s32 %v1770, %v1816
  %v1818 = vrot.slane %v1652, %v1817
  %v1819 = vlaneseq
  %v1820 = vshrl.u32 %v1819, 7
  %v1821 = vsub.s32 %v1770, %v1820
  %v1822 = vrot.slane %v1653, %v1821
  %v1823 = vlaneseq
  %v1824 = vshrl.u32 %v1823, 7
  %v1825 = vsub.s32 %v1770, %v1824
  %v1826 = vrot.slane %v1654, %v1825
  %v1827 = vlaneseq
  %v1828 = vshrl.u32 %v1827, 7
  %v1829 = vsub.s32 %v1770, %v1828
  %v1830 = vrot.slane %v1655, %v1829
  %v1831 = vlaneseq
  %v1832 = vshrl.u32 %v1831, 7
  %v1833 = vsub.s32 %v1770, %v1832
  %v1834 = vrot.slane %v1656, %v1833
  %v1835 = vlaneseq
  %v1836 = vshrl.u32 %v1835, 7
  %v1837 = vsub.s32 %v1770, %v1836
  %v1838 = vrot.slane %v1657, %v1837
  %v1839 = vlaneseq
  %v1840 = vshrl.u32 %v1839, 7
  %v1841 = vsub.s32 %v1770, %v1840
  %v1842 = vrot.slane %v1658, %v1841
  %v1843 = vlaneseq
  %v1844 = vshrl.u32 %v1843, 7
  %v1845 = vsub.s32 %v1770, %v1844
  %v1846 = vrot.slane %v1659, %v1845
  %v1847 = vlaneseq
  %v1848 = vshrl.u32 %v1847, 7
  %v1849 = vsub.s32 %v1770, %v1848
  %v1850 = vrot.slane %v1660, %v1849
  %v1851 = vlaneseq
  %v1852 = vshrl.u32 %v1851, 7
  %v1853 = vsub.s32 %v1770, %v1852
  %v1854 = vrot.slane %v1661, %v1853
  %v1855 = vlaneseq
  %v1856 = vshrl.u32 %v1855, 7
  %v1857 = vsub.s32 %v1770, %v1856
  %v1858 = vrot.slane %v1662, %v1857
  %v1859 = vlaneseq
  %v1860 = vshrl.u32 %v1859, 7
  %v1861 = vsub.s32 %v1770, %v1860
  %v1862 = vrot.slane %v1663, %v1861
  %v1863 = vlaneseq
  %v1864 = vshrl.u32 %v1863, 7
  %v1865 = vsub.s32 %v1770, %v1864
  %v1866 = vrot.slane %v1664, %v1865
  %v1867 = vlaneseq
  %v1868 = vshrl.u32 %v1867, 7
  %v1869 = vsub.s32 %v1770, %v1868
  %v1870 = vrot.slane %v1665, %v1869
  %v1871 = vlaneseq
  %v1872 = vshrl.u32 %v1871, 7
  %v1873 = vsub.s32 %v1770, %v1872
  %v1874 = vrot.slane %v1666, %v1873
  %v1875 = vlaneseq
  %v1876 = vshrl.u32 %v1875, 7
  %v1877 = vsub.s32 %v1770, %v1876
  %v1878 = vrot.slane %v1667, %v1877
  %v1879 = vlaneseq
  %v1880 = vshrl.u32 %v1879, 7
  %v1881 = vsub.s32 %v1770, %v1880
  %v1882 = vrot.slane %v1668, %v1881
  %v1883 = vlaneseq
  %v1884 = vshrl.u32 %v1883, 7
  %v1885 = vsub.s32 %v1770, %v1884
  %v1886 = vrot.slane %v1669, %v1885
  %v1887 = vlaneseq
  %v1888 = vshrl.u32 %v1887, 7
  %v1889 = vsub.s32 %v1770, %v1888
  %v1890 = vrot.slane %v1670, %v1889
  %v1891 = vlaneseq
  %v1892 = vshrl.u32 %v1891, 7
  %v1893 = vsub.s32 %v1770, %v1892
  %v1894 = vrot.slane %v1671, %v1893
  %v1895 = vlaneseq
  %v1896 = vshrl.u32 %v1895, 7
  %v1897 = vsub.s32 %v1770, %v1896
  %v1898 = vrot.slane %v1672, %v1897
  %v1899 = vlaneseq
  %v1900 = vshrl.u32 %v1899, 7
  %v1901 = vsub.s32 %v1770, %v1900
  %v1902 = vrot.slane %v1673, %v1901
  %v1903 = vlaneseq
  %v1904 = vshrl.u32 %v1903, 7
  %v1905 = vsub.s32 %v1770, %v1904
  %v1906 = vrot.slane %v1674, %v1905
  %v1907 = vlaneseq
  %v1908 = vshrl.u32 %v1907, 7
  %v1909 = vsub.s32 %v1770, %v1908
  %v1910 = vrot.slane %v1675, %v1909
  %v1911 = vlaneseq
  %v1912 = vshrl.u32 %v1911, 7
  %v1913 = vsub.s32 %v1770, %v1912
  %v1914 = vrot.slane %v1676, %v1913
  %v1915 = vlaneseq
  %v1916 = vshrl.u32 %v1915, 7
  %v1917 = vsub.s32 %v1770, %v1916
  %v1918 = vrot.slane %v1677, %v1917
  %v1919 = vlaneseq
  %v1920 = vshrl.u32 %v1919, 7
  %v1921 = vsub.s32 %v1770, %v1920
  %v1922 = vrot.slane %v1678, %v1921
  %v1923 = vlaneseq
  %v1924 = vshrl.u32 %v1923, 7
  %v1925 = vsub.s32 %v1770, %v1924
  %v1926 = vrot.slane %v1679, %v1925
  %v1927 = vlaneseq
  %v1928 = vshrl.u32 %v1927, 7
  %v1929 = vsub.s32 %v1770, %v1928
  %v1930 = vrot.slane %v1680, %v1929
  %v1931 = vlaneseq
  %v1932 = vshrl.u32 %v1931, 7
  %v1933 = vsub.s32 %v1770, %v1932
  %v1934 = vrot.slane %v1681, %v1933
  %v1935 = vlaneseq
  %v1936 = vshrl.u32 %v1935, 7
  %v1937 = vsub.s32 %v1770, %v1936
  %v1938 = vrot.slane %v1682, %v1937
  %v1939 = vlaneseq
  %v1940 = vshrl.u32 %v1939, 7
  %v1941 = vsub.s32 %v1770, %v1940
  %v1942 = vrot.slane %v1683, %v1941
  %v1943 = vlaneseq
  %v1944 = vshrl.u32 %v1943, 7
  %v1945 = vsub.s32 %v1770, %v1944
  %v1946 = vrot.slane %v1684, %v1945
  %v1947 = vlaneseq
  %v1948 = vshrl.u32 %v1947, 7
  %v1949 = vsub.s32 %v1770, %v1948
  %v1950 = vrot.slane %v1685, %v1949
  %v1951 = vlaneseq
  %v1952 = vshrl.u32 %v1951, 7
  %v1953 = vsub.s32 %v1770, %v1952
  %v1954 = vrot.slane %v1686, %v1953
  %v1955 = vlaneseq
  %v1956 = vshrl.u32 %v1955, 7
  %v1957 = vsub.s32 %v1770, %v1956
  %v1958 = vrot.slane %v1687, %v1957
  %v1959 = vlaneseq
  %v1960 = vshrl.u32 %v1959, 7
  %v1961 = vsub.s32 %v1770, %v1960
  %v1962 = vrot.slane %v1688, %v1961
  %v1963 = vlaneseq
  %v1964 = vshrl.u32 %v1963, 7
  %v1965 = vsub.s32 %v1770, %v1964
  %v1966 = vrot.slane %v1689, %v1965
  %v1967 = vlaneseq
  %v1968 = vshrl.u32 %v1967, 7
  %v1969 = vsub.s32 %v1770, %v1968
  %v1970 = vrot.slane %v1690, %v1969
  %v1971 = vlaneseq
  %v1972 = vshrl.u32 %v1971, 7
  %v1973 = vsub.s32 %v1770, %v1972
  %v1974 = vrot.slane %v1691, %v1973
  %v1975 = vlaneseq
  %v1976 = vshrl.u32 %v1975, 7
  %v1977 = vsub.s32 %v1770, %v1976
  %v1978 = vrot.slane %v1692, %v1977
  %v1979 = vlaneseq
  %v1980 = vshrl.u32 %v1979, 7
  %v1981 = vsub.s32 %v1770, %v1980
  %v1982 = vrot.slane %v1693, %v1981
  %v1983 = vlaneseq
  %v1984 = vshrl.u32 %v1983, 7
  %v1985 = vsub.s32 %v1770, %v1984
  %v1986 = vrot.slane %v1694, %v1985
  %v1987 = vlaneseq
  %v1988 = vshrl.u32 %v1987, 7
  %v1989 = vsub.s32 %v1770, %v1988
  %v1990 = vrot.slane %v1695, %v1989
  %v1991 = vlaneseq
  %v1992 = vshrl.u32 %v1991, 7
  %v1993 = vsub.s32 %v1770, %v1992
  %v1994 = vrot.slane %v1696, %v1993
  %v1995 = vlaneseq
  %v1996 = vshrl.u32 %v1995, 7
  %v1997 = vsub.s32 %v1770, %v1996
  %v1998 = vrot.slane %v1697, %v1997
  %v1999 = vlaneseq
  %v2000 = vshrl.u32 %v1999, 7
  %v2001 = vsub.s32 %v1770, %v2000
  %v2002 = vrot.slane %v1698, %v2001
  %v2003 = vlaneseq
  %v2004 = vshrl.u32 %v2003, 7
  %v2005 = vsub.s32 %v1770, %v2004
  %v2006 = vrot.slane %v1699, %v2005
  %v2007 = vlaneseq
  %v2008 = vshrl.u32 %v2007, 7
  %v2009 = vsub.s32 %v1770, %v2008
  %v2010 = vrot.slane %v1700, %v2009
  %v2011 = vlaneseq
  %v2012 = vshrl.u32 %v2011, 7
  %v2013 = vsub.s32 %v1770, %v2012
  %v2014 = vrot.slane %v1701, %v2013
  %v2015 = vlaneseq
  %v2016 = vshrl.u32 %v2015, 7
  %v2017 = vsub.s32 %v1770, %v2016
  %v2018 = vrot.slane %v1702, %v2017
  %v2019 = vlaneseq
  %v2020 = vshrl.u32 %v2019, 7
  %v2021 = vsub.s32 %v1770, %v2020
  %v2022 = vrot.slane %v1703, %v2021
  %v2023 = vlaneseq
  %v2024 = vshrl.u32 %v2023, 7
  %v2025 = vsub.s32 %v1770, %v2024
  %v2026 = vrot.slane %v1704, %v2025
  %v2027 = vlaneseq
  %v2028 = vshrl.u32 %v2027, 7
  %v2029 = vsub.s32 %v1770, %v2028
  %v2030 = vrot.slane %v1705, %v2029
  %v2031 = vlaneseq
  %v2032 = vshrl.u32 %v2031, 7
  %v2033 = vsub.s32 %v1770, %v2032
  %v2034 = vrot.slane %v1706, %v2033
  %v2035 = vlaneseq
  %v2036 = vshrl.u32 %v2035, 7
  %v2037 = vsub.s32 %v1770, %v2036
  %v2038 = vrot.slane %v1707, %v2037
  %v2039 = vlaneseq
  %v2040 = vshrl.u32 %v2039, 7
  %v2041 = vsub.s32 %v1770, %v2040
  %v2042 = vrot.slane %v1708, %v2041
  %v2043 = vlaneseq
  %v2044 = vshrl.u32 %v2043, 7
  %v2045 = vsub.s32 %v1770, %v2044
  %v2046 = vrot.slane %v1709, %v2045
  %v2047 = vlaneseq
  %v2048 = vshrl.u32 %v2047, 7
  %v2049 = vsub.s32 %v1770, %v2048
  %v2050 = vrot.slane %v1710, %v2049
  %v2051 = vlaneseq
  %v2052 = vshrl.u32 %v2051, 7
  %v2053 = vsub.s32 %v1770, %v2052
  %v2054 = vrot.slane %v1711, %v2053
  %v2055 = vlaneseq
  %v2056 = vshrl.u32 %v2055, 7
  %v2057 = vsub.s32 %v1770, %v2056
  %v2058 = vrot.slane %v1712, %v2057
  %v2059 = vlaneseq
  %v2060 = vshrl.u32 %v2059, 7
  %v2061 = vsub.s32 %v1770, %v2060
  %v2062 = vrot.slane %v1713, %v2061
  %v2063 = vlaneseq
  %v2064 = vshrl.u32 %v2063, 7
  %v2065 = vsub.s32 %v1770, %v2064
  %v2066 = vrot.slane %v1714, %v2065
  %v2067 = vlaneseq
  %v2068 = vshrl.u32 %v2067, 7
  %v2069 = vsub.s32 %v1770, %v2068
  %v2070 = vrot.slane %v1715, %v2069
  %v2071 = vlaneseq
  %v2072 = vshrl.u32 %v2071, 7
  %v2073 = vsub.s32 %v1770, %v2072
  %v2074 = vrot.slane %v1716, %v2073
  %v2075 = vlaneseq
  %v2076 = vshrl.u32 %v2075, 7
  %v2077 = vsub.s32 %v1770, %v2076
  %v2078 = vrot.slane %v1717, %v2077
  %v2079 = vlaneseq
  %v2080 = vshrl.u32 %v2079, 7
  %v2081 = vsub.s32 %v1770, %v2080
  %v2082 = vrot.slane %v1718, %v2081
  %v2083 = vlaneseq
  %v2084 = vshrl.u32 %v2083, 7
  %v2085 = vsub.s32 %v1770, %v2084
  %v2086 = vrot.slane %v1719, %v2085
  %v2087 = vlaneseq
  %v2088 = vshrl.u32 %v2087, 7
  %v2089 = vsub.s32 %v1770, %v2088
  %v2090 = vrot.slane %v1720, %v2089
  %v2091 = vlaneseq
  %v2092 = vshrl.u32 %v2091, 7
  %v2093 = vsub.s32 %v1770, %v2092
  %v2094 = vrot.slane %v1721, %v2093
  %v2095 = vlaneseq
  %v2096 = vshrl.u32 %v2095, 7
  %v2097 = vsub.s32 %v1770, %v2096
  %v2098 = vrot.slane %v1722, %v2097
  %v2099 = vlaneseq
  %v2100 = vshrl.u32 %v2099, 7
  %v2101 = vsub.s32 %v1770, %v2100
  %v2102 = vrot.slane %v1723, %v2101
  %v2103 = vlaneseq
  %v2104 = vshrl.u32 %v2103, 7
  %v2105 = vsub.s32 %v1770, %v2104
  %v2106 = vrot.slane %v1724, %v2105
  %v2107 = vlaneseq
  %v2108 = vshrl.u32 %v2107, 7
  %v2109 = vsub.s32 %v1770, %v2108
  %v2110 = vrot.slane %v1725, %v2109
  %v2111 = vlaneseq
  %v2112 = vshrl.u32 %v2111, 7
  %v2113 = vsub.s32 %v1770, %v2112
  %v2114 = vrot.slane %v1726, %v2113
  %v2115 = vlaneseq
  %v2116 = vshrl.u32 %v2115, 7
  %v2117 = vsub.s32 %v1770, %v2116
  %v2118 = vrot.slane %v1727, %v2117
  %v2119 = vlaneseq
  %v2120 = vshrl.u32 %v2119, 7
  %v2121 = vsub.s32 %v1770, %v2120
  %v2122 = vrot.slane %v1728, %v2121
  %v2123 = vlaneseq
  %v2124 = vshrl.u32 %v2123, 7
  %v2125 = vsub.s32 %v1770, %v2124
  %v2126 = vrot.slane %v1729, %v2125
  %v2127 = vlaneseq
  %v2128 = vshrl.u32 %v2127, 7
  %v2129 = vsub.s32 %v1770, %v2128
  %v2130 = vrot.slane %v1730, %v2129
  %v2131 = vlaneseq
  %v2132 = vshrl.u32 %v2131, 7
  %v2133 = vsub.s32 %v1770, %v2132
  %v2134 = vrot.slane %v1731, %v2133
  %v2135 = vlaneseq
  %v2136 = vshrl.u32 %v2135, 7
  %v2137 = vsub.s32 %v1770, %v2136
  %v2138 = vrot.slane %v1732, %v2137
  %v2139 = vlaneseq
  %v2140 = vshrl.u32 %v2139, 7
  %v2141 = vsub.s32 %v1770, %v2140
  %v2142 = vrot.slane %v1733, %v2141
  %v2143 = vlaneseq
  %v2144 = vshrl.u32 %v2143, 7
  %v2145 = vsub.s32 %v1770, %v2144
  %v2146 = vrot.slane %v1734, %v2145
  %v2147 = vlaneseq
  %v2148 = vshrl.u32 %v2147, 7
  %v2149 = vsub.s32 %v1770, %v2148
  %v2150 = vrot.slane %v1735, %v2149
  %v2151 = vlaneseq
  %v2152 = vshrl.u32 %v2151, 7
  %v2153 = vsub.s32 %v1770, %v2152
  %v2154 = vrot.slane %v1736, %v2153
  %v2155 = vlaneseq
  %v2156 = vshrl.u32 %v2155, 7
  %v2157 = vsub.s32 %v1770, %v2156
  %v2158 = vrot.slane %v1737, %v2157
  %v2159 = vlaneseq
  %v2160 = vshrl.u32 %v2159, 7
  %v2161 = vsub.s32 %v1770, %v2160
  %v2162 = vrot.slane %v1738, %v2161
  %v2163 = vlaneseq
  %v2164 = vshrl.u32 %v2163, 7
  %v2165 = vsub.s32 %v1770, %v2164
  %v2166 = vrot.slane %v1739, %v2165
  %v2167 = vlaneseq
  %v2168 = vshrl.u32 %v2167, 7
  %v2169 = vsub.s32 %v1770, %v2168
  %v2170 = vrot.slane %v1740, %v2169
  %v2171 = vlaneseq
  %v2172 = vshrl.u32 %v2171, 7
  %v2173 = vsub.s32 %v1770, %v2172
  %v2174 = vrot.slane %v1741, %v2173
  %v2175 = vlaneseq
  %v2176 = vshrl.u32 %v2175, 7
  %v2177 = vsub.s32 %v1770, %v2176
  %v2178 = vrot.slane %v1742, %v2177
  %v2179 = vlaneseq
  %v2180 = vshrl.u32 %v2179, 7
  %v2181 = vsub.s32 %v1770, %v2180
  %v2182 = vrot.slane %v1743, %v2181
  %v2183 = vlaneseq
  %v2184 = vshrl.u32 %v2183, 7
  %v2185 = vsub.s32 %v1770, %v2184
  %v2186 = vrot.slane %v1744, %v2185
  %v2187 = vlaneseq
  %v2188 = vshrl.u32 %v2187, 7
  %v2189 = vsub.s32 %v1770, %v2188
  %v2190 = vrot.slane %v1745, %v2189
  %v2191 = vlaneseq
  %v2192 = vshrl.u32 %v2191, 7
  %v2193 = vsub.s32 %v1770, %v2192
  %v2194 = vrot.slane %v1746, %v2193
  %v2195 = vlaneseq
  %v2196 = vshrl.u32 %v2195, 7
  %v2197 = vsub.s32 %v1770, %v2196
  %v2198 = vrot.slane %v1747, %v2197
  %v2199 = vlaneseq
  %v2200 = vshrl.u32 %v2199, 7
  %v2201 = vsub.s32 %v1770, %v2200
  %v2202 = vrot.slane %v1748, %v2201
  %v2203 = vlaneseq
  %v2204 = vshrl.u32 %v2203, 7
  %v2205 = vsub.s32 %v1770, %v2204
  %v2206 = vrot.slane %v1749, %v2205
  %v2207 = vlaneseq
  %v2208 = vshrl.u32 %v2207, 7
  %v2209 = vsub.s32 %v1770, %v2208
  %v2210 = vrot.slane %v1750, %v2209
  %v2211 = vlaneseq
  %v2212 = vshrl.u32 %v2211, 7
  %v2213 = vsub.s32 %v1770, %v2212
  %v2214 = vrot.slane %v1751, %v2213
  %v2215 = vlaneseq
  %v2216 = vshrl.u32 %v2215, 7
  %v2217 = vsub.s32 %v1770, %v2216
  %v2218 = vrot.slane %v1752, %v2217
  %v2219 = vlaneseq
  %v2220 = vshrl.u32 %v2219, 7
  %v2221 = vsub.s32 %v1770, %v2220
  %v2222 = vrot.slane %v1753, %v2221
  %v2223 = vlaneseq
  %v2224 = vshrl.u32 %v2223, 7
  %v2225 = vsub.s32 %v1770, %v2224
  %v2226 = vrot.slane %v1754, %v2225
  %v2227 = vlaneseq
  %v2228 = vshrl.u32 %v2227, 7
  %v2229 = vsub.s32 %v1770, %v2228
  %v2230 = vrot.slane %v1755, %v2229
  %v2231 = vlaneseq
  %v2232 = vshrl.u32 %v2231, 7
  %v2233 = vsub.s32 %v1770, %v2232
  %v2234 = vrot.slane %v1756, %v2233
  %v2235 = vlaneseq
  %v2236 = vshrl.u32 %v2235, 7
  %v2237 = vsub.s32 %v1770, %v2236
  %v2238 = vrot.slane %v1757, %v2237
  %v2239 = vlaneseq
  %v2240 = vshrl.u32 %v2239, 7
  %v2241 = vsub.s32 %v1770, %v2240
  %v2242 = vrot.slane %v1758, %v2241
  %v2243 = vlaneseq
  %v2244 = vshrl.u32 %v2243, 7
  %v2245 = vsub.s32 %v1770, %v2244
  %v2246 = vrot.slane %v1759, %v2245
  %v2247 = vlaneseq
  %v2248 = vshrl.u32 %v2247, 7
  %v2249 = vsub.s32 %v1770, %v2248
  %v2250 = vrot.slane %v1760, %v2249
  %v2251 = vlaneseq
  %v2252 = vshrl.u32 %v2251, 7
  %v2253 = vsub.s32 %v1770, %v2252
  %v2254 = vrot.slane %v1761, %v2253
  %v2255 = vlaneseq
  %v2256 = vshrl.u32 %v2255, 7
  %v2257 = vsub.s32 %v1770, %v2256
  %v2258 = vrot.slane %v1762, %v2257
  %v2259 = vlaneseq
  %v2260 = vshrl.u32 %v2259, 7
  %v2261 = vsub.s32 %v1770, %v2260
  %v2262 = vrot.slane %v1763, %v2261
  %v2263 = vlaneseq
  %v2264 = vshrl.u32 %v2263, 7
  %v2265 = vsub.s32 %v1770, %v2264
  %v2266 = vrot.slane %v1764, %v2265
  %v2267 = vlaneseq
  %v2268 = vshrl.u32 %v2267, 7
  %v2269 = vsub.s32 %v1770, %v2268
  %v2270 = vrot.slane %v1765, %v2269
  %v2271 = vlaneseq
  %v2272 = vshrl.u32 %v2271, 7
  %v2273 = vsub.s32 %v1770, %v2272
  %v2274 = vrot.slane %v1766, %v2273
  %v2275 = vlaneseq
  %v2276 = vshrl.u32 %v2275, 7
  %v2277 = vsub.s32 %v1770, %v2276
  %v2278 = vrot.slane %v1767, %v2277
  %v2279 = vlaneseq
  %v2280 = vshrl.u32 %v2279, 7
  %v2281 = vsub.s32 %v1770, %v2280
  %v2282 = vrot.slane %v1768, %v2281
  %vm2283 = vcmask 1041409
  %v2284 = vsel %vm2283, %v1778, %v1774
  %vm2285 = vcmask 1042434
  %v2286 = vsel %vm2285, %v1782, %v2284
  %vm2287 = vcmask 1043459
  %v2288 = vsel %vm2287, %v1786, %v2286
  %vm2289 = vcmask 1044484
  %v2290 = vsel %vm2289, %v1790, %v2288
  %vm2291 = vcmask 1045509
  %v2292 = vsel %vm2291, %v1794, %v2290
  %vm2293 = vcmask 1046534
  %v2294 = vsel %vm2293, %v1798, %v2292
  %vm2295 = vcmask 1047559
  %v2296 = vsel %vm2295, %v1802, %v2294
  %v2297 = vsel %vm2283, %v1810, %v1806
  %v2298 = vsel %vm2285, %v1814, %v2297
  %v2299 = vsel %vm2287, %v1818, %v2298
  %v2300 = vsel %vm2289, %v1822, %v2299
  %v2301 = vsel %vm2291, %v1826, %v2300
  %v2302 = vsel %vm2293, %v1830, %v2301
  %v2303 = vsel %vm2295, %v1834, %v2302
  %v2304 = vsel %vm2283, %v1842, %v1838
  %v2305 = vsel %vm2285, %v1846, %v2304
  %v2306 = vsel %vm2287, %v1850, %v2305
  %v2307 = vsel %vm2289, %v1854, %v2306
  %v2308 = vsel %vm2291, %v1858, %v2307
  %v2309 = vsel %vm2293, %v1862, %v2308
  %v2310 = vsel %vm2295, %v1866, %v2309
  %v2311 = vsel %vm2283, %v1874, %v1870
  %v2312 = vsel %vm2285, %v1878, %v2311
  %v2313 = vsel %vm2287, %v1882, %v2312
  %v2314 = vsel %vm2289, %v1886, %v2313
  %v2315 = vsel %vm2291, %v1890, %v2314
  %v2316 = vsel %vm2293, %v1894, %v2315
  %v2317 = vsel %vm2295, %v1898, %v2316
  %v2318 = vsel %vm2283, %v1906, %v1902
  %v2319 = vsel %vm2285, %v1910, %v2318
  %v2320 = vsel %vm2287, %v1914, %v2319
  %v2321 = vsel %vm2289, %v1918, %v2320
  %v2322 = vsel %vm2291, %v1922, %v2321
  %v2323 = vsel %vm2293, %v1926, %v2322
  %v2324 = vsel %vm2295, %v1930, %v2323
  %v2325 = vsel %vm2283, %v1938, %v1934
  %v2326 = vsel %vm2285, %v1942, %v2325
  %v2327 = vsel %vm2287, %v1946, %v2326
  %v2328 = vsel %vm2289, %v1950, %v2327
  %v2329 = vsel %vm2291, %v1954, %v2328
  %v2330 = vsel %vm2293, %v1958, %v2329
  %v2331 = vsel %vm2295, %v1962, %v2330
  %v2332 = vsel %vm2283, %v1970, %v1966
  %v2333 = vsel %vm2285, %v1974, %v2332
  %v2334 = vsel %vm2287, %v1978, %v2333
  %v2335 = vsel %vm2289, %v1982, %v2334
  %v2336 = vsel %vm2291, %v1986, %v2335
  %v2337 = vsel %vm2293, %v1990, %v2336
  %v2338 = vsel %vm2295, %v1994, %v2337
  %v2339 = vsel %vm2283, %v2002, %v1998
  %v2340 = vsel %vm2285, %v2006, %v2339
  %v2341 = vsel %vm2287, %v2010, %v2340
  %v2342 = vsel %vm2289, %v2014, %v2341
  %v2343 = vsel %vm2291, %v2018, %v2342
  %v2344 = vsel %vm2293, %v2022, %v2343
  %v2345 = vsel %vm2295, %v2026, %v2344
  %v2346 = vsel %vm2283, %v2034, %v2030
  %v2347 = vsel %vm2285, %v2038, %v2346
  %v2348 = vsel %vm2287, %v2042, %v2347
  %v2349 = vsel %vm2289, %v2046, %v2348
  %v2350 = vsel %vm2291, %v2050, %v2349
  %v2351 = vsel %vm2293, %v2054, %v2350
  %v2352 = vsel %vm2295, %v2058, %v2351
  %v2353 = vsel %vm2283, %v2066, %v2062
  %v2354 = vsel %vm2285, %v2070, %v2353
  %v2355 = vsel %vm2287, %v2074, %v2354
  %v2356 = vsel %vm2289, %v2078, %v2355
  %v2357 = vsel %vm2291, %v2082, %v2356
  %v2358 = vsel %vm2293, %v2086, %v2357
  %v2359 = vsel %vm2295, %v2090, %v2358
  %v2360 = vsel %vm2283, %v2098, %v2094
  %v2361 = vsel %vm2285, %v2102, %v2360
  %v2362 = vsel %vm2287, %v2106, %v2361
  %v2363 = vsel %vm2289, %v2110, %v2362
  %v2364 = vsel %vm2291, %v2114, %v2363
  %v2365 = vsel %vm2293, %v2118, %v2364
  %v2366 = vsel %vm2295, %v2122, %v2365
  %v2367 = vsel %vm2283, %v2130, %v2126
  %v2368 = vsel %vm2285, %v2134, %v2367
  %v2369 = vsel %vm2287, %v2138, %v2368
  %v2370 = vsel %vm2289, %v2142, %v2369
  %v2371 = vsel %vm2291, %v2146, %v2370
  %v2372 = vsel %vm2293, %v2150, %v2371
  %v2373 = vsel %vm2295, %v2154, %v2372
  %v2374 = vsel %vm2283, %v2162, %v2158
  %v2375 = vsel %vm2285, %v2166, %v2374
  %v2376 = vsel %vm2287, %v2170, %v2375
  %v2377 = vsel %vm2289, %v2174, %v2376
  %v2378 = vsel %vm2291, %v2178, %v2377
  %v2379 = vsel %vm2293, %v2182, %v2378
  %v2380 = vsel %vm2295, %v2186, %v2379
  %v2381 = vsel %vm2283, %v2194, %v2190
  %v2382 = vsel %vm2285, %v2198, %v2381
  %v2383 = vsel %vm2287, %v2202, %v2382
  %v2384 = vsel %vm2289, %v2206, %v2383
  %v2385 = vsel %vm2291, %v2210, %v2384
  %v2386 = vsel %vm2293, %v2214, %v2385
  %v2387 = vsel %vm2295, %v2218, %v2386
  %v2388 = vsel %vm2283, %v2226, %v2222
  %v2389 = vsel %vm2285, %v2230, %v2388
  %v2390 = vsel %vm2287, %v2234, %v2389
  %v2391 = vsel %vm2289, %v2238, %v2390
  %v2392 = vsel %vm2291, %v2242, %v2391
  %v2393 = vsel %vm2293, %v2246, %v2392
  %v2394 = vsel %vm2295, %v2250, %v2393
  %v2395 = vsel %vm2283, %v2258, %v2254
  %v2396 = vsel %vm2285, %v2262, %v2395
  %v2397 = vsel %vm2287, %v2266, %v2396
  %v2398 = vsel %vm2289, %v2270, %v2397
  %v2399 = vsel %vm2291, %v2274, %v2398
  %v2400 = vsel %vm2293, %v2278, %v2399
  %v2401 = vsel %vm2295, %v2282, %v2400
  %v2402 = vpack.c.b16 %v2303, %v2296
  %v2403 = vpack.c.b16 %v2317, %v2310
  %v2404 = vpack.c.b16 %v2331, %v2324
  %v2405 = vpack.c.b16 %v2345, %v2338
  %v2406 = vpack.c.b16 %v2359, %v2352
  %v2407 = vpack.c.b16 %v2373, %v2366
  %v2408 = vpack.c.b16 %v2387, %v2380
  %v2409 = vpack.c.b16 %v2401, %v2394
  %v2414 = vcombine.high %v1425, %v1425
  %v2416 = vunpack.c.l.s4 1983009808
  %v2417 = vunpack.c.0.s8 %v2416
  %v2418 = vlaneseq
  %v2419 = vshrl.u32 %v2418, 7
  %v2420 = vsub.s32 %v2417, %v2419
  %v2421 = vrot.slane %v1425, %v2420
  %v2423 = vunpack.c.l.s4 1983009808
  %v2424 = vunpack.c.0.s8 %v2423
  %v2425 = vlaneseq
  %v2426 = vshrl.u32 %v2425, 7
  %v2427 = vsub.s32 %v2424, %v2426
  %v2428 = vrot.slane %v2414, %v2427
  %v2429 = vcombine.high %v2421, %v2421
  %v2430 = vcombine.high %v2428, %v2428
  %v2431 = vcombine.high %v1426, %v1426
  %v2433 = vunpack.c.l.s4 1983009808
  %v2434 = vunpack.c.0.s8 %v2433
  %v2435 = vlaneseq
  %v2436 = vshrl.u32 %v2435, 7
  %v2437 = vsub.s32 %v2434, %v2436
  %v2438 = vrot.slane %v1426, %v2437
  %v2440 = vunpack.c.l.s4 1983009808
  %v2441 = vunpack.c.0.s8 %v2440
  %v2442 = vlaneseq
  %v2443 = vshrl.u32 %v2442, 7
  %v2444 = vsub.s32 %v2441, %v2443
  %v2445 = vrot.slane %v2431, %v2444
  %v2446 = vcombine.high %v2438, %v2438
  %v2447 = vcombine.high %v2445, %v2445
  %v2448 = vcombine.high %v1427, %v1427
  %v2450 = vunpack.c.l.s4 1983009808
  %v2451 = vunpack.c.0.s8 %v2450
  %v2452 = vlaneseq
  %v2453 = vshrl.u32 %v2452, 7
  %v2454 = vsub.s32 %v2451, %v2453
  %v2455 = vrot.slane %v1427, %v2454
  %v2457 = vunpack.c.l.s4 1983009808
  %v2458 = vunpack.c.0.s8 %v2457
  %v2459 = vlaneseq
  %v2460 = vshrl.u32 %v2459, 7
  %v2461 = vsub.s32 %v2458, %v2460
  %v2462 = vrot.slane %v2448, %v2461
  %v2463 = vcombine.high %v2455, %v2455
  %v2464 = vcombine.high %v2462, %v2462
  %v2465 = vcombine.high %v1428, %v1428
  %v2467 = vunpack.c.l.s4 1983009808
  %v2468 = vunpack.c.0.s8 %v2467
  %v2469 = vlaneseq
  %v2470 = vshrl.u32 %v2469, 7
  %v2471 = vsub.s32 %v2468, %v2470
  %v2472 = vrot.slane %v1428, %v2471
  %v2474 = vunpack.c.l.s4 1983009808
  %v2475 = vunpack.c.0.s8 %v2474
  %v2476 = vlaneseq
  %v2477 = vshrl.u32 %v2476, 7
  %v2478 = vsub.s32 %v2475, %v2477
  %v2479 = vrot.slane %v2465, %v2478
  %v2480 = vcombine.high %v2472, %v2472
  %v2481 = vcombine.high %v2479, %v2479
  %vm2482 = vcmask 31744
  %v2484 = vsel %vm2482, %v2402, 0
  %v2487 = vsel %vm2482, %v2403, 0
  %v2490 = vsel %vm2482, %v2404, 0
  %v2493 = vsel %vm2482, %v2405, 0
  %v2496 = vsel %vm2482, %v2406, 0
  %v2499 = vsel %vm2482, %v2407, 0
  %v2502 = vsel %vm2482, %v2408, 0
  %v2505 = vsel %vm2482, %v2409, 0
  %vm2507 = vcmask 1041408
  %v2509 = vsel %vm2507, %v2421, 0
  %v2512 = vsel %vm2507, %v2429, 0
  %v2515 = vsel %vm2507, %v2428, 0
  %v2518 = vsel %vm2507, %v2430, 0
  %v2521 = vsel %vm2507, %v2438, 0
  %v2524 = vsel %vm2507, %v2446, 0
  %v2527 = vsel %vm2507, %v2445, 0
  %v2530 = vsel %vm2507, %v2447, 0
  %v2533 = vsel %vm2507, %v2455, 0
  %v2536 = vsel %vm2507, %v2463, 0
  %v2539 = vsel %vm2507, %v2462, 0
  %v2542 = vsel %vm2507, %v2464, 0
  %v2545 = vsel %vm2507, %v2472, 0
  %v2548 = vsel %vm2507, %v2480, 0
  %v2551 = vsel %vm2507, %v2479, 0
  %v2554 = vsel %vm2507, %v2481, 0
  %2556 = vmatprep.subr.bf16.mxu0 %v2512
  %2557 = vmatpush1.bf16.msra.mxu0 %v2509
  %2558 = vmatprep.subr.bf16.mxu0 0
  %2559 = vmatpush1.bf16.msra.mxu0 0
  %2560 = vmatprep.subr.bf16.mxu0 0
  %2561 = vmatpush1.bf16.msra.mxu0 0
  %2562 = vmatprep.subr.bf16.mxu0 0
  %2563 = vmatpush1.bf16.msra.mxu0 0
  %2564 = vmatprep.subr.bf16.mxu0 0
  %2565 = vmatpush1.bf16.msra.mxu0 0
  %2566 = vmatprep.subr.bf16.mxu0 0
  %2567 = vmatpush1.bf16.msra.mxu0 0
  %2568 = vmatprep.subr.bf16.mxu0 0
  %2569 = vmatpush1.bf16.msra.mxu0 0
  %2570 = vmatprep.subr.bf16.mxu0 0
  %2571 = vmatpush1.bf16.msra.mxu0 0
  %2572 = vmatprep.subr.bf16.mxu0 0
  %2573 = vmatpush1.bf16.msra.mxu0 0
  %2574 = vmatprep.subr.bf16.mxu0 0
  %2575 = vmatpush1.bf16.msra.mxu0 0
  %2576 = vmatprep.subr.bf16.mxu0 0
  %2577 = vmatpush1.bf16.msra.mxu0 0
  %2578 = vmatprep.subr.bf16.mxu0 0
  %2579 = vmatpush1.bf16.msra.mxu0 0
  %2580 = vmatprep.subr.bf16.mxu0 0
  %2581 = vmatpush1.bf16.msra.mxu0 0
  %2582 = vmatprep.subr.bf16.mxu0 0
  %2583 = vmatpush1.bf16.msra.mxu0 0
  %2584 = vmatprep.subr.bf16.mxu0 0
  %2585 = vmatpush1.bf16.msra.mxu0 0
  %2586 = vmatprep.subr.bf16.mxu0 0
  %2587 = vmatpush1.bf16.msra.mxu0 0
  %2588 = vmatprep.mubr.bf16.mxu0 0
  %2589 = vmatmul.mubr.bf16.gmra.mrb[0].mxu0 %v2484
  %v2590 = vpop.f32.mrb[0].mxu0
  %v2591 = vadd.f32 %v1436, %v2590
  %v2592 = vpop.f32.mrb[0].mxu0
  %v2593 = vadd.f32 %v1440, %v2592
  %v2594 = vpop.f32.mrb[0].mxu0
  %v2595 = vadd.f32 %v1436, %v2594
  %v2596 = vpop.f32.mrb[0].mxu0
  %v2597 = vadd.f32 %v1440, %v2596
  %2598 = vmatprep.mubr.bf16.mxu0 0
  %2599 = vmatmul.mubr.bf16.gmra.mrb[0].mxu0 %v2487
  %v2600 = vpop.f32.mrb[0].mxu0
  %v2601 = vadd.f32 %v1436, %v2600
  %v2602 = vpop.f32.mrb[0].mxu0
  %v2603 = vadd.f32 %v1440, %v2602
  %v2604 = vpop.f32.mrb[0].mxu0
  %v2605 = vadd.f32 %v1436, %v2604
  %v2606 = vpop.f32.mrb[0].mxu0
  %v2607 = vadd.f32 %v1440, %v2606
  %2608 = vmatprep.mubr.bf16.mxu0 0
  %2609 = vmatmul.mubr.bf16.gmra.mrb[0].mxu0 %v2490
  %v2610 = vpop.f32.mrb[0].mxu0
  %v2611 = vadd.f32 %v1436, %v2610
  %v2612 = vpop.f32.mrb[0].mxu0
  %v2613 = vadd.f32 %v1440, %v2612
  %v2614 = vpop.f32.mrb[0].mxu0
  %v2615 = vadd.f32 %v1436, %v2614
  %v2616 = vpop.f32.mrb[0].mxu0
  %v2617 = vadd.f32 %v1440, %v2616
  %2618 = vmatprep.mubr.bf16.mxu0 0
  %2619 = vmatmul.mubr.bf16.gmra.mrb[0].mxu0 %v2493
  %v2620 = vpop.f32.mrb[0].mxu0
  %v2621 = vadd.f32 %v1436, %v2620
  %v2622 = vpop.f32.mrb[0].mxu0
  %v2623 = vadd.f32 %v1440, %v2622
  %v2624 = vpop.f32.mrb[0].mxu0
  %v2625 = vadd.f32 %v1436, %v2624
  %v2626 = vpop.f32.mrb[0].mxu0
  %v2627 = vadd.f32 %v1440, %v2626
  %2628 = vmatprep.mubr.bf16.mxu0 0
  %2629 = vmatmul.mubr.bf16.gmra.mrb[0].mxu0 %v2496
  %v2630 = vpop.f32.mrb[0].mxu0
  %v2631 = vadd.f32 %v1436, %v2630
  %v2632 = vpop.f32.mrb[0].mxu0
  %v2633 = vadd.f32 %v1440, %v2632
  %v2634 = vpop.f32.mrb[0].mxu0
  %v2635 = vadd.f32 %v1436, %v2634
  %v2636 = vpop.f32.mrb[0].mxu0
  %v2637 = vadd.f32 %v1440, %v2636
  %2638 = vmatprep.mubr.bf16.mxu0 0
  %2639 = vmatmul.mubr.bf16.gmra.mrb[0].mxu0 %v2499
  %v2640 = vpop.f32.mrb[0].mxu0
  %v2641 = vadd.f32 %v1436, %v2640
  %v2642 = vpop.f32.mrb[0].mxu0
  %v2643 = vadd.f32 %v1440, %v2642
  %v2644 = vpop.f32.mrb[0].mxu0
  %v2645 = vadd.f32 %v1436, %v2644
  %v2646 = vpop.f32.mrb[0].mxu0
  %v2647 = vadd.f32 %v1440, %v2646
  %2648 = vmatprep.mubr.bf16.mxu0 0
  %2649 = vmatmul.mubr.bf16.gmra.mrb[0].mxu0 %v2502
  %v2650 = vpop.f32.mrb[0].mxu0
  %v2651 = vadd.f32 %v1436, %v2650
  %v2652 = vpop.f32.mrb[0].mxu0
  %v2653 = vadd.f32 %v1440, %v2652
  %v2654 = vpop.f32.mrb[0].mxu0
  %v2655 = vadd.f32 %v1436, %v2654
  %v2656 = vpop.f32.mrb[0].mxu0
  %v2657 = vadd.f32 %v1440, %v2656
  %2658 = vmatprep.mubr.bf16.mxu0 0
  %2659 = vmatmul.mubr.bf16.gmra.mrb[0].mxu0 %v2505
  %v2660 = vpop.f32.mrb[0].mxu0
  %v2661 = vadd.f32 %v1436, %v2660
  %v2662 = vpop.f32.mrb[0].mxu0
  %v2663 = vadd.f32 %v1440, %v2662
  %v2664 = vpop.f32.mrb[0].mxu0
  %v2665 = vadd.f32 %v1436, %v2664
  %v2666 = vpop.f32.mrb[0].mxu0
  %v2667 = vadd.f32 %v1440, %v2666
  %2668 = vdwg.mxu0
  %2669 = vmatprep.subr.bf16.mxu0 %v2518
  %2670 = vmatpush1.bf16.msra.mxu0 %v2515
  %2671 = vmatprep.subr.bf16.mxu0 0
  %2672 = vmatpush1.bf16.msra.mxu0 0
  %2673 = vmatprep.subr.bf16.mxu0 0
  %2674 = vmatpush1.bf16.msra.mxu0 0
  %2675 = vmatprep.subr.bf16.mxu0 0
  %2676 = vmatpush1.bf16.msra.mxu0 0
  %2677 = vmatprep.subr.bf16.mxu0 0
  %2678 = vmatpush1.bf16.msra.mxu0 0
  %2679 = vmatprep.subr.bf16.mxu0 0
  %2680 = vmatpush1.bf16.msra.mxu0 0
  %2681 = vmatprep.subr.bf16.mxu0 0
  %2682 = vmatpush1.bf16.msra.mxu0 0
  %2683 = vmatprep.subr.bf16.mxu0 0
  %2684 = vmatpush1.bf16.msra.mxu0 0
  %2685 = vmatprep.subr.bf16.mxu0 0
  %2686 = vmatpush1.bf16.msra.mxu0 0
  %2687 = vmatprep.subr.bf16.mxu0 0
  %2688 = vmatpush1.bf16.msra.mxu0 0
  %2689 = vmatprep.subr.bf16.mxu0 0
  %2690 = vmatpush1.bf16.msra.mxu0 0
  %2691 = vmatprep.subr.bf16.mxu0 0
  %2692 = vmatpush1.bf16.msra.mxu0 0
  %2693 = vmatprep.subr.bf16.mxu0 0
  %2694 = vmatpush1.bf16.msra.mxu0 0
  %2695 = vmatprep.subr.bf16.mxu0 0
  %2696 = vmatpush1.bf16.msra.mxu0 0
  %2697 = vmatprep.subr.bf16.mxu0 0
  %2698 = vmatpush1.bf16.msra.mxu0 0
  %2699 = vmatprep.subr.bf16.mxu0 0
  %2700 = vmatpush1.bf16.msra.mxu0 0
  %2701 = vmatprep.mubr.bf16.mxu0 0
  %2702 = vmatmul.mubr.bf16.gmra.mrb[0].mxu0 %v2484
  %v2703 = vpop.f32.mrb[0].mxu0
  %v2704 = vadd.f32 %v1444, %v2703
  %v2705 = vpop.f32.mrb[0].mxu0
  %v2706 = vadd.f32 %v1448, %v2705
  %v2707 = vpop.f32.mrb[0].mxu0
  %v2708 = vadd.f32 %v1444, %v2707
  %v2709 = vpop.f32.mrb[0].mxu0
  %v2710 = vadd.f32 %v1448, %v2709
  %2711 = vmatprep.mubr.bf16.mxu0 0
  %2712 = vmatmul.mubr.bf16.gmra.mrb[0].mxu0 %v2487
  %v2713 = vpop.f32.mrb[0].mxu0
  %v2714 = vadd.f32 %v1444, %v2713
  %v2715 = vpop.f32.mrb[0].mxu0
  %v2716 = vadd.f32 %v1448, %v2715
  %v2717 = vpop.f32.mrb[0].mxu0
  %v2718 = vadd.f32 %v1444, %v2717
  %v2719 = vpop.f32.mrb[0].mxu0
  %v2720 = vadd.f32 %v1448, %v2719
  %2721 = vmatprep.mubr.bf16.mxu0 0
  %2722 = vmatmul.mubr.bf16.gmra.mrb[0].mxu0 %v2490
  %v2723 = vpop.f32.mrb[0].mxu0
  %v2724 = vadd.f32 %v1444, %v2723
  %v2725 = vpop.f32.mrb[0].mxu0
  %v2726 = vadd.f32 %v1448, %v2725
  %v2727 = vpop.f32.mrb[0].mxu0
  %v2728 = vadd.f32 %v1444, %v2727
  %v2729 = vpop.f32.mrb[0].mxu0
  %v2730 = vadd.f32 %v1448, %v2729
  %2731 = vmatprep.mubr.bf16.mxu0 0
  %2732 = vmatmul.mubr.bf16.gmra.mrb[0].mxu0 %v2493
  %v2733 = vpop.f32.mrb[0].mxu0
  %v2734 = vadd.f32 %v1444, %v2733
  %v2735 = vpop.f32.mrb[0].mxu0
  %v2736 = vadd.f32 %v1448, %v2735
  %v2737 = vpop.f32.mrb[0].mxu0
  %v2738 = vadd.f32 %v1444, %v2737
  %v2739 = vpop.f32.mrb[0].mxu0
  %v2740 = vadd.f32 %v1448, %v2739
  %2741 = vmatprep.mubr.bf16.mxu0 0
  %2742 = vmatmul.mubr.bf16.gmra.mrb[0].mxu0 %v2496
  %v2743 = vpop.f32.mrb[0].mxu0
  %v2744 = vadd.f32 %v1444, %v2743
  %v2745 = vpop.f32.mrb[0].mxu0
  %v2746 = vadd.f32 %v1448, %v2745
  %v2747 = vpop.f32.mrb[0].mxu0
  %v2748 = vadd.f32 %v1444, %v2747
  %v2749 = vpop.f32.mrb[0].mxu0
  %v2750 = vadd.f32 %v1448, %v2749
  %2751 = vmatprep.mubr.bf16.mxu0 0
  %2752 = vmatmul.mubr.bf16.gmra.mrb[0].mxu0 %v2499
  %v2753 = vpop.f32.mrb[0].mxu0
  %v2754 = vadd.f32 %v1444, %v2753
  %v2755 = vpop.f32.mrb[0].mxu0
  %v2756 = vadd.f32 %v1448, %v2755
  %v2757 = vpop.f32.mrb[0].mxu0
  %v2758 = vadd.f32 %v1444, %v2757
  %v2759 = vpop.f32.mrb[0].mxu0
  %v2760 = vadd.f32 %v1448, %v2759
  %2761 = vmatprep.mubr.bf16.mxu0 0
  %2762 = vmatmul.mubr.bf16.gmra.mrb[0].mxu0 %v2502
  %v2763 = vpop.f32.mrb[0].mxu0
  %v2764 = vadd.f32 %v1444, %v2763
  %v2765 = vpop.f32.mrb[0].mxu0
  %v2766 = vadd.f32 %v1448, %v2765
  %v2767 = vpop.f32.mrb[0].mxu0
  %v2768 = vadd.f32 %v1444, %v2767
  %v2769 = vpop.f32.mrb[0].mxu0
  %v2770 = vadd.f32 %v1448, %v2769
  %2771 = vmatprep.mubr.bf16.mxu0 0
  %2772 = vmatmul.mubr.bf16.gmra.mrb[0].mxu0 %v2505
  %v2773 = vpop.f32.mrb[0].mxu0
  %v2774 = vadd.f32 %v1444, %v2773
  %v2775 = vpop.f32.mrb[0].mxu0
  %v2776 = vadd.f32 %v1448, %v2775
  %v2777 = vpop.f32.mrb[0].mxu0
  %v2778 = vadd.f32 %v1444, %v2777
  %v2779 = vpop.f32.mrb[0].mxu0
  %v2780 = vadd.f32 %v1448, %v2779
  %2781 = vdwg.mxu0
  %2782 = vmatprep.subr.bf16.mxu0 %v2524
  %2783 = vmatpush1.bf16.msra.mxu0 %v2521
  %2784 = vmatprep.subr.bf16.mxu0 0
  %2785 = vmatpush1.bf16.msra.mxu0 0
  %2786 = vmatprep.subr.bf16.mxu0 0
  %2787 = vmatpush1.bf16.msra.mxu0 0
  %2788 = vmatprep.subr.bf16.mxu0 0
  %2789 = vmatpush1.bf16.msra.mxu0 0
  %2790 = vmatprep.subr.bf16.mxu0 0
  %2791 = vmatpush1.bf16.msra.mxu0 0
  %2792 = vmatprep.subr.bf16.mxu0 0
  %2793 = vmatpush1.bf16.msra.mxu0 0
  %2794 = vmatprep.subr.bf16.mxu0 0
  %2795 = vmatpush1.bf16.msra.mxu0 0
  %2796 = vmatprep.subr.bf16.mxu0 0
  %2797 = vmatpush1.bf16.msra.mxu0 0
  %2798 = vmatprep.subr.bf16.mxu0 0
  %2799 = vmatpush1.bf16.msra.mxu0 0
  %2800 = vmatprep.subr.bf16.mxu0 0
  %2801 = vmatpush1.bf16.msra.mxu0 0
  %2802 = vmatprep.subr.bf16.mxu0 0
  %2803 = vmatpush1.bf16.msra.mxu0 0
  %2804 = vmatprep.subr.bf16.mxu0 0
  %2805 = vmatpush1.bf16.msra.mxu0 0
  %2806 = vmatprep.subr.bf16.mxu0 0
  %2807 = vmatpush1.bf16.msra.mxu0 0
  %2808 = vmatprep.subr.bf16.mxu0 0
  %2809 = vmatpush1.bf16.msra.mxu0 0
  %2810 = vmatprep.subr.bf16.mxu0 0
  %2811 = vmatpush1.bf16.msra.mxu0 0
  %2812 = vmatprep.subr.bf16.mxu0 0
  %2813 = vmatpush1.bf16.msra.mxu0 0
  %2814 = vmatprep.mubr.bf16.mxu0 0
  %2815 = vmatmul.mubr.bf16.gmra.mrb[0].mxu0 %v2484
  %v2816 = vpop.f32.mrb[0].mxu0
  %v2817 = vadd.f32 %v1452, %v2816
  %v2818 = vpop.f32.mrb[0].mxu0
  %v2819 = vadd.f32 %v1456, %v2818
  %v2820 = vpop.f32.mrb[0].mxu0
  %v2821 = vadd.f32 %v1452, %v2820
  %v2822 = vpop.f32.mrb[0].mxu0
  %v2823 = vadd.f32 %v1456, %v2822
  %2824 = vmatprep.mubr.bf16.mxu0 0
  %2825 = vmatmul.mubr.bf16.gmra.mrb[0].mxu0 %v2487
  %v2826 = vpop.f32.mrb[0].mxu0
  %v2827 = vadd.f32 %v1452, %v2826
  %v2828 = vpop.f32.mrb[0].mxu0
  %v2829 = vadd.f32 %v1456, %v2828
  %v2830 = vpop.f32.mrb[0].mxu0
  %v2831 = vadd.f32 %v1452, %v2830
  %v2832 = vpop.f32.mrb[0].mxu0
  %v2833 = vadd.f32 %v1456, %v2832
  %2834 = vmatprep.mubr.bf16.mxu0 0
  %2835 = vmatmul.mubr.bf16.gmra.mrb[0].mxu0 %v2490
  %v2836 = vpop.f32.mrb[0].mxu0
  %v2837 = vadd.f32 %v1452, %v2836
  %v2838 = vpop.f32.mrb[0].mxu0
  %v2839 = vadd.f32 %v1456, %v2838
  %v2840 = vpop.f32.mrb[0].mxu0
  %v2841 = vadd.f32 %v1452, %v2840
  %v2842 = vpop.f32.mrb[0].mxu0
  %v2843 = vadd.f32 %v1456, %v2842
  %2844 = vmatprep.mubr.bf16.mxu0 0
  %2845 = vmatmul.mubr.bf16.gmra.mrb[0].mxu0 %v2493
  %v2846 = vpop.f32.mrb[0].mxu0
  %v2847 = vadd.f32 %v1452, %v2846
  %v2848 = vpop.f32.mrb[0].mxu0
  %v2849 = vadd.f32 %v1456, %v2848
  %v2850 = vpop.f32.mrb[0].mxu0
  %v2851 = vadd.f32 %v1452, %v2850
  %v2852 = vpop.f32.mrb[0].mxu0
  %v2853 = vadd.f32 %v1456, %v2852
  %2854 = vmatprep.mubr.bf16.mxu0 0
  %2855 = vmatmul.mubr.bf16.gmra.mrb[0].mxu0 %v2496
  %v2856 = vpop.f32.mrb[0].mxu0
  %v2857 = vadd.f32 %v1452, %v2856
  %v2858 = vpop.f32.mrb[0].mxu0
  %v2859 = vadd.f32 %v1456, %v2858
  %v2860 = vpop.f32.mrb[0].mxu0
  %v2861 = vadd.f32 %v1452, %v2860
  %v2862 = vpop.f32.mrb[0].mxu0
  %v2863 = vadd.f32 %v1456, %v2862
  %2864 = vmatprep.mubr.bf16.mxu0 0
  %2865 = vmatmul.mubr.bf16.gmra.mrb[0].mxu0 %v2499
  %v2866 = vpop.f32.mrb[0].mxu0
  %v2867 = vadd.f32 %v1452, %v2866
  %v2868 = vpop.f32.mrb[0].mxu0
  %v2869 = vadd.f32 %v1456, %v2868
  %v2870 = vpop.f32.mrb[0].mxu0
  %v2871 = vadd.f32 %v1452, %v2870
  %v2872 = vpop.f32.mrb[0].mxu0
  %v2873 = vadd.f32 %v1456, %v2872
  %2874 = vmatprep.mubr.bf16.mxu0 0
  %2875 = vmatmul.mubr.bf16.gmra.mrb[0].mxu0 %v2502
  %v2876 = vpop.f32.mrb[0].mxu0
  %v2877 = vadd.f32 %v1452, %v2876
  %v2878 = vpop.f32.mrb[0].mxu0
  %v2879 = vadd.f32 %v1456, %v2878
  %v2880 = vpop.f32.mrb[0].mxu0
  %v2881 = vadd.f32 %v1452, %v2880
  %v2882 = vpop.f32.mrb[0].mxu0
  %v2883 = vadd.f32 %v1456, %v2882
  %2884 = vmatprep.mubr.bf16.mxu0 0
  %2885 = vmatmul.mubr.bf16.gmra.mrb[0].mxu0 %v2505
  %v2886 = vpop.f32.mrb[0].mxu0
  %v2887 = vadd.f32 %v1452, %v2886
  %v2888 = vpop.f32.mrb[0].mxu0
  %v2889 = vadd.f32 %v1456, %v2888
  %v2890 = vpop.f32.mrb[0].mxu0
  %v2891 = vadd.f32 %v1452, %v2890
  %v2892 = vpop.f32.mrb[0].mxu0
  %v2893 = vadd.f32 %v1456, %v2892
  %2894 = vdwg.mxu0
  %2895 = vmatprep.subr.bf16.mxu0 %v2530
  %2896 = vmatpush1.bf16.msra.mxu0 %v2527
  %2897 = vmatprep.subr.bf16.mxu0 0
  %2898 = vmatpush1.bf16.msra.mxu0 0
  %2899 = vmatprep.subr.bf16.mxu0 0
  %2900 = vmatpush1.bf16.msra.mxu0 0
  %2901 = vmatprep.subr.bf16.mxu0 0
  %2902 = vmatpush1.bf16.msra.mxu0 0
  %2903 = vmatprep.subr.bf16.mxu0 0
  %2904 = vmatpush1.bf16.msra.mxu0 0
  %2905 = vmatprep.subr.bf16.mxu0 0
  %2906 = vmatpush1.bf16.msra.mxu0 0
  %2907 = vmatprep.subr.bf16.mxu0 0
  %2908 = vmatpush1.bf16.msra.mxu0 0
  %2909 = vmatprep.subr.bf16.mxu0 0
  %2910 = vmatpush1.bf16.msra.mxu0 0
  %2911 = vmatprep.subr.bf16.mxu0 0
  %2912 = vmatpush1.bf16.msra.mxu0 0
  %2913 = vmatprep.subr.bf16.mxu0 0
  %2914 = vmatpush1.bf16.msra.mxu0 0
  %2915 = vmatprep.subr.bf16.mxu0 0
  %2916 = vmatpush1.bf16.msra.mxu0 0
  %2917 = vmatprep.subr.bf16.mxu0 0
  %2918 = vmatpush1.bf16.msra.mxu0 0
  %2919 = vmatprep.subr.bf16.mxu0 0
  %2920 = vmatpush1.bf16.msra.mxu0 0
  %2921 = vmatprep.subr.bf16.mxu0 0
  %2922 = vmatpush1.bf16.msra.mxu0 0
  %2923 = vmatprep.subr.bf16.mxu0 0
  %2924 = vmatpush1.bf16.msra.mxu0 0
  %2925 = vmatprep.subr.bf16.mxu0 0
  %2926 = vmatpush1.bf16.msra.mxu0 0
  %2927 = vmatprep.mubr.bf16.mxu0 0
  %2928 = vmatmul.mubr.bf16.gmra.mrb[0].mxu0 %v2484
  %v2929 = vpop.f32.mrb[0].mxu0
  %v2930 = vadd.f32 %v1460, %v2929
  %v2931 = vpop.f32.mrb[0].mxu0
  %v2932 = vadd.f32 %v1464, %v2931
  %v2933 = vpop.f32.mrb[0].mxu0
  %v2934 = vadd.f32 %v1460, %v2933
  %v2935 = vpop.f32.mrb[0].mxu0
  %v2936 = vadd.f32 %v1464, %v2935
  %2937 = vmatprep.mubr.bf16.mxu0 0
  %2938 = vmatmul.mubr.bf16.gmra.mrb[0].mxu0 %v2487
  %v2939 = vpop.f32.mrb[0].mxu0
  %v2940 = vadd.f32 %v1460, %v2939
  %v2941 = vpop.f32.mrb[0].mxu0
  %v2942 = vadd.f32 %v1464, %v2941
  %v2943 = vpop.f32.mrb[0].mxu0
  %v2944 = vadd.f32 %v1460, %v2943
  %v2945 = vpop.f32.mrb[0].mxu0
  %v2946 = vadd.f32 %v1464, %v2945
  %2947 = vmatprep.mubr.bf16.mxu0 0
  %2948 = vmatmul.mubr.bf16.gmra.mrb[0].mxu0 %v2490
  %v2949 = vpop.f32.mrb[0].mxu0
  %v2950 = vadd.f32 %v1460, %v2949
  %v2951 = vpop.f32.mrb[0].mxu0
  %v2952 = vadd.f32 %v1464, %v2951
  %v2953 = vpop.f32.mrb[0].mxu0
  %v2954 = vadd.f32 %v1460, %v2953
  %v2955 = vpop.f32.mrb[0].mxu0
  %v2956 = vadd.f32 %v1464, %v2955
  %2957 = vmatprep.mubr.bf16.mxu0 0
  %2958 = vmatmul.mubr.bf16.gmra.mrb[0].mxu0 %v2493
  %v2959 = vpop.f32.mrb[0].mxu0
  %v2960 = vadd.f32 %v1460, %v2959
  %v2961 = vpop.f32.mrb[0].mxu0
  %v2962 = vadd.f32 %v1464, %v2961
  %v2963 = vpop.f32.mrb[0].mxu0
  %v2964 = vadd.f32 %v1460, %v2963
  %v2965 = vpop.f32.mrb[0].mxu0
  %v2966 = vadd.f32 %v1464, %v2965
  %2967 = vmatprep.mubr.bf16.mxu0 0
  %2968 = vmatmul.mubr.bf16.gmra.mrb[0].mxu0 %v2496
  %v2969 = vpop.f32.mrb[0].mxu0
  %v2970 = vadd.f32 %v1460, %v2969
  %v2971 = vpop.f32.mrb[0].mxu0
  %v2972 = vadd.f32 %v1464, %v2971
  %v2973 = vpop.f32.mrb[0].mxu0
  %v2974 = vadd.f32 %v1460, %v2973
  %v2975 = vpop.f32.mrb[0].mxu0
  %v2976 = vadd.f32 %v1464, %v2975
  %2977 = vmatprep.mubr.bf16.mxu0 0
  %2978 = vmatmul.mubr.bf16.gmra.mrb[0].mxu0 %v2499
  %v2979 = vpop.f32.mrb[0].mxu0
  %v2980 = vadd.f32 %v1460, %v2979
  %v2981 = vpop.f32.mrb[0].mxu0
  %v2982 = vadd.f32 %v1464, %v2981
  %v2983 = vpop.f32.mrb[0].mxu0
  %v2984 = vadd.f32 %v1460, %v2983
  %v2985 = vpop.f32.mrb[0].mxu0
  %v2986 = vadd.f32 %v1464, %v2985
  %2987 = vmatprep.mubr.bf16.mxu0 0
  %2988 = vmatmul.mubr.bf16.gmra.mrb[0].mxu0 %v2502
  %v2989 = vpop.f32.mrb[0].mxu0
  %v2990 = vadd.f32 %v1460, %v2989
  %v2991 = vpop.f32.mrb[0].mxu0
  %v2992 = vadd.f32 %v1464, %v2991
  %v2993 = vpop.f32.mrb[0].mxu0
  %v2994 = vadd.f32 %v1460, %v2993
  %v2995 = vpop.f32.mrb[0].mxu0
  %v2996 = vadd.f32 %v1464, %v2995
  %2997 = vmatprep.mubr.bf16.mxu0 0
  %2998 = vmatmul.mubr.bf16.gmra.mrb[0].mxu0 %v2505
  %v2999 = vpop.f32.mrb[0].mxu0
  %v3000 = vadd.f32 %v1460, %v2999
  %v3001 = vpop.f32.mrb[0].mxu0
  %v3002 = vadd.f32 %v1464, %v3001
  %v3003 = vpop.f32.mrb[0].mxu0
  %v3004 = vadd.f32 %v1460, %v3003
  %v3005 = vpop.f32.mrb[0].mxu0
  %v3006 = vadd.f32 %v1464, %v3005
  %3007 = vdwg.mxu0
  %3008 = vmatprep.subr.bf16.mxu0 %v2536
  %3009 = vmatpush1.bf16.msra.mxu0 %v2533
  %3010 = vmatprep.subr.bf16.mxu0 0
  %3011 = vmatpush1.bf16.msra.mxu0 0
  %3012 = vmatprep.subr.bf16.mxu0 0
  %3013 = vmatpush1.bf16.msra.mxu0 0
  %3014 = vmatprep.subr.bf16.mxu0 0
  %3015 = vmatpush1.bf16.msra.mxu0 0
  %3016 = vmatprep.subr.bf16.mxu0 0
  %3017 = vmatpush1.bf16.msra.mxu0 0
  %3018 = vmatprep.subr.bf16.mxu0 0
  %3019 = vmatpush1.bf16.msra.mxu0 0
  %3020 = vmatprep.subr.bf16.mxu0 0
  %3021 = vmatpush1.bf16.msra.mxu0 0
  %3022 = vmatprep.subr.bf16.mxu0 0
  %3023 = vmatpush1.bf16.msra.mxu0 0
  %3024 = vmatprep.subr.bf16.mxu0 0
  %3025 = vmatpush1.bf16.msra.mxu0 0
  %3026 = vmatprep.subr.bf16.mxu0 0
  %3027 = vmatpush1.bf16.msra.mxu0 0
  %3028 = vmatprep.subr.bf16.mxu0 0
  %3029 = vmatpush1.bf16.msra.mxu0 0
  %3030 = vmatprep.subr.bf16.mxu0 0
  %3031 = vmatpush1.bf16.msra.mxu0 0
  %3032 = vmatprep.subr.bf16.mxu0 0
  %3033 = vmatpush1.bf16.msra.mxu0 0
  %3034 = vmatprep.subr.bf16.mxu0 0
  %3035 = vmatpush1.bf16.msra.mxu0 0
  %3036 = vmatprep.subr.bf16.mxu0 0
  %3037 = vmatpush1.bf16.msra.mxu0 0
  %3038 = vmatprep.subr.bf16.mxu0 0
  %3039 = vmatpush1.bf16.msra.mxu0 0
  %3040 = vmatprep.mubr.bf16.mxu0 0
  %3041 = vmatmul.mubr.bf16.gmra.mrb[0].mxu0 %v2484
  %v3042 = vpop.f32.mrb[0].mxu0
  %v3043 = vadd.f32 %v1468, %v3042
  %v3044 = vpop.f32.mrb[0].mxu0
  %v3045 = vadd.f32 %v1472, %v3044
  %v3046 = vpop.f32.mrb[0].mxu0
  %v3047 = vadd.f32 %v1468, %v3046
  %v3048 = vpop.f32.mrb[0].mxu0
  %v3049 = vadd.f32 %v1472, %v3048
  %3050 = vmatprep.mubr.bf16.mxu0 0
  %3051 = vmatmul.mubr.bf16.gmra.mrb[0].mxu0 %v2487
  %v3052 = vpop.f32.mrb[0].mxu0
  %v3053 = vadd.f32 %v1468, %v3052
  %v3054 = vpop.f32.mrb[0].mxu0
  %v3055 = vadd.f32 %v1472, %v3054
  %v3056 = vpop.f32.mrb[0].mxu0
  %v3057 = vadd.f32 %v1468, %v3056
  %v3058 = vpop.f32.mrb[0].mxu0
  %v3059 = vadd.f32 %v1472, %v3058
  %3060 = vmatprep.mubr.bf16.mxu0 0
  %3061 = vmatmul.mubr.bf16.gmra.mrb[0].mxu0 %v2490
  %v3062 = vpop.f32.mrb[0].mxu0
  %v3063 = vadd.f32 %v1468, %v3062
  %v3064 = vpop.f32.mrb[0].mxu0
  %v3065 = vadd.f32 %v1472, %v3064
  %v3066 = vpop.f32.mrb[0].mxu0
  %v3067 = vadd.f32 %v1468, %v3066
  %v3068 = vpop.f32.mrb[0].mxu0
  %v3069 = vadd.f32 %v1472, %v3068
  %3070 = vmatprep.mubr.bf16.mxu0 0
  %3071 = vmatmul.mubr.bf16.gmra.mrb[0].mxu0 %v2493
  %v3072 = vpop.f32.mrb[0].mxu0
  %v3073 = vadd.f32 %v1468, %v3072
  %v3074 = vpop.f32.mrb[0].mxu0
  %v3075 = vadd.f32 %v1472, %v3074
  %v3076 = vpop.f32.mrb[0].mxu0
  %v3077 = vadd.f32 %v1468, %v3076
  %v3078 = vpop.f32.mrb[0].mxu0
  %v3079 = vadd.f32 %v1472, %v3078
  %3080 = vmatprep.mubr.bf16.mxu0 0
  %3081 = vmatmul.mubr.bf16.gmra.mrb[0].mxu0 %v2496
  %v3082 = vpop.f32.mrb[0].mxu0
  %v3083 = vadd.f32 %v1468, %v3082
  %v3084 = vpop.f32.mrb[0].mxu0
  %v3085 = vadd.f32 %v1472, %v3084
  %v3086 = vpop.f32.mrb[0].mxu0
  %v3087 = vadd.f32 %v1468, %v3086
  %v3088 = vpop.f32.mrb[0].mxu0
  %v3089 = vadd.f32 %v1472, %v3088
  %3090 = vmatprep.mubr.bf16.mxu0 0
  %3091 = vmatmul.mubr.bf16.gmra.mrb[0].mxu0 %v2499
  %v3092 = vpop.f32.mrb[0].mxu0
  %v3093 = vadd.f32 %v1468, %v3092
  %v3094 = vpop.f32.mrb[0].mxu0
  %v3095 = vadd.f32 %v1472, %v3094
  %v3096 = vpop.f32.mrb[0].mxu0
  %v3097 = vadd.f32 %v1468, %v3096
  %v3098 = vpop.f32.mrb[0].mxu0
  %v3099 = vadd.f32 %v1472, %v3098
  %3100 = vmatprep.mubr.bf16.mxu0 0
  %3101 = vmatmul.mubr.bf16.gmra.mrb[0].mxu0 %v2502
  %v3102 = vpop.f32.mrb[0].mxu0
  %v3103 = vadd.f32 %v1468, %v3102
  %v3104 = vpop.f32.mrb[0].mxu0
  %v3105 = vadd.f32 %v1472, %v3104
  %v3106 = vpop.f32.mrb[0].mxu0
  %v3107 = vadd.f32 %v1468, %v3106
  %v3108 = vpop.f32.mrb[0].mxu0
  %v3109 = vadd.f32 %v1472, %v3108
  %3110 = vmatprep.mubr.bf16.mxu0 0
  %3111 = vmatmul.mubr.bf16.gmra.mrb[0].mxu0 %v2505
  %v3112 = vpop.f32.mrb[0].mxu0
  %v3113 = vadd.f32 %v1468, %v3112
  %v3114 = vpop.f32.mrb[0].mxu0
  %v3115 = vadd.f32 %v1472, %v3114
  %v3116 = vpop.f32.mrb[0].mxu0
  %v3117 = vadd.f32 %v1468, %v3116
  %v3118 = vpop.f32.mrb[0].mxu0
  %v3119 = vadd.f32 %v1472, %v3118
  %3120 = vdwg.mxu0
  %3121 = vmatprep.subr.bf16.mxu0 %v2542
  %3122 = vmatpush1.bf16.msra.mxu0 %v2539
  %3123 = vmatprep.subr.bf16.mxu0 0
  %3124 = vmatpush1.bf16.msra.mxu0 0
  %3125 = vmatprep.subr.bf16.mxu0 0
  %3126 = vmatpush1.bf16.msra.mxu0 0
  %3127 = vmatprep.subr.bf16.mxu0 0
  %3128 = vmatpush1.bf16.msra.mxu0 0
  %3129 = vmatprep.subr.bf16.mxu0 0
  %3130 = vmatpush1.bf16.msra.mxu0 0
  %3131 = vmatprep.subr.bf16.mxu0 0
  %3132 = vmatpush1.bf16.msra.mxu0 0
  %3133 = vmatprep.subr.bf16.mxu0 0
  %3134 = vmatpush1.bf16.msra.mxu0 0
  %3135 = vmatprep.subr.bf16.mxu0 0
  %3136 = vmatpush1.bf16.msra.mxu0 0
  %3137 = vmatprep.subr.bf16.mxu0 0
  %3138 = vmatpush1.bf16.msra.mxu0 0
  %3139 = vmatprep.subr.bf16.mxu0 0
  %3140 = vmatpush1.bf16.msra.mxu0 0
  %3141 = vmatprep.subr.bf16.mxu0 0
  %3142 = vmatpush1.bf16.msra.mxu0 0
  %3143 = vmatprep.subr.bf16.mxu0 0
  %3144 = vmatpush1.bf16.msra.mxu0 0
  %3145 = vmatprep.subr.bf16.mxu0 0
  %3146 = vmatpush1.bf16.msra.mxu0 0
  %3147 = vmatprep.subr.bf16.mxu0 0
  %3148 = vmatpush1.bf16.msra.mxu0 0
  %3149 = vmatprep.subr.bf16.mxu0 0
  %3150 = vmatpush1.bf16.msra.mxu0 0
  %3151 = vmatprep.subr.bf16.mxu0 0
  %3152 = vmatpush1.bf16.msra.mxu0 0
  %3153 = vmatprep.mubr.bf16.mxu0 0
  %3154 = vmatmul.mubr.bf16.gmra.mrb[0].mxu0 %v2484
  %v3155 = vpop.f32.mrb[0].mxu0
  %v3156 = vadd.f32 %v1476, %v3155
  %v3157 = vpop.f32.mrb[0].mxu0
  %v3158 = vadd.f32 %v1480, %v3157
  %v3159 = vpop.f32.mrb[0].mxu0
  %v3160 = vadd.f32 %v1476, %v3159
  %v3161 = vpop.f32.mrb[0].mxu0
  %v3162 = vadd.f32 %v1480, %v3161
  %3163 = vmatprep.mubr.bf16.mxu0 0
  %3164 = vmatmul.mubr.bf16.gmra.mrb[0].mxu0 %v2487
  %v3165 = vpop.f32.mrb[0].mxu0
  %v3166 = vadd.f32 %v1476, %v3165
  %v3167 = vpop.f32.mrb[0].mxu0
  %v3168 = vadd.f32 %v1480, %v3167
  %v3169 = vpop.f32.mrb[0].mxu0
  %v3170 = vadd.f32 %v1476, %v3169
  %v3171 = vpop.f32.mrb[0].mxu0
  %v3172 = vadd.f32 %v1480, %v3171
  %3173 = vmatprep.mubr.bf16.mxu0 0
  %3174 = vmatmul.mubr.bf16.gmra.mrb[0].mxu0 %v2490
  %v3175 = vpop.f32.mrb[0].mxu0
  %v3176 = vadd.f32 %v1476, %v3175
  %v3177 = vpop.f32.mrb[0].mxu0
  %v3178 = vadd.f32 %v1480, %v3177
  %v3179 = vpop.f32.mrb[0].mxu0
  %v3180 = vadd.f32 %v1476, %v3179
  %v3181 = vpop.f32.mrb[0].mxu0
  %v3182 = vadd.f32 %v1480, %v3181
  %3183 = vmatprep.mubr.bf16.mxu0 0
  %3184 = vmatmul.mubr.bf16.gmra.mrb[0].mxu0 %v2493
  %v3185 = vpop.f32.mrb[0].mxu0
  %v3186 = vadd.f32 %v1476, %v3185
  %v3187 = vpop.f32.mrb[0].mxu0
  %v3188 = vadd.f32 %v1480, %v3187
  %v3189 = vpop.f32.mrb[0].mxu0
  %v3190 = vadd.f32 %v1476, %v3189
  %v3191 = vpop.f32.mrb[0].mxu0
  %v3192 = vadd.f32 %v1480, %v3191
  %3193 = vmatprep.mubr.bf16.mxu0 0
  %3194 = vmatmul.mubr.bf16.gmra.mrb[0].mxu0 %v2496
  %v3195 = vpop.f32.mrb[0].mxu0
  %v3196 = vadd.f32 %v1476, %v3195
  %v3197 = vpop.f32.mrb[0].mxu0
  %v3198 = vadd.f32 %v1480, %v3197
  %v3199 = vpop.f32.mrb[0].mxu0
  %v3200 = vadd.f32 %v1476, %v3199
  %v3201 = vpop.f32.mrb[0].mxu0
  %v3202 = vadd.f32 %v1480, %v3201
  %3203 = vmatprep.mubr.bf16.mxu0 0
  %3204 = vmatmul.mubr.bf16.gmra.mrb[0].mxu0 %v2499
  %v3205 = vpop.f32.mrb[0].mxu0
  %v3206 = vadd.f32 %v1476, %v3205
  %v3207 = vpop.f32.mrb[0].mxu0
  %v3208 = vadd.f32 %v1480, %v3207
  %v3209 = vpop.f32.mrb[0].mxu0
  %v3210 = vadd.f32 %v1476, %v3209
  %v3211 = vpop.f32.mrb[0].mxu0
  %v3212 = vadd.f32 %v1480, %v3211
  %3213 = vmatprep.mubr.bf16.mxu0 0
  %3214 = vmatmul.mubr.bf16.gmra.mrb[0].mxu0 %v2502
  %v3215 = vpop.f32.mrb[0].mxu0
  %v3216 = vadd.f32 %v1476, %v3215
  %v3217 = vpop.f32.mrb[0].mxu0
  %v3218 = vadd.f32 %v1480, %v3217
  %v3219 = vpop.f32.mrb[0].mxu0
  %v3220 = vadd.f32 %v1476, %v3219
  %v3221 = vpop.f32.mrb[0].mxu0
  %v3222 = vadd.f32 %v1480, %v3221
  %3223 = vmatprep.mubr.bf16.mxu0 0
  %3224 = vmatmul.mubr.bf16.gmra.mrb[0].mxu0 %v2505
  %v3225 = vpop.f32.mrb[0].mxu0
  %v3226 = vadd.f32 %v1476, %v3225
  %v3227 = vpop.f32.mrb[0].mxu0
  %v3228 = vadd.f32 %v1480, %v3227
  %v3229 = vpop.f32.mrb[0].mxu0
  %v3230 = vadd.f32 %v1476, %v3229
  %v3231 = vpop.f32.mrb[0].mxu0
  %v3232 = vadd.f32 %v1480, %v3231
  %3233 = vdwg.mxu0
  %3234 = vmatprep.subr.bf16.mxu0 %v2548
  %3235 = vmatpush1.bf16.msra.mxu0 %v2545
  %3236 = vmatprep.subr.bf16.mxu0 0
  %3237 = vmatpush1.bf16.msra.mxu0 0
  %3238 = vmatprep.subr.bf16.mxu0 0
  %3239 = vmatpush1.bf16.msra.mxu0 0
  %3240 = vmatprep.subr.bf16.mxu0 0
  %3241 = vmatpush1.bf16.msra.mxu0 0
  %3242 = vmatprep.subr.bf16.mxu0 0
  %3243 = vmatpush1.bf16.msra.mxu0 0
  %3244 = vmatprep.subr.bf16.mxu0 0
  %3245 = vmatpush1.bf16.msra.mxu0 0
  %3246 = vmatprep.subr.bf16.mxu0 0
  %3247 = vmatpush1.bf16.msra.mxu0 0
  %3248 = vmatprep.subr.bf16.mxu0 0
  %3249 = vmatpush1.bf16.msra.mxu0 0
  %3250 = vmatprep.subr.bf16.mxu0 0
  %3251 = vmatpush1.bf16.msra.mxu0 0
  %3252 = vmatprep.subr.bf16.mxu0 0
  %3253 = vmatpush1.bf16.msra.mxu0 0
  %3254 = vmatprep.subr.bf16.mxu0 0
  %3255 = vmatpush1.bf16.msra.mxu0 0
  %3256 = vmatprep.subr.bf16.mxu0 0
  %3257 = vmatpush1.bf16.msra.mxu0 0
  %3258 = vmatprep.subr.bf16.mxu0 0
  %3259 = vmatpush1.bf16.msra.mxu0 0
  %3260 = vmatprep.subr.bf16.mxu0 0
  %3261 = vmatpush1.bf16.msra.mxu0 0
  %3262 = vmatprep.subr.bf16.mxu0 0
  %3263 = vmatpush1.bf16.msra.mxu0 0
  %3264 = vmatprep.subr.bf16.mxu0 0
  %3265 = vmatpush1.bf16.msra.mxu0 0
  %3266 = vmatprep.mubr.bf16.mxu0 0
  %3267 = vmatmul.mubr.bf16.gmra.mrb[0].mxu0 %v2484
  %v3268 = vpop.f32.mrb[0].mxu0
  %v3269 = vadd.f32 %v1484, %v3268
  %v3270 = vpop.f32.mrb[0].mxu0
  %v3271 = vadd.f32 %v1488, %v3270
  %v3272 = vpop.f32.mrb[0].mxu0
  %v3273 = vadd.f32 %v1484, %v3272
  %v3274 = vpop.f32.mrb[0].mxu0
  %v3275 = vadd.f32 %v1488, %v3274
  %3276 = vmatprep.mubr.bf16.mxu0 0
  %3277 = vmatmul.mubr.bf16.gmra.mrb[0].mxu0 %v2487
  %v3278 = vpop.f32.mrb[0].mxu0
  %v3279 = vadd.f32 %v1484, %v3278
  %v3280 = vpop.f32.mrb[0].mxu0
  %v3281 = vadd.f32 %v1488, %v3280
  %v3282 = vpop.f32.mrb[0].mxu0
  %v3283 = vadd.f32 %v1484, %v3282
  %v3284 = vpop.f32.mrb[0].mxu0
  %v3285 = vadd.f32 %v1488, %v3284
  %3286 = vmatprep.mubr.bf16.mxu0 0
  %3287 = vmatmul.mubr.bf16.gmra.mrb[0].mxu0 %v2490
  %v3288 = vpop.f32.mrb[0].mxu0
  %v3289 = vadd.f32 %v1484, %v3288
  %v3290 = vpop.f32.mrb[0].mxu0
  %v3291 = vadd.f32 %v1488, %v3290
  %v3292 = vpop.f32.mrb[0].mxu0
  %v3293 = vadd.f32 %v1484, %v3292
  %v3294 = vpop.f32.mrb[0].mxu0
  %v3295 = vadd.f32 %v1488, %v3294
  %3296 = vmatprep.mubr.bf16.mxu0 0
  %3297 = vmatmul.mubr.bf16.gmra.mrb[0].mxu0 %v2493
  %v3298 = vpop.f32.mrb[0].mxu0
  %v3299 = vadd.f32 %v1484, %v3298
  %v3300 = vpop.f32.mrb[0].mxu0
  %v3301 = vadd.f32 %v1488, %v3300
  %v3302 = vpop.f32.mrb[0].mxu0
  %v3303 = vadd.f32 %v1484, %v3302
  %v3304 = vpop.f32.mrb[0].mxu0
  %v3305 = vadd.f32 %v1488, %v3304
  %3306 = vmatprep.mubr.bf16.mxu0 0
  %3307 = vmatmul.mubr.bf16.gmra.mrb[0].mxu0 %v2496
  %v3308 = vpop.f32.mrb[0].mxu0
  %v3309 = vadd.f32 %v1484, %v3308
  %v3310 = vpop.f32.mrb[0].mxu0
  %v3311 = vadd.f32 %v1488, %v3310
  %v3312 = vpop.f32.mrb[0].mxu0
  %v3313 = vadd.f32 %v1484, %v3312
  %v3314 = vpop.f32.mrb[0].mxu0
  %v3315 = vadd.f32 %v1488, %v3314
  %3316 = vmatprep.mubr.bf16.mxu0 0
  %3317 = vmatmul.mubr.bf16.gmra.mrb[0].mxu0 %v2499
  %v3318 = vpop.f32.mrb[0].mxu0
  %v3319 = vadd.f32 %v1484, %v3318
  %v3320 = vpop.f32.mrb[0].mxu0
  %v3321 = vadd.f32 %v1488, %v3320
  %v3322 = vpop.f32.mrb[0].mxu0
  %v3323 = vadd.f32 %v1484, %v3322
  %v3324 = vpop.f32.mrb[0].mxu0
  %v3325 = vadd.f32 %v1488, %v3324
  %3326 = vmatprep.mubr.bf16.mxu0 0
  %3327 = vmatmul.mubr.bf16.gmra.mrb[0].mxu0 %v2502
  %v3328 = vpop.f32.mrb[0].mxu0
  %v3329 = vadd.f32 %v1484, %v3328
  %v3330 = vpop.f32.mrb[0].mxu0
  %v3331 = vadd.f32 %v1488, %v3330
  %v3332 = vpop.f32.mrb[0].mxu0
  %v3333 = vadd.f32 %v1484, %v3332
  %v3334 = vpop.f32.mrb[0].mxu0
  %v3335 = vadd.f32 %v1488, %v3334
  %3336 = vmatprep.mubr.bf16.mxu0 0
  %3337 = vmatmul.mubr.bf16.gmra.mrb[0].mxu0 %v2505
  %v3338 = vpop.f32.mrb[0].mxu0
  %v3339 = vadd.f32 %v1484, %v3338
  %v3340 = vpop.f32.mrb[0].mxu0
  %v3341 = vadd.f32 %v1488, %v3340
  %v3342 = vpop.f32.mrb[0].mxu0
  %v3343 = vadd.f32 %v1484, %v3342
  %v3344 = vpop.f32.mrb[0].mxu0
  %v3345 = vadd.f32 %v1488, %v3344
  %3346 = vdwg.mxu0
  %3347 = vmatprep.subr.bf16.mxu0 %v2554
  %3348 = vmatpush1.bf16.msra.mxu0 %v2551
  %3349 = vmatprep.subr.bf16.mxu0 0
  %3350 = vmatpush1.bf16.msra.mxu0 0
  %3351 = vmatprep.subr.bf16.mxu0 0
  %3352 = vmatpush1.bf16.msra.mxu0 0
  %3353 = vmatprep.subr.bf16.mxu0 0
  %3354 = vmatpush1.bf16.msra.mxu0 0
  %3355 = vmatprep.subr.bf16.mxu0 0
  %3356 = vmatpush1.bf16.msra.mxu0 0
  %3357 = vmatprep.subr.bf16.mxu0 0
  %3358 = vmatpush1.bf16.msra.mxu0 0
  %3359 = vmatprep.subr.bf16.mxu0 0
  %3360 = vmatpush1.bf16.msra.mxu0 0
  %3361 = vmatprep.subr.bf16.mxu0 0
  %3362 = vmatpush1.bf16.msra.mxu0 0
  %3363 = vmatprep.subr.bf16.mxu0 0
  %3364 = vmatpush1.bf16.msra.mxu0 0
  %3365 = vmatprep.subr.bf16.mxu0 0
  %3366 = vmatpush1.bf16.msra.mxu0 0
  %3367 = vmatprep.subr.bf16.mxu0 0
  %3368 = vmatpush1.bf16.msra.mxu0 0
  %3369 = vmatprep.subr.bf16.mxu0 0
  %3370 = vmatpush1.bf16.msra.mxu0 0
  %3371 = vmatprep.subr.bf16.mxu0 0
  %3372 = vmatpush1.bf16.msra.mxu0 0
  %3373 = vmatprep.subr.bf16.mxu0 0
  %3374 = vmatpush1.bf16.msra.mxu0 0
  %3375 = vmatprep.subr.bf16.mxu0 0
  %3376 = vmatpush1.bf16.msra.mxu0 0
  %3377 = vmatprep.subr.bf16.mxu0 0
  %3378 = vmatpush1.bf16.msra.mxu0 0
  %3379 = vmatprep.mubr.bf16.mxu0 0
  %3380 = vmatmul.mubr.bf16.gmra.mrb[0].mxu0 %v2484
  %v3381 = vpop.f32.mrb[0].mxu0
  %v3382 = vadd.f32 %v1492, %v3381
  %v3383 = vpop.f32.mrb[0].mxu0
  %v3384 = vadd.f32 %v1496, %v3383
  %v3385 = vpop.f32.mrb[0].mxu0
  %v3386 = vadd.f32 %v1492, %v3385
  %v3387 = vpop.f32.mrb[0].mxu0
  %v3388 = vadd.f32 %v1496, %v3387
  %3389 = vmatprep.mubr.bf16.mxu0 0
  %3390 = vmatmul.mubr.bf16.gmra.mrb[0].mxu0 %v2487
  %v3391 = vpop.f32.mrb[0].mxu0
  %v3392 = vadd.f32 %v1492, %v3391
  %v3393 = vpop.f32.mrb[0].mxu0
  %v3394 = vadd.f32 %v1496, %v3393
  %v3395 = vpop.f32.mrb[0].mxu0
  %v3396 = vadd.f32 %v1492, %v3395
  %v3397 = vpop.f32.mrb[0].mxu0
  %v3398 = vadd.f32 %v1496, %v3397
  %3399 = vmatprep.mubr.bf16.mxu0 0
  %3400 = vmatmul.mubr.bf16.gmra.mrb[0].mxu0 %v2490
  %v3401 = vpop.f32.mrb[0].mxu0
  %v3402 = vadd.f32 %v1492, %v3401
  %v3403 = vpop.f32.mrb[0].mxu0
  %v3404 = vadd.f32 %v1496, %v3403
  %v3405 = vpop.f32.mrb[0].mxu0
  %v3406 = vadd.f32 %v1492, %v3405
  %v3407 = vpop.f32.mrb[0].mxu0
  %v3408 = vadd.f32 %v1496, %v3407
  %3409 = vmatprep.mubr.bf16.mxu0 0
  %3410 = vmatmul.mubr.bf16.gmra.mrb[0].mxu0 %v2493
  %v3411 = vpop.f32.mrb[0].mxu0
  %v3412 = vadd.f32 %v1492, %v3411
  %v3413 = vpop.f32.mrb[0].mxu0
  %v3414 = vadd.f32 %v1496, %v3413
  %v3415 = vpop.f32.mrb[0].mxu0
  %v3416 = vadd.f32 %v1492, %v3415
  %v3417 = vpop.f32.mrb[0].mxu0
  %v3418 = vadd.f32 %v1496, %v3417
  %3419 = vmatprep.mubr.bf16.mxu0 0
  %3420 = vmatmul.mubr.bf16.gmra.mrb[0].mxu0 %v2496
  %v3421 = vpop.f32.mrb[0].mxu0
  %v3422 = vadd.f32 %v1492, %v3421
  %v3423 = vpop.f32.mrb[0].mxu0
  %v3424 = vadd.f32 %v1496, %v3423
  %v3425 = vpop.f32.mrb[0].mxu0
  %v3426 = vadd.f32 %v1492, %v3425
  %v3427 = vpop.f32.mrb[0].mxu0
  %v3428 = vadd.f32 %v1496, %v3427
  %3429 = vmatprep.mubr.bf16.mxu0 0
  %3430 = vmatmul.mubr.bf16.gmra.mrb[0].mxu0 %v2499
  %v3431 = vpop.f32.mrb[0].mxu0
  %v3432 = vadd.f32 %v1492, %v3431
  %v3433 = vpop.f32.mrb[0].mxu0
  %v3434 = vadd.f32 %v1496, %v3433
  %v3435 = vpop.f32.mrb[0].mxu0
  %v3436 = vadd.f32 %v1492, %v3435
  %v3437 = vpop.f32.mrb[0].mxu0
  %v3438 = vadd.f32 %v1496, %v3437
  %3439 = vmatprep.mubr.bf16.mxu0 0
  %3440 = vmatmul.mubr.bf16.gmra.mrb[0].mxu0 %v2502
  %v3441 = vpop.f32.mrb[0].mxu0
  %v3442 = vadd.f32 %v1492, %v3441
  %v3443 = vpop.f32.mrb[0].mxu0
  %v3444 = vadd.f32 %v1496, %v3443
  %v3445 = vpop.f32.mrb[0].mxu0
  %v3446 = vadd.f32 %v1492, %v3445
  %v3447 = vpop.f32.mrb[0].mxu0
  %v3448 = vadd.f32 %v1496, %v3447
  %3449 = vmatprep.mubr.bf16.mxu0 0
  %3450 = vmatmul.mubr.bf16.gmra.mrb[0].mxu0 %v2505
  %v3451 = vpop.f32.mrb[0].mxu0
  %v3452 = vadd.f32 %v1492, %v3451
  %v3453 = vpop.f32.mrb[0].mxu0
  %v3454 = vadd.f32 %v1496, %v3453
  %v3455 = vpop.f32.mrb[0].mxu0
  %v3456 = vadd.f32 %v1492, %v3455
  %v3457 = vpop.f32.mrb[0].mxu0
  %v3458 = vadd.f32 %v1496, %v3457
  %3459 = vdwg.mxu0
  %3460 = vst [vmem:[%s3] sm:$0xff] %v2591
  %3461 = vst [vmem:[%s3 + $0x8] sm:$0xff] %v2593
  %3462 = vst [vmem:[%s3 + $0x10] sm:$0xff] %v2704
  %3463 = vst [vmem:[%s3 + $0x18] sm:$0xff] %v2706
  %3464 = vst [vmem:[%s3 + $0x20] sm:$0xff] %v2817
  %3465 = vst [vmem:[%s3 + $0x28] sm:$0xff] %v2819
  %3466 = vst [vmem:[%s3 + $0x30] sm:$0xff] %v2930
  %3467 = vst [vmem:[%s3 + $0x38] sm:$0xff] %v2932
  %3468 = vst [vmem:[%s3 + $0x40] sm:$0xff] %v3043
  %3469 = vst [vmem:[%s3 + $0x48] sm:$0xff] %v3045
  %3470 = vst [vmem:[%s3 + $0x50] sm:$0xff] %v3156
  %3471 = vst [vmem:[%s3 + $0x58] sm:$0xff] %v3158
  %3472 = vst [vmem:[%s3 + $0x60] sm:$0xff] %v3269
  %3473 = vst [vmem:[%s3 + $0x68] sm:$0xff] %v3271
  %3474 = vst [vmem:[%s3 + $0x70] sm:$0xff] %v3382
  %3475 = vst [vmem:[%s3 + $0x78] sm:$0xff] %v3384
  %3476 = vst [vmem:[%s3 + $0x80] sm:$0xff] %v2595
  %3477 = vst [vmem:[%s3 + $0x88] sm:$0xff] %v2597
  %3478 = vst [vmem:[%s3 + $0x90] sm:$0xff] %v2708
  %3479 = vst [vmem:[%s3 + $0x98] sm:$0xff] %v2710
  %3480 = vst [vmem:[%s3 + $0xa0] sm:$0xff] %v2821
  %3481 = vst [vmem:[%s3 + $0xa8] sm:$0xff] %v2823
  %3482 = vst [vmem:[%s3 + $0xb0] sm:$0xff] %v2934
  %3483 = vst [vmem:[%s3 + $0xb8] sm:$0xff] %v2936
  %3484 = vst [vmem:[%s3 + $0xc0] sm:$0xff] %v3047
  %3485 = vst [vmem:[%s3 + $0xc8] sm:$0xff] %v3049
  %3486 = vst [vmem:[%s3 + $0xd0] sm:$0xff] %v3160
  %3487 = vst [vmem:[%s3 + $0xd8] sm:$0xff] %v3162
  %3488 = vst [vmem:[%s3 + $0xe0] sm:$0xff] %v3273
  %3489 = vst [vmem:[%s3 + $0xe8] sm:$0xff] %v3275
  %3490 = vst [vmem:[%s3 + $0xf0] sm:$0xff] %v3386
  %3491 = vst [vmem:[%s3 + $0xf8] sm:$0xff] %v3388
  %3492 = vst [vmem:[%s3 + $0x100] sm:$0xff] %v2601
  %3493 = vst [vmem:[%s3 + $0x108] sm:$0xff] %v2603
  %3494 = vst [vmem:[%s3 + $0x110] sm:$0xff] %v2714
  %3495 = vst [vmem:[%s3 + $0x118] sm:$0xff] %v2716
  %3496 = vst [vmem:[%s3 + $0x120] sm:$0xff] %v2827
  %3497 = vst [vmem:[%s3 + $0x128] sm:$0xff] %v2829
  %3498 = vst [vmem:[%s3 + $0x130] sm:$0xff] %v2940
  %3499 = vst [vmem:[%s3 + $0x138] sm:$0xff] %v2942
  %3500 = vst [vmem:[%s3 + $0x140] sm:$0xff] %v3053
  %3501 = vst [vmem:[%s3 + $0x148] sm:$0xff] %v3055
  %3502 = vst [vmem:[%s3 + $0x150] sm:$0xff] %v3166
  %3503 = vst [vmem:[%s3 + $0x158] sm:$0xff] %v3168
  %3504 = vst [vmem:[%s3 + $0x160] sm:$0xff] %v3279
  %3505 = vst [vmem:[%s3 + $0x168] sm:$0xff] %v3281
  %3506 = vst [vmem:[%s3 + $0x170] sm:$0xff] %v3392
  %3507 = vst [vmem:[%s3 + $0x178] sm:$0xff] %v3394
  %3508 = vst [vmem:[%s3 + $0x180] sm:$0xff] %v2605
  %3509 = vst [vmem:[%s3 + $0x188] sm:$0xff] %v2607
  %3510 = vst [vmem:[%s3 + $0x190] sm:$0xff] %v2718
  %3511 = vst [vmem:[%s3 + $0x198] sm:$0xff] %v2720
  %3512 = vst [vmem:[%s3 + $0x1a0] sm:$0xff] %v2831
  %3513 = vst [vmem:[%s3 + $0x1a8] sm:$0xff] %v2833
  %3514 = vst [vmem:[%s3 + $0x1b0] sm:$0xff] %v2944
  %3515 = vst [vmem:[%s3 + $0x1b8] sm:$0xff] %v2946
  %3516 = vst [vmem:[%s3 + $0x1c0] sm:$0xff] %v3057
  %3517 = vst [vmem:[%s3 + $0x1c8] sm:$0xff] %v3059
  %3518 = vst [vmem:[%s3 + $0x1d0] sm:$0xff] %v3170
  %3519 = vst [vmem:[%s3 + $0x1d8] sm:$0xff] %v3172
  %3520 = vst [vmem:[%s3 + $0x1e0] sm:$0xff] %v3283
  %3521 = vst [vmem:[%s3 + $0x1e8] sm:$0xff] %v3285
  %3522 = vst [vmem:[%s3 + $0x1f0] sm:$0xff] %v3396
  %3523 = vst [vmem:[%s3 + $0x1f8] sm:$0xff] %v3398
  %3524 = vst [vmem:[%s3 + $0x200] sm:$0xff] %v2611
  %3525 = vst [vmem:[%s3 + $0x208] sm:$0xff] %v2613
  %3526 = vst [vmem:[%s3 + $0x210] sm:$0xff] %v2724
  %3527 = vst [vmem:[%s3 + $0x218] sm:$0xff] %v2726
  %3528 = vst [vmem:[%s3 + $0x220] sm:$0xff] %v2837
  %3529 = vst [vmem:[%s3 + $0x228] sm:$0xff] %v2839
  %3530 = vst [vmem:[%s3 + $0x230] sm:$0xff] %v2950
  %3531 = vst [vmem:[%s3 + $0x238] sm:$0xff] %v2952
  %3532 = vst [vmem:[%s3 + $0x240] sm:$0xff] %v3063
  %3533 = vst [vmem:[%s3 + $0x248] sm:$0xff] %v3065
  %3534 = vst [vmem:[%s3 + $0x250] sm:$0xff] %v3176
  %3535 = vst [vmem:[%s3 + $0x258] sm:$0xff] %v3178
  %3536 = vst [vmem:[%s3 + $0x260] sm:$0xff] %v3289
  %3537 = vst [vmem:[%s3 + $0x268] sm:$0xff] %v3291
  %3538 = vst [vmem:[%s3 + $0x270] sm:$0xff] %v3402
  %3539 = vst [vmem:[%s3 + $0x278] sm:$0xff] %v3404
  %3540 = vst [vmem:[%s3 + $0x280] sm:$0xff] %v2615
  %3541 = vst [vmem:[%s3 + $0x288] sm:$0xff] %v2617
  %3542 = vst [vmem:[%s3 + $0x290] sm:$0xff] %v2728
  %3543 = vst [vmem:[%s3 + $0x298] sm:$0xff] %v2730
  %3544 = vst [vmem:[%s3 + $0x2a0] sm:$0xff] %v2841
  %3545 = vst [vmem:[%s3 + $0x2a8] sm:$0xff] %v2843
  %3546 = vst [vmem:[%s3 + $0x2b0] sm:$0xff] %v2954
  %3547 = vst [vmem:[%s3 + $0x2b8] sm:$0xff] %v2956
  %3548 = vst [vmem:[%s3 + $0x2c0] sm:$0xff] %v3067
  %3549 = vst [vmem:[%s3 + $0x2c8] sm:$0xff] %v3069
  %3550 = vst [vmem:[%s3 + $0x2d0] sm:$0xff] %v3180
  %3551 = vst [vmem:[%s3 + $0x2d8] sm:$0xff] %v3182
  %3552 = vst [vmem:[%s3 + $0x2e0] sm:$0xff] %v3293
  %3553 = vst [vmem:[%s3 + $0x2e8] sm:$0xff] %v3295
  %3554 = vst [vmem:[%s3 + $0x2f0] sm:$0xff] %v3406
  %3555 = vst [vmem:[%s3 + $0x2f8] sm:$0xff] %v3408
  %3556 = vst [vmem:[%s3 + $0x300] sm:$0xff] %v2621
  %3557 = vst [vmem:[%s3 + $0x308] sm:$0xff] %v2623
  %3558 = vst [vmem:[%s3 + $0x310] sm:$0xff] %v2734
  %3559 = vst [vmem:[%s3 + $0x318] sm:$0xff] %v2736
  %3560 = vst [vmem:[%s3 + $0x320] sm:$0xff] %v2847
  %3561 = vst [vmem:[%s3 + $0x328] sm:$0xff] %v2849
  %3562 = vst [vmem:[%s3 + $0x330] sm:$0xff] %v2960
  %3563 = vst [vmem:[%s3 + $0x338] sm:$0xff] %v2962
  %3564 = vst [vmem:[%s3 + $0x340] sm:$0xff] %v3073
  %3565 = vst [vmem:[%s3 + $0x348] sm:$0xff] %v3075
  %3566 = vst [vmem:[%s3 + $0x350] sm:$0xff] %v3186
  %3567 = vst [vmem:[%s3 + $0x358] sm:$0xff] %v3188
  %3568 = vst [vmem:[%s3 + $0x360] sm:$0xff] %v3299
  %3569 = vst [vmem:[%s3 + $0x368] sm:$0xff] %v3301
  %3570 = vst [vmem:[%s3 + $0x370] sm:$0xff] %v3412
  %3571 = vst [vmem:[%s3 + $0x378] sm:$0xff] %v3414
  %3572 = vst [vmem:[%s3 + $0x380] sm:$0xff] %v2625
  %3573 = vst [vmem:[%s3 + $0x388] sm:$0xff] %v2627
  %3574 = vst [vmem:[%s3 + $0x390] sm:$0xff] %v2738
  %3575 = vst [vmem:[%s3 + $0x398] sm:$0xff] %v2740
  %3576 = vst [vmem:[%s3 + $0x3a0] sm:$0xff] %v2851
  %3577 = vst [vmem:[%s3 + $0x3a8] sm:$0xff] %v2853
  %3578 = vst [vmem:[%s3 + $0x3b0] sm:$0xff] %v2964
  %3579 = vst [vmem:[%s3 + $0x3b8] sm:$0xff] %v2966
  %3580 = vst [vmem:[%s3 + $0x3c0] sm:$0xff] %v3077
  %3581 = vst [vmem:[%s3 + $0x3c8] sm:$0xff] %v3079
  %3582 = vst [vmem:[%s3 + $0x3d0] sm:$0xff] %v3190
  %3583 = vst [vmem:[%s3 + $0x3d8] sm:$0xff] %v3192
  %3584 = vst [vmem:[%s3 + $0x3e0] sm:$0xff] %v3303
  %3585 = vst [vmem:[%s3 + $0x3e8] sm:$0xff] %v3305
  %3586 = vst [vmem:[%s3 + $0x3f0] sm:$0xff] %v3416
  %3587 = vst [vmem:[%s3 + $0x3f8] sm:$0xff] %v3418
  %3588 = vst [vmem:[%s3 + $0x400] sm:$0xff] %v2631
  %3589 = vst [vmem:[%s3 + $0x408] sm:$0xff] %v2633
  %3590 = vst [vmem:[%s3 + $0x410] sm:$0xff] %v2744
  %3591 = vst [vmem:[%s3 + $0x418] sm:$0xff] %v2746
  %3592 = vst [vmem:[%s3 + $0x420] sm:$0xff] %v2857
  %3593 = vst [vmem:[%s3 + $0x428] sm:$0xff] %v2859
  %3594 = vst [vmem:[%s3 + $0x430] sm:$0xff] %v2970
  %3595 = vst [vmem:[%s3 + $0x438] sm:$0xff] %v2972
  %3596 = vst [vmem:[%s3 + $0x440] sm:$0xff] %v3083
  %3597 = vst [vmem:[%s3 + $0x448] sm:$0xff] %v3085
  %3598 = vst [vmem:[%s3 + $0x450] sm:$0xff] %v3196
  %3599 = vst [vmem:[%s3 + $0x458] sm:$0xff] %v3198
  %3600 = vst [vmem:[%s3 + $0x460] sm:$0xff] %v3309
  %3601 = vst [vmem:[%s3 + $0x468] sm:$0xff] %v3311
  %3602 = vst [vmem:[%s3 + $0x470] sm:$0xff] %v3422
  %3603 = vst [vmem:[%s3 + $0x478] sm:$0xff] %v3424
  %3604 = vst [vmem:[%s3 + $0x480] sm:$0xff] %v2635
  %3605 = vst [vmem:[%s3 + $0x488] sm:$0xff] %v2637
  %3606 = vst [vmem:[%s3 + $0x490] sm:$0xff] %v2748
  %3607 = vst [vmem:[%s3 + $0x498] sm:$0xff] %v2750
  %3608 = vst [vmem:[%s3 + $0x4a0] sm:$0xff] %v2861
  %3609 = vst [vmem:[%s3 + $0x4a8] sm:$0xff] %v2863
  %3610 = vst [vmem:[%s3 + $0x4b0] sm:$0xff] %v2974
  %3611 = vst [vmem:[%s3 + $0x4b8] sm:$0xff] %v2976
  %3612 = vst [vmem:[%s3 + $0x4c0] sm:$0xff] %v3087
  %3613 = vst [vmem:[%s3 + $0x4c8] sm:$0xff] %v3089
  %3614 = vst [vmem:[%s3 + $0x4d0] sm:$0xff] %v3200
  %3615 = vst [vmem:[%s3 + $0x4d8] sm:$0xff] %v3202
  %3616 = vst [vmem:[%s3 + $0x4e0] sm:$0xff] %v3313
  %3617 = vst [vmem:[%s3 + $0x4e8] sm:$0xff] %v3315
  %3618 = vst [vmem:[%s3 + $0x4f0] sm:$0xff] %v3426
  %3619 = vst [vmem:[%s3 + $0x4f8] sm:$0xff] %v3428
  %3620 = vst [vmem:[%s3 + $0x500] sm:$0xff] %v2641
  %3621 = vst [vmem:[%s3 + $0x508] sm:$0xff] %v2643
  %3622 = vst [vmem:[%s3 + $0x510] sm:$0xff] %v2754
  %3623 = vst [vmem:[%s3 + $0x518] sm:$0xff] %v2756
  %3624 = vst [vmem:[%s3 + $0x520] sm:$0xff] %v2867
  %3625 = vst [vmem:[%s3 + $0x528] sm:$0xff] %v2869
  %3626 = vst [vmem:[%s3 + $0x530] sm:$0xff] %v2980
  %3627 = vst [vmem:[%s3 + $0x538] sm:$0xff] %v2982
  %3628 = vst [vmem:[%s3 + $0x540] sm:$0xff] %v3093
  %3629 = vst [vmem:[%s3 + $0x548] sm:$0xff] %v3095
  %3630 = vst [vmem:[%s3 + $0x550] sm:$0xff] %v3206
  %3631 = vst [vmem:[%s3 + $0x558] sm:$0xff] %v3208
  %3632 = vst [vmem:[%s3 + $0x560] sm:$0xff] %v3319
  %3633 = vst [vmem:[%s3 + $0x568] sm:$0xff] %v3321
  %3634 = vst [vmem:[%s3 + $0x570] sm:$0xff] %v3432
  %3635 = vst [vmem:[%s3 + $0x578] sm:$0xff] %v3434
  %3636 = vst [vmem:[%s3 + $0x580] sm:$0xff] %v2645
  %3637 = vst [vmem:[%s3 + $0x588] sm:$0xff] %v2647
  %3638 = vst [vmem:[%s3 + $0x590] sm:$0xff] %v2758
  %3639 = vst [vmem:[%s3 + $0x598] sm:$0xff] %v2760
  %3640 = vst [vmem:[%s3 + $0x5a0] sm:$0xff] %v2871
  %3641 = vst [vmem:[%s3 + $0x5a8] sm:$0xff] %v2873
  %3642 = vst [vmem:[%s3 + $0x5b0] sm:$0xff] %v2984
  %3643 = vst [vmem:[%s3 + $0x5b8] sm:$0xff] %v2986
  %3644 = vst [vmem:[%s3 + $0x5c0] sm:$0xff] %v3097
  %3645 = vst [vmem:[%s3 + $0x5c8] sm:$0xff] %v3099
  %3646 = vst [vmem:[%s3 + $0x5d0] sm:$0xff] %v3210
  %3647 = vst [vmem:[%s3 + $0x5d8] sm:$0xff] %v3212
  %3648 = vst [vmem:[%s3 + $0x5e0] sm:$0xff] %v3323
  %3649 = vst [vmem:[%s3 + $0x5e8] sm:$0xff] %v3325
  %3650 = vst [vmem:[%s3 + $0x5f0] sm:$0xff] %v3436
  %3651 = vst [vmem:[%s3 + $0x5f8] sm:$0xff] %v3438
  %3652 = vst [vmem:[%s3 + $0x600] sm:$0xff] %v2651
  %3653 = vst [vmem:[%s3 + $0x608] sm:$0xff] %v2653
  %3654 = vst [vmem:[%s3 + $0x610] sm:$0xff] %v2764
  %3655 = vst [vmem:[%s3 + $0x618] sm:$0xff] %v2766
  %3656 = vst [vmem:[%s3 + $0x620] sm:$0xff] %v2877
  %3657 = vst [vmem:[%s3 + $0x628] sm:$0xff] %v2879
  %3658 = vst [vmem:[%s3 + $0x630] sm:$0xff] %v2990
  %3659 = vst [vmem:[%s3 + $0x638] sm:$0xff] %v2992
  %3660 = vst [vmem:[%s3 + $0x640] sm:$0xff] %v3103
  %3661 = vst [vmem:[%s3 + $0x648] sm:$0xff] %v3105
  %3662 = vst [vmem:[%s3 + $0x650] sm:$0xff] %v3216
  %3663 = vst [vmem:[%s3 + $0x658] sm:$0xff] %v3218
  %3664 = vst [vmem:[%s3 + $0x660] sm:$0xff] %v3329
  %3665 = vst [vmem:[%s3 + $0x668] sm:$0xff] %v3331
  %3666 = vst [vmem:[%s3 + $0x670] sm:$0xff] %v3442
  %3667 = vst [vmem:[%s3 + $0x678] sm:$0xff] %v3444
  %3668 = vst [vmem:[%s3 + $0x680] sm:$0xff] %v2655
  %3669 = vst [vmem:[%s3 + $0x688] sm:$0xff] %v2657
  %3670 = vst [vmem:[%s3 + $0x690] sm:$0xff] %v2768
  %3671 = vst [vmem:[%s3 + $0x698] sm:$0xff] %v2770
  %3672 = vst [vmem:[%s3 + $0x6a0] sm:$0xff] %v2881
  %3673 = vst [vmem:[%s3 + $0x6a8] sm:$0xff] %v2883
  %3674 = vst [vmem:[%s3 + $0x6b0] sm:$0xff] %v2994
  %3675 = vst [vmem:[%s3 + $0x6b8] sm:$0xff] %v2996
  %3676 = vst [vmem:[%s3 + $0x6c0] sm:$0xff] %v3107
  %3677 = vst [vmem:[%s3 + $0x6c8] sm:$0xff] %v3109
  %3678 = vst [vmem:[%s3 + $0x6d0] sm:$0xff] %v3220
  %3679 = vst [vmem:[%s3 + $0x6d8] sm:$0xff] %v3222
  %3680 = vst [vmem:[%s3 + $0x6e0] sm:$0xff] %v3333
  %3681 = vst [vmem:[%s3 + $0x6e8] sm:$0xff] %v3335
  %3682 = vst [vmem:[%s3 + $0x6f0] sm:$0xff] %v3446
  %3683 = vst [vmem:[%s3 + $0x6f8] sm:$0xff] %v3448
  %3684 = vst [vmem:[%s3 + $0x700] sm:$0xff] %v2661
  %3685 = vst [vmem:[%s3 + $0x708] sm:$0xff] %v2663
  %3686 = vst [vmem:[%s3 + $0x710] sm:$0xff] %v2774
  %3687 = vst [vmem:[%s3 + $0x718] sm:$0xff] %v2776
  %3688 = vst [vmem:[%s3 + $0x720] sm:$0xff] %v2887
  %3689 = vst [vmem:[%s3 + $0x728] sm:$0xff] %v2889
  %3690 = vst [vmem:[%s3 + $0x730] sm:$0xff] %v3000
  %3691 = vst [vmem:[%s3 + $0x738] sm:$0xff] %v3002
  %3692 = vst [vmem:[%s3 + $0x740] sm:$0xff] %v3113
  %3693 = vst [vmem:[%s3 + $0x748] sm:$0xff] %v3115
  %3694 = vst [vmem:[%s3 + $0x750] sm:$0xff] %v3226
  %3695 = vst [vmem:[%s3 + $0x758] sm:$0xff] %v3228
  %3696 = vst [vmem:[%s3 + $0x760] sm:$0xff] %v3339
  %3697 = vst [vmem:[%s3 + $0x768] sm:$0xff] %v3341
  %3698 = vst [vmem:[%s3 + $0x770] sm:$0xff] %v3452
  %3699 = vst [vmem:[%s3 + $0x778] sm:$0xff] %v3454
  %3700 = vst [vmem:[%s3 + $0x780] sm:$0xff] %v2665
  %3701 = vst [vmem:[%s3 + $0x788] sm:$0xff] %v2667
  %3702 = vst [vmem:[%s3 + $0x790] sm:$0xff] %v2778
  %3703 = vst [vmem:[%s3 + $0x798] sm:$0xff] %v2780
  %3704 = vst [vmem:[%s3 + $0x7a0] sm:$0xff] %v2891
  %3705 = vst [vmem:[%s3 + $0x7a8] sm:$0xff] %v2893
  %3706 = vst [vmem:[%s3 + $0x7b0] sm:$0xff] %v3004
  %3707 = vst [vmem:[%s3 + $0x7b8] sm:$0xff] %v3006
  %3708 = vst [vmem:[%s3 + $0x7c0] sm:$0xff] %v3117
  %3709 = vst [vmem:[%s3 + $0x7c8] sm:$0xff] %v3119
  %3710 = vst [vmem:[%s3 + $0x7d0] sm:$0xff] %v3230
  %3711 = vst [vmem:[%s3 + $0x7d8] sm:$0xff] %v3232
  %3712 = vst [vmem:[%s3 + $0x7e0] sm:$0xff] %v3343
  %3713 = vst [vmem:[%s3 + $0x7e8] sm:$0xff] %v3345
  %3714 = vst [vmem:[%s3 + $0x7f0] sm:$0xff] %v3456
  %3715 = vst [vmem:[%s3 + $0x7f8] sm:$0xff] %v3458
  // Predicated region
  $region14: #{corr_lstm_forward.4} parent=0 // pred_check
    _
  $region15: #{corr_lstm_forward.4} parent=0 // pred_check_branch
    %3717 = sbr.rel (0) target = $region17
  $region16: #{corr_lstm_forward.4} parent=0 // pred_region
    _
  $region17: #{corr_lstm_forward.4} parent=0 // pred_fallthru
    _
  // Predicated region
  $region18: #{corr_lstm_forward.4} parent=0 // pred_check
    _
  $region19: #{corr_lstm_forward.4} parent=0 // pred_check_branch
    %3719 = sbr.rel (0) target = $region21
  $region20: #{corr_lstm_forward.4} parent=0 // pred_region
    _
  $region21: #{corr_lstm_forward.4} parent=0 // pred_fallthru
    _

</llo_original>
